<compile_context>
chip_gen: v5e
topology: v5e:2x2
jax: 0.10.0
libtpu: 0.0.40
codegen_flags: <defaults>
</compile_context>

<pallas_src>
from functools import partial

import jax
import jax.numpy as jnp
from jax.experimental import pallas as pl
from jax.experimental.pallas import tpu as pltpu

# --- config consistent with the PyTorch module (small T / B for the demo) ---
N_EMBD = 384            # n_embd
N_HEADS = 6             # n_heads
HEAD_SIZE = N_EMBD // N_HEADS     # 64
SEQ_LEN = 16            # T  (<= block_size = 256)
BATCH = 2
FFN_HIDDEN = 4 * N_EMBD

# Exact-reciprocal fallback for the softmax denominator (review concern).
# approx=True uses the EUP vrcp slot; error ~1e-3 rel, within tolerance here.
SOFTMAX_APPROX_RECIP = True


def block_kernel(x_ref, ln1g_ref, ln1b_ref, wqkv_ref, wproj_ref, bproj_ref,
                 ln2g_ref, ln2b_ref, w1_ref, b1_ref, w2_ref, b2_ref,
                 o_ref, att_ref, *, batch, seq_len, n_heads, head_size,
                 approx_recip):
    x = x_ref[...]                                         # (B*T, D) f32

    def layernorm(v, g, b):
        mu = jnp.mean(v, axis=-1, keepdims=True)
        var = jnp.mean((v - mu) ** 2, axis=-1, keepdims=True)
        return (v - mu) * jax.lax.rsqrt(var + 1e-5) * g + b

    # ---- multi-head causal self-attention on LN1(x) ----
    ln1 = layernorm(x, ln1g_ref[...], ln1b_ref[...])       # (B*T, D) f32

    # Fused, lane-dense QKV projection (1/sqrt(hs) pre-folded into Q columns).
    qkv = jnp.dot(ln1.astype(jnp.bfloat16), wqkv_ref[...],
                  preferred_element_type=jnp.float32)      # (B*T, 3*H*hs)
    hh = n_heads * head_size
    q, k, v = qkv[:, :hh], qkv[:, hh:2 * hh], qkv[:, 2 * hh:]

    # Additive causal mask, built ONCE outside the loops.  Finite -1e30 (not
    # -inf): identical after max-subtraction + exp, but never yields NaN on a
    # fully-masked/padded row.
    row = jax.lax.broadcasted_iota(jnp.int32, (seq_len, seq_len), 0)
    col = jax.lax.broadcasted_iota(jnp.int32, (seq_len, seq_len), 1)
    neg_mask = jnp.where(row >= col, 0.0, -1e30).astype(jnp.float32)

    # Contract the last dims of q and k directly (no XLU transpose of k).
    dn = (((1,), (1,)), ((), ()))

    # Score blocks for every (b, h), stacked along the sublane axis so the
    # softmax chain below runs once for all heads/batches instead of B*H
    # times.
    # TODO(synk): at T=16 each block still only touches 16/128 lanes; a fully
    #             lane-dense softmax needs a (B*H, T, hs) activation layout,
    #             worthwhile once T grows toward block_size=256.
    score_blocks = []
    for b in range(batch):                    # static loops: B, H are tiny
        r0 = b * seq_len
        for h in range(n_heads):
            c0 = h * head_size
            q_bh = q[r0:r0 + seq_len, c0:c0 + head_size]
            k_bh = k[r0:r0 + seq_len, c0:c0 + head_size]
            s = jax.lax.dot_general(q_bh, k_bh, dn,
                                    preferred_element_type=jnp.float32)
            score_blocks.append(s + neg_mask)
    s_all = jnp.concatenate(score_blocks, axis=0)          # (B*H*T, T)

    # ONE max/exp/sum/reciprocal chain (row groups == (b, h, q-row) exactly
    # as in the per-head form, so semantics are unchanged).
    s_all = s_all - jnp.max(s_all, axis=-1, keepdims=True)
    p_all = jnp.exp(s_all)
    denom = jnp.sum(p_all, axis=-1, keepdims=True)
    if approx_recip:
        p_all = p_all * pl.reciprocal(denom, approx=True)
    else:
        p_all = p_all / denom

    # Per-(b,h) attention values, written into an aligned VMEM slab via ref
    # stores (replaces the jnp.concatenate relayout chain).
    # TODO(synk): odd-head q/k/v column slices start at lane offset 64 (not
    #             128-aligned) and still cost a small relayout each; the full
    #             fix is the (B*H, T, hs) layout noted above.
    for b in range(batch):
        r0 = b * seq_len
        for h in range(n_heads):
            c0 = h * head_size
            i = b * n_heads + h
            p_bh = p_all[i * seq_len:(i + 1) * seq_len, :]
            v_bh = v[r0:r0 + seq_len, c0:c0 + head_size]
            att_ref[r0:r0 + seq_len, c0:c0 + head_size] = jnp.dot(
                p_bh, v_bh, preferred_element_type=jnp.float32)

    # Single lane-dense output projection over the concatenated heads.
    att = att_ref[...]                                     # (B*T, H*hs) f32
    attn_out = jnp.dot(att.astype(jnp.bfloat16), wproj_ref[...],
                       preferred_element_type=jnp.float32) + bproj_ref[...]
    x1 = x + attn_out                                      # first residual

    # ---- FFN on LN2(x1) ----
    ln2 = layernorm(x1, ln2g_ref[...], ln2b_ref[...])
    h1 = jnp.dot(ln2.astype(jnp.bfloat16), w1_ref[...],
                 preferred_element_type=jnp.float32) + b1_ref[...]
    h1 = jnp.maximum(h1, 0.0)                              # ReLU
    ffn = jnp.dot(h1.astype(jnp.bfloat16), w2_ref[...],
                  preferred_element_type=jnp.float32) + b2_ref[...]

    o_ref[...] = (x1 + ffn).astype(o_ref.dtype)


def _pack_qkv(wqkv_per_head):
    """(H, D, 3*hs) per-head Linear weights -> fused (D, 3*H*hs).

    Q | K | V each occupy a contiguous H*hs lane slab; head h owns columns
    [h*hs, (h+1)*hs) within its slab.  1/sqrt(hs) is folded into the Q
    columns (exact only for power-of-two hs, asserted)."""
    hs = HEAD_SIZE
    assert hs & (hs - 1) == 0, "1/sqrt(hs) fold assumes power-of-two head size"

    def lay(w):                               # (H, D, hs) -> (D, H*hs)
        return jnp.transpose(w, (1, 0, 2)).reshape(N_EMBD, N_HEADS * hs)

    q = lay(wqkv_per_head[:, :, :hs]) * (1.0 / float(hs) ** 0.5)
    k = lay(wqkv_per_head[:, :, hs:2 * hs])
    v = lay(wqkv_per_head[:, :, 2 * hs:])
    return jnp.concatenate([q, k, v], axis=1)


def prepare_params(params):
    """One-time weight repack + bf16 cast, hoisted out of the per-step path.

    Call once at init and reuse the result; per forward step only the
    pallas_call inside (jitted) block_forward touches HBM."""
    bf16 = jnp.bfloat16
    row2d = lambda v: v.reshape(1, -1)
    packed = {
        "ln1_g": row2d(params["ln1_g"]), "ln1_b": row2d(params["ln1_b"]),
        "wqkv": _pack_qkv(params["wqkv"]).astype(bf16),     # (D, 3*H*hs)
        "wproj": params["wproj"].astype(bf16),              # (H*hs, D)
        "bproj": row2d(params["bproj"]),
        "ln2_g": row2d(params["ln2_g"]), "ln2_b": row2d(params["ln2_b"]),
        "w1": params["w1"].astype(bf16),                    # (D, 4D)
        "b1": row2d(params["b1"]),
        "w2": params["w2"].astype(bf16),                    # (4D, D)
        "b2": row2d(params["b2"]),
    }
    # Materialize now so the packing XLA ops never run in the hot path.
    return jax.tree_util.tree_map(jax.block_until_ready, packed)


@jax.jit
def block_forward(x, packed):
    """Hot-path forward: one pallas_call (plus free reshapes)."""
    B, T, D = x.shape
    kernel = partial(block_kernel, batch=B, seq_len=T, n_heads=N_HEADS,
                     head_size=HEAD_SIZE, approx_recip=SOFTMAX_APPROX_RECIP)
    vmem = pl.BlockSpec(memory_space=pltpu.MemorySpace.VMEM)  # whole array

    out = pl.pallas_call(
        kernel,
        out_shape=jax.ShapeDtypeStruct((B * T, D), x.dtype),
        in_specs=[vmem] * 12,
        out_specs=vmem,
        scratch_shapes=[pltpu.VMEM((B * T, N_HEADS * HEAD_SIZE), jnp.float32)],
    )(x.reshape(B * T, D),
      packed["ln1_g"], packed["ln1_b"],
      packed["wqkv"], packed["wproj"], packed["bproj"],
      packed["ln2_g"], packed["ln2_b"],
      packed["w1"], packed["b1"], packed["w2"], packed["b2"])
    return out.reshape(B, T, D)


def reference_forward(x, params):
    """Pure-JAX reference mirroring the PyTorch Block structure (per-head QKV,
    concat over heads, output projection, FFN).  Uses the same bf16 weights
    and bf16-input matmuls (f32 accumulation) as the kernel so the comparison
    isolates the Pallas lowering rather than dtype choices."""
    bf16 = jnp.bfloat16
    H, hs = N_HEADS, HEAD_SIZE
    T = x.shape[1]

    def ln(v, g, b):
        mu = jnp.mean(v, axis=-1, keepdims=True)
        var = jnp.mean((v - mu) ** 2, axis=-1, keepdims=True)
        return (v - mu) * jax.lax.rsqrt(var + 1e-5) * g + b

    x1 = ln(x, params["ln1_g"], params["ln1_b"])
    mask = jnp.tril(jnp.ones((T, T), bool))
    heads = []
    for h in range(H):
        w_h = params["wqkv"][h].astype(bf16)                    # (D, 3*hs)
        qkv = jnp.einsum("btd,de->bte", x1.astype(bf16), w_h,
                         preferred_element_type=jnp.float32)
        q, k, v = qkv[..., :hs], qkv[..., hs:2 * hs], qkv[..., 2 * hs:]
        wei = jnp.einsum("bqe,bke->bqk", q, k,
                         preferred_element_type=jnp.float32)
        wei = wei / jnp.sqrt(jnp.float32(hs))
        wei = jnp.where(mask, wei, -jnp.inf)
        wei = jax.nn.softmax(wei, axis=-1)
        heads.append(jnp.einsum("bqk,bke->bqe", wei, v,
                                preferred_element_type=jnp.float32))
    att = jnp.concatenate(heads, axis=-1)
    att = jnp.einsum("bte,ed->btd", att.astype(bf16),
                     params["wproj"].astype(bf16),
                     preferred_element_type=jnp.float32) + params["bproj"]
    xa = x + att
    x2 = ln(xa, params["ln2_g"], params["ln2_b"])
    ff = jnp.einsum("btd,dh->bth", x2.astype(bf16),
                    params["w1"].astype(bf16),
                    preferred_element_type=jnp.float32) + params["b1"]
    ff = jnp.maximum(ff, 0.0)
    ff = jnp.einsum("bth,hd->btd", ff.astype(bf16),
                    params["w2"].astype(bf16),
                    preferred_element_type=jnp.float32) + params["b2"]
    return xa + ff


def init_params(key):
    ks = jax.random.split(key, 9)
    s = 0.02
    D, H, hs, F = N_EMBD, N_HEADS, HEAD_SIZE, FFN_HIDDEN
    return {
        "ln1_g": 1.0 + 0.1 * jax.random.normal(ks[0], (D,), jnp.float32),
        "ln1_b": 0.1 * jax.random.normal(ks[1], (D,), jnp.float32),
        "wqkv": s * jax.random.normal(ks[2], (H, D, 3 * hs), jnp.float32),
        "wproj": s * jax.random.normal(ks[3], (H * hs, D), jnp.float32),
        "bproj": s * jax.random.normal(ks[4], (D,), jnp.float32),
        "ln2_g": 1.0 + 0.1 * jax.random.normal(ks[5], (D,), jnp.float32),
        "ln2_b": 0.1 * jax.random.normal(ks[6], (D,), jnp.float32),
        "w1": s * jax.random.normal(ks[7], (D, F), jnp.float32),
        "b1": jnp.zeros((F,), jnp.float32),
        "w2": s * jax.random.normal(ks[8], (F, D), jnp.float32),
        "b2": jnp.zeros((D,), jnp.float32),
    }


if __name__ == "__main__":
    key = jax.random.PRNGKey(0)
    k_x, k_p = jax.random.split(key)
    x = jax.random.normal(k_x, (BATCH, SEQ_LEN, N_EMBD), jnp.float32)
    params = init_params(k_p)

    packed = prepare_params(params)      # one-time pack/cast (off hot path)

    out = jax.block_until_ready(block_forward(x, packed))
    ref = reference_forward(x, params)

    assert out.shape == ref.shape == (BATCH, SEQ_LEN, N_EMBD)
    err = jnp.max(jnp.abs(out - ref))
    assert jnp.allclose(out, ref, atol=2e-3, rtol=2e-3), f"max abs err {err}"

    print("KERNEL_OK")
</pallas_src>

<mosaic_0001>
module attributes {stable_mosaic.version = 11 : i64} {
  func.func @block_kernel(%arg0: memref<32x384xf32, #tpu.memory_space<vmem>>, %arg1: memref<1x384xf32, #tpu.memory_space<vmem>>, %arg2: memref<1x384xf32, #tpu.memory_space<vmem>>, %arg3: memref<384x1152xbf16, #tpu.memory_space<vmem>>, %arg4: memref<384x384xbf16, #tpu.memory_space<vmem>>, %arg5: memref<1x384xf32, #tpu.memory_space<vmem>>, %arg6: memref<1x384xf32, #tpu.memory_space<vmem>>, %arg7: memref<1x384xf32, #tpu.memory_space<vmem>>, %arg8: memref<384x1536xbf16, #tpu.memory_space<vmem>>, %arg9: memref<1x1536xf32, #tpu.memory_space<vmem>>, %arg10: memref<1536x384xbf16, #tpu.memory_space<vmem>>, %arg11: memref<1x384xf32, #tpu.memory_space<vmem>>, %arg12: memref<32x384xf32, #tpu.memory_space<vmem>>, %arg13: memref<32x384xf32, #tpu.memory_space<vmem>>) attributes {dimension_semantics = [], scalar_prefetch = 0 : i64, scratch_operands = 1 : i64, tpu.core_type = #tpu.core_type<tc>} {
    %c0 = arith.constant 0 : index
    %c0_0 = arith.constant 0 : index
    %0 = vector.load %arg0[%c0, %c0_0] : memref<32x384xf32, #tpu.memory_space<vmem>>, vector<32x384xf32>
    %c0_1 = arith.constant 0 : index
    %c0_2 = arith.constant 0 : index
    %1 = vector.load %arg1[%c0_1, %c0_2] : memref<1x384xf32, #tpu.memory_space<vmem>>, vector<1x384xf32>
    %c0_3 = arith.constant 0 : index
    %c0_4 = arith.constant 0 : index
    %2 = vector.load %arg2[%c0_3, %c0_4] : memref<1x384xf32, #tpu.memory_space<vmem>>, vector<1x384xf32>
    %cst = arith.constant dense<0.000000e+00> : vector<32xf32>
    %3 = vector.multi_reduction <add>, %0, %cst [1] : vector<32x384xf32> to vector<32xf32>
    %4 = vector.shape_cast %3 : vector<32xf32> to vector<32x1xf32>
    %cst_5 = arith.constant 3.840000e+02 : f32
    %5 = vector.broadcast %cst_5 : f32 to vector<32x1xf32>
    %6 = arith.divf %4, %5 : vector<32x1xf32>
    %7 = vector.broadcast %6 : vector<32x1xf32> to vector<32x384xf32>
    %8 = arith.subf %0, %7 : vector<32x384xf32>
    %9 = arith.mulf %8, %8 : vector<32x384xf32>
    %cst_6 = arith.constant dense<0.000000e+00> : vector<32xf32>
    %10 = vector.multi_reduction <add>, %9, %cst_6 [1] : vector<32x384xf32> to vector<32xf32>
    %11 = vector.shape_cast %10 : vector<32xf32> to vector<32x1xf32>
    %cst_7 = arith.constant 3.840000e+02 : f32
    %12 = vector.broadcast %cst_7 : f32 to vector<32x1xf32>
    %13 = arith.divf %11, %12 : vector<32x1xf32>
    %14 = vector.broadcast %6 : vector<32x1xf32> to vector<32x384xf32>
    %15 = arith.subf %0, %14 : vector<32x384xf32>
    %cst_8 = arith.constant 9.99999974E-6 : f32
    %16 = vector.broadcast %cst_8 : f32 to vector<32x1xf32>
    %17 = arith.addf %13, %16 : vector<32x1xf32>
    %18 = math.rsqrt %17 : vector<32x1xf32>
    %19 = vector.broadcast %18 : vector<32x1xf32> to vector<32x384xf32>
    %20 = arith.mulf %15, %19 : vector<32x384xf32>
    %21 = vector.broadcast %1 : vector<1x384xf32> to vector<32x384xf32>
    %22 = arith.mulf %20, %21 : vector<32x384xf32>
    %23 = vector.broadcast %2 : vector<1x384xf32> to vector<32x384xf32>
    %24 = arith.addf %22, %23 : vector<32x384xf32>
    %25 = arith.truncf %24 : vector<32x384xf32> to vector<32x384xbf16>
    %c0_9 = arith.constant 0 : index
    %c0_10 = arith.constant 0 : index
    %26 = vector.load %arg3[%c0_9, %c0_10] : memref<384x1152xbf16, #tpu.memory_space<vmem>>, vector<384x1152xbf16>
    %cst_11 = arith.constant dense<0.000000e+00> : vector<32x1152xf32>
    %27 = tpu.matmul %25, %26, %cst_11 {dimension_numbers = #tpu.dot_dimension_numbers<[1], [0], [0], [1], [0, 0, 1, 1], [], []>} : vector<32x384xbf16>, vector<384x1152xbf16>, vector<32x1152xf32> -> vector<32x1152xf32>
    %28 = vector.extract_strided_slice %27 {offsets = [0, 0], sizes = [32, 384], strides = [1, 1]} : vector<32x1152xf32> to vector<32x384xf32>
    %29 = vector.extract_strided_slice %27 {offsets = [0, 384], sizes = [32, 384], strides = [1, 1]} : vector<32x1152xf32> to vector<32x384xf32>
    %30 = vector.extract_strided_slice %27 {offsets = [0, 768], sizes = [32, 384], strides = [1, 1]} : vector<32x1152xf32> to vector<32x384xf32>
    %31 = tpu.iota {dimensions = array<i32: 0>} : vector<16x16xi32>
    %32 = tpu.iota {dimensions = array<i32: 1>} : vector<16x16xi32>
    %33 = arith.cmpi sge, %31, %32 : vector<16x16xi32>
    %cst_12 = arith.constant 0.000000e+00 : f32
    %cst_13 = arith.constant -1.000000e+30 : f32
    %34 = vector.broadcast %cst_12 : f32 to vector<16x16xf32>
    %35 = vector.broadcast %cst_13 : f32 to vector<16x16xf32>
    %36 = arith.select %33, %34, %35 : vector<16x16xi1>, vector<16x16xf32>
    %37 = vector.extract_strided_slice %28 {offsets = [0, 0], sizes = [16, 64], strides = [1, 1]} : vector<32x384xf32> to vector<16x64xf32>
    %38 = vector.extract_strided_slice %29 {offsets = [0, 0], sizes = [16, 64], strides = [1, 1]} : vector<32x384xf32> to vector<16x64xf32>
    %cst_14 = arith.constant dense<0.000000e+00> : vector<16x16xf32>
    %39 = tpu.matmul %37, %38, %cst_14 {dimension_numbers = #tpu.dot_dimension_numbers<[1], [1], [0], [0], [0, 0, 1, 0], [], []>} : vector<16x64xf32>, vector<16x64xf32>, vector<16x16xf32> -> vector<16x16xf32>
    %40 = arith.addf %39, %36 : vector<16x16xf32>
    %41 = vector.extract_strided_slice %28 {offsets = [0, 64], sizes = [16, 64], strides = [1, 1]} : vector<32x384xf32> to vector<16x64xf32>
    %42 = vector.extract_strided_slice %29 {offsets = [0, 64], sizes = [16, 64], strides = [1, 1]} : vector<32x384xf32> to vector<16x64xf32>
    %cst_15 = arith.constant dense<0.000000e+00> : vector<16x16xf32>
    %43 = tpu.matmul %41, %42, %cst_15 {dimension_numbers = #tpu.dot_dimension_numbers<[1], [1], [0], [0], [0, 0, 1, 0], [], []>} : vector<16x64xf32>, vector<16x64xf32>, vector<16x16xf32> -> vector<16x16xf32>
    %44 = arith.addf %43, %36 : vector<16x16xf32>
    %45 = vector.extract_strided_slice %28 {offsets = [0, 128], sizes = [16, 64], strides = [1, 1]} : vector<32x384xf32> to vector<16x64xf32>
    %46 = vector.extract_strided_slice %29 {offsets = [0, 128], sizes = [16, 64], strides = [1, 1]} : vector<32x384xf32> to vector<16x64xf32>
    %cst_16 = arith.constant dense<0.000000e+00> : vector<16x16xf32>
    %47 = tpu.matmul %45, %46, %cst_16 {dimension_numbers = #tpu.dot_dimension_numbers<[1], [1], [0], [0], [0, 0, 1, 0], [], []>} : vector<16x64xf32>, vector<16x64xf32>, vector<16x16xf32> -> vector<16x16xf32>
    %48 = arith.addf %47, %36 : vector<16x16xf32>
    %49 = vector.extract_strided_slice %28 {offsets = [0, 192], sizes = [16, 64], strides = [1, 1]} : vector<32x384xf32> to vector<16x64xf32>
    %50 = vector.extract_strided_slice %29 {offsets = [0, 192], sizes = [16, 64], strides = [1, 1]} : vector<32x384xf32> to vector<16x64xf32>
    %cst_17 = arith.constant dense<0.000000e+00> : vector<16x16xf32>
    %51 = tpu.matmul %49, %50, %cst_17 {dimension_numbers = #tpu.dot_dimension_numbers<[1], [1], [0], [0], [0, 0, 1, 0], [], []>} : vector<16x64xf32>, vector<16x64xf32>, vector<16x16xf32> -> vector<16x16xf32>
    %52 = arith.addf %51, %36 : vector<16x16xf32>
    %53 = vector.extract_strided_slice %28 {offsets = [0, 256], sizes = [16, 64], strides = [1, 1]} : vector<32x384xf32> to vector<16x64xf32>
    %54 = vector.extract_strided_slice %29 {offsets = [0, 256], sizes = [16, 64], strides = [1, 1]} : vector<32x384xf32> to vector<16x64xf32>
    %cst_18 = arith.constant dense<0.000000e+00> : vector<16x16xf32>
    %55 = tpu.matmul %53, %54, %cst_18 {dimension_numbers = #tpu.dot_dimension_numbers<[1], [1], [0], [0], [0, 0, 1, 0], [], []>} : vector<16x64xf32>, vector<16x64xf32>, vector<16x16xf32> -> vector<16x16xf32>
    %56 = arith.addf %55, %36 : vector<16x16xf32>
    %57 = vector.extract_strided_slice %28 {offsets = [0, 320], sizes = [16, 64], strides = [1, 1]} : vector<32x384xf32> to vector<16x64xf32>
    %58 = vector.extract_strided_slice %29 {offsets = [0, 320], sizes = [16, 64], strides = [1, 1]} : vector<32x384xf32> to vector<16x64xf32>
    %cst_19 = arith.constant dense<0.000000e+00> : vector<16x16xf32>
    %59 = tpu.matmul %57, %58, %cst_19 {dimension_numbers = #tpu.dot_dimension_numbers<[1], [1], [0], [0], [0, 0, 1, 0], [], []>} : vector<16x64xf32>, vector<16x64xf32>, vector<16x16xf32> -> vector<16x16xf32>
    %60 = arith.addf %59, %36 : vector<16x16xf32>
    %61 = vector.extract_strided_slice %28 {offsets = [16, 0], sizes = [16, 64], strides = [1, 1]} : vector<32x384xf32> to vector<16x64xf32>
    %62 = vector.extract_strided_slice %29 {offsets = [16, 0], sizes = [16, 64], strides = [1, 1]} : vector<32x384xf32> to vector<16x64xf32>
    %cst_20 = arith.constant dense<0.000000e+00> : vector<16x16xf32>
    %63 = tpu.matmul %61, %62, %cst_20 {dimension_numbers = #tpu.dot_dimension_numbers<[1], [1], [0], [0], [0, 0, 1, 0], [], []>} : vector<16x64xf32>, vector<16x64xf32>, vector<16x16xf32> -> vector<16x16xf32>
    %64 = arith.addf %63, %36 : vector<16x16xf32>
    %65 = vector.extract_strided_slice %28 {offsets = [16, 64], sizes = [16, 64], strides = [1, 1]} : vector<32x384xf32> to vector<16x64xf32>
    %66 = vector.extract_strided_slice %29 {offsets = [16, 64], sizes = [16, 64], strides = [1, 1]} : vector<32x384xf32> to vector<16x64xf32>
    %cst_21 = arith.constant dense<0.000000e+00> : vector<16x16xf32>
    %67 = tpu.matmul %65, %66, %cst_21 {dimension_numbers = #tpu.dot_dimension_numbers<[1], [1], [0], [0], [0, 0, 1, 0], [], []>} : vector<16x64xf32>, vector<16x64xf32>, vector<16x16xf32> -> vector<16x16xf32>
    %68 = arith.addf %67, %36 : vector<16x16xf32>
    %69 = vector.extract_strided_slice %28 {offsets = [16, 128], sizes = [16, 64], strides = [1, 1]} : vector<32x384xf32> to vector<16x64xf32>
    %70 = vector.extract_strided_slice %29 {offsets = [16, 128], sizes = [16, 64], strides = [1, 1]} : vector<32x384xf32> to vector<16x64xf32>
    %cst_22 = arith.constant dense<0.000000e+00> : vector<16x16xf32>
    %71 = tpu.matmul %69, %70, %cst_22 {dimension_numbers = #tpu.dot_dimension_numbers<[1], [1], [0], [0], [0, 0, 1, 0], [], []>} : vector<16x64xf32>, vector<16x64xf32>, vector<16x16xf32> -> vector<16x16xf32>
    %72 = arith.addf %71, %36 : vector<16x16xf32>
    %73 = vector.extract_strided_slice %28 {offsets = [16, 192], sizes = [16, 64], strides = [1, 1]} : vector<32x384xf32> to vector<16x64xf32>
    %74 = vector.extract_strided_slice %29 {offsets = [16, 192], sizes = [16, 64], strides = [1, 1]} : vector<32x384xf32> to vector<16x64xf32>
    %cst_23 = arith.constant dense<0.000000e+00> : vector<16x16xf32>
    %75 = tpu.matmul %73, %74, %cst_23 {dimension_numbers = #tpu.dot_dimension_numbers<[1], [1], [0], [0], [0, 0, 1, 0], [], []>} : vector<16x64xf32>, vector<16x64xf32>, vector<16x16xf32> -> vector<16x16xf32>
    %76 = arith.addf %75, %36 : vector<16x16xf32>
    %77 = vector.extract_strided_slice %28 {offsets = [16, 256], sizes = [16, 64], strides = [1, 1]} : vector<32x384xf32> to vector<16x64xf32>
    %78 = vector.extract_strided_slice %29 {offsets = [16, 256], sizes = [16, 64], strides = [1, 1]} : vector<32x384xf32> to vector<16x64xf32>
    %cst_24 = arith.constant dense<0.000000e+00> : vector<16x16xf32>
    %79 = tpu.matmul %77, %78, %cst_24 {dimension_numbers = #tpu.dot_dimension_numbers<[1], [1], [0], [0], [0, 0, 1, 0], [], []>} : vector<16x64xf32>, vector<16x64xf32>, vector<16x16xf32> -> vector<16x16xf32>
    %80 = arith.addf %79, %36 : vector<16x16xf32>
    %81 = vector.extract_strided_slice %28 {offsets = [16, 320], sizes = [16, 64], strides = [1, 1]} : vector<32x384xf32> to vector<16x64xf32>
    %82 = vector.extract_strided_slice %29 {offsets = [16, 320], sizes = [16, 64], strides = [1, 1]} : vector<32x384xf32> to vector<16x64xf32>
    %cst_25 = arith.constant dense<0.000000e+00> : vector<16x16xf32>
    %83 = tpu.matmul %81, %82, %cst_25 {dimension_numbers = #tpu.dot_dimension_numbers<[1], [1], [0], [0], [0, 0, 1, 0], [], []>} : vector<16x64xf32>, vector<16x64xf32>, vector<16x16xf32> -> vector<16x16xf32>
    %84 = arith.addf %83, %36 : vector<16x16xf32>
    %85 = tpu.concatenate %40, %44, %48, %52, %56, %60, %64, %68, %72, %76, %80, %84 in 0 : vector<16x16xf32>, vector<16x16xf32>, vector<16x16xf32>, vector<16x16xf32>, vector<16x16xf32>, vector<16x16xf32>, vector<16x16xf32>, vector<16x16xf32>, vector<16x16xf32>, vector<16x16xf32>, vector<16x16xf32>, vector<16x16xf32> -> vector<192x16xf32>
    %cst_26 = arith.constant dense<0xFF800000> : vector<192xf32>
    %86 = vector.multi_reduction <maximumf>, %85, %cst_26 [1] : vector<192x16xf32> to vector<192xf32>
    %87 = vector.shape_cast %86 : vector<192xf32> to vector<192x1xf32>
    %88 = vector.broadcast %87 : vector<192x1xf32> to vector<192x16xf32>
    %89 = arith.subf %85, %88 : vector<192x16xf32>
    %90 = math.exp %89 : vector<192x16xf32>
    %cst_27 = arith.constant dense<0.000000e+00> : vector<192xf32>
    %91 = vector.multi_reduction <add>, %90, %cst_27 [1] : vector<192x16xf32> to vector<192xf32>
    %92 = vector.shape_cast %91 : vector<192xf32> to vector<192x1xf32>
    %93 = tpu.reciprocal %92 {approx = true} : vector<192x1xf32> -> vector<192x1xf32>
    %94 = vector.broadcast %93 : vector<192x1xf32> to vector<192x16xf32>
    %95 = arith.mulf %90, %94 : vector<192x16xf32>
    %96 = vector.extract_strided_slice %95 {offsets = [0, 0], sizes = [16, 16], strides = [1, 1]} : vector<192x16xf32> to vector<16x16xf32>
    %97 = vector.extract_strided_slice %30 {offsets = [0, 0], sizes = [16, 64], strides = [1, 1]} : vector<32x384xf32> to vector<16x64xf32>
    %cst_28 = arith.constant dense<0.000000e+00> : vector<16x64xf32>
    %98 = tpu.matmul %96, %97, %cst_28 {dimension_numbers = #tpu.dot_dimension_numbers<[1], [0], [0], [1], [0, 0, 1, 1], [], []>} : vector<16x16xf32>, vector<16x64xf32>, vector<16x64xf32> -> vector<16x64xf32>
    %c0_29 = arith.constant 0 : index
    %c0_30 = arith.constant 0 : index
    %99 = vector.load %arg13[%c0_29, %c0_30] : memref<32x384xf32, #tpu.memory_space<vmem>>, vector<16x64xf32>
    tpu.vector_store %arg13[%c0_29, %c0_30], %98 {strides = array<i32>} : memref<32x384xf32, #tpu.memory_space<vmem>>, vector<16x64xf32>,
    %100 = vector.extract_strided_slice %95 {offsets = [16, 0], sizes = [16, 16], strides = [1, 1]} : vector<192x16xf32> to vector<16x16xf32>
    %101 = vector.extract_strided_slice %30 {offsets = [0, 64], sizes = [16, 64], strides = [1, 1]} : vector<32x384xf32> to vector<16x64xf32>
    %cst_31 = arith.constant dense<0.000000e+00> : vector<16x64xf32>
    %102 = tpu.matmul %100, %101, %cst_31 {dimension_numbers = #tpu.dot_dimension_numbers<[1], [0], [0], [1], [0, 0, 1, 1], [], []>} : vector<16x16xf32>, vector<16x64xf32>, vector<16x64xf32> -> vector<16x64xf32>
    %c0_32 = arith.constant 0 : index
    %c64 = arith.constant 64 : index
    %103 = vector.load %arg13[%c0_32, %c64] : memref<32x384xf32, #tpu.memory_space<vmem>>, vector<16x64xf32>
    tpu.vector_store %arg13[%c0_32, %c64], %102 {strides = array<i32>} : memref<32x384xf32, #tpu.memory_space<vmem>>, vector<16x64xf32>,
    %104 = vector.extract_strided_slice %95 {offsets = [32, 0], sizes = [16, 16], strides = [1, 1]} : vector<192x16xf32> to vector<16x16xf32>
    %105 = vector.extract_strided_slice %30 {offsets = [0, 128], sizes = [16, 64], strides = [1, 1]} : vector<32x384xf32> to vector<16x64xf32>
    %cst_33 = arith.constant dense<0.000000e+00> : vector<16x64xf32>
    %106 = tpu.matmul %104, %105, %cst_33 {dimension_numbers = #tpu.dot_dimension_numbers<[1], [0], [0], [1], [0, 0, 1, 1], [], []>} : vector<16x16xf32>, vector<16x64xf32>, vector<16x64xf32> -> vector<16x64xf32>
    %c0_34 = arith.constant 0 : index
    %c128 = arith.constant 128 : index
    %107 = vector.load %arg13[%c0_34, %c128] : memref<32x384xf32, #tpu.memory_space<vmem>>, vector<16x64xf32>
    tpu.vector_store %arg13[%c0_34, %c128], %106 {strides = array<i32>} : memref<32x384xf32, #tpu.memory_space<vmem>>, vector<16x64xf32>,
    %108 = vector.extract_strided_slice %95 {offsets = [48, 0], sizes = [16, 16], strides = [1, 1]} : vector<192x16xf32> to vector<16x16xf32>
    %109 = vector.extract_strided_slice %30 {offsets = [0, 192], sizes = [16, 64], strides = [1, 1]} : vector<32x384xf32> to vector<16x64xf32>
    %cst_35 = arith.constant dense<0.000000e+00> : vector<16x64xf32>
    %110 = tpu.matmul %108, %109, %cst_35 {dimension_numbers = #tpu.dot_dimension_numbers<[1], [0], [0], [1], [0, 0, 1, 1], [], []>} : vector<16x16xf32>, vector<16x64xf32>, vector<16x64xf32> -> vector<16x64xf32>
    %c0_36 = arith.constant 0 : index
    %c192 = arith.constant 192 : index
    %111 = vector.load %arg13[%c0_36, %c192] : memref<32x384xf32, #tpu.memory_space<vmem>>, vector<16x64xf32>
    tpu.vector_store %arg13[%c0_36, %c192], %110 {strides = array<i32>} : memref<32x384xf32, #tpu.memory_space<vmem>>, vector<16x64xf32>,
    %112 = vector.extract_strided_slice %95 {offsets = [64, 0], sizes = [16, 16], strides = [1, 1]} : vector<192x16xf32> to vector<16x16xf32>
    %113 = vector.extract_strided_slice %30 {offsets = [0, 256], sizes = [16, 64], strides = [1, 1]} : vector<32x384xf32> to vector<16x64xf32>
    %cst_37 = arith.constant dense<0.000000e+00> : vector<16x64xf32>
    %114 = tpu.matmul %112, %113, %cst_37 {dimension_numbers = #tpu.dot_dimension_numbers<[1], [0], [0], [1], [0, 0, 1, 1], [], []>} : vector<16x16xf32>, vector<16x64xf32>, vector<16x64xf32> -> vector<16x64xf32>
    %c0_38 = arith.constant 0 : index
    %c256 = arith.constant 256 : index
    %115 = vector.load %arg13[%c0_38, %c256] : memref<32x384xf32, #tpu.memory_space<vmem>>, vector<16x64xf32>
    tpu.vector_store %arg13[%c0_38, %c256], %114 {strides = array<i32>} : memref<32x384xf32, #tpu.memory_space<vmem>>, vector<16x64xf32>,
    %116 = vector.extract_strided_slice %95 {offsets = [80, 0], sizes = [16, 16], strides = [1, 1]} : vector<192x16xf32> to vector<16x16xf32>
    %117 = vector.extract_strided_slice %30 {offsets = [0, 320], sizes = [16, 64], strides = [1, 1]} : vector<32x384xf32> to vector<16x64xf32>
    %cst_39 = arith.constant dense<0.000000e+00> : vector<16x64xf32>
    %118 = tpu.matmul %116, %117, %cst_39 {dimension_numbers = #tpu.dot_dimension_numbers<[1], [0], [0], [1], [0, 0, 1, 1], [], []>} : vector<16x16xf32>, vector<16x64xf32>, vector<16x64xf32> -> vector<16x64xf32>
    %c0_40 = arith.constant 0 : index
    %c320 = arith.constant 320 : index
    %119 = vector.load %arg13[%c0_40, %c320] : memref<32x384xf32, #tpu.memory_space<vmem>>, vector<16x64xf32>
    tpu.vector_store %arg13[%c0_40, %c320], %118 {strides = array<i32>} : memref<32x384xf32, #tpu.memory_space<vmem>>, vector<16x64xf32>,
    %120 = vector.extract_strided_slice %95 {offsets = [96, 0], sizes = [16, 16], strides = [1, 1]} : vector<192x16xf32> to vector<16x16xf32>
    %121 = vector.extract_strided_slice %30 {offsets = [16, 0], sizes = [16, 64], strides = [1, 1]} : vector<32x384xf32> to vector<16x64xf32>
    %cst_41 = arith.constant dense<0.000000e+00> : vector<16x64xf32>
    %122 = tpu.matmul %120, %121, %cst_41 {dimension_numbers = #tpu.dot_dimension_numbers<[1], [0], [0], [1], [0, 0, 1, 1], [], []>} : vector<16x16xf32>, vector<16x64xf32>, vector<16x64xf32> -> vector<16x64xf32>
    %c16 = arith.constant 16 : index
    %c0_42 = arith.constant 0 : index
    %123 = vector.load %arg13[%c16, %c0_42] : memref<32x384xf32, #tpu.memory_space<vmem>>, vector<16x64xf32>
    tpu.vector_store %arg13[%c16, %c0_42], %122 {strides = array<i32>} : memref<32x384xf32, #tpu.memory_space<vmem>>, vector<16x64xf32>,
    %124 = vector.extract_strided_slice %95 {offsets = [112, 0], sizes = [16, 16], strides = [1, 1]} : vector<192x16xf32> to vector<16x16xf32>
    %125 = vector.extract_strided_slice %30 {offsets = [16, 64], sizes = [16, 64], strides = [1, 1]} : vector<32x384xf32> to vector<16x64xf32>
    %cst_43 = arith.constant dense<0.000000e+00> : vector<16x64xf32>
    %126 = tpu.matmul %124, %125, %cst_43 {dimension_numbers = #tpu.dot_dimension_numbers<[1], [0], [0], [1], [0, 0, 1, 1], [], []>} : vector<16x16xf32>, vector<16x64xf32>, vector<16x64xf32> -> vector<16x64xf32>
    %c16_44 = arith.constant 16 : index
    %c64_45 = arith.constant 64 : index
    %127 = vector.load %arg13[%c16_44, %c64_45] : memref<32x384xf32, #tpu.memory_space<vmem>>, vector<16x64xf32>
    tpu.vector_store %arg13[%c16_44, %c64_45], %126 {strides = array<i32>} : memref<32x384xf32, #tpu.memory_space<vmem>>, vector<16x64xf32>,
    %128 = vector.extract_strided_slice %95 {offsets = [128, 0], sizes = [16, 16], strides = [1, 1]} : vector<192x16xf32> to vector<16x16xf32>
    %129 = vector.extract_strided_slice %30 {offsets = [16, 128], sizes = [16, 64], strides = [1, 1]} : vector<32x384xf32> to vector<16x64xf32>
    %cst_46 = arith.constant dense<0.000000e+00> : vector<16x64xf32>
    %130 = tpu.matmul %128, %129, %cst_46 {dimension_numbers = #tpu.dot_dimension_numbers<[1], [0], [0], [1], [0, 0, 1, 1], [], []>} : vector<16x16xf32>, vector<16x64xf32>, vector<16x64xf32> -> vector<16x64xf32>
    %c16_47 = arith.constant 16 : index
    %c128_48 = arith.constant 128 : index
    %131 = vector.load %arg13[%c16_47, %c128_48] : memref<32x384xf32, #tpu.memory_space<vmem>>, vector<16x64xf32>
    tpu.vector_store %arg13[%c16_47, %c128_48], %130 {strides = array<i32>} : memref<32x384xf32, #tpu.memory_space<vmem>>, vector<16x64xf32>,
    %132 = vector.extract_strided_slice %95 {offsets = [144, 0], sizes = [16, 16], strides = [1, 1]} : vector<192x16xf32> to vector<16x16xf32>
    %133 = vector.extract_strided_slice %30 {offsets = [16, 192], sizes = [16, 64], strides = [1, 1]} : vector<32x384xf32> to vector<16x64xf32>
    %cst_49 = arith.constant dense<0.000000e+00> : vector<16x64xf32>
    %134 = tpu.matmul %132, %133, %cst_49 {dimension_numbers = #tpu.dot_dimension_numbers<[1], [0], [0], [1], [0, 0, 1, 1], [], []>} : vector<16x16xf32>, vector<16x64xf32>, vector<16x64xf32> -> vector<16x64xf32>
    %c16_50 = arith.constant 16 : index
    %c192_51 = arith.constant 192 : index
    %135 = vector.load %arg13[%c16_50, %c192_51] : memref<32x384xf32, #tpu.memory_space<vmem>>, vector<16x64xf32>
    tpu.vector_store %arg13[%c16_50, %c192_51], %134 {strides = array<i32>} : memref<32x384xf32, #tpu.memory_space<vmem>>, vector<16x64xf32>,
    %136 = vector.extract_strided_slice %95 {offsets = [160, 0], sizes = [16, 16], strides = [1, 1]} : vector<192x16xf32> to vector<16x16xf32>
    %137 = vector.extract_strided_slice %30 {offsets = [16, 256], sizes = [16, 64], strides = [1, 1]} : vector<32x384xf32> to vector<16x64xf32>
    %cst_52 = arith.constant dense<0.000000e+00> : vector<16x64xf32>
    %138 = tpu.matmul %136, %137, %cst_52 {dimension_numbers = #tpu.dot_dimension_numbers<[1], [0], [0], [1], [0, 0, 1, 1], [], []>} : vector<16x16xf32>, vector<16x64xf32>, vector<16x64xf32> -> vector<16x64xf32>
    %c16_53 = arith.constant 16 : index
    %c256_54 = arith.constant 256 : index
    %139 = vector.load %arg13[%c16_53, %c256_54] : memref<32x384xf32, #tpu.memory_space<vmem>>, vector<16x64xf32>
    tpu.vector_store %arg13[%c16_53, %c256_54], %138 {strides = array<i32>} : memref<32x384xf32, #tpu.memory_space<vmem>>, vector<16x64xf32>,
    %140 = vector.extract_strided_slice %95 {offsets = [176, 0], sizes = [16, 16], strides = [1, 1]} : vector<192x16xf32> to vector<16x16xf32>
    %141 = vector.extract_strided_slice %30 {offsets = [16, 320], sizes = [16, 64], strides = [1, 1]} : vector<32x384xf32> to vector<16x64xf32>
    %cst_55 = arith.constant dense<0.000000e+00> : vector<16x64xf32>
    %142 = tpu.matmul %140, %141, %cst_55 {dimension_numbers = #tpu.dot_dimension_numbers<[1], [0], [0], [1], [0, 0, 1, 1], [], []>} : vector<16x16xf32>, vector<16x64xf32>, vector<16x64xf32> -> vector<16x64xf32>
    %c16_56 = arith.constant 16 : index
    %c320_57 = arith.constant 320 : index
    %143 = vector.load %arg13[%c16_56, %c320_57] : memref<32x384xf32, #tpu.memory_space<vmem>>, vector<16x64xf32>
    tpu.vector_store %arg13[%c16_56, %c320_57], %142 {strides = array<i32>} : memref<32x384xf32, #tpu.memory_space<vmem>>, vector<16x64xf32>,
    %c0_58 = arith.constant 0 : index
    %c0_59 = arith.constant 0 : index
    %144 = vector.load %arg13[%c0_58, %c0_59] : memref<32x384xf32, #tpu.memory_space<vmem>>, vector<32x384xf32>
    %145 = arith.truncf %144 : vector<32x384xf32> to vector<32x384xbf16>
    %c0_60 = arith.constant 0 : index
    %c0_61 = arith.constant 0 : index
    %146 = vector.load %arg4[%c0_60, %c0_61] : memref<384x384xbf16, #tpu.memory_space<vmem>>, vector<384x384xbf16>
    %cst_62 = arith.constant dense<0.000000e+00> : vector<32x384xf32>
    %147 = tpu.matmul %145, %146, %cst_62 {dimension_numbers = #tpu.dot_dimension_numbers<[1], [0], [0], [1], [0, 0, 1, 1], [], []>} : vector<32x384xbf16>, vector<384x384xbf16>, vector<32x384xf32> -> vector<32x384xf32>
    %c0_63 = arith.constant 0 : index
    %c0_64 = arith.constant 0 : index
    %148 = vector.load %arg5[%c0_63, %c0_64] : memref<1x384xf32, #tpu.memory_space<vmem>>, vector<1x384xf32>
    %149 = vector.broadcast %148 : vector<1x384xf32> to vector<32x384xf32>
    %150 = arith.addf %147, %149 : vector<32x384xf32>
    %151 = arith.addf %0, %150 : vector<32x384xf32>
    %c0_65 = arith.constant 0 : index
    %c0_66 = arith.constant 0 : index
    %152 = vector.load %arg6[%c0_65, %c0_66] : memref<1x384xf32, #tpu.memory_space<vmem>>, vector<1x384xf32>
    %c0_67 = arith.constant 0 : index
    %c0_68 = arith.constant 0 : index
    %153 = vector.load %arg7[%c0_67, %c0_68] : memref<1x384xf32, #tpu.memory_space<vmem>>, vector<1x384xf32>
    %cst_69 = arith.constant dense<0.000000e+00> : vector<32xf32>
    %154 = vector.multi_reduction <add>, %151, %cst_69 [1] : vector<32x384xf32> to vector<32xf32>
    %155 = vector.shape_cast %154 : vector<32xf32> to vector<32x1xf32>
    %cst_70 = arith.constant 3.840000e+02 : f32
    %156 = vector.broadcast %cst_70 : f32 to vector<32x1xf32>
    %157 = arith.divf %155, %156 : vector<32x1xf32>
    %158 = vector.broadcast %157 : vector<32x1xf32> to vector<32x384xf32>
    %159 = arith.subf %151, %158 : vector<32x384xf32>
    %160 = arith.mulf %159, %159 : vector<32x384xf32>
    %cst_71 = arith.constant dense<0.000000e+00> : vector<32xf32>
    %161 = vector.multi_reduction <add>, %160, %cst_71 [1] : vector<32x384xf32> to vector<32xf32>
    %162 = vector.shape_cast %161 : vector<32xf32> to vector<32x1xf32>
    %cst_72 = arith.constant 3.840000e+02 : f32
    %163 = vector.broadcast %cst_72 : f32 to vector<32x1xf32>
    %164 = arith.divf %162, %163 : vector<32x1xf32>
    %165 = vector.broadcast %157 : vector<32x1xf32> to vector<32x384xf32>
    %166 = arith.subf %151, %165 : vector<32x384xf32>
    %cst_73 = arith.constant 9.99999974E-6 : f32
    %167 = vector.broadcast %cst_73 : f32 to vector<32x1xf32>
    %168 = arith.addf %164, %167 : vector<32x1xf32>
    %169 = math.rsqrt %168 : vector<32x1xf32>
    %170 = vector.broadcast %169 : vector<32x1xf32> to vector<32x384xf32>
    %171 = arith.mulf %166, %170 : vector<32x384xf32>
    %172 = vector.broadcast %152 : vector<1x384xf32> to vector<32x384xf32>
    %173 = arith.mulf %171, %172 : vector<32x384xf32>
    %174 = vector.broadcast %153 : vector<1x384xf32> to vector<32x384xf32>
    %175 = arith.addf %173, %174 : vector<32x384xf32>
    %176 = arith.truncf %175 : vector<32x384xf32> to vector<32x384xbf16>
    %c0_74 = arith.constant 0 : index
    %c0_75 = arith.constant 0 : index
    %177 = vector.load %arg8[%c0_74, %c0_75] : memref<384x1536xbf16, #tpu.memory_space<vmem>>, vector<384x1536xbf16>
    %cst_76 = arith.constant dense<0.000000e+00> : vector<32x1536xf32>
    %178 = tpu.matmul %176, %177, %cst_76 {dimension_numbers = #tpu.dot_dimension_numbers<[1], [0], [0], [1], [0, 0, 1, 1], [], []>} : vector<32x384xbf16>, vector<384x1536xbf16>, vector<32x1536xf32> -> vector<32x1536xf32>
    %c0_77 = arith.constant 0 : index
    %c0_78 = arith.constant 0 : index
    %179 = vector.load %arg9[%c0_77, %c0_78] : memref<1x1536xf32, #tpu.memory_space<vmem>>, vector<1x1536xf32>
    %180 = vector.broadcast %179 : vector<1x1536xf32> to vector<32x1536xf32>
    %181 = arith.addf %178, %180 : vector<32x1536xf32>
    %cst_79 = arith.constant 0.000000e+00 : f32
    %182 = vector.broadcast %cst_79 : f32 to vector<32x1536xf32>
    %183 = arith.maximumf %181, %182 : vector<32x1536xf32>
    %184 = arith.truncf %183 : vector<32x1536xf32> to vector<32x1536xbf16>
    %c0_80 = arith.constant 0 : index
    %c0_81 = arith.constant 0 : index
    %185 = vector.load %arg10[%c0_80, %c0_81] : memref<1536x384xbf16, #tpu.memory_space<vmem>>, vector<1536x384xbf16>
    %cst_82 = arith.constant dense<0.000000e+00> : vector<32x384xf32>
    %186 = tpu.matmul %184, %185, %cst_82 {dimension_numbers = #tpu.dot_dimension_numbers<[1], [0], [0], [1], [0, 0, 1, 1], [], []>} : vector<32x1536xbf16>, vector<1536x384xbf16>, vector<32x384xf32> -> vector<32x384xf32>
    %c0_83 = arith.constant 0 : index
    %c0_84 = arith.constant 0 : index
    %187 = vector.load %arg11[%c0_83, %c0_84] : memref<1x384xf32, #tpu.memory_space<vmem>>, vector<1x384xf32>
    %188 = vector.broadcast %187 : vector<1x384xf32> to vector<32x384xf32>
    %189 = arith.addf %186, %188 : vector<32x384xf32>
    %190 = arith.addf %151, %189 : vector<32x384xf32>
    %c0_85 = arith.constant 0 : index
    %c0_86 = arith.constant 0 : index
    %191 = vector.load %arg12[%c0_85, %c0_86] : memref<32x384xf32, #tpu.memory_space<vmem>>, vector<32x384xf32>
    tpu.vector_store %arg12[%c0_85, %c0_86], %190 {strides = array<i32>} : memref<32x384xf32, #tpu.memory_space<vmem>>, vector<32x384xf32>,
    return
  }
}

</mosaic_0001>

<llo_original>
// kernel: block_forward.1
$region0: #{block_forward.1}
  #allocation0 [shape = 'u32[]', space=smem, size = 0x4, offset = 0x4, fixed_abs, tag = 'smem constant byte address 0x4 - core index']
  #allocation1 [shape = 'u32[72,128]{1,0:T(1,128)}', space=vmem, size = 0x9000, scoped, tag = 'internal scratch']
  #allocation2 [shape = 'f32[32,384]{1,0:T(8,128)}', space=vmem, size = 0xc000, scoped, tag = 'scratch operand']
  %s0 = inlined_call_operand.hbm [shape: f32[32,384], index: 0, kind: input, shape index: {}]
  %s1 = inlined_call_operand.hbm [shape: f32[1,384], index: 1, kind: input, shape index: {}]
  %s2 = inlined_call_operand.hbm [shape: f32[1,384], index: 2, kind: input, shape index: {}]
  %s3 = inlined_call_operand.hbm [shape: bf16[384,1152], index: 3, kind: input, shape index: {}]
  %s4 = inlined_call_operand.hbm [shape: bf16[384,384], index: 4, kind: input, shape index: {}]
  %s5 = inlined_call_operand.hbm [shape: f32[1,384], index: 5, kind: input, shape index: {}]
  %s6 = inlined_call_operand.hbm [shape: f32[1,384], index: 6, kind: input, shape index: {}]
  %s7 = inlined_call_operand.hbm [shape: f32[1,384], index: 7, kind: input, shape index: {}]
  %s8 = inlined_call_operand.hbm [shape: bf16[384,1536], index: 8, kind: input, shape index: {}]
  %s9 = inlined_call_operand.hbm [shape: f32[1,1536], index: 9, kind: input, shape index: {}]
  %s10 = inlined_call_operand.hbm [shape: bf16[1536,384], index: 10, kind: input, shape index: {}]
  %s11 = inlined_call_operand.hbm [shape: f32[1,384], index: 11, kind: input, shape index: {}]
  %s12 = inlined_call_operand.hbm [shape: f32[32,384], index: 12, kind: output, shape index: {}]
  %s13 = sld [smem:[#allocation0]]
  $region106: #{block_forward.1} parent=0
    _
  %s15 = ssub.s32 1, %s13
  %s16 = scalar_select 0, %s15, %s13
  $region1: #{block_forward.1} parent=0
    #allocation3 [shape = 'u8[49152]{0}', space=vmem, size = 0xc000, scoped, tag = 'input window, operand 0, single buffered']
    #allocation4 [shape = 's32[1]{0}', space=sflag, size = 0x4, scoped, tag = 'scoped memory for block_forward.1']
    #allocation5 [shape = 's32[1]{0}', space=sflag, size = 0x4, scoped, tag = 'scoped memory for block_forward.1']
    #allocation6 [shape = 'u8[1536]{0}', space=vmem, size = 0x800, scoped, tag = 'input window, operand 1, single buffered']
    #allocation7 [shape = 's32[1]{0}', space=sflag, size = 0x4, scoped, tag = 'scoped memory for block_forward.1']
    #allocation8 [shape = 'u8[1536]{0}', space=vmem, size = 0x800, scoped, tag = 'input window, operand 2, single buffered']
    #allocation9 [shape = 'u8[884736]{0}', space=vmem, size = 0xd8000, scoped, tag = 'input window, operand 3, single buffered']
    #allocation10 [shape = 's32[1]{0}', space=sflag, size = 0x4, scoped, tag = 'scoped memory for block_forward.1']
    #allocation11 [shape = 'u8[294912]{0}', space=vmem, size = 0x48000, scoped, tag = 'input window, operand 4, single buffered']
    #allocation12 [shape = 'u8[1536]{0}', space=vmem, size = 0x800, scoped, tag = 'input window, operand 5, single buffered']
    #allocation13 [shape = 's32[1]{0}', space=sflag, size = 0x4, scoped, tag = 'scoped memory for block_forward.1']
    #allocation14 [shape = 'u8[1536]{0}', space=vmem, size = 0x800, scoped, tag = 'input window, operand 6, single buffered']
    #allocation15 [shape = 'u8[1536]{0}', space=vmem, size = 0x800, scoped, tag = 'input window, operand 7, single buffered']
    #allocation16 [shape = 's32[1]{0}', space=sflag, size = 0x4, scoped, tag = 'scoped memory for block_forward.1']
    #allocation17 [shape = 'u8[1179648]{0}', space=vmem, size = 0x120000, scoped, tag = 'input window, operand 8, single buffered']
    #allocation18 [shape = 'u8[6144]{0}', space=vmem, size = 0x1800, scoped, tag = 'input window, operand 9, single buffered']
    #allocation19 [shape = 's32[1]{0}', space=sflag, size = 0x4, scoped, tag = 'scoped memory for block_forward.1']
    #allocation20 [shape = 'u8[1179648]{0}', space=vmem, size = 0x120000, scoped, tag = 'input window, operand 10, single buffered']
    #allocation21 [shape = 'u8[1536]{0}', space=vmem, size = 0x800, scoped, tag = 'input window, operand 11, single buffered']
    #allocation22 [shape = 's32[1]{0}', space=sflag, size = 0x4, scoped, tag = 'scoped memory for block_forward.1']
    #allocation23 [shape = 'u8[49152]{0}', space=vmem, size = 0xc000, scoped, tag = 'output window, operand 0, single buffered']
    %17 = vsyncpa [#allocation4], 0
    %18 = vsyncpa [#allocation7], 0
    %19 = vsyncpa [#allocation10], 0
    %20 = vsyncpa [#allocation13], 0
    %21 = vsyncpa [#allocation16], 0
    %22 = vsyncpa [#allocation19], 0
    %23 = vsyncpa [#allocation22], 0
    %24 = vsyncpa [#allocation5], 0
    // Predicated region
    $region2: #{block_forward.1} parent=1 // pred_check
      _
    $region3: #{block_forward.1} parent=1 // pred_check_branch
      %26 = sbr.rel (0) target = $region5
    $region4: #{block_forward.1} parent=1 // pred_region
      %28 = vsyncadd [#allocation4], 0
      %s29 = sshll.u32 %s0, 4
      %s30 = int_to_ptr.hbm [resolvable:$true] %s29
      %s31 = sshll.u32 [#allocation3], 4
      %s32 = int_to_ptr.vmem [resolvable:$true] %s31
      %37 = dma.hbm_to_vmem [thread:$0]  %s30, 1536, %s32, [#allocation4], 384, 384, 24
    $region5: #{block_forward.1} parent=1 // pred_fallthru
      _
    // Predicated region
    $region6: #{block_forward.1} parent=1 // pred_check
      _
    $region7: #{block_forward.1} parent=1 // pred_check_branch
      %39 = sbr.rel (0) target = $region9
    $region8: #{block_forward.1} parent=1 // pred_region
      %41 = vsyncadd [#allocation7], 0
      %s43 = sshll.u32 %s1, 4
      %s44 = int_to_ptr.hbm [resolvable:$true] %s43
      %s45 = sshll.u32 [#allocation6], 4
      %s46 = int_to_ptr.vmem [resolvable:$true] %s45
      %48 = dma.hbm_to_vmem [thread:$0]  %s44, 48, %s46, [#allocation7]
    $region9: #{block_forward.1} parent=1 // pred_fallthru
      _
    // Predicated region
    $region10: #{block_forward.1} parent=1 // pred_check
      _
    $region11: #{block_forward.1} parent=1 // pred_check_branch
      %50 = sbr.rel (0) target = $region13
    $region12: #{block_forward.1} parent=1 // pred_region
      %52 = vsyncadd [#allocation7], 0
      %s54 = sshll.u32 %s2, 4
      %s55 = int_to_ptr.hbm [resolvable:$true] %s54
      %s56 = sshll.u32 [#allocation8], 4
      %s57 = int_to_ptr.vmem [resolvable:$true] %s56
      %59 = dma.hbm_to_vmem [thread:$0]  %s55, 48, %s57, [#allocation7]
    $region13: #{block_forward.1} parent=1 // pred_fallthru
      _
    // Predicated region
    $region14: #{block_forward.1} parent=1 // pred_check
      _
    $region15: #{block_forward.1} parent=1 // pred_check_branch
      %61 = sbr.rel (0) target = $region17
    $region16: #{block_forward.1} parent=1 // pred_region
      %63 = vsyncadd [#allocation10], 0
      %s64 = sshll.u32 %s3, 4
      %s65 = int_to_ptr.hbm [resolvable:$true] %s64
      %s66 = sshll.u32 [#allocation9], 4
      %s67 = int_to_ptr.vmem [resolvable:$true] %s66
      %72 = dma.hbm_to_vmem [thread:$0]  %s65, 27648, %s67, [#allocation10], 576, 576, 36
    $region17: #{block_forward.1} parent=1 // pred_fallthru
      _
    // Predicated region
    $region18: #{block_forward.1} parent=1 // pred_check
      _
    $region19: #{block_forward.1} parent=1 // pred_check_branch
      %74 = sbr.rel (0) target = $region21
    $region20: #{block_forward.1} parent=1 // pred_region
      %76 = vsyncadd [#allocation10], 0
      %s77 = sshll.u32 %s4, 4
      %s78 = int_to_ptr.hbm [resolvable:$true] %s77
      %s79 = sshll.u32 [#allocation11], 4
      %s80 = int_to_ptr.vmem [resolvable:$true] %s79
      %85 = dma.hbm_to_vmem [thread:$0]  %s78, 9216, %s80, [#allocation10], 192, 192, 12
    $region21: #{block_forward.1} parent=1 // pred_fallthru
      _
    // Predicated region
    $region22: #{block_forward.1} parent=1 // pred_check
      _
    $region23: #{block_forward.1} parent=1 // pred_check_branch
      %87 = sbr.rel (0) target = $region25
    $region24: #{block_forward.1} parent=1 // pred_region
      %89 = vsyncadd [#allocation13], 0
      %s91 = sshll.u32 %s5, 4
      %s92 = int_to_ptr.hbm [resolvable:$true] %s91
      %s93 = sshll.u32 [#allocation12], 4
      %s94 = int_to_ptr.vmem [resolvable:$true] %s93
      %96 = dma.hbm_to_vmem [thread:$0]  %s92, 48, %s94, [#allocation13]
    $region25: #{block_forward.1} parent=1 // pred_fallthru
      _
    // Predicated region
    $region26: #{block_forward.1} parent=1 // pred_check
      _
    $region27: #{block_forward.1} parent=1 // pred_check_branch
      %98 = sbr.rel (0) target = $region29
    $region28: #{block_forward.1} parent=1 // pred_region
      %100 = vsyncadd [#allocation13], 0
      %s102 = sshll.u32 %s6, 4
      %s103 = int_to_ptr.hbm [resolvable:$true] %s102
      %s104 = sshll.u32 [#allocation14], 4
      %s105 = int_to_ptr.vmem [resolvable:$true] %s104
      %107 = dma.hbm_to_vmem [thread:$0]  %s103, 48, %s105, [#allocation13]
    $region29: #{block_forward.1} parent=1 // pred_fallthru
      _
    // Predicated region
    $region30: #{block_forward.1} parent=1 // pred_check
      _
    $region31: #{block_forward.1} parent=1 // pred_check_branch
      %109 = sbr.rel (0) target = $region33
    $region32: #{block_forward.1} parent=1 // pred_region
      %111 = vsyncadd [#allocation16], 0
      %s113 = sshll.u32 %s7, 4
      %s114 = int_to_ptr.hbm [resolvable:$true] %s113
      %s115 = sshll.u32 [#allocation15], 4
      %s116 = int_to_ptr.vmem [resolvable:$true] %s115
      %118 = dma.hbm_to_vmem [thread:$0]  %s114, 48, %s116, [#allocation16]
    $region33: #{block_forward.1} parent=1 // pred_fallthru
      _
    // Predicated region
    $region34: #{block_forward.1} parent=1 // pred_check
      _
    $region35: #{block_forward.1} parent=1 // pred_check_branch
      %120 = sbr.rel (0) target = $region37
    $region36: #{block_forward.1} parent=1 // pred_region
      %122 = vsyncadd [#allocation16], 0
      %s123 = sshll.u32 %s8, 4
      %s124 = int_to_ptr.hbm [resolvable:$true] %s123
      %s125 = sshll.u32 [#allocation17], 4
      %s126 = int_to_ptr.vmem [resolvable:$true] %s125
      %131 = dma.hbm_to_vmem [thread:$0]  %s124, 36864, %s126, [#allocation16], 768, 768, 48
    $region37: #{block_forward.1} parent=1 // pred_fallthru
      _
    // Predicated region
    $region38: #{block_forward.1} parent=1 // pred_check
      _
    $region39: #{block_forward.1} parent=1 // pred_check_branch
      %133 = sbr.rel (0) target = $region41
    $region40: #{block_forward.1} parent=1 // pred_region
      %135 = vsyncadd [#allocation19], 0
      %s137 = sshll.u32 %s9, 4
      %s138 = int_to_ptr.hbm [resolvable:$true] %s137
      %s139 = sshll.u32 [#allocation18], 4
      %s140 = int_to_ptr.vmem [resolvable:$true] %s139
      %142 = dma.hbm_to_vmem [thread:$0]  %s138, 192, %s140, [#allocation19]
    $region41: #{block_forward.1} parent=1 // pred_fallthru
      _
    // Predicated region
    $region42: #{block_forward.1} parent=1 // pred_check
      _
    $region43: #{block_forward.1} parent=1 // pred_check_branch
      %144 = sbr.rel (0) target = $region45
    $region44: #{block_forward.1} parent=1 // pred_region
      %146 = vsyncadd [#allocation19], 0
      %s147 = sshll.u32 %s10, 4
      %s148 = int_to_ptr.hbm [resolvable:$true] %s147
      %s149 = sshll.u32 [#allocation20], 4
      %s150 = int_to_ptr.vmem [resolvable:$true] %s149
      %155 = dma.hbm_to_vmem [thread:$0]  %s148, 36864, %s150, [#allocation19], 192, 192, 12
    $region45: #{block_forward.1} parent=1 // pred_fallthru
      _
    // Predicated region
    $region46: #{block_forward.1} parent=1 // pred_check
      _
    $region47: #{block_forward.1} parent=1 // pred_check_branch
      %157 = sbr.rel (0) target = $region49
    $region48: #{block_forward.1} parent=1 // pred_region
      %159 = vsyncadd [#allocation22], 0
      %s161 = sshll.u32 %s11, 4
      %s162 = int_to_ptr.hbm [resolvable:$true] %s161
      %s163 = sshll.u32 [#allocation21], 4
      %s164 = int_to_ptr.vmem [resolvable:$true] %s163
      %166 = dma.hbm_to_vmem [thread:$0]  %s162, 48, %s164, [#allocation22]
    $region49: #{block_forward.1} parent=1 // pred_fallthru
      _
    // Predicated region
    $region50: #{block_forward.1} parent=1 // pred_check
      _
    $region51: #{block_forward.1} parent=1 // pred_check_branch
      %168 = sbr.rel (0) target = $region53
    $region52: #{block_forward.1} parent=1 // pred_region
      %170 = dma.done [#allocation4], 1536
    $region53: #{block_forward.1} parent=1 // pred_fallthru
      _
    // Predicated region
    $region54: #{block_forward.1} parent=1 // pred_check
      _
    $region55: #{block_forward.1} parent=1 // pred_check_branch
      %172 = sbr.rel (0) target = $region57
    $region56: #{block_forward.1} parent=1 // pred_region
      %174 = dma.done [#allocation7], 48
    $region57: #{block_forward.1} parent=1 // pred_fallthru
      _
    // Predicated region
    $region58: #{block_forward.1} parent=1 // pred_check
      _
    $region59: #{block_forward.1} parent=1 // pred_check_branch
      %176 = sbr.rel (0) target = $region61
    $region60: #{block_forward.1} parent=1 // pred_region
      %178 = dma.done [#allocation7], 48
    $region61: #{block_forward.1} parent=1 // pred_fallthru
      _
    // Predicated region
    $region62: #{block_forward.1} parent=1 // pred_check
      _
    $region63: #{block_forward.1} parent=1 // pred_check_branch
      %180 = sbr.rel (0) target = $region65
    $region64: #{block_forward.1} parent=1 // pred_region
      %182 = dma.done [#allocation10], 27648
    $region65: #{block_forward.1} parent=1 // pred_fallthru
      _
    // Predicated region
    $region66: #{block_forward.1} parent=1 // pred_check
      _
    $region67: #{block_forward.1} parent=1 // pred_check_branch
      %184 = sbr.rel (0) target = $region69
    $region68: #{block_forward.1} parent=1 // pred_region
      %186 = dma.done [#allocation10], 9216
    $region69: #{block_forward.1} parent=1 // pred_fallthru
      _
    // Predicated region
    $region70: #{block_forward.1} parent=1 // pred_check
      _
    $region71: #{block_forward.1} parent=1 // pred_check_branch
      %188 = sbr.rel (0) target = $region73
    $region72: #{block_forward.1} parent=1 // pred_region
      %190 = dma.done [#allocation13], 48
    $region73: #{block_forward.1} parent=1 // pred_fallthru
      _
    // Predicated region
    $region74: #{block_forward.1} parent=1 // pred_check
      _
    $region75: #{block_forward.1} parent=1 // pred_check_branch
      %192 = sbr.rel (0) target = $region77
    $region76: #{block_forward.1} parent=1 // pred_region
      %194 = dma.done [#allocation13], 48
    $region77: #{block_forward.1} parent=1 // pred_fallthru
      _
    // Predicated region
    $region78: #{block_forward.1} parent=1 // pred_check
      _
    $region79: #{block_forward.1} parent=1 // pred_check_branch
      %196 = sbr.rel (0) target = $region81
    $region80: #{block_forward.1} parent=1 // pred_region
      %198 = dma.done [#allocation16], 48
    $region81: #{block_forward.1} parent=1 // pred_fallthru
      _
    // Predicated region
    $region82: #{block_forward.1} parent=1 // pred_check
      _
    $region83: #{block_forward.1} parent=1 // pred_check_branch
      %200 = sbr.rel (0) target = $region85
    $region84: #{block_forward.1} parent=1 // pred_region
      %202 = dma.done [#allocation16], 36864
    $region85: #{block_forward.1} parent=1 // pred_fallthru
      _
    // Predicated region
    $region86: #{block_forward.1} parent=1 // pred_check
      _
    $region87: #{block_forward.1} parent=1 // pred_check_branch
      %204 = sbr.rel (0) target = $region89
    $region88: #{block_forward.1} parent=1 // pred_region
      %206 = dma.done [#allocation19], 192
    $region89: #{block_forward.1} parent=1 // pred_fallthru
      _
    // Predicated region
    $region90: #{block_forward.1} parent=1 // pred_check
      _
    $region91: #{block_forward.1} parent=1 // pred_check_branch
      %208 = sbr.rel (0) target = $region93
    $region92: #{block_forward.1} parent=1 // pred_region
      %210 = dma.done [#allocation19], 36864
    $region93: #{block_forward.1} parent=1 // pred_fallthru
      _
    // Predicated region
    $region94: #{block_forward.1} parent=1 // pred_check
      _
    $region95: #{block_forward.1} parent=1 // pred_check_branch
      %212 = sbr.rel (0) target = $region97
    $region96: #{block_forward.1} parent=1 // pred_region
      %214 = dma.done [#allocation22], 48
    $region97: #{block_forward.1} parent=1 // pred_fallthru
      _
    %v215 = vld [vmem:[#allocation3] sm:$0xff]
    %v216 = vld [vmem:[#allocation3 + $0x8] sm:$0xff]
    %v217 = vld [vmem:[#allocation3 + $0x10] sm:$0xff]
    %v218 = vld [vmem:[#allocation3 + $0x18] sm:$0xff]
    %v219 = vld [vmem:[#allocation3 + $0x20] sm:$0xff]
    %v220 = vld [vmem:[#allocation3 + $0x28] sm:$0xff]
    %v221 = vld [vmem:[#allocation3 + $0x30] sm:$0xff]
    %v222 = vld [vmem:[#allocation3 + $0x38] sm:$0xff]
    %v223 = vld [vmem:[#allocation3 + $0x40] sm:$0xff]
    %v224 = vld [vmem:[#allocation3 + $0x48] sm:$0xff]
    %v225 = vld [vmem:[#allocation3 + $0x50] sm:$0xff]
    %v226 = vld [vmem:[#allocation3 + $0x58] sm:$0xff]
    %v227 = vld [vmem:[#allocation6] sm:$0x7]
    %v228 = vld [vmem:[#allocation8] sm:$0x7]
    %v229 = vadd.f32 %v215, %v216
    %v230 = vadd.f32 %v229, %v217
    %231 = vadd.xlane.f32.xlu0 %v230
    %v232 = vpop.xlane.xlu0 %231
    %v233 = vadd.f32 %v218, %v219
    %v234 = vadd.f32 %v233, %v220
    %235 = vadd.xlane.f32.xlu0 %v234
    %v236 = vpop.xlane.xlu0 %235
    %v237 = vadd.f32 %v221, %v222
    %v238 = vadd.f32 %v237, %v223
    %239 = vadd.xlane.f32.xlu0 %v238
    %v240 = vpop.xlane.xlu0 %239
    %v241 = vadd.f32 %v224, %v225
    %v242 = vadd.f32 %v241, %v226
    %243 = vadd.xlane.f32.xlu0 %v242
    %v244 = vpop.xlane.xlu0 %243
    %v245 = vrcp.pop 384.0
    %v246 = vmul.f32 384.0, %v245
    %v247 = vsub.f32 1.0, %v246
    %v248 = vmul.f32 %v245, %v247
    %v249 = vadd.f32 %v245, %v248
    %vm250 = vweird.f32 %v245
    %v251 = vsel %vm250, %v245, %v249
    %v252 = vmul.f32 %v232, %v251
    %v253 = vmul.f32 %v236, %v251
    %v254 = vmul.f32 %v240, %v251
    %v255 = vmul.f32 %v244, %v251
    %v256 = vsub.f32 %v215, %v252
    %v257 = vsub.f32 %v216, %v252
    %v258 = vsub.f32 %v217, %v252
    %v259 = vsub.f32 %v218, %v253
    %v260 = vsub.f32 %v219, %v253
    %v261 = vsub.f32 %v220, %v253
    %v262 = vsub.f32 %v221, %v254
    %v263 = vsub.f32 %v222, %v254
    %v264 = vsub.f32 %v223, %v254
    %v265 = vsub.f32 %v224, %v255
    %v266 = vsub.f32 %v225, %v255
    %v267 = vsub.f32 %v226, %v255
    %v268 = vmul.f32 %v256, %v256
    %v269 = vmul.f32 %v257, %v257
    %v270 = vmul.f32 %v258, %v258
    %v271 = vmul.f32 %v259, %v259
    %v272 = vmul.f32 %v260, %v260
    %v273 = vmul.f32 %v261, %v261
    %v274 = vmul.f32 %v262, %v262
    %v275 = vmul.f32 %v263, %v263
    %v276 = vmul.f32 %v264, %v264
    %v277 = vmul.f32 %v265, %v265
    %v278 = vmul.f32 %v266, %v266
    %v279 = vmul.f32 %v267, %v267
    %v280 = vadd.f32 %v268, %v269
    %v281 = vadd.f32 %v280, %v270
    %282 = vadd.xlane.f32.xlu0 %v281
    %v283 = vpop.xlane.xlu0 %282
    %v284 = vadd.f32 %v271, %v272
    %v285 = vadd.f32 %v284, %v273
    %286 = vadd.xlane.f32.xlu0 %v285
    %v287 = vpop.xlane.xlu0 %286
    %v288 = vadd.f32 %v274, %v275
    %v289 = vadd.f32 %v288, %v276
    %290 = vadd.xlane.f32.xlu0 %v289
    %v291 = vpop.xlane.xlu0 %290
    %v292 = vadd.f32 %v277, %v278
    %v293 = vadd.f32 %v292, %v279
    %294 = vadd.xlane.f32.xlu0 %v293
    %v295 = vpop.xlane.xlu0 %294
    %v296 = vmul.f32 %v283, %v251
    %v297 = vmul.f32 %v287, %v251
    %v298 = vmul.f32 %v291, %v251
    %v299 = vmul.f32 %v295, %v251
    %v300 = vadd.f32 %v296, 1e-05
    %v301 = vadd.f32 %v297, 1e-05
    %v302 = vadd.f32 %v298, 1e-05
    %v303 = vadd.f32 %v299, 1e-05
    %v304 = vrsqrt.pop %v300
    %v305 = vmul.f32 %v304, %v300
    %v306 = vmul.f32 %v305, %v304
    %v307 = vmul.f32 0.5, %v306
    %v308 = vsub.f32 1.5, %v307
    %v309 = vmul.f32 %v304, %v308
    %vm310 = vweird.f32 %v300
    %vm311 = vweird.f32 %v304
    %vm312 = vmor %vm310, %vm311
    %v313 = vsel %vm312, %v304, %v309
    %v314 = vrsqrt.pop %v301
    %v315 = vmul.f32 %v314, %v301
    %v316 = vmul.f32 %v315, %v314
    %v317 = vmul.f32 0.5, %v316
    %v318 = vsub.f32 1.5, %v317
    %v319 = vmul.f32 %v314, %v318
    %vm320 = vweird.f32 %v301
    %vm321 = vweird.f32 %v314
    %vm322 = vmor %vm320, %vm321
    %v323 = vsel %vm322, %v314, %v319
    %v324 = vrsqrt.pop %v302
    %v325 = vmul.f32 %v324, %v302
    %v326 = vmul.f32 %v325, %v324
    %v327 = vmul.f32 0.5, %v326
    %v328 = vsub.f32 1.5, %v327
    %v329 = vmul.f32 %v324, %v328
    %vm330 = vweird.f32 %v302
    %vm331 = vweird.f32 %v324
    %vm332 = vmor %vm330, %vm331
    %v333 = vsel %vm332, %v324, %v329
    %v334 = vrsqrt.pop %v303
    %v335 = vmul.f32 %v334, %v303
    %v336 = vmul.f32 %v335, %v334
    %v337 = vmul.f32 0.5, %v336
    %v338 = vsub.f32 1.5, %v337
    %v339 = vmul.f32 %v334, %v338
    %vm340 = vweird.f32 %v303
    %vm341 = vweird.f32 %v334
    %vm342 = vmor %vm340, %vm341
    %v343 = vsel %vm342, %v334, %v339
    %v344 = vmul.f32 %v256, %v313
    %v345 = vmul.f32 %v257, %v313
    %v346 = vmul.f32 %v258, %v313
    %v347 = vmul.f32 %v259, %v323
    %v348 = vmul.f32 %v260, %v323
    %v349 = vmul.f32 %v261, %v323
    %v350 = vmul.f32 %v262, %v333
    %v351 = vmul.f32 %v263, %v333
    %v352 = vmul.f32 %v264, %v333
    %v353 = vmul.f32 %v265, %v343
    %v354 = vmul.f32 %v266, %v343
    %v355 = vmul.f32 %v267, %v343
    %v357 = vperm.slane %v227, 0
    %v358 = vperm.slane %v227, 1
    %v359 = vperm.slane %v227, 2
    %v363 = vmul.f32 %v344, %v357
    %v364 = vmul.f32 %v345, %v358
    %v365 = vmul.f32 %v346, %v359
    %v366 = vmul.f32 %v347, %v357
    %v367 = vmul.f32 %v348, %v358
    %v368 = vmul.f32 %v349, %v359
    %v369 = vmul.f32 %v350, %v357
    %v370 = vmul.f32 %v351, %v358
    %v371 = vmul.f32 %v352, %v359
    %v372 = vmul.f32 %v353, %v357
    %v373 = vmul.f32 %v354, %v358
    %v374 = vmul.f32 %v355, %v359
    %v376 = vperm.slane %v228, 0
    %v377 = vperm.slane %v228, 1
    %v378 = vperm.slane %v228, 2
    %v382 = vadd.f32 %v363, %v376
    %v383 = vadd.f32 %v364, %v377
    %v384 = vadd.f32 %v365, %v378
    %v385 = vadd.f32 %v366, %v376
    %v386 = vadd.f32 %v367, %v377
    %v387 = vadd.f32 %v368, %v378
    %v388 = vadd.f32 %v369, %v376
    %v389 = vadd.f32 %v370, %v377
    %v390 = vadd.f32 %v371, %v378
    %v391 = vadd.f32 %v372, %v376
    %v392 = vadd.f32 %v373, %v377
    %v393 = vadd.f32 %v374, %v378
    %v394 = vpack.c.bf16 %v385, %v382
    %v395 = vpack.c.bf16 %v386, %v383
    %v396 = vpack.c.bf16 %v387, %v384
    %v397 = vpack.c.bf16 %v391, %v388
    %v398 = vpack.c.bf16 %v392, %v389
    %v399 = vpack.c.bf16 %v393, %v390
    %v400 = vld [vmem:[#allocation9] sm:$0xff]
    %v401 = vld [vmem:[#allocation9 + $0x8] sm:$0xff]
    %v402 = vld [vmem:[#allocation9 + $0x10] sm:$0xff]
    %v403 = vld [vmem:[#allocation9 + $0x18] sm:$0xff]
    %v404 = vld [vmem:[#allocation9 + $0x20] sm:$0xf]
    %v405 = vld [vmem:[#allocation9 + $0x24] sm:$0xff]
    %v406 = vld [vmem:[#allocation9 + $0x2c] sm:$0xff]
    %v407 = vld [vmem:[#allocation9 + $0x34] sm:$0xff]
    %v408 = vld [vmem:[#allocation9 + $0x3c] sm:$0xff]
    %v409 = vld [vmem:[#allocation9 + $0x44] sm:$0xf]
    %v410 = vld [vmem:[#allocation9 + $0x48] sm:$0xff]
    %v411 = vld [vmem:[#allocation9 + $0x50] sm:$0xff]
    %v412 = vld [vmem:[#allocation9 + $0x58] sm:$0xff]
    %v413 = vld [vmem:[#allocation9 + $0x60] sm:$0xff]
    %v414 = vld [vmem:[#allocation9 + $0x68] sm:$0xf]
    %v415 = vld [vmem:[#allocation9 + $0x6c] sm:$0xff]
    %v416 = vld [vmem:[#allocation9 + $0x74] sm:$0xff]
    %v417 = vld [vmem:[#allocation9 + $0x7c] sm:$0xff]
    %v418 = vld [vmem:[#allocation9 + $0x84] sm:$0xff]
    %v419 = vld [vmem:[#allocation9 + $0x8c] sm:$0xf]
    %v420 = vld [vmem:[#allocation9 + $0x90] sm:$0xff]
    %v421 = vld [vmem:[#allocation9 + $0x98] sm:$0xff]
    %v422 = vld [vmem:[#allocation9 + $0xa0] sm:$0xff]
    %v423 = vld [vmem:[#allocation9 + $0xa8] sm:$0xff]
    %v424 = vld [vmem:[#allocation9 + $0xb0] sm:$0xf]
    %v425 = vld [vmem:[#allocation9 + $0xb4] sm:$0xff]
    %v426 = vld [vmem:[#allocation9 + $0xbc] sm:$0xff]
    %v427 = vld [vmem:[#allocation9 + $0xc4] sm:$0xff]
    %v428 = vld [vmem:[#allocation9 + $0xcc] sm:$0xff]
    %v429 = vld [vmem:[#allocation9 + $0xd4] sm:$0xf]
    %v430 = vld [vmem:[#allocation9 + $0xd8] sm:$0xff]
    %v431 = vld [vmem:[#allocation9 + $0xe0] sm:$0xff]
    %v432 = vld [vmem:[#allocation9 + $0xe8] sm:$0xff]
    %v433 = vld [vmem:[#allocation9 + $0xf0] sm:$0xff]
    %v434 = vld [vmem:[#allocation9 + $0xf8] sm:$0xf]
    %v435 = vld [vmem:[#allocation9 + $0xfc] sm:$0xff]
    %v436 = vld [vmem:[#allocation9 + $0x104] sm:$0xff]
    %v437 = vld [vmem:[#allocation9 + $0x10c] sm:$0xff]
    %v438 = vld [vmem:[#allocation9 + $0x114] sm:$0xff]
    %v439 = vld [vmem:[#allocation9 + $0x11c] sm:$0xf]
    %v440 = vld [vmem:[#allocation9 + $0x120] sm:$0xff]
    %v441 = vld [vmem:[#allocation9 + $0x128] sm:$0xff]
    %v442 = vld [vmem:[#allocation9 + $0x130] sm:$0xff]
    %v443 = vld [vmem:[#allocation9 + $0x138] sm:$0xff]
    %v444 = vld [vmem:[#allocation9 + $0x140] sm:$0xf]
    %v445 = vld [vmem:[#allocation9 + $0x144] sm:$0xff]
    %v446 = vld [vmem:[#allocation9 + $0x14c] sm:$0xff]
    %v447 = vld [vmem:[#allocation9 + $0x154] sm:$0xff]
    %v448 = vld [vmem:[#allocation9 + $0x15c] sm:$0xff]
    %v449 = vld [vmem:[#allocation9 + $0x164] sm:$0xf]
    %v450 = vld [vmem:[#allocation9 + $0x168] sm:$0xff]
    %v451 = vld [vmem:[#allocation9 + $0x170] sm:$0xff]
    %v452 = vld [vmem:[#allocation9 + $0x178] sm:$0xff]
    %v453 = vld [vmem:[#allocation9 + $0x180] sm:$0xff]
    %v454 = vld [vmem:[#allocation9 + $0x188] sm:$0xf]
    %v455 = vld [vmem:[#allocation9 + $0x18c] sm:$0xff]
    %v456 = vld [vmem:[#allocation9 + $0x194] sm:$0xff]
    %v457 = vld [vmem:[#allocation9 + $0x19c] sm:$0xff]
    %v458 = vld [vmem:[#allocation9 + $0x1a4] sm:$0xff]
    %v459 = vld [vmem:[#allocation9 + $0x1ac] sm:$0xf]
    %v460 = vld [vmem:[#allocation9 + $0x1b0] sm:$0xff]
    %v461 = vld [vmem:[#allocation9 + $0x1b8] sm:$0xff]
    %v462 = vld [vmem:[#allocation9 + $0x1c0] sm:$0xff]
    %v463 = vld [vmem:[#allocation9 + $0x1c8] sm:$0xff]
    %v464 = vld [vmem:[#allocation9 + $0x1d0] sm:$0xf]
    %v465 = vld [vmem:[#allocation9 + $0x1d4] sm:$0xff]
    %v466 = vld [vmem:[#allocation9 + $0x1dc] sm:$0xff]
    %v467 = vld [vmem:[#allocation9 + $0x1e4] sm:$0xff]
    %v468 = vld [vmem:[#allocation9 + $0x1ec] sm:$0xff]
    %v469 = vld [vmem:[#allocation9 + $0x1f4] sm:$0xf]
    %v470 = vld [vmem:[#allocation9 + $0x1f8] sm:$0xff]
    %v471 = vld [vmem:[#allocation9 + $0x200] sm:$0xff]
    %v472 = vld [vmem:[#allocation9 + $0x208] sm:$0xff]
    %v473 = vld [vmem:[#allocation9 + $0x210] sm:$0xff]
    %v474 = vld [vmem:[#allocation9 + $0x218] sm:$0xf]
    %v475 = vld [vmem:[#allocation9 + $0x21c] sm:$0xff]
    %v476 = vld [vmem:[#allocation9 + $0x224] sm:$0xff]
    %v477 = vld [vmem:[#allocation9 + $0x22c] sm:$0xff]
    %v478 = vld [vmem:[#allocation9 + $0x234] sm:$0xff]
    %v479 = vld [vmem:[#allocation9 + $0x23c] sm:$0xf]
    %v480 = vld [vmem:[#allocation9 + $0x240] sm:$0xff]
    %v481 = vld [vmem:[#allocation9 + $0x248] sm:$0xff]
    %v482 = vld [vmem:[#allocation9 + $0x250] sm:$0xff]
    %v483 = vld [vmem:[#allocation9 + $0x258] sm:$0xff]
    %v484 = vld [vmem:[#allocation9 + $0x260] sm:$0xf]
    %v485 = vld [vmem:[#allocation9 + $0x264] sm:$0xff]
    %v486 = vld [vmem:[#allocation9 + $0x26c] sm:$0xff]
    %v487 = vld [vmem:[#allocation9 + $0x274] sm:$0xff]
    %v488 = vld [vmem:[#allocation9 + $0x27c] sm:$0xff]
    %v489 = vld [vmem:[#allocation9 + $0x284] sm:$0xf]
    %v490 = vld [vmem:[#allocation9 + $0x288] sm:$0xff]
    %v491 = vld [vmem:[#allocation9 + $0x290] sm:$0xff]
    %v492 = vld [vmem:[#allocation9 + $0x298] sm:$0xff]
    %v493 = vld [vmem:[#allocation9 + $0x2a0] sm:$0xff]
    %v494 = vld [vmem:[#allocation9 + $0x2a8] sm:$0xf]
    %v495 = vld [vmem:[#allocation9 + $0x2ac] sm:$0xff]
    %v496 = vld [vmem:[#allocation9 + $0x2b4] sm:$0xff]
    %v497 = vld [vmem:[#allocation9 + $0x2bc] sm:$0xff]
    %v498 = vld [vmem:[#allocation9 + $0x2c4] sm:$0xff]
    %v499 = vld [vmem:[#allocation9 + $0x2cc] sm:$0xf]
    %v500 = vld [vmem:[#allocation9 + $0x2d0] sm:$0xff]
    %v501 = vld [vmem:[#allocation9 + $0x2d8] sm:$0xff]
    %v502 = vld [vmem:[#allocation9 + $0x2e0] sm:$0xff]
    %v503 = vld [vmem:[#allocation9 + $0x2e8] sm:$0xff]
    %v504 = vld [vmem:[#allocation9 + $0x2f0] sm:$0xf]
    %v505 = vld [vmem:[#allocation9 + $0x2f4] sm:$0xff]
    %v506 = vld [vmem:[#allocation9 + $0x2fc] sm:$0xff]
    %v507 = vld [vmem:[#allocation9 + $0x304] sm:$0xff]
    %v508 = vld [vmem:[#allocation9 + $0x30c] sm:$0xff]
    %v509 = vld [vmem:[#allocation9 + $0x314] sm:$0xf]
    %v510 = vld [vmem:[#allocation9 + $0x318] sm:$0xff]
    %v511 = vld [vmem:[#allocation9 + $0x320] sm:$0xff]
    %v512 = vld [vmem:[#allocation9 + $0x328] sm:$0xff]
    %v513 = vld [vmem:[#allocation9 + $0x330] sm:$0xff]
    %v514 = vld [vmem:[#allocation9 + $0x338] sm:$0xf]
    %v515 = vld [vmem:[#allocation9 + $0x33c] sm:$0xff]
    %v516 = vld [vmem:[#allocation9 + $0x344] sm:$0xff]
    %v517 = vld [vmem:[#allocation9 + $0x34c] sm:$0xff]
    %v518 = vld [vmem:[#allocation9 + $0x354] sm:$0xff]
    %v519 = vld [vmem:[#allocation9 + $0x35c] sm:$0xf]
    %v520 = vld [vmem:[#allocation9 + $0x360] sm:$0xff]
    %v521 = vld [vmem:[#allocation9 + $0x368] sm:$0xff]
    %v522 = vld [vmem:[#allocation9 + $0x370] sm:$0xff]
    %v523 = vld [vmem:[#allocation9 + $0x378] sm:$0xff]
    %v524 = vld [vmem:[#allocation9 + $0x380] sm:$0xf]
    %v525 = vld [vmem:[#allocation9 + $0x384] sm:$0xff]
    %v526 = vld [vmem:[#allocation9 + $0x38c] sm:$0xff]
    %v527 = vld [vmem:[#allocation9 + $0x394] sm:$0xff]
    %v528 = vld [vmem:[#allocation9 + $0x39c] sm:$0xff]
    %v529 = vld [vmem:[#allocation9 + $0x3a4] sm:$0xf]
    %v530 = vld [vmem:[#allocation9 + $0x3a8] sm:$0xff]
    %v531 = vld [vmem:[#allocation9 + $0x3b0] sm:$0xff]
    %v532 = vld [vmem:[#allocation9 + $0x3b8] sm:$0xff]
    %v533 = vld [vmem:[#allocation9 + $0x3c0] sm:$0xff]
    %v534 = vld [vmem:[#allocation9 + $0x3c8] sm:$0xf]
    %v535 = vld [vmem:[#allocation9 + $0x3cc] sm:$0xff]
    %v536 = vld [vmem:[#allocation9 + $0x3d4] sm:$0xff]
    %v537 = vld [vmem:[#allocation9 + $0x3dc] sm:$0xff]
    %v538 = vld [vmem:[#allocation9 + $0x3e4] sm:$0xff]
    %v539 = vld [vmem:[#allocation9 + $0x3ec] sm:$0xf]
    %v540 = vld [vmem:[#allocation9 + $0x3f0] sm:$0xff]
    %v541 = vld [vmem:[#allocation9 + $0x3f8] sm:$0xff]
    %v542 = vld [vmem:[#allocation9 + $0x400] sm:$0xff]
    %v543 = vld [vmem:[#allocation9 + $0x408] sm:$0xff]
    %v544 = vld [vmem:[#allocation9 + $0x410] sm:$0xf]
    %v545 = vld [vmem:[#allocation9 + $0x414] sm:$0xff]
    %v546 = vld [vmem:[#allocation9 + $0x41c] sm:$0xff]
    %v547 = vld [vmem:[#allocation9 + $0x424] sm:$0xff]
    %v548 = vld [vmem:[#allocation9 + $0x42c] sm:$0xff]
    %v549 = vld [vmem:[#allocation9 + $0x434] sm:$0xf]
    %v550 = vld [vmem:[#allocation9 + $0x438] sm:$0xff]
    %v551 = vld [vmem:[#allocation9 + $0x440] sm:$0xff]
    %v552 = vld [vmem:[#allocation9 + $0x448] sm:$0xff]
    %v553 = vld [vmem:[#allocation9 + $0x450] sm:$0xff]
    %v554 = vld [vmem:[#allocation9 + $0x458] sm:$0xf]
    %v555 = vld [vmem:[#allocation9 + $0x45c] sm:$0xff]
    %v556 = vld [vmem:[#allocation9 + $0x464] sm:$0xff]
    %v557 = vld [vmem:[#allocation9 + $0x46c] sm:$0xff]
    %v558 = vld [vmem:[#allocation9 + $0x474] sm:$0xff]
    %v559 = vld [vmem:[#allocation9 + $0x47c] sm:$0xf]
    %v560 = vld [vmem:[#allocation9 + $0x480] sm:$0xff]
    %v561 = vld [vmem:[#allocation9 + $0x488] sm:$0xff]
    %v562 = vld [vmem:[#allocation9 + $0x490] sm:$0xff]
    %v563 = vld [vmem:[#allocation9 + $0x498] sm:$0xff]
    %v564 = vld [vmem:[#allocation9 + $0x4a0] sm:$0xf]
    %v565 = vld [vmem:[#allocation9 + $0x4a4] sm:$0xff]
    %v566 = vld [vmem:[#allocation9 + $0x4ac] sm:$0xff]
    %v567 = vld [vmem:[#allocation9 + $0x4b4] sm:$0xff]
    %v568 = vld [vmem:[#allocation9 + $0x4bc] sm:$0xff]
    %v569 = vld [vmem:[#allocation9 + $0x4c4] sm:$0xf]
    %v570 = vld [vmem:[#allocation9 + $0x4c8] sm:$0xff]
    %v571 = vld [vmem:[#allocation9 + $0x4d0] sm:$0xff]
    %v572 = vld [vmem:[#allocation9 + $0x4d8] sm:$0xff]
    %v573 = vld [vmem:[#allocation9 + $0x4e0] sm:$0xff]
    %v574 = vld [vmem:[#allocation9 + $0x4e8] sm:$0xf]
    %v575 = vld [vmem:[#allocation9 + $0x4ec] sm:$0xff]
    %v576 = vld [vmem:[#allocation9 + $0x4f4] sm:$0xff]
    %v577 = vld [vmem:[#allocation9 + $0x4fc] sm:$0xff]
    %v578 = vld [vmem:[#allocation9 + $0x504] sm:$0xff]
    %v579 = vld [vmem:[#allocation9 + $0x50c] sm:$0xf]
    %v580 = vld [vmem:[#allocation9 + $0x510] sm:$0xff]
    %v581 = vld [vmem:[#allocation9 + $0x518] sm:$0xff]
    %v582 = vld [vmem:[#allocation9 + $0x520] sm:$0xff]
    %v583 = vld [vmem:[#allocation9 + $0x528] sm:$0xff]
    %v584 = vld [vmem:[#allocation9 + $0x530] sm:$0xf]
    %v585 = vld [vmem:[#allocation9 + $0x534] sm:$0xff]
    %v586 = vld [vmem:[#allocation9 + $0x53c] sm:$0xff]
    %v587 = vld [vmem:[#allocation9 + $0x544] sm:$0xff]
    %v588 = vld [vmem:[#allocation9 + $0x54c] sm:$0xff]
    %v589 = vld [vmem:[#allocation9 + $0x554] sm:$0xf]
    %v590 = vld [vmem:[#allocation9 + $0x558] sm:$0xff]
    %v591 = vld [vmem:[#allocation9 + $0x560] sm:$0xff]
    %v592 = vld [vmem:[#allocation9 + $0x568] sm:$0xff]
    %v593 = vld [vmem:[#allocation9 + $0x570] sm:$0xff]
    %v594 = vld [vmem:[#allocation9 + $0x578] sm:$0xf]
    %v595 = vld [vmem:[#allocation9 + $0x57c] sm:$0xff]
    %v596 = vld [vmem:[#allocation9 + $0x584] sm:$0xff]
    %v597 = vld [vmem:[#allocation9 + $0x58c] sm:$0xff]
    %v598 = vld [vmem:[#allocation9 + $0x594] sm:$0xff]
    %v599 = vld [vmem:[#allocation9 + $0x59c] sm:$0xf]
    %v600 = vld [vmem:[#allocation9 + $0x5a0] sm:$0xff]
    %v601 = vld [vmem:[#allocation9 + $0x5a8] sm:$0xff]
    %v602 = vld [vmem:[#allocation9 + $0x5b0] sm:$0xff]
    %v603 = vld [vmem:[#allocation9 + $0x5b8] sm:$0xff]
    %v604 = vld [vmem:[#allocation9 + $0x5c0] sm:$0xf]
    %v605 = vld [vmem:[#allocation9 + $0x5c4] sm:$0xff]
    %v606 = vld [vmem:[#allocation9 + $0x5cc] sm:$0xff]
    %v607 = vld [vmem:[#allocation9 + $0x5d4] sm:$0xff]
    %v608 = vld [vmem:[#allocation9 + $0x5dc] sm:$0xff]
    %v609 = vld [vmem:[#allocation9 + $0x5e4] sm:$0xf]
    %v610 = vld [vmem:[#allocation9 + $0x5e8] sm:$0xff]
    %v611 = vld [vmem:[#allocation9 + $0x5f0] sm:$0xff]
    %v612 = vld [vmem:[#allocation9 + $0x5f8] sm:$0xff]
    %v613 = vld [vmem:[#allocation9 + $0x600] sm:$0xff]
    %v614 = vld [vmem:[#allocation9 + $0x608] sm:$0xf]
    %v615 = vld [vmem:[#allocation9 + $0x60c] sm:$0xff]
    %v616 = vld [vmem:[#allocation9 + $0x614] sm:$0xff]
    %v617 = vld [vmem:[#allocation9 + $0x61c] sm:$0xff]
    %v618 = vld [vmem:[#allocation9 + $0x624] sm:$0xff]
    %v619 = vld [vmem:[#allocation9 + $0x62c] sm:$0xf]
    %v620 = vld [vmem:[#allocation9 + $0x630] sm:$0xff]
    %v621 = vld [vmem:[#allocation9 + $0x638] sm:$0xff]
    %v622 = vld [vmem:[#allocation9 + $0x640] sm:$0xff]
    %v623 = vld [vmem:[#allocation9 + $0x648] sm:$0xff]
    %v624 = vld [vmem:[#allocation9 + $0x650] sm:$0xf]
    %v625 = vld [vmem:[#allocation9 + $0x654] sm:$0xff]
    %v626 = vld [vmem:[#allocation9 + $0x65c] sm:$0xff]
    %v627 = vld [vmem:[#allocation9 + $0x664] sm:$0xff]
    %v628 = vld [vmem:[#allocation9 + $0x66c] sm:$0xff]
    %v629 = vld [vmem:[#allocation9 + $0x674] sm:$0xf]
    %v630 = vld [vmem:[#allocation9 + $0x678] sm:$0xff]
    %v631 = vld [vmem:[#allocation9 + $0x680] sm:$0xff]
    %v632 = vld [vmem:[#allocation9 + $0x688] sm:$0xff]
    %v633 = vld [vmem:[#allocation9 + $0x690] sm:$0xff]
    %v634 = vld [vmem:[#allocation9 + $0x698] sm:$0xf]
    %v635 = vld [vmem:[#allocation9 + $0x69c] sm:$0xff]
    %v636 = vld [vmem:[#allocation9 + $0x6a4] sm:$0xff]
    %v637 = vld [vmem:[#allocation9 + $0x6ac] sm:$0xff]
    %v638 = vld [vmem:[#allocation9 + $0x6b4] sm:$0xff]
    %v639 = vld [vmem:[#allocation9 + $0x6bc] sm:$0xf]
    %v880 = vunpack.c.l.b16 %v400
    %v881 = vunpack.c.h.b16 %v400
    %v882 = vunpack.c.l.b16 %v401
    %v883 = vunpack.c.h.b16 %v401
    %v884 = vunpack.c.l.b16 %v402
    %v885 = vunpack.c.h.b16 %v402
    %v886 = vunpack.c.l.b16 %v403
    %v887 = vunpack.c.h.b16 %v403
    %v888 = vunpack.c.l.b16 %v404
    %v889 = vunpack.c.l.b16 %v405
    %v890 = vunpack.c.h.b16 %v405
    %v891 = vunpack.c.l.b16 %v406
    %v892 = vunpack.c.h.b16 %v406
    %v893 = vunpack.c.l.b16 %v407
    %v894 = vunpack.c.h.b16 %v407
    %v895 = vunpack.c.l.b16 %v408
    %v896 = vunpack.c.h.b16 %v408
    %v897 = vunpack.c.l.b16 %v409
    %v898 = vunpack.c.l.b16 %v410
    %v899 = vunpack.c.h.b16 %v410
    %v900 = vunpack.c.l.b16 %v411
    %v901 = vunpack.c.h.b16 %v411
    %v902 = vunpack.c.l.b16 %v412
    %v903 = vunpack.c.h.b16 %v412
    %v904 = vunpack.c.l.b16 %v413
    %v905 = vunpack.c.h.b16 %v413
    %v906 = vunpack.c.l.b16 %v414
    %v907 = vunpack.c.l.b16 %v415
    %v908 = vunpack.c.h.b16 %v415
    %v909 = vunpack.c.l.b16 %v416
    %v910 = vunpack.c.h.b16 %v416
    %v911 = vunpack.c.l.b16 %v417
    %v912 = vunpack.c.h.b16 %v417
    %v913 = vunpack.c.l.b16 %v418
    %v914 = vunpack.c.h.b16 %v418
    %v915 = vunpack.c.l.b16 %v419
    %v916 = vunpack.c.l.b16 %v420
    %v917 = vunpack.c.h.b16 %v420
    %v918 = vunpack.c.l.b16 %v421
    %v919 = vunpack.c.h.b16 %v421
    %v920 = vunpack.c.l.b16 %v422
    %v921 = vunpack.c.h.b16 %v422
    %v922 = vunpack.c.l.b16 %v423
    %v923 = vunpack.c.h.b16 %v423
    %v924 = vunpack.c.l.b16 %v424
    %v925 = vunpack.c.l.b16 %v425
    %v926 = vunpack.c.h.b16 %v425
    %v927 = vunpack.c.l.b16 %v426
    %v928 = vunpack.c.h.b16 %v426
    %v929 = vunpack.c.l.b16 %v427
    %v930 = vunpack.c.h.b16 %v427
    %v931 = vunpack.c.l.b16 %v428
    %v932 = vunpack.c.h.b16 %v428
    %v933 = vunpack.c.l.b16 %v429
    %v934 = vunpack.c.l.b16 %v430
    %v935 = vunpack.c.h.b16 %v430
    %v936 = vunpack.c.l.b16 %v431
    %v937 = vunpack.c.h.b16 %v431
    %v938 = vunpack.c.l.b16 %v432
    %v939 = vunpack.c.h.b16 %v432
    %v940 = vunpack.c.l.b16 %v433
    %v941 = vunpack.c.h.b16 %v433
    %v942 = vunpack.c.l.b16 %v434
    %v943 = vunpack.c.l.b16 %v435
    %v944 = vunpack.c.h.b16 %v435
    %v945 = vunpack.c.l.b16 %v436
    %v946 = vunpack.c.h.b16 %v436
    %v947 = vunpack.c.l.b16 %v437
    %v948 = vunpack.c.h.b16 %v437
    %v949 = vunpack.c.l.b16 %v438
    %v950 = vunpack.c.h.b16 %v438
    %v951 = vunpack.c.l.b16 %v439
    %v952 = vunpack.c.l.b16 %v440
    %v953 = vunpack.c.h.b16 %v440
    %v954 = vunpack.c.l.b16 %v441
    %v955 = vunpack.c.h.b16 %v441
    %v956 = vunpack.c.l.b16 %v442
    %v957 = vunpack.c.h.b16 %v442
    %v958 = vunpack.c.l.b16 %v443
    %v959 = vunpack.c.h.b16 %v443
    %v960 = vunpack.c.l.b16 %v444
    %v961 = vunpack.c.l.b16 %v445
    %v962 = vunpack.c.h.b16 %v445
    %v963 = vunpack.c.l.b16 %v446
    %v964 = vunpack.c.h.b16 %v446
    %v965 = vunpack.c.l.b16 %v447
    %v966 = vunpack.c.h.b16 %v447
    %v967 = vunpack.c.l.b16 %v448
    %v968 = vunpack.c.h.b16 %v448
    %v969 = vunpack.c.l.b16 %v449
    %v970 = vunpack.c.l.b16 %v450
    %v971 = vunpack.c.h.b16 %v450
    %v972 = vunpack.c.l.b16 %v451
    %v973 = vunpack.c.h.b16 %v451
    %v974 = vunpack.c.l.b16 %v452
    %v975 = vunpack.c.h.b16 %v452
    %v976 = vunpack.c.l.b16 %v453
    %v977 = vunpack.c.h.b16 %v453
    %v978 = vunpack.c.l.b16 %v454
    %v979 = vunpack.c.l.b16 %v455
    %v980 = vunpack.c.h.b16 %v455
    %v981 = vunpack.c.l.b16 %v456
    %v982 = vunpack.c.h.b16 %v456
    %v983 = vunpack.c.l.b16 %v457
    %v984 = vunpack.c.h.b16 %v457
    %v985 = vunpack.c.l.b16 %v458
    %v986 = vunpack.c.h.b16 %v458
    %v987 = vunpack.c.l.b16 %v459
    %v988 = vunpack.c.l.b16 %v460
    %v989 = vunpack.c.h.b16 %v460
    %v990 = vunpack.c.l.b16 %v461
    %v991 = vunpack.c.h.b16 %v461
    %v992 = vunpack.c.l.b16 %v462
    %v993 = vunpack.c.h.b16 %v462
    %v994 = vunpack.c.l.b16 %v463
    %v995 = vunpack.c.h.b16 %v463
    %v996 = vunpack.c.l.b16 %v464
    %v997 = vunpack.c.l.b16 %v465
    %v998 = vunpack.c.h.b16 %v465
    %v999 = vunpack.c.l.b16 %v466
    %v1000 = vunpack.c.h.b16 %v466
    %v1001 = vunpack.c.l.b16 %v467
    %v1002 = vunpack.c.h.b16 %v467
    %v1003 = vunpack.c.l.b16 %v468
    %v1004 = vunpack.c.h.b16 %v468
    %v1005 = vunpack.c.l.b16 %v469
    %v1006 = vunpack.c.l.b16 %v470
    %v1007 = vunpack.c.h.b16 %v470
    %v1008 = vunpack.c.l.b16 %v471
    %v1009 = vunpack.c.h.b16 %v471
    %v1010 = vunpack.c.l.b16 %v472
    %v1011 = vunpack.c.h.b16 %v472
    %v1012 = vunpack.c.l.b16 %v473
    %v1013 = vunpack.c.h.b16 %v473
    %v1014 = vunpack.c.l.b16 %v474
    %v1015 = vunpack.c.l.b16 %v475
    %v1016 = vunpack.c.h.b16 %v475
    %v1017 = vunpack.c.l.b16 %v476
    %v1018 = vunpack.c.h.b16 %v476
    %v1019 = vunpack.c.l.b16 %v477
    %v1020 = vunpack.c.h.b16 %v477
    %v1021 = vunpack.c.l.b16 %v478
    %v1022 = vunpack.c.h.b16 %v478
    %v1023 = vunpack.c.l.b16 %v479
    %v1024 = vunpack.c.l.b16 %v480
    %v1025 = vunpack.c.h.b16 %v480
    %v1026 = vunpack.c.l.b16 %v481
    %v1027 = vunpack.c.h.b16 %v481
    %v1028 = vunpack.c.l.b16 %v482
    %v1029 = vunpack.c.h.b16 %v482
    %v1030 = vunpack.c.l.b16 %v483
    %v1031 = vunpack.c.h.b16 %v483
    %v1032 = vunpack.c.l.b16 %v484
    %v1033 = vunpack.c.l.b16 %v485
    %v1034 = vunpack.c.h.b16 %v485
    %v1035 = vunpack.c.l.b16 %v486
    %v1036 = vunpack.c.h.b16 %v486
    %v1037 = vunpack.c.l.b16 %v487
    %v1038 = vunpack.c.h.b16 %v487
    %v1039 = vunpack.c.l.b16 %v488
    %v1040 = vunpack.c.h.b16 %v488
    %v1041 = vunpack.c.l.b16 %v489
    %v1042 = vunpack.c.l.b16 %v490
    %v1043 = vunpack.c.h.b16 %v490
    %v1044 = vunpack.c.l.b16 %v491
    %v1045 = vunpack.c.h.b16 %v491
    %v1046 = vunpack.c.l.b16 %v492
    %v1047 = vunpack.c.h.b16 %v492
    %v1048 = vunpack.c.l.b16 %v493
    %v1049 = vunpack.c.h.b16 %v493
    %v1050 = vunpack.c.l.b16 %v494
    %v1051 = vunpack.c.l.b16 %v495
    %v1052 = vunpack.c.h.b16 %v495
    %v1053 = vunpack.c.l.b16 %v496
    %v1054 = vunpack.c.h.b16 %v496
    %v1055 = vunpack.c.l.b16 %v497
    %v1056 = vunpack.c.h.b16 %v497
    %v1057 = vunpack.c.l.b16 %v498
    %v1058 = vunpack.c.h.b16 %v498
    %v1059 = vunpack.c.l.b16 %v499
    %v1060 = vunpack.c.l.b16 %v500
    %v1061 = vunpack.c.h.b16 %v500
    %v1062 = vunpack.c.l.b16 %v501
    %v1063 = vunpack.c.h.b16 %v501
    %v1064 = vunpack.c.l.b16 %v502
    %v1065 = vunpack.c.h.b16 %v502
    %v1066 = vunpack.c.l.b16 %v503
    %v1067 = vunpack.c.h.b16 %v503
    %v1068 = vunpack.c.l.b16 %v504
    %v1069 = vunpack.c.l.b16 %v505
    %v1070 = vunpack.c.h.b16 %v505
    %v1071 = vunpack.c.l.b16 %v506
    %v1072 = vunpack.c.h.b16 %v506
    %v1073 = vunpack.c.l.b16 %v507
    %v1074 = vunpack.c.h.b16 %v507
    %v1075 = vunpack.c.l.b16 %v508
    %v1076 = vunpack.c.h.b16 %v508
    %v1077 = vunpack.c.l.b16 %v509
    %v1078 = vunpack.c.l.b16 %v510
    %v1079 = vunpack.c.h.b16 %v510
    %v1080 = vunpack.c.l.b16 %v511
    %v1081 = vunpack.c.h.b16 %v511
    %v1082 = vunpack.c.l.b16 %v512
    %v1083 = vunpack.c.h.b16 %v512
    %v1084 = vunpack.c.l.b16 %v513
    %v1085 = vunpack.c.h.b16 %v513
    %v1086 = vunpack.c.l.b16 %v514
    %v1087 = vunpack.c.l.b16 %v515
    %v1088 = vunpack.c.h.b16 %v515
    %v1089 = vunpack.c.l.b16 %v516
    %v1090 = vunpack.c.h.b16 %v516
    %v1091 = vunpack.c.l.b16 %v517
    %v1092 = vunpack.c.h.b16 %v517
    %v1093 = vunpack.c.l.b16 %v518
    %v1094 = vunpack.c.h.b16 %v518
    %v1095 = vunpack.c.l.b16 %v519
    %v1096 = vunpack.c.l.b16 %v520
    %v1097 = vunpack.c.h.b16 %v520
    %v1098 = vunpack.c.l.b16 %v521
    %v1099 = vunpack.c.h.b16 %v521
    %v1100 = vunpack.c.l.b16 %v522
    %v1101 = vunpack.c.h.b16 %v522
    %v1102 = vunpack.c.l.b16 %v523
    %v1103 = vunpack.c.h.b16 %v523
    %v1104 = vunpack.c.l.b16 %v524
    %v1105 = vunpack.c.l.b16 %v525
    %v1106 = vunpack.c.h.b16 %v525
    %v1107 = vunpack.c.l.b16 %v526
    %v1108 = vunpack.c.h.b16 %v526
    %v1109 = vunpack.c.l.b16 %v527
    %v1110 = vunpack.c.h.b16 %v527
    %v1111 = vunpack.c.l.b16 %v528
    %v1112 = vunpack.c.h.b16 %v528
    %v1113 = vunpack.c.l.b16 %v529
    %v1114 = vunpack.c.l.b16 %v530
    %v1115 = vunpack.c.h.b16 %v530
    %v1116 = vunpack.c.l.b16 %v531
    %v1117 = vunpack.c.h.b16 %v531
    %v1118 = vunpack.c.l.b16 %v532
    %v1119 = vunpack.c.h.b16 %v532
    %v1120 = vunpack.c.l.b16 %v533
    %v1121 = vunpack.c.h.b16 %v533
    %v1122 = vunpack.c.l.b16 %v534
    %v1123 = vunpack.c.l.b16 %v535
    %v1124 = vunpack.c.h.b16 %v535
    %v1125 = vunpack.c.l.b16 %v536
    %v1126 = vunpack.c.h.b16 %v536
    %v1127 = vunpack.c.l.b16 %v537
    %v1128 = vunpack.c.h.b16 %v537
    %v1129 = vunpack.c.l.b16 %v538
    %v1130 = vunpack.c.h.b16 %v538
    %v1131 = vunpack.c.l.b16 %v539
    %v1132 = vunpack.c.l.b16 %v540
    %v1133 = vunpack.c.h.b16 %v540
    %v1134 = vunpack.c.l.b16 %v541
    %v1135 = vunpack.c.h.b16 %v541
    %v1136 = vunpack.c.l.b16 %v542
    %v1137 = vunpack.c.h.b16 %v542
    %v1138 = vunpack.c.l.b16 %v543
    %v1139 = vunpack.c.h.b16 %v543
    %v1140 = vunpack.c.l.b16 %v544
    %v1141 = vunpack.c.l.b16 %v545
    %v1142 = vunpack.c.h.b16 %v545
    %v1143 = vunpack.c.l.b16 %v546
    %v1144 = vunpack.c.h.b16 %v546
    %v1145 = vunpack.c.l.b16 %v547
    %v1146 = vunpack.c.h.b16 %v547
    %v1147 = vunpack.c.l.b16 %v548
    %v1148 = vunpack.c.h.b16 %v548
    %v1149 = vunpack.c.l.b16 %v549
    %v1150 = vunpack.c.l.b16 %v550
    %v1151 = vunpack.c.h.b16 %v550
    %v1152 = vunpack.c.l.b16 %v551
    %v1153 = vunpack.c.h.b16 %v551
    %v1154 = vunpack.c.l.b16 %v552
    %v1155 = vunpack.c.h.b16 %v552
    %v1156 = vunpack.c.l.b16 %v553
    %v1157 = vunpack.c.h.b16 %v553
    %v1158 = vunpack.c.l.b16 %v554
    %v1159 = vunpack.c.l.b16 %v555
    %v1160 = vunpack.c.h.b16 %v555
    %v1161 = vunpack.c.l.b16 %v556
    %v1162 = vunpack.c.h.b16 %v556
    %v1163 = vunpack.c.l.b16 %v557
    %v1164 = vunpack.c.h.b16 %v557
    %v1165 = vunpack.c.l.b16 %v558
    %v1166 = vunpack.c.h.b16 %v558
    %v1167 = vunpack.c.l.b16 %v559
    %v1168 = vunpack.c.l.b16 %v560
    %v1169 = vunpack.c.h.b16 %v560
    %v1170 = vunpack.c.l.b16 %v561
    %v1171 = vunpack.c.h.b16 %v561
    %v1172 = vunpack.c.l.b16 %v562
    %v1173 = vunpack.c.h.b16 %v562
    %v1174 = vunpack.c.l.b16 %v563
    %v1175 = vunpack.c.h.b16 %v563
    %v1176 = vunpack.c.l.b16 %v564
    %v1177 = vunpack.c.l.b16 %v565
    %v1178 = vunpack.c.h.b16 %v565
    %v1179 = vunpack.c.l.b16 %v566
    %v1180 = vunpack.c.h.b16 %v566
    %v1181 = vunpack.c.l.b16 %v567
    %v1182 = vunpack.c.h.b16 %v567
    %v1183 = vunpack.c.l.b16 %v568
    %v1184 = vunpack.c.h.b16 %v568
    %v1185 = vunpack.c.l.b16 %v569
    %v1186 = vunpack.c.l.b16 %v570
    %v1187 = vunpack.c.h.b16 %v570
    %v1188 = vunpack.c.l.b16 %v571
    %v1189 = vunpack.c.h.b16 %v571
    %v1190 = vunpack.c.l.b16 %v572
    %v1191 = vunpack.c.h.b16 %v572
    %v1192 = vunpack.c.l.b16 %v573
    %v1193 = vunpack.c.h.b16 %v573
    %v1194 = vunpack.c.l.b16 %v574
    %v1195 = vunpack.c.l.b16 %v575
    %v1196 = vunpack.c.h.b16 %v575
    %v1197 = vunpack.c.l.b16 %v576
    %v1198 = vunpack.c.h.b16 %v576
    %v1199 = vunpack.c.l.b16 %v577
    %v1200 = vunpack.c.h.b16 %v577
    %v1201 = vunpack.c.l.b16 %v578
    %v1202 = vunpack.c.h.b16 %v578
    %v1203 = vunpack.c.l.b16 %v579
    %v1204 = vunpack.c.l.b16 %v580
    %v1205 = vunpack.c.h.b16 %v580
    %v1206 = vunpack.c.l.b16 %v581
    %v1207 = vunpack.c.h.b16 %v581
    %v1208 = vunpack.c.l.b16 %v582
    %v1209 = vunpack.c.h.b16 %v582
    %v1210 = vunpack.c.l.b16 %v583
    %v1211 = vunpack.c.h.b16 %v583
    %v1212 = vunpack.c.l.b16 %v584
    %v1213 = vunpack.c.l.b16 %v585
    %v1214 = vunpack.c.h.b16 %v585
    %v1215 = vunpack.c.l.b16 %v586
    %v1216 = vunpack.c.h.b16 %v586
    %v1217 = vunpack.c.l.b16 %v587
    %v1218 = vunpack.c.h.b16 %v587
    %v1219 = vunpack.c.l.b16 %v588
    %v1220 = vunpack.c.h.b16 %v588
    %v1221 = vunpack.c.l.b16 %v589
    %v1222 = vunpack.c.l.b16 %v590
    %v1223 = vunpack.c.h.b16 %v590
    %v1224 = vunpack.c.l.b16 %v591
    %v1225 = vunpack.c.h.b16 %v591
    %v1226 = vunpack.c.l.b16 %v592
    %v1227 = vunpack.c.h.b16 %v592
    %v1228 = vunpack.c.l.b16 %v593
    %v1229 = vunpack.c.h.b16 %v593
    %v1230 = vunpack.c.l.b16 %v594
    %v1231 = vunpack.c.l.b16 %v595
    %v1232 = vunpack.c.h.b16 %v595
    %v1233 = vunpack.c.l.b16 %v596
    %v1234 = vunpack.c.h.b16 %v596
    %v1235 = vunpack.c.l.b16 %v597
    %v1236 = vunpack.c.h.b16 %v597
    %v1237 = vunpack.c.l.b16 %v598
    %v1238 = vunpack.c.h.b16 %v598
    %v1239 = vunpack.c.l.b16 %v599
    %v1240 = vunpack.c.l.b16 %v600
    %v1241 = vunpack.c.h.b16 %v600
    %v1242 = vunpack.c.l.b16 %v601
    %v1243 = vunpack.c.h.b16 %v601
    %v1244 = vunpack.c.l.b16 %v602
    %v1245 = vunpack.c.h.b16 %v602
    %v1246 = vunpack.c.l.b16 %v603
    %v1247 = vunpack.c.h.b16 %v603
    %v1248 = vunpack.c.l.b16 %v604
    %v1249 = vunpack.c.l.b16 %v605
    %v1250 = vunpack.c.h.b16 %v605
    %v1251 = vunpack.c.l.b16 %v606
    %v1252 = vunpack.c.h.b16 %v606
    %v1253 = vunpack.c.l.b16 %v607
    %v1254 = vunpack.c.h.b16 %v607
    %v1255 = vunpack.c.l.b16 %v608
    %v1256 = vunpack.c.h.b16 %v608
    %v1257 = vunpack.c.l.b16 %v609
    %v1258 = vunpack.c.l.b16 %v610
    %v1259 = vunpack.c.h.b16 %v610
    %v1260 = vunpack.c.l.b16 %v611
    %v1261 = vunpack.c.h.b16 %v611
    %v1262 = vunpack.c.l.b16 %v612
    %v1263 = vunpack.c.h.b16 %v612
    %v1264 = vunpack.c.l.b16 %v613
    %v1265 = vunpack.c.h.b16 %v613
    %v1266 = vunpack.c.l.b16 %v614
    %v1267 = vunpack.c.l.b16 %v615
    %v1268 = vunpack.c.h.b16 %v615
    %v1269 = vunpack.c.l.b16 %v616
    %v1270 = vunpack.c.h.b16 %v616
    %v1271 = vunpack.c.l.b16 %v617
    %v1272 = vunpack.c.h.b16 %v617
    %v1273 = vunpack.c.l.b16 %v618
    %v1274 = vunpack.c.h.b16 %v618
    %v1275 = vunpack.c.l.b16 %v619
    %v1276 = vunpack.c.l.b16 %v620
    %v1277 = vunpack.c.h.b16 %v620
    %v1278 = vunpack.c.l.b16 %v621
    %v1279 = vunpack.c.h.b16 %v621
    %v1280 = vunpack.c.l.b16 %v622
    %v1281 = vunpack.c.h.b16 %v622
    %v1282 = vunpack.c.l.b16 %v623
    %v1283 = vunpack.c.h.b16 %v623
    %v1284 = vunpack.c.l.b16 %v624
    %v1285 = vunpack.c.l.b16 %v625
    %v1286 = vunpack.c.h.b16 %v625
    %v1287 = vunpack.c.l.b16 %v626
    %v1288 = vunpack.c.h.b16 %v626
    %v1289 = vunpack.c.l.b16 %v627
    %v1290 = vunpack.c.h.b16 %v627
    %v1291 = vunpack.c.l.b16 %v628
    %v1292 = vunpack.c.h.b16 %v628
    %v1293 = vunpack.c.l.b16 %v629
    %v1294 = vunpack.c.l.b16 %v630
    %v1295 = vunpack.c.h.b16 %v630
    %v1296 = vunpack.c.l.b16 %v631
    %v1297 = vunpack.c.h.b16 %v631
    %v1298 = vunpack.c.l.b16 %v632
    %v1299 = vunpack.c.h.b16 %v632
    %v1300 = vunpack.c.l.b16 %v633
    %v1301 = vunpack.c.h.b16 %v633
    %v1302 = vunpack.c.l.b16 %v634
    %v1303 = vunpack.c.l.b16 %v635
    %v1304 = vunpack.c.h.b16 %v635
    %v1305 = vunpack.c.l.b16 %v636
    %v1306 = vunpack.c.h.b16 %v636
    %v1307 = vunpack.c.l.b16 %v637
    %v1308 = vunpack.c.h.b16 %v637
    %v1309 = vunpack.c.l.b16 %v638
    %v1310 = vunpack.c.h.b16 %v638
    %v1311 = vunpack.c.l.b16 %v639
    %v1312 = vpack.c.b16 %v889, %v880
    %v1313 = vpack.c.b16 %v890, %v881
    %v1314 = vpack.c.b16 %v891, %v882
    %v1315 = vpack.c.b16 %v892, %v883
    %v1316 = vpack.c.b16 %v893, %v884
    %v1317 = vpack.c.b16 %v894, %v885
    %v1318 = vpack.c.b16 %v895, %v886
    %v1319 = vpack.c.b16 %v896, %v887
    %v1320 = vpack.c.b16 %v897, %v888
    %v1321 = vpack.c.b16 %v907, %v898
    %v1322 = vpack.c.b16 %v908, %v899
    %v1323 = vpack.c.b16 %v909, %v900
    %v1324 = vpack.c.b16 %v910, %v901
    %v1325 = vpack.c.b16 %v911, %v902
    %v1326 = vpack.c.b16 %v912, %v903
    %v1327 = vpack.c.b16 %v913, %v904
    %v1328 = vpack.c.b16 %v914, %v905
    %v1329 = vpack.c.b16 %v915, %v906
    %v1330 = vpack.c.b16 %v925, %v916
    %v1331 = vpack.c.b16 %v926, %v917
    %v1332 = vpack.c.b16 %v927, %v918
    %v1333 = vpack.c.b16 %v928, %v919
    %v1334 = vpack.c.b16 %v929, %v920
    %v1335 = vpack.c.b16 %v930, %v921
    %v1336 = vpack.c.b16 %v931, %v922
    %v1337 = vpack.c.b16 %v932, %v923
    %v1338 = vpack.c.b16 %v933, %v924
    %v1339 = vpack.c.b16 %v943, %v934
    %v1340 = vpack.c.b16 %v944, %v935
    %v1341 = vpack.c.b16 %v945, %v936
    %v1342 = vpack.c.b16 %v946, %v937
    %v1343 = vpack.c.b16 %v947, %v938
    %v1344 = vpack.c.b16 %v948, %v939
    %v1345 = vpack.c.b16 %v949, %v940
    %v1346 = vpack.c.b16 %v950, %v941
    %v1347 = vpack.c.b16 %v951, %v942
    %v1348 = vpack.c.b16 %v961, %v952
    %v1349 = vpack.c.b16 %v962, %v953
    %v1350 = vpack.c.b16 %v963, %v954
    %v1351 = vpack.c.b16 %v964, %v955
    %v1352 = vpack.c.b16 %v965, %v956
    %v1353 = vpack.c.b16 %v966, %v957
    %v1354 = vpack.c.b16 %v967, %v958
    %v1355 = vpack.c.b16 %v968, %v959
    %v1356 = vpack.c.b16 %v969, %v960
    %v1357 = vpack.c.b16 %v979, %v970
    %v1358 = vpack.c.b16 %v980, %v971
    %v1359 = vpack.c.b16 %v981, %v972
    %v1360 = vpack.c.b16 %v982, %v973
    %v1361 = vpack.c.b16 %v983, %v974
    %v1362 = vpack.c.b16 %v984, %v975
    %v1363 = vpack.c.b16 %v985, %v976
    %v1364 = vpack.c.b16 %v986, %v977
    %v1365 = vpack.c.b16 %v987, %v978
    %v1366 = vpack.c.b16 %v997, %v988
    %v1367 = vpack.c.b16 %v998, %v989
    %v1368 = vpack.c.b16 %v999, %v990
    %v1369 = vpack.c.b16 %v1000, %v991
    %v1370 = vpack.c.b16 %v1001, %v992
    %v1371 = vpack.c.b16 %v1002, %v993
    %v1372 = vpack.c.b16 %v1003, %v994
    %v1373 = vpack.c.b16 %v1004, %v995
    %v1374 = vpack.c.b16 %v1005, %v996
    %v1375 = vpack.c.b16 %v1015, %v1006
    %v1376 = vpack.c.b16 %v1016, %v1007
    %v1377 = vpack.c.b16 %v1017, %v1008
    %v1378 = vpack.c.b16 %v1018, %v1009
    %v1379 = vpack.c.b16 %v1019, %v1010
    %v1380 = vpack.c.b16 %v1020, %v1011
    %v1381 = vpack.c.b16 %v1021, %v1012
    %v1382 = vpack.c.b16 %v1022, %v1013
    %v1383 = vpack.c.b16 %v1023, %v1014
    %v1384 = vpack.c.b16 %v1033, %v1024
    %v1385 = vpack.c.b16 %v1034, %v1025
    %v1386 = vpack.c.b16 %v1035, %v1026
    %v1387 = vpack.c.b16 %v1036, %v1027
    %v1388 = vpack.c.b16 %v1037, %v1028
    %v1389 = vpack.c.b16 %v1038, %v1029
    %v1390 = vpack.c.b16 %v1039, %v1030
    %v1391 = vpack.c.b16 %v1040, %v1031
    %v1392 = vpack.c.b16 %v1041, %v1032
    %v1393 = vpack.c.b16 %v1051, %v1042
    %v1394 = vpack.c.b16 %v1052, %v1043
    %v1395 = vpack.c.b16 %v1053, %v1044
    %v1396 = vpack.c.b16 %v1054, %v1045
    %v1397 = vpack.c.b16 %v1055, %v1046
    %v1398 = vpack.c.b16 %v1056, %v1047
    %v1399 = vpack.c.b16 %v1057, %v1048
    %v1400 = vpack.c.b16 %v1058, %v1049
    %v1401 = vpack.c.b16 %v1059, %v1050
    %v1402 = vpack.c.b16 %v1069, %v1060
    %v1403 = vpack.c.b16 %v1070, %v1061
    %v1404 = vpack.c.b16 %v1071, %v1062
    %v1405 = vpack.c.b16 %v1072, %v1063
    %v1406 = vpack.c.b16 %v1073, %v1064
    %v1407 = vpack.c.b16 %v1074, %v1065
    %v1408 = vpack.c.b16 %v1075, %v1066
    %v1409 = vpack.c.b16 %v1076, %v1067
    %v1410 = vpack.c.b16 %v1077, %v1068
    %v1411 = vpack.c.b16 %v1087, %v1078
    %v1412 = vpack.c.b16 %v1088, %v1079
    %v1413 = vpack.c.b16 %v1089, %v1080
    %v1414 = vpack.c.b16 %v1090, %v1081
    %v1415 = vpack.c.b16 %v1091, %v1082
    %v1416 = vpack.c.b16 %v1092, %v1083
    %v1417 = vpack.c.b16 %v1093, %v1084
    %v1418 = vpack.c.b16 %v1094, %v1085
    %v1419 = vpack.c.b16 %v1095, %v1086
    %v1420 = vpack.c.b16 %v1105, %v1096
    %v1421 = vpack.c.b16 %v1106, %v1097
    %v1422 = vpack.c.b16 %v1107, %v1098
    %v1423 = vpack.c.b16 %v1108, %v1099
    %v1424 = vpack.c.b16 %v1109, %v1100
    %v1425 = vpack.c.b16 %v1110, %v1101
    %v1426 = vpack.c.b16 %v1111, %v1102
    %v1427 = vpack.c.b16 %v1112, %v1103
    %v1428 = vpack.c.b16 %v1113, %v1104
    %v1429 = vpack.c.b16 %v1123, %v1114
    %v1430 = vpack.c.b16 %v1124, %v1115
    %v1431 = vpack.c.b16 %v1125, %v1116
    %v1432 = vpack.c.b16 %v1126, %v1117
    %v1433 = vpack.c.b16 %v1127, %v1118
    %v1434 = vpack.c.b16 %v1128, %v1119
    %v1435 = vpack.c.b16 %v1129, %v1120
    %v1436 = vpack.c.b16 %v1130, %v1121
    %v1437 = vpack.c.b16 %v1131, %v1122
    %v1438 = vpack.c.b16 %v1141, %v1132
    %v1439 = vpack.c.b16 %v1142, %v1133
    %v1440 = vpack.c.b16 %v1143, %v1134
    %v1441 = vpack.c.b16 %v1144, %v1135
    %v1442 = vpack.c.b16 %v1145, %v1136
    %v1443 = vpack.c.b16 %v1146, %v1137
    %v1444 = vpack.c.b16 %v1147, %v1138
    %v1445 = vpack.c.b16 %v1148, %v1139
    %v1446 = vpack.c.b16 %v1149, %v1140
    %v1447 = vpack.c.b16 %v1159, %v1150
    %v1448 = vpack.c.b16 %v1160, %v1151
    %v1449 = vpack.c.b16 %v1161, %v1152
    %v1450 = vpack.c.b16 %v1162, %v1153
    %v1451 = vpack.c.b16 %v1163, %v1154
    %v1452 = vpack.c.b16 %v1164, %v1155
    %v1453 = vpack.c.b16 %v1165, %v1156
    %v1454 = vpack.c.b16 %v1166, %v1157
    %v1455 = vpack.c.b16 %v1167, %v1158
    %v1456 = vpack.c.b16 %v1177, %v1168
    %v1457 = vpack.c.b16 %v1178, %v1169
    %v1458 = vpack.c.b16 %v1179, %v1170
    %v1459 = vpack.c.b16 %v1180, %v1171
    %v1460 = vpack.c.b16 %v1181, %v1172
    %v1461 = vpack.c.b16 %v1182, %v1173
    %v1462 = vpack.c.b16 %v1183, %v1174
    %v1463 = vpack.c.b16 %v1184, %v1175
    %v1464 = vpack.c.b16 %v1185, %v1176
    %v1465 = vpack.c.b16 %v1195, %v1186
    %v1466 = vpack.c.b16 %v1196, %v1187
    %v1467 = vpack.c.b16 %v1197, %v1188
    %v1468 = vpack.c.b16 %v1198, %v1189
    %v1469 = vpack.c.b16 %v1199, %v1190
    %v1470 = vpack.c.b16 %v1200, %v1191
    %v1471 = vpack.c.b16 %v1201, %v1192
    %v1472 = vpack.c.b16 %v1202, %v1193
    %v1473 = vpack.c.b16 %v1203, %v1194
    %v1474 = vpack.c.b16 %v1213, %v1204
    %v1475 = vpack.c.b16 %v1214, %v1205
    %v1476 = vpack.c.b16 %v1215, %v1206
    %v1477 = vpack.c.b16 %v1216, %v1207
    %v1478 = vpack.c.b16 %v1217, %v1208
    %v1479 = vpack.c.b16 %v1218, %v1209
    %v1480 = vpack.c.b16 %v1219, %v1210
    %v1481 = vpack.c.b16 %v1220, %v1211
    %v1482 = vpack.c.b16 %v1221, %v1212
    %v1483 = vpack.c.b16 %v1231, %v1222
    %v1484 = vpack.c.b16 %v1232, %v1223
    %v1485 = vpack.c.b16 %v1233, %v1224
    %v1486 = vpack.c.b16 %v1234, %v1225
    %v1487 = vpack.c.b16 %v1235, %v1226
    %v1488 = vpack.c.b16 %v1236, %v1227
    %v1489 = vpack.c.b16 %v1237, %v1228
    %v1490 = vpack.c.b16 %v1238, %v1229
    %v1491 = vpack.c.b16 %v1239, %v1230
    %v1492 = vpack.c.b16 %v1249, %v1240
    %v1493 = vpack.c.b16 %v1250, %v1241
    %v1494 = vpack.c.b16 %v1251, %v1242
    %v1495 = vpack.c.b16 %v1252, %v1243
    %v1496 = vpack.c.b16 %v1253, %v1244
    %v1497 = vpack.c.b16 %v1254, %v1245
    %v1498 = vpack.c.b16 %v1255, %v1246
    %v1499 = vpack.c.b16 %v1256, %v1247
    %v1500 = vpack.c.b16 %v1257, %v1248
    %v1501 = vpack.c.b16 %v1267, %v1258
    %v1502 = vpack.c.b16 %v1268, %v1259
    %v1503 = vpack.c.b16 %v1269, %v1260
    %v1504 = vpack.c.b16 %v1270, %v1261
    %v1505 = vpack.c.b16 %v1271, %v1262
    %v1506 = vpack.c.b16 %v1272, %v1263
    %v1507 = vpack.c.b16 %v1273, %v1264
    %v1508 = vpack.c.b16 %v1274, %v1265
    %v1509 = vpack.c.b16 %v1275, %v1266
    %v1510 = vpack.c.b16 %v1285, %v1276
    %v1511 = vpack.c.b16 %v1286, %v1277
    %v1512 = vpack.c.b16 %v1287, %v1278
    %v1513 = vpack.c.b16 %v1288, %v1279
    %v1514 = vpack.c.b16 %v1289, %v1280
    %v1515 = vpack.c.b16 %v1290, %v1281
    %v1516 = vpack.c.b16 %v1291, %v1282
    %v1517 = vpack.c.b16 %v1292, %v1283
    %v1518 = vpack.c.b16 %v1293, %v1284
    %v1519 = vpack.c.b16 %v1303, %v1294
    %v1520 = vpack.c.b16 %v1304, %v1295
    %v1521 = vpack.c.b16 %v1305, %v1296
    %v1522 = vpack.c.b16 %v1306, %v1297
    %v1523 = vpack.c.b16 %v1307, %v1298
    %v1524 = vpack.c.b16 %v1308, %v1299
    %v1525 = vpack.c.b16 %v1309, %v1300
    %v1526 = vpack.c.b16 %v1310, %v1301
    %v1527 = vpack.c.b16 %v1311, %v1302
    %1744 = vmatpush.bf16.msra.mxu0 %v1375
    %1745 = vmatpush.bf16.msra.mxu0 %v1366
    %1746 = vmatpush.bf16.msra.mxu0 %v1357
    %1747 = vmatpush.bf16.msra.mxu0 %v1348
    %1748 = vmatpush.bf16.msra.mxu0 %v1339
    %1749 = vmatpush.bf16.msra.mxu0 %v1330
    %1750 = vmatpush.bf16.msra.mxu0 %v1321
    %1751 = vmatpush.bf16.msra.mxu0 %v1312
    %1752 = vmatmul.bf16.gmra.mxu0 %v394
    %v1753 = vpop.f32.mrf.mxu0
    %v1754 = vadd.f32 0.0, %v1753
    %v1755 = vpop.f32.mrf.mxu0
    %v1756 = vadd.f32 0.0, %v1755
    %1757 = vmatmul.bf16.gmra.mxu0 %v397
    %v1758 = vpop.f32.mrf.mxu0
    %v1759 = vadd.f32 0.0, %v1758
    %v1760 = vpop.f32.mrf.mxu0
    %v1761 = vadd.f32 0.0, %v1760
    %1762 = vdwg.mxu0
    %1763 = vmatpush.bf16.msra.mxu0 %v1447
    %1764 = vmatpush.bf16.msra.mxu0 %v1438
    %1765 = vmatpush.bf16.msra.mxu0 %v1429
    %1766 = vmatpush.bf16.msra.mxu0 %v1420
    %1767 = vmatpush.bf16.msra.mxu0 %v1411
    %1768 = vmatpush.bf16.msra.mxu0 %v1402
    %1769 = vmatpush.bf16.msra.mxu0 %v1393
    %1770 = vmatpush.bf16.msra.mxu0 %v1384
    %1771 = vmatmul.bf16.gmra.mxu0 %v395
    %v1772 = vpop.f32.mrf.mxu0
    %v1773 = vadd.f32 %v1754, %v1772
    %v1774 = vpop.f32.mrf.mxu0
    %v1775 = vadd.f32 %v1756, %v1774
    %1776 = vmatmul.bf16.gmra.mxu0 %v398
    %v1777 = vpop.f32.mrf.mxu0
    %v1778 = vadd.f32 %v1759, %v1777
    %v1779 = vpop.f32.mrf.mxu0
    %v1780 = vadd.f32 %v1761, %v1779
    %1781 = vdwg.mxu0
    %1782 = vmatpush.bf16.msra.mxu0 %v1519
    %1783 = vmatpush.bf16.msra.mxu0 %v1510
    %1784 = vmatpush.bf16.msra.mxu0 %v1501
    %1785 = vmatpush.bf16.msra.mxu0 %v1492
    %1786 = vmatpush.bf16.msra.mxu0 %v1483
    %1787 = vmatpush.bf16.msra.mxu0 %v1474
    %1788 = vmatpush.bf16.msra.mxu0 %v1465
    %1789 = vmatpush.bf16.msra.mxu0 %v1456
    %1790 = vmatmul.bf16.gmra.mxu0 %v396
    %v1791 = vpop.f32.mrf.mxu0
    %v1792 = vadd.f32 %v1773, %v1791
    %v1793 = vpop.f32.mrf.mxu0
    %v1794 = vadd.f32 %v1775, %v1793
    %1795 = vmatmul.bf16.gmra.mxu0 %v399
    %v1796 = vpop.f32.mrf.mxu0
    %v1797 = vadd.f32 %v1778, %v1796
    %v1798 = vpop.f32.mrf.mxu0
    %v1799 = vadd.f32 %v1780, %v1798
    %1800 = vdwg.mxu0
    %1801 = vmatpush.bf16.msra.mxu0 %v1376
    %1802 = vmatpush.bf16.msra.mxu0 %v1367
    %1803 = vmatpush.bf16.msra.mxu0 %v1358
    %1804 = vmatpush.bf16.msra.mxu0 %v1349
    %1805 = vmatpush.bf16.msra.mxu0 %v1340
    %1806 = vmatpush.bf16.msra.mxu0 %v1331
    %1807 = vmatpush.bf16.msra.mxu0 %v1322
    %1808 = vmatpush.bf16.msra.mxu0 %v1313
    %1809 = vmatmul.bf16.gmra.mxu0 %v394
    %v1810 = vpop.f32.mrf.mxu0
    %v1811 = vadd.f32 0.0, %v1810
    %v1812 = vpop.f32.mrf.mxu0
    %v1813 = vadd.f32 0.0, %v1812
    %1814 = vmatmul.bf16.gmra.mxu0 %v397
    %v1815 = vpop.f32.mrf.mxu0
    %v1816 = vadd.f32 0.0, %v1815
    %v1817 = vpop.f32.mrf.mxu0
    %v1818 = vadd.f32 0.0, %v1817
    %1819 = vdwg.mxu0
    %1820 = vmatpush.bf16.msra.mxu0 %v1448
    %1821 = vmatpush.bf16.msra.mxu0 %v1439
    %1822 = vmatpush.bf16.msra.mxu0 %v1430
    %1823 = vmatpush.bf16.msra.mxu0 %v1421
    %1824 = vmatpush.bf16.msra.mxu0 %v1412
    %1825 = vmatpush.bf16.msra.mxu0 %v1403
    %1826 = vmatpush.bf16.msra.mxu0 %v1394
    %1827 = vmatpush.bf16.msra.mxu0 %v1385
    %1828 = vmatmul.bf16.gmra.mxu0 %v395
    %v1829 = vpop.f32.mrf.mxu0
    %v1830 = vadd.f32 %v1811, %v1829
    %v1831 = vpop.f32.mrf.mxu0
    %v1832 = vadd.f32 %v1813, %v1831
    %1833 = vmatmul.bf16.gmra.mxu0 %v398
    %v1834 = vpop.f32.mrf.mxu0
    %v1835 = vadd.f32 %v1816, %v1834
    %v1836 = vpop.f32.mrf.mxu0
    %v1837 = vadd.f32 %v1818, %v1836
    %1838 = vdwg.mxu0
    %1839 = vmatpush.bf16.msra.mxu0 %v1520
    %1840 = vmatpush.bf16.msra.mxu0 %v1511
    %1841 = vmatpush.bf16.msra.mxu0 %v1502
    %1842 = vmatpush.bf16.msra.mxu0 %v1493
    %1843 = vmatpush.bf16.msra.mxu0 %v1484
    %1844 = vmatpush.bf16.msra.mxu0 %v1475
    %1845 = vmatpush.bf16.msra.mxu0 %v1466
    %1846 = vmatpush.bf16.msra.mxu0 %v1457
    %1847 = vmatmul.bf16.gmra.mxu0 %v396
    %v1848 = vpop.f32.mrf.mxu0
    %v1849 = vadd.f32 %v1830, %v1848
    %v1850 = vpop.f32.mrf.mxu0
    %v1851 = vadd.f32 %v1832, %v1850
    %1852 = vmatmul.bf16.gmra.mxu0 %v399
    %v1853 = vpop.f32.mrf.mxu0
    %v1854 = vadd.f32 %v1835, %v1853
    %v1855 = vpop.f32.mrf.mxu0
    %v1856 = vadd.f32 %v1837, %v1855
    %1857 = vdwg.mxu0
    %1858 = vmatpush.bf16.msra.mxu0 %v1377
    %1859 = vmatpush.bf16.msra.mxu0 %v1368
    %1860 = vmatpush.bf16.msra.mxu0 %v1359
    %1861 = vmatpush.bf16.msra.mxu0 %v1350
    %1862 = vmatpush.bf16.msra.mxu0 %v1341
    %1863 = vmatpush.bf16.msra.mxu0 %v1332
    %1864 = vmatpush.bf16.msra.mxu0 %v1323
    %1865 = vmatpush.bf16.msra.mxu0 %v1314
    %1866 = vmatmul.bf16.gmra.mxu0 %v394
    %v1867 = vpop.f32.mrf.mxu0
    %v1868 = vadd.f32 0.0, %v1867
    %v1869 = vpop.f32.mrf.mxu0
    %v1870 = vadd.f32 0.0, %v1869
    %1871 = vmatmul.bf16.gmra.mxu0 %v397
    %v1872 = vpop.f32.mrf.mxu0
    %v1873 = vadd.f32 0.0, %v1872
    %v1874 = vpop.f32.mrf.mxu0
    %v1875 = vadd.f32 0.0, %v1874
    %1876 = vdwg.mxu0
    %1877 = vmatpush.bf16.msra.mxu0 %v1449
    %1878 = vmatpush.bf16.msra.mxu0 %v1440
    %1879 = vmatpush.bf16.msra.mxu0 %v1431
    %1880 = vmatpush.bf16.msra.mxu0 %v1422
    %1881 = vmatpush.bf16.msra.mxu0 %v1413
    %1882 = vmatpush.bf16.msra.mxu0 %v1404
    %1883 = vmatpush.bf16.msra.mxu0 %v1395
    %1884 = vmatpush.bf16.msra.mxu0 %v1386
    %1885 = vmatmul.bf16.gmra.mxu0 %v395
    %v1886 = vpop.f32.mrf.mxu0
    %v1887 = vadd.f32 %v1868, %v1886
    %v1888 = vpop.f32.mrf.mxu0
    %v1889 = vadd.f32 %v1870, %v1888
    %1890 = vmatmul.bf16.gmra.mxu0 %v398
    %v1891 = vpop.f32.mrf.mxu0
    %v1892 = vadd.f32 %v1873, %v1891
    %v1893 = vpop.f32.mrf.mxu0
    %v1894 = vadd.f32 %v1875, %v1893
    %1895 = vdwg.mxu0
    %1896 = vmatpush.bf16.msra.mxu0 %v1521
    %1897 = vmatpush.bf16.msra.mxu0 %v1512
    %1898 = vmatpush.bf16.msra.mxu0 %v1503
    %1899 = vmatpush.bf16.msra.mxu0 %v1494
    %1900 = vmatpush.bf16.msra.mxu0 %v1485
    %1901 = vmatpush.bf16.msra.mxu0 %v1476
    %1902 = vmatpush.bf16.msra.mxu0 %v1467
    %1903 = vmatpush.bf16.msra.mxu0 %v1458
    %1904 = vmatmul.bf16.gmra.mxu0 %v396
    %v1905 = vpop.f32.mrf.mxu0
    %v1906 = vadd.f32 %v1887, %v1905
    %v1907 = vpop.f32.mrf.mxu0
    %v1908 = vadd.f32 %v1889, %v1907
    %1909 = vmatmul.bf16.gmra.mxu0 %v399
    %v1910 = vpop.f32.mrf.mxu0
    %v1911 = vadd.f32 %v1892, %v1910
    %v1912 = vpop.f32.mrf.mxu0
    %v1913 = vadd.f32 %v1894, %v1912
    %1914 = vdwg.mxu0
    %1915 = vmatpush.bf16.msra.mxu0 %v1378
    %1916 = vmatpush.bf16.msra.mxu0 %v1369
    %1917 = vmatpush.bf16.msra.mxu0 %v1360
    %1918 = vmatpush.bf16.msra.mxu0 %v1351
    %1919 = vmatpush.bf16.msra.mxu0 %v1342
    %1920 = vmatpush.bf16.msra.mxu0 %v1333
    %1921 = vmatpush.bf16.msra.mxu0 %v1324
    %1922 = vmatpush.bf16.msra.mxu0 %v1315
    %1923 = vmatmul.bf16.gmra.mxu0 %v394
    %v1924 = vpop.f32.mrf.mxu0
    %v1925 = vadd.f32 0.0, %v1924
    %v1926 = vpop.f32.mrf.mxu0
    %v1927 = vadd.f32 0.0, %v1926
    %1928 = vmatmul.bf16.gmra.mxu0 %v397
    %v1929 = vpop.f32.mrf.mxu0
    %v1930 = vadd.f32 0.0, %v1929
    %v1931 = vpop.f32.mrf.mxu0
    %v1932 = vadd.f32 0.0, %v1931
    %1933 = vdwg.mxu0
    %1934 = vmatpush.bf16.msra.mxu0 %v1450
    %1935 = vmatpush.bf16.msra.mxu0 %v1441
    %1936 = vmatpush.bf16.msra.mxu0 %v1432
    %1937 = vmatpush.bf16.msra.mxu0 %v1423
    %1938 = vmatpush.bf16.msra.mxu0 %v1414
    %1939 = vmatpush.bf16.msra.mxu0 %v1405
    %1940 = vmatpush.bf16.msra.mxu0 %v1396
    %1941 = vmatpush.bf16.msra.mxu0 %v1387
    %1942 = vmatmul.bf16.gmra.mxu0 %v395
    %v1943 = vpop.f32.mrf.mxu0
    %v1944 = vadd.f32 %v1925, %v1943
    %v1945 = vpop.f32.mrf.mxu0
    %v1946 = vadd.f32 %v1927, %v1945
    %1947 = vmatmul.bf16.gmra.mxu0 %v398
    %v1948 = vpop.f32.mrf.mxu0
    %v1949 = vadd.f32 %v1930, %v1948
    %v1950 = vpop.f32.mrf.mxu0
    %v1951 = vadd.f32 %v1932, %v1950
    %1952 = vdwg.mxu0
    %1953 = vmatpush.bf16.msra.mxu0 %v1522
    %1954 = vmatpush.bf16.msra.mxu0 %v1513
    %1955 = vmatpush.bf16.msra.mxu0 %v1504
    %1956 = vmatpush.bf16.msra.mxu0 %v1495
    %1957 = vmatpush.bf16.msra.mxu0 %v1486
    %1958 = vmatpush.bf16.msra.mxu0 %v1477
    %1959 = vmatpush.bf16.msra.mxu0 %v1468
    %1960 = vmatpush.bf16.msra.mxu0 %v1459
    %1961 = vmatmul.bf16.gmra.mxu0 %v396
    %v1962 = vpop.f32.mrf.mxu0
    %v1963 = vadd.f32 %v1944, %v1962
    %v1964 = vpop.f32.mrf.mxu0
    %v1965 = vadd.f32 %v1946, %v1964
    %1966 = vmatmul.bf16.gmra.mxu0 %v399
    %v1967 = vpop.f32.mrf.mxu0
    %v1968 = vadd.f32 %v1949, %v1967
    %v1969 = vpop.f32.mrf.mxu0
    %v1970 = vadd.f32 %v1951, %v1969
    %1971 = vdwg.mxu0
    %1972 = vmatpush.bf16.msra.mxu0 %v1379
    %1973 = vmatpush.bf16.msra.mxu0 %v1370
    %1974 = vmatpush.bf16.msra.mxu0 %v1361
    %1975 = vmatpush.bf16.msra.mxu0 %v1352
    %1976 = vmatpush.bf16.msra.mxu0 %v1343
    %1977 = vmatpush.bf16.msra.mxu0 %v1334
    %1978 = vmatpush.bf16.msra.mxu0 %v1325
    %1979 = vmatpush.bf16.msra.mxu0 %v1316
    %1980 = vmatmul.bf16.gmra.mxu0 %v394
    %v1981 = vpop.f32.mrf.mxu0
    %v1982 = vadd.f32 0.0, %v1981
    %v1983 = vpop.f32.mrf.mxu0
    %v1984 = vadd.f32 0.0, %v1983
    %1985 = vmatmul.bf16.gmra.mxu0 %v397
    %v1986 = vpop.f32.mrf.mxu0
    %v1987 = vadd.f32 0.0, %v1986
    %v1988 = vpop.f32.mrf.mxu0
    %v1989 = vadd.f32 0.0, %v1988
    %1990 = vdwg.mxu0
    %1991 = vmatpush.bf16.msra.mxu0 %v1451
    %1992 = vmatpush.bf16.msra.mxu0 %v1442
    %1993 = vmatpush.bf16.msra.mxu0 %v1433
    %1994 = vmatpush.bf16.msra.mxu0 %v1424
    %1995 = vmatpush.bf16.msra.mxu0 %v1415
    %1996 = vmatpush.bf16.msra.mxu0 %v1406
    %1997 = vmatpush.bf16.msra.mxu0 %v1397
    %1998 = vmatpush.bf16.msra.mxu0 %v1388
    %1999 = vmatmul.bf16.gmra.mxu0 %v395
    %v2000 = vpop.f32.mrf.mxu0
    %v2001 = vadd.f32 %v1982, %v2000
    %v2002 = vpop.f32.mrf.mxu0
    %v2003 = vadd.f32 %v1984, %v2002
    %2004 = vmatmul.bf16.gmra.mxu0 %v398
    %v2005 = vpop.f32.mrf.mxu0
    %v2006 = vadd.f32 %v1987, %v2005
    %v2007 = vpop.f32.mrf.mxu0
    %v2008 = vadd.f32 %v1989, %v2007
    %2009 = vdwg.mxu0
    %2010 = vmatpush.bf16.msra.mxu0 %v1523
    %2011 = vmatpush.bf16.msra.mxu0 %v1514
    %2012 = vmatpush.bf16.msra.mxu0 %v1505
    %2013 = vmatpush.bf16.msra.mxu0 %v1496
    %2014 = vmatpush.bf16.msra.mxu0 %v1487
    %2015 = vmatpush.bf16.msra.mxu0 %v1478
    %2016 = vmatpush.bf16.msra.mxu0 %v1469
    %2017 = vmatpush.bf16.msra.mxu0 %v1460
    %2018 = vmatmul.bf16.gmra.mxu0 %v396
    %v2019 = vpop.f32.mrf.mxu0
    %v2020 = vadd.f32 %v2001, %v2019
    %v2021 = vpop.f32.mrf.mxu0
    %v2022 = vadd.f32 %v2003, %v2021
    %2023 = vmatmul.bf16.gmra.mxu0 %v399
    %v2024 = vpop.f32.mrf.mxu0
    %v2025 = vadd.f32 %v2006, %v2024
    %v2026 = vpop.f32.mrf.mxu0
    %v2027 = vadd.f32 %v2008, %v2026
    %2028 = vdwg.mxu0
    %2029 = vmatpush.bf16.msra.mxu0 %v1380
    %2030 = vmatpush.bf16.msra.mxu0 %v1371
    %2031 = vmatpush.bf16.msra.mxu0 %v1362
    %2032 = vmatpush.bf16.msra.mxu0 %v1353
    %2033 = vmatpush.bf16.msra.mxu0 %v1344
    %2034 = vmatpush.bf16.msra.mxu0 %v1335
    %2035 = vmatpush.bf16.msra.mxu0 %v1326
    %2036 = vmatpush.bf16.msra.mxu0 %v1317
    %2037 = vmatmul.bf16.gmra.mxu0 %v394
    %v2038 = vpop.f32.mrf.mxu0
    %v2039 = vadd.f32 0.0, %v2038
    %v2040 = vpop.f32.mrf.mxu0
    %v2041 = vadd.f32 0.0, %v2040
    %2042 = vmatmul.bf16.gmra.mxu0 %v397
    %v2043 = vpop.f32.mrf.mxu0
    %v2044 = vadd.f32 0.0, %v2043
    %v2045 = vpop.f32.mrf.mxu0
    %v2046 = vadd.f32 0.0, %v2045
    %2047 = vdwg.mxu0
    %2048 = vmatpush.bf16.msra.mxu0 %v1452
    %2049 = vmatpush.bf16.msra.mxu0 %v1443
    %2050 = vmatpush.bf16.msra.mxu0 %v1434
    %2051 = vmatpush.bf16.msra.mxu0 %v1425
    %2052 = vmatpush.bf16.msra.mxu0 %v1416
    %2053 = vmatpush.bf16.msra.mxu0 %v1407
    %2054 = vmatpush.bf16.msra.mxu0 %v1398
    %2055 = vmatpush.bf16.msra.mxu0 %v1389
    %2056 = vmatmul.bf16.gmra.mxu0 %v395
    %v2057 = vpop.f32.mrf.mxu0
    %v2058 = vadd.f32 %v2039, %v2057
    %v2059 = vpop.f32.mrf.mxu0
    %v2060 = vadd.f32 %v2041, %v2059
    %2061 = vmatmul.bf16.gmra.mxu0 %v398
    %v2062 = vpop.f32.mrf.mxu0
    %v2063 = vadd.f32 %v2044, %v2062
    %v2064 = vpop.f32.mrf.mxu0
    %v2065 = vadd.f32 %v2046, %v2064
    %2066 = vdwg.mxu0
    %2067 = vmatpush.bf16.msra.mxu0 %v1524
    %2068 = vmatpush.bf16.msra.mxu0 %v1515
    %2069 = vmatpush.bf16.msra.mxu0 %v1506
    %2070 = vmatpush.bf16.msra.mxu0 %v1497
    %2071 = vmatpush.bf16.msra.mxu0 %v1488
    %2072 = vmatpush.bf16.msra.mxu0 %v1479
    %2073 = vmatpush.bf16.msra.mxu0 %v1470
    %2074 = vmatpush.bf16.msra.mxu0 %v1461
    %2075 = vmatmul.bf16.gmra.mxu0 %v396
    %v2076 = vpop.f32.mrf.mxu0
    %v2077 = vadd.f32 %v2058, %v2076
    %v2078 = vpop.f32.mrf.mxu0
    %v2079 = vadd.f32 %v2060, %v2078
    %2080 = vmatmul.bf16.gmra.mxu0 %v399
    %v2081 = vpop.f32.mrf.mxu0
    %v2082 = vadd.f32 %v2063, %v2081
    %v2083 = vpop.f32.mrf.mxu0
    %v2084 = vadd.f32 %v2065, %v2083
    %2085 = vdwg.mxu0
    %2086 = vmatpush.bf16.msra.mxu0 %v1381
    %2087 = vmatpush.bf16.msra.mxu0 %v1372
    %2088 = vmatpush.bf16.msra.mxu0 %v1363
    %2089 = vmatpush.bf16.msra.mxu0 %v1354
    %2090 = vmatpush.bf16.msra.mxu0 %v1345
    %2091 = vmatpush.bf16.msra.mxu0 %v1336
    %2092 = vmatpush.bf16.msra.mxu0 %v1327
    %2093 = vmatpush.bf16.msra.mxu0 %v1318
    %2094 = vmatmul.bf16.gmra.mxu0 %v394
    %v2095 = vpop.f32.mrf.mxu0
    %v2096 = vadd.f32 0.0, %v2095
    %v2097 = vpop.f32.mrf.mxu0
    %v2098 = vadd.f32 0.0, %v2097
    %2099 = vmatmul.bf16.gmra.mxu0 %v397
    %v2100 = vpop.f32.mrf.mxu0
    %v2101 = vadd.f32 0.0, %v2100
    %v2102 = vpop.f32.mrf.mxu0
    %v2103 = vadd.f32 0.0, %v2102
    %2104 = vdwg.mxu0
    %2105 = vmatpush.bf16.msra.mxu0 %v1453
    %2106 = vmatpush.bf16.msra.mxu0 %v1444
    %2107 = vmatpush.bf16.msra.mxu0 %v1435
    %2108 = vmatpush.bf16.msra.mxu0 %v1426
    %2109 = vmatpush.bf16.msra.mxu0 %v1417
    %2110 = vmatpush.bf16.msra.mxu0 %v1408
    %2111 = vmatpush.bf16.msra.mxu0 %v1399
    %2112 = vmatpush.bf16.msra.mxu0 %v1390
    %2113 = vmatmul.bf16.gmra.mxu0 %v395
    %v2114 = vpop.f32.mrf.mxu0
    %v2115 = vadd.f32 %v2096, %v2114
    %v2116 = vpop.f32.mrf.mxu0
    %v2117 = vadd.f32 %v2098, %v2116
    %2118 = vmatmul.bf16.gmra.mxu0 %v398
    %v2119 = vpop.f32.mrf.mxu0
    %v2120 = vadd.f32 %v2101, %v2119
    %v2121 = vpop.f32.mrf.mxu0
    %v2122 = vadd.f32 %v2103, %v2121
    %2123 = vdwg.mxu0
    %2124 = vmatpush.bf16.msra.mxu0 %v1525
    %2125 = vmatpush.bf16.msra.mxu0 %v1516
    %2126 = vmatpush.bf16.msra.mxu0 %v1507
    %2127 = vmatpush.bf16.msra.mxu0 %v1498
    %2128 = vmatpush.bf16.msra.mxu0 %v1489
    %2129 = vmatpush.bf16.msra.mxu0 %v1480
    %2130 = vmatpush.bf16.msra.mxu0 %v1471
    %2131 = vmatpush.bf16.msra.mxu0 %v1462
    %2132 = vmatmul.bf16.gmra.mxu0 %v396
    %v2133 = vpop.f32.mrf.mxu0
    %v2134 = vadd.f32 %v2115, %v2133
    %v2135 = vpop.f32.mrf.mxu0
    %v2136 = vadd.f32 %v2117, %v2135
    %2137 = vmatmul.bf16.gmra.mxu0 %v399
    %v2138 = vpop.f32.mrf.mxu0
    %v2139 = vadd.f32 %v2120, %v2138
    %v2140 = vpop.f32.mrf.mxu0
    %v2141 = vadd.f32 %v2122, %v2140
    %2142 = vdwg.mxu0
    %2143 = vmatpush.bf16.msra.mxu0 %v1382
    %2144 = vmatpush.bf16.msra.mxu0 %v1373
    %2145 = vmatpush.bf16.msra.mxu0 %v1364
    %2146 = vmatpush.bf16.msra.mxu0 %v1355
    %2147 = vmatpush.bf16.msra.mxu0 %v1346
    %2148 = vmatpush.bf16.msra.mxu0 %v1337
    %2149 = vmatpush.bf16.msra.mxu0 %v1328
    %2150 = vmatpush.bf16.msra.mxu0 %v1319
    %2151 = vmatmul.bf16.gmra.mxu0 %v394
    %v2152 = vpop.f32.mrf.mxu0
    %v2153 = vadd.f32 0.0, %v2152
    %v2154 = vpop.f32.mrf.mxu0
    %v2155 = vadd.f32 0.0, %v2154
    %2156 = vmatmul.bf16.gmra.mxu0 %v397
    %v2157 = vpop.f32.mrf.mxu0
    %v2158 = vadd.f32 0.0, %v2157
    %v2159 = vpop.f32.mrf.mxu0
    %v2160 = vadd.f32 0.0, %v2159
    %2161 = vdwg.mxu0
    %2162 = vmatpush.bf16.msra.mxu0 %v1454
    %2163 = vmatpush.bf16.msra.mxu0 %v1445
    %2164 = vmatpush.bf16.msra.mxu0 %v1436
    %2165 = vmatpush.bf16.msra.mxu0 %v1427
    %2166 = vmatpush.bf16.msra.mxu0 %v1418
    %2167 = vmatpush.bf16.msra.mxu0 %v1409
    %2168 = vmatpush.bf16.msra.mxu0 %v1400
    %2169 = vmatpush.bf16.msra.mxu0 %v1391
    %2170 = vmatmul.bf16.gmra.mxu0 %v395
    %v2171 = vpop.f32.mrf.mxu0
    %v2172 = vadd.f32 %v2153, %v2171
    %v2173 = vpop.f32.mrf.mxu0
    %v2174 = vadd.f32 %v2155, %v2173
    %2175 = vmatmul.bf16.gmra.mxu0 %v398
    %v2176 = vpop.f32.mrf.mxu0
    %v2177 = vadd.f32 %v2158, %v2176
    %v2178 = vpop.f32.mrf.mxu0
    %v2179 = vadd.f32 %v2160, %v2178
    %2180 = vdwg.mxu0
    %2181 = vmatpush.bf16.msra.mxu0 %v1526
    %2182 = vmatpush.bf16.msra.mxu0 %v1517
    %2183 = vmatpush.bf16.msra.mxu0 %v1508
    %2184 = vmatpush.bf16.msra.mxu0 %v1499
    %2185 = vmatpush.bf16.msra.mxu0 %v1490
    %2186 = vmatpush.bf16.msra.mxu0 %v1481
    %2187 = vmatpush.bf16.msra.mxu0 %v1472
    %2188 = vmatpush.bf16.msra.mxu0 %v1463
    %2189 = vmatmul.bf16.gmra.mxu0 %v396
    %v2190 = vpop.f32.mrf.mxu0
    %v2191 = vadd.f32 %v2172, %v2190
    %v2192 = vpop.f32.mrf.mxu0
    %v2193 = vadd.f32 %v2174, %v2192
    %2194 = vmatmul.bf16.gmra.mxu0 %v399
    %v2195 = vpop.f32.mrf.mxu0
    %v2196 = vadd.f32 %v2177, %v2195
    %v2197 = vpop.f32.mrf.mxu0
    %v2198 = vadd.f32 %v2179, %v2197
    %2199 = vdwg.mxu0
    %2200 = vmatpush.bf16.msra.mxu0 %v1383
    %2201 = vmatpush.bf16.msra.mxu0 %v1374
    %2202 = vmatpush.bf16.msra.mxu0 %v1365
    %2203 = vmatpush.bf16.msra.mxu0 %v1356
    %2204 = vmatpush.bf16.msra.mxu0 %v1347
    %2205 = vmatpush.bf16.msra.mxu0 %v1338
    %2206 = vmatpush.bf16.msra.mxu0 %v1329
    %2207 = vmatpush.bf16.msra.mxu0 %v1320
    %2208 = vmatmul.bf16.gmra.mxu0 %v394
    %v2209 = vpop.f32.mrf.mxu0
    %v2210 = vadd.f32 0.0, %v2209
    %v2211 = vpop.f32.mrf.mxu0
    %v2212 = vadd.f32 0.0, %v2211
    %2213 = vmatmul.bf16.gmra.mxu0 %v397
    %v2214 = vpop.f32.mrf.mxu0
    %v2215 = vadd.f32 0.0, %v2214
    %v2216 = vpop.f32.mrf.mxu0
    %v2217 = vadd.f32 0.0, %v2216
    %2218 = vdwg.mxu0
    %2219 = vmatpush.bf16.msra.mxu0 %v1455
    %2220 = vmatpush.bf16.msra.mxu0 %v1446
    %2221 = vmatpush.bf16.msra.mxu0 %v1437
    %2222 = vmatpush.bf16.msra.mxu0 %v1428
    %2223 = vmatpush.bf16.msra.mxu0 %v1419
    %2224 = vmatpush.bf16.msra.mxu0 %v1410
    %2225 = vmatpush.bf16.msra.mxu0 %v1401
    %2226 = vmatpush.bf16.msra.mxu0 %v1392
    %2227 = vmatmul.bf16.gmra.mxu0 %v395
    %v2228 = vpop.f32.mrf.mxu0
    %v2229 = vadd.f32 %v2210, %v2228
    %v2230 = vpop.f32.mrf.mxu0
    %v2231 = vadd.f32 %v2212, %v2230
    %2232 = vmatmul.bf16.gmra.mxu0 %v398
    %v2233 = vpop.f32.mrf.mxu0
    %v2234 = vadd.f32 %v2215, %v2233
    %v2235 = vpop.f32.mrf.mxu0
    %v2236 = vadd.f32 %v2217, %v2235
    %2237 = vdwg.mxu0
    %2238 = vmatpush.bf16.msra.mxu0 %v1527
    %2239 = vmatpush.bf16.msra.mxu0 %v1518
    %2240 = vmatpush.bf16.msra.mxu0 %v1509
    %2241 = vmatpush.bf16.msra.mxu0 %v1500
    %2242 = vmatpush.bf16.msra.mxu0 %v1491
    %2243 = vmatpush.bf16.msra.mxu0 %v1482
    %2244 = vmatpush.bf16.msra.mxu0 %v1473
    %2245 = vmatpush.bf16.msra.mxu0 %v1464
    %2246 = vmatmul.bf16.gmra.mxu0 %v396
    %v2247 = vpop.f32.mrf.mxu0
    %v2248 = vadd.f32 %v2229, %v2247
    %v2249 = vpop.f32.mrf.mxu0
    %v2250 = vadd.f32 %v2231, %v2249
    %2251 = vmatmul.bf16.gmra.mxu0 %v399
    %v2252 = vpop.f32.mrf.mxu0
    %v2253 = vadd.f32 %v2234, %v2252
    %v2254 = vpop.f32.mrf.mxu0
    %v2255 = vadd.f32 %v2236, %v2254
    %2256 = vdwg.mxu0
    %v2257 = vlaneseq
    %v2258 = vshrl.u32 %v2257, 7
    %v2259 = vadd.s32 %v2258, 8
    %v2260 = vlaneseq
    %v2261 = vand.u32 %v2260, 127
    %vm2262 = vcmp.ge.s32.totalorder %v2258, %v2261
    %vm2263 = vcmp.ge.s32.totalorder %v2259, %v2261
    %v2264 = vsel %vm2262, 0.0, -1e+30
    %v2265 = vsel %vm2263, 0.0, -1e+30
    %vm2266 = vcmask 523264
    %v2268 = vsel %vm2266, %v1792, 0
    %v2271 = vsel %vm2266, %v1794, 0
    %v2274 = vsel %vm2266, %v1963, 0
    %v2277 = vsel %vm2266, %v1965, 0
    %2279 = vmatpush.xpose.msra.mxu0 0.0
    %2280 = vmatpush.xpose.msra.mxu0 0.0
    %2281 = vmatpush.xpose.msra.mxu0 0.0
    %2282 = vmatpush.xpose.msra.mxu0 0.0
    %2283 = vmatpush.xpose.msra.mxu0 0.0
    %2284 = vmatpush.xpose.msra.mxu0 0.0
    %2285 = vmatpush.xpose.msra.mxu0 0.0
    %2286 = vmatpush.xpose.msra.mxu0 0.0
    %2287 = vmatpush.xpose.msra.mxu0 0.0
    %2288 = vmatpush.xpose.msra.mxu0 0.0
    %2289 = vmatpush.xpose.msra.mxu0 0.0
    %2290 = vmatpush.xpose.msra.mxu0 0.0
    %2291 = vmatpush.xpose.msra.mxu0 0.0
    %2292 = vmatpush.xpose.msra.mxu0 0.0
    %2293 = vmatpush.xpose.msra.mxu0 %v2277
    %2294 = vmatpush.xpose.msra.mxu0 %v2274
    %2295 = vmatmul.f32.gmra.mxu0 %v2268
    %v2296 = vpop.f32.mrf.mxu0
    %v2297 = vadd.f32 %v2264, %v2296
    %2298 = vmatmul.f32.gmra.mxu0 %v2271
    %v2299 = vpop.f32.mrf.mxu0
    %v2300 = vadd.f32 %v2265, %v2299
    %2301 = vdwg.mxu0
    %2302 = vrot.lane.b32.xlu0 %v1792, 64
    %v2303 = vpop.permute.xlu0 %2302
    %2304 = vrot.lane.b32.xlu0 %v1794, 64
    %v2305 = vpop.permute.xlu0 %2304
    %2306 = vrot.lane.b32.xlu0 %v1963, 64
    %v2307 = vpop.permute.xlu0 %2306
    %2308 = vrot.lane.b32.xlu0 %v1965, 64
    %v2309 = vpop.permute.xlu0 %2308
    %v2310 = vsel %vm2266, %v2303, 0
    %v2312 = vsel %vm2266, %v2305, 0
    %v2314 = vsel %vm2266, %v2307, 0
    %v2316 = vsel %vm2266, %v2309, 0
    %2318 = vmatpush.xpose.msra.mxu0 0.0
    %2319 = vmatpush.xpose.msra.mxu0 0.0
    %2320 = vmatpush.xpose.msra.mxu0 0.0
    %2321 = vmatpush.xpose.msra.mxu0 0.0
    %2322 = vmatpush.xpose.msra.mxu0 0.0
    %2323 = vmatpush.xpose.msra.mxu0 0.0
    %2324 = vmatpush.xpose.msra.mxu0 0.0
    %2325 = vmatpush.xpose.msra.mxu0 0.0
    %2326 = vmatpush.xpose.msra.mxu0 0.0
    %2327 = vmatpush.xpose.msra.mxu0 0.0
    %2328 = vmatpush.xpose.msra.mxu0 0.0
    %2329 = vmatpush.xpose.msra.mxu0 0.0
    %2330 = vmatpush.xpose.msra.mxu0 0.0
    %2331 = vmatpush.xpose.msra.mxu0 0.0
    %2332 = vmatpush.xpose.msra.mxu0 %v2316
    %2333 = vmatpush.xpose.msra.mxu0 %v2314
    %2334 = vmatmul.f32.gmra.mxu0 %v2310
    %v2335 = vpop.f32.mrf.mxu0
    %v2336 = vadd.f32 %v2264, %v2335
    %2337 = vmatmul.f32.gmra.mxu0 %v2312
    %v2338 = vpop.f32.mrf.mxu0
    %v2339 = vadd.f32 %v2265, %v2338
    %2340 = vdwg.mxu0
    %v2342 = vsel %vm2266, %v1849, 0
    %v2345 = vsel %vm2266, %v1851, 0
    %v2348 = vsel %vm2266, %v2020, 0
    %v2351 = vsel %vm2266, %v2022, 0
    %2353 = vmatpush.xpose.msra.mxu0 0.0
    %2354 = vmatpush.xpose.msra.mxu0 0.0
    %2355 = vmatpush.xpose.msra.mxu0 0.0
    %2356 = vmatpush.xpose.msra.mxu0 0.0
    %2357 = vmatpush.xpose.msra.mxu0 0.0
    %2358 = vmatpush.xpose.msra.mxu0 0.0
    %2359 = vmatpush.xpose.msra.mxu0 0.0
    %2360 = vmatpush.xpose.msra.mxu0 0.0
    %2361 = vmatpush.xpose.msra.mxu0 0.0
    %2362 = vmatpush.xpose.msra.mxu0 0.0
    %2363 = vmatpush.xpose.msra.mxu0 0.0
    %2364 = vmatpush.xpose.msra.mxu0 0.0
    %2365 = vmatpush.xpose.msra.mxu0 0.0
    %2366 = vmatpush.xpose.msra.mxu0 0.0
    %2367 = vmatpush.xpose.msra.mxu0 %v2351
    %2368 = vmatpush.xpose.msra.mxu0 %v2348
    %2369 = vmatmul.f32.gmra.mxu0 %v2342
    %v2370 = vpop.f32.mrf.mxu0
    %v2371 = vadd.f32 %v2264, %v2370
    %2372 = vmatmul.f32.gmra.mxu0 %v2345
    %v2373 = vpop.f32.mrf.mxu0
    %v2374 = vadd.f32 %v2265, %v2373
    %2375 = vdwg.mxu0
    %2376 = vrot.lane.b32.xlu0 %v1849, 64
    %v2377 = vpop.permute.xlu0 %2376
    %2378 = vrot.lane.b32.xlu0 %v1851, 64
    %v2379 = vpop.permute.xlu0 %2378
    %2380 = vrot.lane.b32.xlu0 %v2020, 64
    %v2381 = vpop.permute.xlu0 %2380
    %2382 = vrot.lane.b32.xlu0 %v2022, 64
    %v2383 = vpop.permute.xlu0 %2382
    %v2384 = vsel %vm2266, %v2377, 0
    %v2386 = vsel %vm2266, %v2379, 0
    %v2388 = vsel %vm2266, %v2381, 0
    %v2390 = vsel %vm2266, %v2383, 0
    %2392 = vmatpush.xpose.msra.mxu0 0.0
    %2393 = vmatpush.xpose.msra.mxu0 0.0
    %2394 = vmatpush.xpose.msra.mxu0 0.0
    %2395 = vmatpush.xpose.msra.mxu0 0.0
    %2396 = vmatpush.xpose.msra.mxu0 0.0
    %2397 = vmatpush.xpose.msra.mxu0 0.0
    %2398 = vmatpush.xpose.msra.mxu0 0.0
    %2399 = vmatpush.xpose.msra.mxu0 0.0
    %2400 = vmatpush.xpose.msra.mxu0 0.0
    %2401 = vmatpush.xpose.msra.mxu0 0.0
    %2402 = vmatpush.xpose.msra.mxu0 0.0
    %2403 = vmatpush.xpose.msra.mxu0 0.0
    %2404 = vmatpush.xpose.msra.mxu0 0.0
    %2405 = vmatpush.xpose.msra.mxu0 0.0
    %2406 = vmatpush.xpose.msra.mxu0 %v2390
    %2407 = vmatpush.xpose.msra.mxu0 %v2388
    %2408 = vmatmul.f32.gmra.mxu0 %v2384
    %v2409 = vpop.f32.mrf.mxu0
    %v2410 = vadd.f32 %v2264, %v2409
    %2411 = vmatmul.f32.gmra.mxu0 %v2386
    %v2412 = vpop.f32.mrf.mxu0
    %v2413 = vadd.f32 %v2265, %v2412
    %2414 = vdwg.mxu0
    %v2416 = vsel %vm2266, %v1906, 0
    %v2419 = vsel %vm2266, %v1908, 0
    %v2422 = vsel %vm2266, %v2077, 0
    %v2425 = vsel %vm2266, %v2079, 0
    %2427 = vmatpush.xpose.msra.mxu0 0.0
    %2428 = vmatpush.xpose.msra.mxu0 0.0
    %2429 = vmatpush.xpose.msra.mxu0 0.0
    %2430 = vmatpush.xpose.msra.mxu0 0.0
    %2431 = vmatpush.xpose.msra.mxu0 0.0
    %2432 = vmatpush.xpose.msra.mxu0 0.0
    %2433 = vmatpush.xpose.msra.mxu0 0.0
    %2434 = vmatpush.xpose.msra.mxu0 0.0
    %2435 = vmatpush.xpose.msra.mxu0 0.0
    %2436 = vmatpush.xpose.msra.mxu0 0.0
    %2437 = vmatpush.xpose.msra.mxu0 0.0
    %2438 = vmatpush.xpose.msra.mxu0 0.0
    %2439 = vmatpush.xpose.msra.mxu0 0.0
    %2440 = vmatpush.xpose.msra.mxu0 0.0
    %2441 = vmatpush.xpose.msra.mxu0 %v2425
    %2442 = vmatpush.xpose.msra.mxu0 %v2422
    %2443 = vmatmul.f32.gmra.mxu0 %v2416
    %v2444 = vpop.f32.mrf.mxu0
    %v2445 = vadd.f32 %v2264, %v2444
    %2446 = vmatmul.f32.gmra.mxu0 %v2419
    %v2447 = vpop.f32.mrf.mxu0
    %v2448 = vadd.f32 %v2265, %v2447
    %2449 = vdwg.mxu0
    %2450 = vrot.lane.b32.xlu0 %v1906, 64
    %v2451 = vpop.permute.xlu0 %2450
    %2452 = vrot.lane.b32.xlu0 %v1908, 64
    %v2453 = vpop.permute.xlu0 %2452
    %2454 = vrot.lane.b32.xlu0 %v2077, 64
    %v2455 = vpop.permute.xlu0 %2454
    %2456 = vrot.lane.b32.xlu0 %v2079, 64
    %v2457 = vpop.permute.xlu0 %2456
    %v2458 = vsel %vm2266, %v2451, 0
    %v2460 = vsel %vm2266, %v2453, 0
    %v2462 = vsel %vm2266, %v2455, 0
    %v2464 = vsel %vm2266, %v2457, 0
    %2466 = vmatpush.xpose.msra.mxu0 0.0
    %2467 = vmatpush.xpose.msra.mxu0 0.0
    %2468 = vmatpush.xpose.msra.mxu0 0.0
    %2469 = vmatpush.xpose.msra.mxu0 0.0
    %2470 = vmatpush.xpose.msra.mxu0 0.0
    %2471 = vmatpush.xpose.msra.mxu0 0.0
    %2472 = vmatpush.xpose.msra.mxu0 0.0
    %2473 = vmatpush.xpose.msra.mxu0 0.0
    %2474 = vmatpush.xpose.msra.mxu0 0.0
    %2475 = vmatpush.xpose.msra.mxu0 0.0
    %2476 = vmatpush.xpose.msra.mxu0 0.0
    %2477 = vmatpush.xpose.msra.mxu0 0.0
    %2478 = vmatpush.xpose.msra.mxu0 0.0
    %2479 = vmatpush.xpose.msra.mxu0 0.0
    %2480 = vmatpush.xpose.msra.mxu0 %v2464
    %2481 = vmatpush.xpose.msra.mxu0 %v2462
    %2482 = vmatmul.f32.gmra.mxu0 %v2458
    %v2483 = vpop.f32.mrf.mxu0
    %v2484 = vadd.f32 %v2264, %v2483
    %2485 = vmatmul.f32.gmra.mxu0 %v2460
    %v2486 = vpop.f32.mrf.mxu0
    %v2487 = vadd.f32 %v2265, %v2486
    %2488 = vdwg.mxu0
    %v2490 = vsel %vm2266, %v1797, 0
    %v2493 = vsel %vm2266, %v1799, 0
    %v2496 = vsel %vm2266, %v1968, 0
    %v2499 = vsel %vm2266, %v1970, 0
    %2501 = vmatpush.xpose.msra.mxu0 0.0
    %2502 = vmatpush.xpose.msra.mxu0 0.0
    %2503 = vmatpush.xpose.msra.mxu0 0.0
    %2504 = vmatpush.xpose.msra.mxu0 0.0
    %2505 = vmatpush.xpose.msra.mxu0 0.0
    %2506 = vmatpush.xpose.msra.mxu0 0.0
    %2507 = vmatpush.xpose.msra.mxu0 0.0
    %2508 = vmatpush.xpose.msra.mxu0 0.0
    %2509 = vmatpush.xpose.msra.mxu0 0.0
    %2510 = vmatpush.xpose.msra.mxu0 0.0
    %2511 = vmatpush.xpose.msra.mxu0 0.0
    %2512 = vmatpush.xpose.msra.mxu0 0.0
    %2513 = vmatpush.xpose.msra.mxu0 0.0
    %2514 = vmatpush.xpose.msra.mxu0 0.0
    %2515 = vmatpush.xpose.msra.mxu0 %v2499
    %2516 = vmatpush.xpose.msra.mxu0 %v2496
    %2517 = vmatmul.f32.gmra.mxu0 %v2490
    %v2518 = vpop.f32.mrf.mxu0
    %v2519 = vadd.f32 %v2264, %v2518
    %2520 = vmatmul.f32.gmra.mxu0 %v2493
    %v2521 = vpop.f32.mrf.mxu0
    %v2522 = vadd.f32 %v2265, %v2521
    %2523 = vdwg.mxu0
    %2524 = vrot.lane.b32.xlu0 %v1797, 64
    %v2525 = vpop.permute.xlu0 %2524
    %2526 = vrot.lane.b32.xlu0 %v1799, 64
    %v2527 = vpop.permute.xlu0 %2526
    %2528 = vrot.lane.b32.xlu0 %v1968, 64
    %v2529 = vpop.permute.xlu0 %2528
    %2530 = vrot.lane.b32.xlu0 %v1970, 64
    %v2531 = vpop.permute.xlu0 %2530
    %v2532 = vsel %vm2266, %v2525, 0
    %v2534 = vsel %vm2266, %v2527, 0
    %v2536 = vsel %vm2266, %v2529, 0
    %v2538 = vsel %vm2266, %v2531, 0
    %2540 = vmatpush.xpose.msra.mxu0 0.0
    %2541 = vmatpush.xpose.msra.mxu0 0.0
    %2542 = vmatpush.xpose.msra.mxu0 0.0
    %2543 = vmatpush.xpose.msra.mxu0 0.0
    %2544 = vmatpush.xpose.msra.mxu0 0.0
    %2545 = vmatpush.xpose.msra.mxu0 0.0
    %2546 = vmatpush.xpose.msra.mxu0 0.0
    %2547 = vmatpush.xpose.msra.mxu0 0.0
    %2548 = vmatpush.xpose.msra.mxu0 0.0
    %2549 = vmatpush.xpose.msra.mxu0 0.0
    %2550 = vmatpush.xpose.msra.mxu0 0.0
    %2551 = vmatpush.xpose.msra.mxu0 0.0
    %2552 = vmatpush.xpose.msra.mxu0 0.0
    %2553 = vmatpush.xpose.msra.mxu0 0.0
    %2554 = vmatpush.xpose.msra.mxu0 %v2538
    %2555 = vmatpush.xpose.msra.mxu0 %v2536
    %2556 = vmatmul.f32.gmra.mxu0 %v2532
    %v2557 = vpop.f32.mrf.mxu0
    %v2558 = vadd.f32 %v2264, %v2557
    %2559 = vmatmul.f32.gmra.mxu0 %v2534
    %v2560 = vpop.f32.mrf.mxu0
    %v2561 = vadd.f32 %v2265, %v2560
    %2562 = vdwg.mxu0
    %v2564 = vsel %vm2266, %v1854, 0
    %v2567 = vsel %vm2266, %v1856, 0
    %v2570 = vsel %vm2266, %v2025, 0
    %v2573 = vsel %vm2266, %v2027, 0
    %2575 = vmatpush.xpose.msra.mxu0 0.0
    %2576 = vmatpush.xpose.msra.mxu0 0.0
    %2577 = vmatpush.xpose.msra.mxu0 0.0
    %2578 = vmatpush.xpose.msra.mxu0 0.0
    %2579 = vmatpush.xpose.msra.mxu0 0.0
    %2580 = vmatpush.xpose.msra.mxu0 0.0
    %2581 = vmatpush.xpose.msra.mxu0 0.0
    %2582 = vmatpush.xpose.msra.mxu0 0.0
    %2583 = vmatpush.xpose.msra.mxu0 0.0
    %2584 = vmatpush.xpose.msra.mxu0 0.0
    %2585 = vmatpush.xpose.msra.mxu0 0.0
    %2586 = vmatpush.xpose.msra.mxu0 0.0
    %2587 = vmatpush.xpose.msra.mxu0 0.0
    %2588 = vmatpush.xpose.msra.mxu0 0.0
    %2589 = vmatpush.xpose.msra.mxu0 %v2573
    %2590 = vmatpush.xpose.msra.mxu0 %v2570
    %2591 = vmatmul.f32.gmra.mxu0 %v2564
    %v2592 = vpop.f32.mrf.mxu0
    %v2593 = vadd.f32 %v2264, %v2592
    %2594 = vmatmul.f32.gmra.mxu0 %v2567
    %v2595 = vpop.f32.mrf.mxu0
    %v2596 = vadd.f32 %v2265, %v2595
    %2597 = vdwg.mxu0
    %2598 = vrot.lane.b32.xlu0 %v1854, 64
    %v2599 = vpop.permute.xlu0 %2598
    %2600 = vrot.lane.b32.xlu0 %v1856, 64
    %v2601 = vpop.permute.xlu0 %2600
    %2602 = vrot.lane.b32.xlu0 %v2025, 64
    %v2603 = vpop.permute.xlu0 %2602
    %2604 = vrot.lane.b32.xlu0 %v2027, 64
    %v2605 = vpop.permute.xlu0 %2604
    %v2606 = vsel %vm2266, %v2599, 0
    %v2608 = vsel %vm2266, %v2601, 0
    %v2610 = vsel %vm2266, %v2603, 0
    %v2612 = vsel %vm2266, %v2605, 0
    %2614 = vmatpush.xpose.msra.mxu0 0.0
    %2615 = vmatpush.xpose.msra.mxu0 0.0
    %2616 = vmatpush.xpose.msra.mxu0 0.0
    %2617 = vmatpush.xpose.msra.mxu0 0.0
    %2618 = vmatpush.xpose.msra.mxu0 0.0
    %2619 = vmatpush.xpose.msra.mxu0 0.0
    %2620 = vmatpush.xpose.msra.mxu0 0.0
    %2621 = vmatpush.xpose.msra.mxu0 0.0
    %2622 = vmatpush.xpose.msra.mxu0 0.0
    %2623 = vmatpush.xpose.msra.mxu0 0.0
    %2624 = vmatpush.xpose.msra.mxu0 0.0
    %2625 = vmatpush.xpose.msra.mxu0 0.0
    %2626 = vmatpush.xpose.msra.mxu0 0.0
    %2627 = vmatpush.xpose.msra.mxu0 0.0
    %2628 = vmatpush.xpose.msra.mxu0 %v2612
    %2629 = vmatpush.xpose.msra.mxu0 %v2610
    %2630 = vmatmul.f32.gmra.mxu0 %v2606
    %v2631 = vpop.f32.mrf.mxu0
    %v2632 = vadd.f32 %v2264, %v2631
    %2633 = vmatmul.f32.gmra.mxu0 %v2608
    %v2634 = vpop.f32.mrf.mxu0
    %v2635 = vadd.f32 %v2265, %v2634
    %2636 = vdwg.mxu0
    %v2638 = vsel %vm2266, %v1911, 0
    %v2641 = vsel %vm2266, %v1913, 0
    %v2644 = vsel %vm2266, %v2082, 0
    %v2647 = vsel %vm2266, %v2084, 0
    %2649 = vmatpush.xpose.msra.mxu0 0.0
    %2650 = vmatpush.xpose.msra.mxu0 0.0
    %2651 = vmatpush.xpose.msra.mxu0 0.0
    %2652 = vmatpush.xpose.msra.mxu0 0.0
    %2653 = vmatpush.xpose.msra.mxu0 0.0
    %2654 = vmatpush.xpose.msra.mxu0 0.0
    %2655 = vmatpush.xpose.msra.mxu0 0.0
    %2656 = vmatpush.xpose.msra.mxu0 0.0
    %2657 = vmatpush.xpose.msra.mxu0 0.0
    %2658 = vmatpush.xpose.msra.mxu0 0.0
    %2659 = vmatpush.xpose.msra.mxu0 0.0
    %2660 = vmatpush.xpose.msra.mxu0 0.0
    %2661 = vmatpush.xpose.msra.mxu0 0.0
    %2662 = vmatpush.xpose.msra.mxu0 0.0
    %2663 = vmatpush.xpose.msra.mxu0 %v2647
    %2664 = vmatpush.xpose.msra.mxu0 %v2644
    %2665 = vmatmul.f32.gmra.mxu0 %v2638
    %v2666 = vpop.f32.mrf.mxu0
    %v2667 = vadd.f32 %v2264, %v2666
    %2668 = vmatmul.f32.gmra.mxu0 %v2641
    %v2669 = vpop.f32.mrf.mxu0
    %v2670 = vadd.f32 %v2265, %v2669
    %2671 = vdwg.mxu0
    %2672 = vrot.lane.b32.xlu0 %v1911, 64
    %v2673 = vpop.permute.xlu0 %2672
    %2674 = vrot.lane.b32.xlu0 %v1913, 64
    %v2675 = vpop.permute.xlu0 %2674
    %2676 = vrot.lane.b32.xlu0 %v2082, 64
    %v2677 = vpop.permute.xlu0 %2676
    %2678 = vrot.lane.b32.xlu0 %v2084, 64
    %v2679 = vpop.permute.xlu0 %2678
    %v2680 = vsel %vm2266, %v2673, 0
    %v2682 = vsel %vm2266, %v2675, 0
    %v2684 = vsel %vm2266, %v2677, 0
    %v2686 = vsel %vm2266, %v2679, 0
    %2688 = vmatpush.xpose.msra.mxu0 0.0
    %2689 = vmatpush.xpose.msra.mxu0 0.0
    %2690 = vmatpush.xpose.msra.mxu0 0.0
    %2691 = vmatpush.xpose.msra.mxu0 0.0
    %2692 = vmatpush.xpose.msra.mxu0 0.0
    %2693 = vmatpush.xpose.msra.mxu0 0.0
    %2694 = vmatpush.xpose.msra.mxu0 0.0
    %2695 = vmatpush.xpose.msra.mxu0 0.0
    %2696 = vmatpush.xpose.msra.mxu0 0.0
    %2697 = vmatpush.xpose.msra.mxu0 0.0
    %2698 = vmatpush.xpose.msra.mxu0 0.0
    %2699 = vmatpush.xpose.msra.mxu0 0.0
    %2700 = vmatpush.xpose.msra.mxu0 0.0
    %2701 = vmatpush.xpose.msra.mxu0 0.0
    %2702 = vmatpush.xpose.msra.mxu0 %v2686
    %2703 = vmatpush.xpose.msra.mxu0 %v2684
    %2704 = vmatmul.f32.gmra.mxu0 %v2680
    %v2705 = vpop.f32.mrf.mxu0
    %v2706 = vadd.f32 %v2264, %v2705
    %2707 = vmatmul.f32.gmra.mxu0 %v2682
    %v2708 = vpop.f32.mrf.mxu0
    %v2709 = vadd.f32 %v2265, %v2708
    %2710 = vdwg.mxu0
    %vm2711 = vcmask 130048
    %v2712 = vsel %vm2711, %v2297, -inf
    %2713 = vmax.xlane.f32.xlu0 %v2712
    %v2714 = vpop.xlane.xlu0 %2713
    %v2715 = vsel %vm2711, %v2300, -inf
    %2716 = vmax.xlane.f32.xlu0 %v2715
    %v2717 = vpop.xlane.xlu0 %2716
    %v2718 = vsel %vm2711, %v2336, -inf
    %2719 = vmax.xlane.f32.xlu0 %v2718
    %v2720 = vpop.xlane.xlu0 %2719
    %v2721 = vsel %vm2711, %v2339, -inf
    %2722 = vmax.xlane.f32.xlu0 %v2721
    %v2723 = vpop.xlane.xlu0 %2722
    %v2724 = vsel %vm2711, %v2371, -inf
    %2725 = vmax.xlane.f32.xlu0 %v2724
    %v2726 = vpop.xlane.xlu0 %2725
    %v2727 = vsel %vm2711, %v2374, -inf
    %2728 = vmax.xlane.f32.xlu0 %v2727
    %v2729 = vpop.xlane.xlu0 %2728
    %v2730 = vsel %vm2711, %v2410, -inf
    %2731 = vmax.xlane.f32.xlu0 %v2730
    %v2732 = vpop.xlane.xlu0 %2731
    %v2733 = vsel %vm2711, %v2413, -inf
    %2734 = vmax.xlane.f32.xlu0 %v2733
    %v2735 = vpop.xlane.xlu0 %2734
    %v2736 = vsel %vm2711, %v2445, -inf
    %2737 = vmax.xlane.f32.xlu0 %v2736
    %v2738 = vpop.xlane.xlu0 %2737
    %v2739 = vsel %vm2711, %v2448, -inf
    %2740 = vmax.xlane.f32.xlu0 %v2739
    %v2741 = vpop.xlane.xlu0 %2740
    %v2742 = vsel %vm2711, %v2484, -inf
    %2743 = vmax.xlane.f32.xlu0 %v2742
    %v2744 = vpop.xlane.xlu0 %2743
    %v2745 = vsel %vm2711, %v2487, -inf
    %2746 = vmax.xlane.f32.xlu0 %v2745
    %v2747 = vpop.xlane.xlu0 %2746
    %v2748 = vsel %vm2711, %v2519, -inf
    %2749 = vmax.xlane.f32.xlu0 %v2748
    %v2750 = vpop.xlane.xlu0 %2749
    %v2751 = vsel %vm2711, %v2522, -inf
    %2752 = vmax.xlane.f32.xlu0 %v2751
    %v2753 = vpop.xlane.xlu0 %2752
    %v2754 = vsel %vm2711, %v2558, -inf
    %2755 = vmax.xlane.f32.xlu0 %v2754
    %v2756 = vpop.xlane.xlu0 %2755
    %v2757 = vsel %vm2711, %v2561, -inf
    %2758 = vmax.xlane.f32.xlu0 %v2757
    %v2759 = vpop.xlane.xlu0 %2758
    %v2760 = vsel %vm2711, %v2593, -inf
    %2761 = vmax.xlane.f32.xlu0 %v2760
    %v2762 = vpop.xlane.xlu0 %2761
    %v2763 = vsel %vm2711, %v2596, -inf
    %2764 = vmax.xlane.f32.xlu0 %v2763
    %v2765 = vpop.xlane.xlu0 %2764
    %v2766 = vsel %vm2711, %v2632, -inf
    %2767 = vmax.xlane.f32.xlu0 %v2766
    %v2768 = vpop.xlane.xlu0 %2767
    %v2769 = vsel %vm2711, %v2635, -inf
    %2770 = vmax.xlane.f32.xlu0 %v2769
    %v2771 = vpop.xlane.xlu0 %2770
    %v2772 = vsel %vm2711, %v2667, -inf
    %2773 = vmax.xlane.f32.xlu0 %v2772
    %v2774 = vpop.xlane.xlu0 %2773
    %v2775 = vsel %vm2711, %v2670, -inf
    %2776 = vmax.xlane.f32.xlu0 %v2775
    %v2777 = vpop.xlane.xlu0 %2776
    %v2778 = vsel %vm2711, %v2706, -inf
    %2779 = vmax.xlane.f32.xlu0 %v2778
    %v2780 = vpop.xlane.xlu0 %2779
    %v2781 = vsel %vm2711, %v2709, -inf
    %2782 = vmax.xlane.f32.xlu0 %v2781
    %v2783 = vpop.xlane.xlu0 %2782
    %v2784 = vsub.f32 %v2297, %v2714
    %v2785 = vsub.f32 %v2300, %v2717
    %v2786 = vsub.f32 %v2336, %v2720
    %v2787 = vsub.f32 %v2339, %v2723
    %v2788 = vsub.f32 %v2371, %v2726
    %v2789 = vsub.f32 %v2374, %v2729
    %v2790 = vsub.f32 %v2410, %v2732
    %v2791 = vsub.f32 %v2413, %v2735
    %v2792 = vsub.f32 %v2445, %v2738
    %v2793 = vsub.f32 %v2448, %v2741
    %v2794 = vsub.f32 %v2484, %v2744
    %v2795 = vsub.f32 %v2487, %v2747
    %v2796 = vsub.f32 %v2519, %v2750
    %v2797 = vsub.f32 %v2522, %v2753
    %v2798 = vsub.f32 %v2558, %v2756
    %v2799 = vsub.f32 %v2561, %v2759
    %v2800 = vsub.f32 %v2593, %v2762
    %v2801 = vsub.f32 %v2596, %v2765
    %v2802 = vsub.f32 %v2632, %v2768
    %v2803 = vsub.f32 %v2635, %v2771
    %v2804 = vsub.f32 %v2667, %v2774
    %v2805 = vsub.f32 %v2670, %v2777
    %v2806 = vsub.f32 %v2706, %v2780
    %v2807 = vsub.f32 %v2709, %v2783
    %v2808 = vmul.f32 %v2784, 1.442695
    %v2809 = vpow.pop %v2808
    %v2810 = vmul.f32 %v2785, 1.442695
    %v2811 = vpow.pop %v2810
    %v2812 = vmul.f32 %v2786, 1.442695
    %v2813 = vpow.pop %v2812
    %v2814 = vmul.f32 %v2787, 1.442695
    %v2815 = vpow.pop %v2814
    %v2816 = vmul.f32 %v2788, 1.442695
    %v2817 = vpow.pop %v2816
    %v2818 = vmul.f32 %v2789, 1.442695
    %v2819 = vpow.pop %v2818
    %v2820 = vmul.f32 %v2790, 1.442695
    %v2821 = vpow.pop %v2820
    %v2822 = vmul.f32 %v2791, 1.442695
    %v2823 = vpow.pop %v2822
    %v2824 = vmul.f32 %v2792, 1.442695
    %v2825 = vpow.pop %v2824
    %v2826 = vmul.f32 %v2793, 1.442695
    %v2827 = vpow.pop %v2826
    %v2828 = vmul.f32 %v2794, 1.442695
    %v2829 = vpow.pop %v2828
    %v2830 = vmul.f32 %v2795, 1.442695
    %v2831 = vpow.pop %v2830
    %v2832 = vmul.f32 %v2796, 1.442695
    %v2833 = vpow.pop %v2832
    %v2834 = vmul.f32 %v2797, 1.442695
    %v2835 = vpow.pop %v2834
    %v2836 = vmul.f32 %v2798, 1.442695
    %v2837 = vpow.pop %v2836
    %v2838 = vmul.f32 %v2799, 1.442695
    %v2839 = vpow.pop %v2838
    %v2840 = vmul.f32 %v2800, 1.442695
    %v2841 = vpow.pop %v2840
    %v2842 = vmul.f32 %v2801, 1.442695
    %v2843 = vpow.pop %v2842
    %v2844 = vmul.f32 %v2802, 1.442695
    %v2845 = vpow.pop %v2844
    %v2846 = vmul.f32 %v2803, 1.442695
    %v2847 = vpow.pop %v2846
    %v2848 = vmul.f32 %v2804, 1.442695
    %v2849 = vpow.pop %v2848
    %v2850 = vmul.f32 %v2805, 1.442695
    %v2851 = vpow.pop %v2850
    %v2852 = vmul.f32 %v2806, 1.442695
    %v2853 = vpow.pop %v2852
    %v2854 = vmul.f32 %v2807, 1.442695
    %v2855 = vpow.pop %v2854
    %v2856 = vsel %vm2711, %v2809, 0.0
    %2857 = vadd.xlane.f32.xlu0 %v2856
    %v2858 = vpop.xlane.xlu0 %2857
    %v2859 = vsel %vm2711, %v2811, 0.0
    %2860 = vadd.xlane.f32.xlu0 %v2859
    %v2861 = vpop.xlane.xlu0 %2860
    %v2862 = vsel %vm2711, %v2813, 0.0
    %2863 = vadd.xlane.f32.xlu0 %v2862
    %v2864 = vpop.xlane.xlu0 %2863
    %v2865 = vsel %vm2711, %v2815, 0.0
    %2866 = vadd.xlane.f32.xlu0 %v2865
    %v2867 = vpop.xlane.xlu0 %2866
    %v2868 = vsel %vm2711, %v2817, 0.0
    %2869 = vadd.xlane.f32.xlu0 %v2868
    %v2870 = vpop.xlane.xlu0 %2869
    %v2871 = vsel %vm2711, %v2819, 0.0
    %2872 = vadd.xlane.f32.xlu0 %v2871
    %v2873 = vpop.xlane.xlu0 %2872
    %v2874 = vsel %vm2711, %v2821, 0.0
    %2875 = vadd.xlane.f32.xlu0 %v2874
    %v2876 = vpop.xlane.xlu0 %2875
    %v2877 = vsel %vm2711, %v2823, 0.0
    %2878 = vadd.xlane.f32.xlu0 %v2877
    %v2879 = vpop.xlane.xlu0 %2878
    %v2880 = vsel %vm2711, %v2825, 0.0
    %2881 = vadd.xlane.f32.xlu0 %v2880
    %v2882 = vpop.xlane.xlu0 %2881
    %v2883 = vsel %vm2711, %v2827, 0.0
    %2884 = vadd.xlane.f32.xlu0 %v2883
    %v2885 = vpop.xlane.xlu0 %2884
    %v2886 = vsel %vm2711, %v2829, 0.0
    %2887 = vadd.xlane.f32.xlu0 %v2886
    %v2888 = vpop.xlane.xlu0 %2887
    %v2889 = vsel %vm2711, %v2831, 0.0
    %2890 = vadd.xlane.f32.xlu0 %v2889
    %v2891 = vpop.xlane.xlu0 %2890
    %v2892 = vsel %vm2711, %v2833, 0.0
    %2893 = vadd.xlane.f32.xlu0 %v2892
    %v2894 = vpop.xlane.xlu0 %2893
    %v2895 = vsel %vm2711, %v2835, 0.0
    %2896 = vadd.xlane.f32.xlu0 %v2895
    %v2897 = vpop.xlane.xlu0 %2896
    %v2898 = vsel %vm2711, %v2837, 0.0
    %2899 = vadd.xlane.f32.xlu0 %v2898
    %v2900 = vpop.xlane.xlu0 %2899
    %v2901 = vsel %vm2711, %v2839, 0.0
    %2902 = vadd.xlane.f32.xlu0 %v2901
    %v2903 = vpop.xlane.xlu0 %2902
    %v2904 = vsel %vm2711, %v2841, 0.0
    %2905 = vadd.xlane.f32.xlu0 %v2904
    %v2906 = vpop.xlane.xlu0 %2905
    %v2907 = vsel %vm2711, %v2843, 0.0
    %2908 = vadd.xlane.f32.xlu0 %v2907
    %v2909 = vpop.xlane.xlu0 %2908
    %v2910 = vsel %vm2711, %v2845, 0.0
    %2911 = vadd.xlane.f32.xlu0 %v2910
    %v2912 = vpop.xlane.xlu0 %2911
    %v2913 = vsel %vm2711, %v2847, 0.0
    %2914 = vadd.xlane.f32.xlu0 %v2913
    %v2915 = vpop.xlane.xlu0 %2914
    %v2916 = vsel %vm2711, %v2849, 0.0
    %2917 = vadd.xlane.f32.xlu0 %v2916
    %v2918 = vpop.xlane.xlu0 %2917
    %v2919 = vsel %vm2711, %v2851, 0.0
    %2920 = vadd.xlane.f32.xlu0 %v2919
    %v2921 = vpop.xlane.xlu0 %2920
    %v2922 = vsel %vm2711, %v2853, 0.0
    %2923 = vadd.xlane.f32.xlu0 %v2922
    %v2924 = vpop.xlane.xlu0 %2923
    %v2925 = vsel %vm2711, %v2855, 0.0
    %2926 = vadd.xlane.f32.xlu0 %v2925
    %v2927 = vpop.xlane.xlu0 %2926
    %v2928 = vrcp.pop %v2858
    %v2929 = vrcp.pop %v2861
    %v2930 = vrcp.pop %v2864
    %v2931 = vrcp.pop %v2867
    %v2932 = vrcp.pop %v2870
    %v2933 = vrcp.pop %v2873
    %v2934 = vrcp.pop %v2876
    %v2935 = vrcp.pop %v2879
    %v2936 = vrcp.pop %v2882
    %v2937 = vrcp.pop %v2885
    %v2938 = vrcp.pop %v2888
    %v2939 = vrcp.pop %v2891
    %v2940 = vrcp.pop %v2894
    %v2941 = vrcp.pop %v2897
    %v2942 = vrcp.pop %v2900
    %v2943 = vrcp.pop %v2903
    %v2944 = vrcp.pop %v2906
    %v2945 = vrcp.pop %v2909
    %v2946 = vrcp.pop %v2912
    %v2947 = vrcp.pop %v2915
    %v2948 = vrcp.pop %v2918
    %v2949 = vrcp.pop %v2921
    %v2950 = vrcp.pop %v2924
    %v2951 = vrcp.pop %v2927
    %v2952 = vmul.f32 %v2809, %v2928
    %v2953 = vmul.f32 %v2811, %v2929
    %v2954 = vmul.f32 %v2813, %v2930
    %v2955 = vmul.f32 %v2815, %v2931
    %v2956 = vmul.f32 %v2817, %v2932
    %v2957 = vmul.f32 %v2819, %v2933
    %v2958 = vmul.f32 %v2821, %v2934
    %v2959 = vmul.f32 %v2823, %v2935
    %v2960 = vmul.f32 %v2825, %v2936
    %v2961 = vmul.f32 %v2827, %v2937
    %v2962 = vmul.f32 %v2829, %v2938
    %v2963 = vmul.f32 %v2831, %v2939
    %v2964 = vmul.f32 %v2833, %v2940
    %v2965 = vmul.f32 %v2835, %v2941
    %v2966 = vmul.f32 %v2837, %v2942
    %v2967 = vmul.f32 %v2839, %v2943
    %v2968 = vmul.f32 %v2841, %v2944
    %v2969 = vmul.f32 %v2843, %v2945
    %v2970 = vmul.f32 %v2845, %v2946
    %v2971 = vmul.f32 %v2847, %v2947
    %v2972 = vmul.f32 %v2849, %v2948
    %v2973 = vmul.f32 %v2851, %v2949
    %v2974 = vmul.f32 %v2853, %v2950
    %v2975 = vmul.f32 %v2855, %v2951
    %v2977 = vsel %vm2711, %v2952, 0
    %v2980 = vsel %vm2711, %v2953, 0
    %2982 = vmatpush.msra.mxu0 0.0
    %2983 = vmatpush.msra.mxu0 0.0
    %2984 = vmatpush.msra.mxu0 0.0
    %2985 = vmatpush.msra.mxu0 0.0
    %2986 = vmatpush.msra.mxu0 0.0
    %2987 = vmatpush.msra.mxu0 0.0
    %2988 = vmatpush.msra.mxu0 0.0
    %2989 = vmatpush.msra.mxu0 0.0
    %2990 = vmatpush.msra.mxu0 0.0
    %2991 = vmatpush.msra.mxu0 0.0
    %2992 = vmatpush.msra.mxu0 0.0
    %2993 = vmatpush.msra.mxu0 0.0
    %2994 = vmatpush.msra.mxu0 0.0
    %2995 = vmatpush.msra.mxu0 0.0
    %2996 = vmatpush.msra.mxu0 %v2136
    %2997 = vmatpush.msra.mxu0 %v2134
    %2998 = vmatmul.f32.gmra.mxu0 %v2977
    %v2999 = vpop.f32.mrf.mxu0
    %v3000 = vadd.f32 0.0, %v2999
    %3001 = vmatmul.f32.gmra.mxu0 %v2980
    %v3002 = vpop.f32.mrf.mxu0
    %v3003 = vadd.f32 0.0, %v3002
    %3004 = vdwg.mxu0
    %3005 = vst.msk [vmem:[#allocation2] sm:$0xff] %vm2266, %v3000
    %3006 = vst.msk [vmem:[#allocation2 + $0x18] sm:$0xff] %vm2266, %v3003
    %3009 = vrot.lane.b32.xlu0 %v2134, 64
    %v3010 = vpop.permute.xlu0 %3009
    %3011 = vrot.lane.b32.xlu0 %v2136, 64
    %v3012 = vpop.permute.xlu0 %3011
    %v3016 = vsel %vm2711, %v2954, 0
    %v3019 = vsel %vm2711, %v2955, 0
    %3021 = vmatpush.msra.mxu0 0.0
    %3022 = vmatpush.msra.mxu0 0.0
    %3023 = vmatpush.msra.mxu0 0.0
    %3024 = vmatpush.msra.mxu0 0.0
    %3025 = vmatpush.msra.mxu0 0.0
    %3026 = vmatpush.msra.mxu0 0.0
    %3027 = vmatpush.msra.mxu0 0.0
    %3028 = vmatpush.msra.mxu0 0.0
    %3029 = vmatpush.msra.mxu0 0.0
    %3030 = vmatpush.msra.mxu0 0.0
    %3031 = vmatpush.msra.mxu0 0.0
    %3032 = vmatpush.msra.mxu0 0.0
    %3033 = vmatpush.msra.mxu0 0.0
    %3034 = vmatpush.msra.mxu0 0.0
    %3035 = vmatpush.msra.mxu0 %v3012
    %3036 = vmatpush.msra.mxu0 %v3010
    %3037 = vmatmul.f32.gmra.mxu0 %v3016
    %v3038 = vpop.f32.mrf.mxu0
    %v3039 = vadd.f32 0.0, %v3038
    %3040 = vmatmul.f32.gmra.mxu0 %v3019
    %v3041 = vpop.f32.mrf.mxu0
    %v3042 = vadd.f32 0.0, %v3041
    %3043 = vdwg.mxu0
    %3046 = vrot.lane.b32.xlu0 %v3039, 64
    %v3047 = vpop.permute.xlu0 %3046
    %3048 = vrot.lane.b32.xlu0 %v3042, 64
    %v3049 = vpop.permute.xlu0 %3048
    %vm3052 = vcmask 1048064
    %3053 = vst.msk [vmem:[#allocation2] sm:$0xff] %vm3052, %v3047
    %3054 = vst.msk [vmem:[#allocation2 + $0x18] sm:$0xff] %vm3052, %v3049
    %v3056 = vsel %vm2711, %v2956, 0
    %v3059 = vsel %vm2711, %v2957, 0
    %3061 = vmatpush.msra.mxu0 0.0
    %3062 = vmatpush.msra.mxu0 0.0
    %3063 = vmatpush.msra.mxu0 0.0
    %3064 = vmatpush.msra.mxu0 0.0
    %3065 = vmatpush.msra.mxu0 0.0
    %3066 = vmatpush.msra.mxu0 0.0
    %3067 = vmatpush.msra.mxu0 0.0
    %3068 = vmatpush.msra.mxu0 0.0
    %3069 = vmatpush.msra.mxu0 0.0
    %3070 = vmatpush.msra.mxu0 0.0
    %3071 = vmatpush.msra.mxu0 0.0
    %3072 = vmatpush.msra.mxu0 0.0
    %3073 = vmatpush.msra.mxu0 0.0
    %3074 = vmatpush.msra.mxu0 0.0
    %3075 = vmatpush.msra.mxu0 %v2193
    %3076 = vmatpush.msra.mxu0 %v2191
    %3077 = vmatmul.f32.gmra.mxu0 %v3056
    %v3078 = vpop.f32.mrf.mxu0
    %v3079 = vadd.f32 0.0, %v3078
    %3080 = vmatmul.f32.gmra.mxu0 %v3059
    %v3081 = vpop.f32.mrf.mxu0
    %v3082 = vadd.f32 0.0, %v3081
    %3083 = vdwg.mxu0
    %3084 = vst.msk [vmem:[#allocation2 + $0x8] sm:$0xff] %vm2266, %v3079
    %3085 = vst.msk [vmem:[#allocation2 + $0x20] sm:$0xff] %vm2266, %v3082
    %3088 = vrot.lane.b32.xlu0 %v2191, 64
    %v3089 = vpop.permute.xlu0 %3088
    %3090 = vrot.lane.b32.xlu0 %v2193, 64
    %v3091 = vpop.permute.xlu0 %3090
    %v3095 = vsel %vm2711, %v2958, 0
    %v3098 = vsel %vm2711, %v2959, 0
    %3100 = vmatpush.msra.mxu0 0.0
    %3101 = vmatpush.msra.mxu0 0.0
    %3102 = vmatpush.msra.mxu0 0.0
    %3103 = vmatpush.msra.mxu0 0.0
    %3104 = vmatpush.msra.mxu0 0.0
    %3105 = vmatpush.msra.mxu0 0.0
    %3106 = vmatpush.msra.mxu0 0.0
    %3107 = vmatpush.msra.mxu0 0.0
    %3108 = vmatpush.msra.mxu0 0.0
    %3109 = vmatpush.msra.mxu0 0.0
    %3110 = vmatpush.msra.mxu0 0.0
    %3111 = vmatpush.msra.mxu0 0.0
    %3112 = vmatpush.msra.mxu0 0.0
    %3113 = vmatpush.msra.mxu0 0.0
    %3114 = vmatpush.msra.mxu0 %v3091
    %3115 = vmatpush.msra.mxu0 %v3089
    %3116 = vmatmul.f32.gmra.mxu0 %v3095
    %v3117 = vpop.f32.mrf.mxu0
    %v3118 = vadd.f32 0.0, %v3117
    %3119 = vmatmul.f32.gmra.mxu0 %v3098
    %v3120 = vpop.f32.mrf.mxu0
    %v3121 = vadd.f32 0.0, %v3120
    %3122 = vdwg.mxu0
    %3125 = vrot.lane.b32.xlu0 %v3118, 64
    %v3126 = vpop.permute.xlu0 %3125
    %3127 = vrot.lane.b32.xlu0 %v3121, 64
    %v3128 = vpop.permute.xlu0 %3127
    %3131 = vst.msk [vmem:[#allocation2 + $0x8] sm:$0xff] %vm3052, %v3126
    %3132 = vst.msk [vmem:[#allocation2 + $0x20] sm:$0xff] %vm3052, %v3128
    %v3134 = vsel %vm2711, %v2960, 0
    %v3137 = vsel %vm2711, %v2961, 0
    %3139 = vmatpush.msra.mxu0 0.0
    %3140 = vmatpush.msra.mxu0 0.0
    %3141 = vmatpush.msra.mxu0 0.0
    %3142 = vmatpush.msra.mxu0 0.0
    %3143 = vmatpush.msra.mxu0 0.0
    %3144 = vmatpush.msra.mxu0 0.0
    %3145 = vmatpush.msra.mxu0 0.0
    %3146 = vmatpush.msra.mxu0 0.0
    %3147 = vmatpush.msra.mxu0 0.0
    %3148 = vmatpush.msra.mxu0 0.0
    %3149 = vmatpush.msra.mxu0 0.0
    %3150 = vmatpush.msra.mxu0 0.0
    %3151 = vmatpush.msra.mxu0 0.0
    %3152 = vmatpush.msra.mxu0 0.0
    %3153 = vmatpush.msra.mxu0 %v2250
    %3154 = vmatpush.msra.mxu0 %v2248
    %3155 = vmatmul.f32.gmra.mxu0 %v3134
    %v3156 = vpop.f32.mrf.mxu0
    %v3157 = vadd.f32 0.0, %v3156
    %3158 = vmatmul.f32.gmra.mxu0 %v3137
    %v3159 = vpop.f32.mrf.mxu0
    %v3160 = vadd.f32 0.0, %v3159
    %3161 = vdwg.mxu0
    %3162 = vst.msk [vmem:[#allocation2 + $0x10] sm:$0xff] %vm2266, %v3157
    %3163 = vst.msk [vmem:[#allocation2 + $0x28] sm:$0xff] %vm2266, %v3160
    %3166 = vrot.lane.b32.xlu0 %v2248, 64
    %v3167 = vpop.permute.xlu0 %3166
    %3168 = vrot.lane.b32.xlu0 %v2250, 64
    %v3169 = vpop.permute.xlu0 %3168
    %v3173 = vsel %vm2711, %v2962, 0
    %v3176 = vsel %vm2711, %v2963, 0
    %3178 = vmatpush.msra.mxu0 0.0
    %3179 = vmatpush.msra.mxu0 0.0
    %3180 = vmatpush.msra.mxu0 0.0
    %3181 = vmatpush.msra.mxu0 0.0
    %3182 = vmatpush.msra.mxu0 0.0
    %3183 = vmatpush.msra.mxu0 0.0
    %3184 = vmatpush.msra.mxu0 0.0
    %3185 = vmatpush.msra.mxu0 0.0
    %3186 = vmatpush.msra.mxu0 0.0
    %3187 = vmatpush.msra.mxu0 0.0
    %3188 = vmatpush.msra.mxu0 0.0
    %3189 = vmatpush.msra.mxu0 0.0
    %3190 = vmatpush.msra.mxu0 0.0
    %3191 = vmatpush.msra.mxu0 0.0
    %3192 = vmatpush.msra.mxu0 %v3169
    %3193 = vmatpush.msra.mxu0 %v3167
    %3194 = vmatmul.f32.gmra.mxu0 %v3173
    %v3195 = vpop.f32.mrf.mxu0
    %v3196 = vadd.f32 0.0, %v3195
    %3197 = vmatmul.f32.gmra.mxu0 %v3176
    %v3198 = vpop.f32.mrf.mxu0
    %v3199 = vadd.f32 0.0, %v3198
    %3200 = vdwg.mxu0
    %3203 = vrot.lane.b32.xlu0 %v3196, 64
    %v3204 = vpop.permute.xlu0 %3203
    %3205 = vrot.lane.b32.xlu0 %v3199, 64
    %v3206 = vpop.permute.xlu0 %3205
    %3209 = vst.msk [vmem:[#allocation2 + $0x10] sm:$0xff] %vm3052, %v3204
    %3210 = vst.msk [vmem:[#allocation2 + $0x28] sm:$0xff] %vm3052, %v3206
    %v3212 = vsel %vm2711, %v2964, 0
    %v3215 = vsel %vm2711, %v2965, 0
    %3217 = vmatpush.msra.mxu0 0.0
    %3218 = vmatpush.msra.mxu0 0.0
    %3219 = vmatpush.msra.mxu0 0.0
    %3220 = vmatpush.msra.mxu0 0.0
    %3221 = vmatpush.msra.mxu0 0.0
    %3222 = vmatpush.msra.mxu0 0.0
    %3223 = vmatpush.msra.mxu0 0.0
    %3224 = vmatpush.msra.mxu0 0.0
    %3225 = vmatpush.msra.mxu0 0.0
    %3226 = vmatpush.msra.mxu0 0.0
    %3227 = vmatpush.msra.mxu0 0.0
    %3228 = vmatpush.msra.mxu0 0.0
    %3229 = vmatpush.msra.mxu0 0.0
    %3230 = vmatpush.msra.mxu0 0.0
    %3231 = vmatpush.msra.mxu0 %v2141
    %3232 = vmatpush.msra.mxu0 %v2139
    %3233 = vmatmul.f32.gmra.mxu0 %v3212
    %v3234 = vpop.f32.mrf.mxu0
    %v3235 = vadd.f32 0.0, %v3234
    %3236 = vmatmul.f32.gmra.mxu0 %v3215
    %v3237 = vpop.f32.mrf.mxu0
    %v3238 = vadd.f32 0.0, %v3237
    %3239 = vdwg.mxu0
    %3240 = vst.msk [vmem:[#allocation2 + $0x30] sm:$0xff] %vm2266, %v3235
    %3241 = vst.msk [vmem:[#allocation2 + $0x48] sm:$0xff] %vm2266, %v3238
    %3244 = vrot.lane.b32.xlu0 %v2139, 64
    %v3245 = vpop.permute.xlu0 %3244
    %3246 = vrot.lane.b32.xlu0 %v2141, 64
    %v3247 = vpop.permute.xlu0 %3246
    %v3251 = vsel %vm2711, %v2966, 0
    %v3254 = vsel %vm2711, %v2967, 0
    %3256 = vmatpush.msra.mxu0 0.0
    %3257 = vmatpush.msra.mxu0 0.0
    %3258 = vmatpush.msra.mxu0 0.0
    %3259 = vmatpush.msra.mxu0 0.0
    %3260 = vmatpush.msra.mxu0 0.0
    %3261 = vmatpush.msra.mxu0 0.0
    %3262 = vmatpush.msra.mxu0 0.0
    %3263 = vmatpush.msra.mxu0 0.0
    %3264 = vmatpush.msra.mxu0 0.0
    %3265 = vmatpush.msra.mxu0 0.0
    %3266 = vmatpush.msra.mxu0 0.0
    %3267 = vmatpush.msra.mxu0 0.0
    %3268 = vmatpush.msra.mxu0 0.0
    %3269 = vmatpush.msra.mxu0 0.0
    %3270 = vmatpush.msra.mxu0 %v3247
    %3271 = vmatpush.msra.mxu0 %v3245
    %3272 = vmatmul.f32.gmra.mxu0 %v3251
    %v3273 = vpop.f32.mrf.mxu0
    %v3274 = vadd.f32 0.0, %v3273
    %3275 = vmatmul.f32.gmra.mxu0 %v3254
    %v3276 = vpop.f32.mrf.mxu0
    %v3277 = vadd.f32 0.0, %v3276
    %3278 = vdwg.mxu0
    %3281 = vrot.lane.b32.xlu0 %v3274, 64
    %v3282 = vpop.permute.xlu0 %3281
    %3283 = vrot.lane.b32.xlu0 %v3277, 64
    %v3284 = vpop.permute.xlu0 %3283
    %3287 = vst.msk [vmem:[#allocation2 + $0x30] sm:$0xff] %vm3052, %v3282
    %3288 = vst.msk [vmem:[#allocation2 + $0x48] sm:$0xff] %vm3052, %v3284
    %v3290 = vsel %vm2711, %v2968, 0
    %v3293 = vsel %vm2711, %v2969, 0
    %3295 = vmatpush.msra.mxu0 0.0
    %3296 = vmatpush.msra.mxu0 0.0
    %3297 = vmatpush.msra.mxu0 0.0
    %3298 = vmatpush.msra.mxu0 0.0
    %3299 = vmatpush.msra.mxu0 0.0
    %3300 = vmatpush.msra.mxu0 0.0
    %3301 = vmatpush.msra.mxu0 0.0
    %3302 = vmatpush.msra.mxu0 0.0
    %3303 = vmatpush.msra.mxu0 0.0
    %3304 = vmatpush.msra.mxu0 0.0
    %3305 = vmatpush.msra.mxu0 0.0
    %3306 = vmatpush.msra.mxu0 0.0
    %3307 = vmatpush.msra.mxu0 0.0
    %3308 = vmatpush.msra.mxu0 0.0
    %3309 = vmatpush.msra.mxu0 %v2198
    %3310 = vmatpush.msra.mxu0 %v2196
    %3311 = vmatmul.f32.gmra.mxu0 %v3290
    %v3312 = vpop.f32.mrf.mxu0
    %v3313 = vadd.f32 0.0, %v3312
    %3314 = vmatmul.f32.gmra.mxu0 %v3293
    %v3315 = vpop.f32.mrf.mxu0
    %v3316 = vadd.f32 0.0, %v3315
    %3317 = vdwg.mxu0
    %3318 = vst.msk [vmem:[#allocation2 + $0x38] sm:$0xff] %vm2266, %v3313
    %3319 = vst.msk [vmem:[#allocation2 + $0x50] sm:$0xff] %vm2266, %v3316
    %3322 = vrot.lane.b32.xlu0 %v2196, 64
    %v3323 = vpop.permute.xlu0 %3322
    %3324 = vrot.lane.b32.xlu0 %v2198, 64
    %v3325 = vpop.permute.xlu0 %3324
    %v3329 = vsel %vm2711, %v2970, 0
    %v3332 = vsel %vm2711, %v2971, 0
    %3334 = vmatpush.msra.mxu0 0.0
    %3335 = vmatpush.msra.mxu0 0.0
    %3336 = vmatpush.msra.mxu0 0.0
    %3337 = vmatpush.msra.mxu0 0.0
    %3338 = vmatpush.msra.mxu0 0.0
    %3339 = vmatpush.msra.mxu0 0.0
    %3340 = vmatpush.msra.mxu0 0.0
    %3341 = vmatpush.msra.mxu0 0.0
    %3342 = vmatpush.msra.mxu0 0.0
    %3343 = vmatpush.msra.mxu0 0.0
    %3344 = vmatpush.msra.mxu0 0.0
    %3345 = vmatpush.msra.mxu0 0.0
    %3346 = vmatpush.msra.mxu0 0.0
    %3347 = vmatpush.msra.mxu0 0.0
    %3348 = vmatpush.msra.mxu0 %v3325
    %3349 = vmatpush.msra.mxu0 %v3323
    %3350 = vmatmul.f32.gmra.mxu0 %v3329
    %v3351 = vpop.f32.mrf.mxu0
    %v3352 = vadd.f32 0.0, %v3351
    %3353 = vmatmul.f32.gmra.mxu0 %v3332
    %v3354 = vpop.f32.mrf.mxu0
    %v3355 = vadd.f32 0.0, %v3354
    %3356 = vdwg.mxu0
    %3359 = vrot.lane.b32.xlu0 %v3352, 64
    %v3360 = vpop.permute.xlu0 %3359
    %3361 = vrot.lane.b32.xlu0 %v3355, 64
    %v3362 = vpop.permute.xlu0 %3361
    %3365 = vst.msk [vmem:[#allocation2 + $0x38] sm:$0xff] %vm3052, %v3360
    %3366 = vst.msk [vmem:[#allocation2 + $0x50] sm:$0xff] %vm3052, %v3362
    %v3368 = vsel %vm2711, %v2972, 0
    %v3371 = vsel %vm2711, %v2973, 0
    %3373 = vmatpush.msra.mxu0 0.0
    %3374 = vmatpush.msra.mxu0 0.0
    %3375 = vmatpush.msra.mxu0 0.0
    %3376 = vmatpush.msra.mxu0 0.0
    %3377 = vmatpush.msra.mxu0 0.0
    %3378 = vmatpush.msra.mxu0 0.0
    %3379 = vmatpush.msra.mxu0 0.0
    %3380 = vmatpush.msra.mxu0 0.0
    %3381 = vmatpush.msra.mxu0 0.0
    %3382 = vmatpush.msra.mxu0 0.0
    %3383 = vmatpush.msra.mxu0 0.0
    %3384 = vmatpush.msra.mxu0 0.0
    %3385 = vmatpush.msra.mxu0 0.0
    %3386 = vmatpush.msra.mxu0 0.0
    %3387 = vmatpush.msra.mxu0 %v2255
    %3388 = vmatpush.msra.mxu0 %v2253
    %3389 = vmatmul.f32.gmra.mxu0 %v3368
    %v3390 = vpop.f32.mrf.mxu0
    %v3391 = vadd.f32 0.0, %v3390
    %3392 = vmatmul.f32.gmra.mxu0 %v3371
    %v3393 = vpop.f32.mrf.mxu0
    %v3394 = vadd.f32 0.0, %v3393
    %3395 = vdwg.mxu0
    %3396 = vst.msk [vmem:[#allocation2 + $0x40] sm:$0xff] %vm2266, %v3391
    %3397 = vst.msk [vmem:[#allocation2 + $0x58] sm:$0xff] %vm2266, %v3394
    %3400 = vrot.lane.b32.xlu0 %v2253, 64
    %v3401 = vpop.permute.xlu0 %3400
    %3402 = vrot.lane.b32.xlu0 %v2255, 64
    %v3403 = vpop.permute.xlu0 %3402
    %v3407 = vsel %vm2711, %v2974, 0
    %v3410 = vsel %vm2711, %v2975, 0
    %3412 = vmatpush.msra.mxu0 0.0
    %3413 = vmatpush.msra.mxu0 0.0
    %3414 = vmatpush.msra.mxu0 0.0
    %3415 = vmatpush.msra.mxu0 0.0
    %3416 = vmatpush.msra.mxu0 0.0
    %3417 = vmatpush.msra.mxu0 0.0
    %3418 = vmatpush.msra.mxu0 0.0
    %3419 = vmatpush.msra.mxu0 0.0
    %3420 = vmatpush.msra.mxu0 0.0
    %3421 = vmatpush.msra.mxu0 0.0
    %3422 = vmatpush.msra.mxu0 0.0
    %3423 = vmatpush.msra.mxu0 0.0
    %3424 = vmatpush.msra.mxu0 0.0
    %3425 = vmatpush.msra.mxu0 0.0
    %3426 = vmatpush.msra.mxu0 %v3403
    %3427 = vmatpush.msra.mxu0 %v3401
    %3428 = vmatmul.f32.gmra.mxu0 %v3407
    %v3429 = vpop.f32.mrf.mxu0
    %v3430 = vadd.f32 0.0, %v3429
    %3431 = vmatmul.f32.gmra.mxu0 %v3410
    %v3432 = vpop.f32.mrf.mxu0
    %v3433 = vadd.f32 0.0, %v3432
    %3434 = vdwg.mxu0
    %3437 = vrot.lane.b32.xlu0 %v3430, 64
    %v3438 = vpop.permute.xlu0 %3437
    %3439 = vrot.lane.b32.xlu0 %v3433, 64
    %v3440 = vpop.permute.xlu0 %3439
    %3443 = vst.msk [vmem:[#allocation2 + $0x40] sm:$0xff] %vm3052, %v3438
    %3444 = vst.msk [vmem:[#allocation2 + $0x58] sm:$0xff] %vm3052, %v3440
    %v3445 = vld [vmem:[#allocation2] sm:$0xff]
    %v3446 = vld [vmem:[#allocation2 + $0x8] sm:$0xff]
    %v3447 = vld [vmem:[#allocation2 + $0x10] sm:$0xff]
    %v3448 = vld [vmem:[#allocation2 + $0x18] sm:$0xff]
    %v3449 = vld [vmem:[#allocation2 + $0x20] sm:$0xff]
    %v3450 = vld [vmem:[#allocation2 + $0x28] sm:$0xff]
    %v3451 = vld [vmem:[#allocation2 + $0x30] sm:$0xff]
    %v3452 = vld [vmem:[#allocation2 + $0x38] sm:$0xff]
    %v3453 = vld [vmem:[#allocation2 + $0x40] sm:$0xff]
    %v3454 = vld [vmem:[#allocation2 + $0x48] sm:$0xff]
    %v3455 = vld [vmem:[#allocation2 + $0x50] sm:$0xff]
    %v3456 = vld [vmem:[#allocation2 + $0x58] sm:$0xff]
    %v3457 = vpack.c.bf16 %v3448, %v3445
    %v3458 = vpack.c.bf16 %v3449, %v3446
    %v3459 = vpack.c.bf16 %v3450, %v3447
    %v3460 = vpack.c.bf16 %v3454, %v3451
    %v3461 = vpack.c.bf16 %v3455, %v3452
    %v3462 = vpack.c.bf16 %v3456, %v3453
    %v3463 = vld [vmem:[#allocation11] sm:$0xff]
    %v3464 = vld [vmem:[#allocation11 + $0x8] sm:$0xf]
    %v3465 = vld [vmem:[#allocation11 + $0xc] sm:$0xff]
    %v3466 = vld [vmem:[#allocation11 + $0x14] sm:$0xf]
    %v3467 = vld [vmem:[#allocation11 + $0x18] sm:$0xff]
    %v3468 = vld [vmem:[#allocation11 + $0x20] sm:$0xf]
    %v3469 = vld [vmem:[#allocation11 + $0x24] sm:$0xff]
    %v3470 = vld [vmem:[#allocation11 + $0x2c] sm:$0xf]
    %v3471 = vld [vmem:[#allocation11 + $0x30] sm:$0xff]
    %v3472 = vld [vmem:[#allocation11 + $0x38] sm:$0xf]
    %v3473 = vld [vmem:[#allocation11 + $0x3c] sm:$0xff]
    %v3474 = vld [vmem:[#allocation11 + $0x44] sm:$0xf]
    %v3475 = vld [vmem:[#allocation11 + $0x48] sm:$0xff]
    %v3476 = vld [vmem:[#allocation11 + $0x50] sm:$0xf]
    %v3477 = vld [vmem:[#allocation11 + $0x54] sm:$0xff]
    %v3478 = vld [vmem:[#allocation11 + $0x5c] sm:$0xf]
    %v3479 = vld [vmem:[#allocation11 + $0x60] sm:$0xff]
    %v3480 = vld [vmem:[#allocation11 + $0x68] sm:$0xf]
    %v3481 = vld [vmem:[#allocation11 + $0x6c] sm:$0xff]
    %v3482 = vld [vmem:[#allocation11 + $0x74] sm:$0xf]
    %v3483 = vld [vmem:[#allocation11 + $0x78] sm:$0xff]
    %v3484 = vld [vmem:[#allocation11 + $0x80] sm:$0xf]
    %v3485 = vld [vmem:[#allocation11 + $0x84] sm:$0xff]
    %v3486 = vld [vmem:[#allocation11 + $0x8c] sm:$0xf]
    %v3487 = vld [vmem:[#allocation11 + $0x90] sm:$0xff]
    %v3488 = vld [vmem:[#allocation11 + $0x98] sm:$0xf]
    %v3489 = vld [vmem:[#allocation11 + $0x9c] sm:$0xff]
    %v3490 = vld [vmem:[#allocation11 + $0xa4] sm:$0xf]
    %v3491 = vld [vmem:[#allocation11 + $0xa8] sm:$0xff]
    %v3492 = vld [vmem:[#allocation11 + $0xb0] sm:$0xf]
    %v3493 = vld [vmem:[#allocation11 + $0xb4] sm:$0xff]
    %v3494 = vld [vmem:[#allocation11 + $0xbc] sm:$0xf]
    %v3495 = vld [vmem:[#allocation11 + $0xc0] sm:$0xff]
    %v3496 = vld [vmem:[#allocation11 + $0xc8] sm:$0xf]
    %v3497 = vld [vmem:[#allocation11 + $0xcc] sm:$0xff]
    %v3498 = vld [vmem:[#allocation11 + $0xd4] sm:$0xf]
    %v3499 = vld [vmem:[#allocation11 + $0xd8] sm:$0xff]
    %v3500 = vld [vmem:[#allocation11 + $0xe0] sm:$0xf]
    %v3501 = vld [vmem:[#allocation11 + $0xe4] sm:$0xff]
    %v3502 = vld [vmem:[#allocation11 + $0xec] sm:$0xf]
    %v3503 = vld [vmem:[#allocation11 + $0xf0] sm:$0xff]
    %v3504 = vld [vmem:[#allocation11 + $0xf8] sm:$0xf]
    %v3505 = vld [vmem:[#allocation11 + $0xfc] sm:$0xff]
    %v3506 = vld [vmem:[#allocation11 + $0x104] sm:$0xf]
    %v3507 = vld [vmem:[#allocation11 + $0x108] sm:$0xff]
    %v3508 = vld [vmem:[#allocation11 + $0x110] sm:$0xf]
    %v3509 = vld [vmem:[#allocation11 + $0x114] sm:$0xff]
    %v3510 = vld [vmem:[#allocation11 + $0x11c] sm:$0xf]
    %v3511 = vld [vmem:[#allocation11 + $0x120] sm:$0xff]
    %v3512 = vld [vmem:[#allocation11 + $0x128] sm:$0xf]
    %v3513 = vld [vmem:[#allocation11 + $0x12c] sm:$0xff]
    %v3514 = vld [vmem:[#allocation11 + $0x134] sm:$0xf]
    %v3515 = vld [vmem:[#allocation11 + $0x138] sm:$0xff]
    %v3516 = vld [vmem:[#allocation11 + $0x140] sm:$0xf]
    %v3517 = vld [vmem:[#allocation11 + $0x144] sm:$0xff]
    %v3518 = vld [vmem:[#allocation11 + $0x14c] sm:$0xf]
    %v3519 = vld [vmem:[#allocation11 + $0x150] sm:$0xff]
    %v3520 = vld [vmem:[#allocation11 + $0x158] sm:$0xf]
    %v3521 = vld [vmem:[#allocation11 + $0x15c] sm:$0xff]
    %v3522 = vld [vmem:[#allocation11 + $0x164] sm:$0xf]
    %v3523 = vld [vmem:[#allocation11 + $0x168] sm:$0xff]
    %v3524 = vld [vmem:[#allocation11 + $0x170] sm:$0xf]
    %v3525 = vld [vmem:[#allocation11 + $0x174] sm:$0xff]
    %v3526 = vld [vmem:[#allocation11 + $0x17c] sm:$0xf]
    %v3527 = vld [vmem:[#allocation11 + $0x180] sm:$0xff]
    %v3528 = vld [vmem:[#allocation11 + $0x188] sm:$0xf]
    %v3529 = vld [vmem:[#allocation11 + $0x18c] sm:$0xff]
    %v3530 = vld [vmem:[#allocation11 + $0x194] sm:$0xf]
    %v3531 = vld [vmem:[#allocation11 + $0x198] sm:$0xff]
    %v3532 = vld [vmem:[#allocation11 + $0x1a0] sm:$0xf]
    %v3533 = vld [vmem:[#allocation11 + $0x1a4] sm:$0xff]
    %v3534 = vld [vmem:[#allocation11 + $0x1ac] sm:$0xf]
    %v3535 = vld [vmem:[#allocation11 + $0x1b0] sm:$0xff]
    %v3536 = vld [vmem:[#allocation11 + $0x1b8] sm:$0xf]
    %v3537 = vld [vmem:[#allocation11 + $0x1bc] sm:$0xff]
    %v3538 = vld [vmem:[#allocation11 + $0x1c4] sm:$0xf]
    %v3539 = vld [vmem:[#allocation11 + $0x1c8] sm:$0xff]
    %v3540 = vld [vmem:[#allocation11 + $0x1d0] sm:$0xf]
    %v3541 = vld [vmem:[#allocation11 + $0x1d4] sm:$0xff]
    %v3542 = vld [vmem:[#allocation11 + $0x1dc] sm:$0xf]
    %v3543 = vld [vmem:[#allocation11 + $0x1e0] sm:$0xff]
    %v3544 = vld [vmem:[#allocation11 + $0x1e8] sm:$0xf]
    %v3545 = vld [vmem:[#allocation11 + $0x1ec] sm:$0xff]
    %v3546 = vld [vmem:[#allocation11 + $0x1f4] sm:$0xf]
    %v3547 = vld [vmem:[#allocation11 + $0x1f8] sm:$0xff]
    %v3548 = vld [vmem:[#allocation11 + $0x200] sm:$0xf]
    %v3549 = vld [vmem:[#allocation11 + $0x204] sm:$0xff]
    %v3550 = vld [vmem:[#allocation11 + $0x20c] sm:$0xf]
    %v3551 = vld [vmem:[#allocation11 + $0x210] sm:$0xff]
    %v3552 = vld [vmem:[#allocation11 + $0x218] sm:$0xf]
    %v3553 = vld [vmem:[#allocation11 + $0x21c] sm:$0xff]
    %v3554 = vld [vmem:[#allocation11 + $0x224] sm:$0xf]
    %v3555 = vld [vmem:[#allocation11 + $0x228] sm:$0xff]
    %v3556 = vld [vmem:[#allocation11 + $0x230] sm:$0xf]
    %v3557 = vld [vmem:[#allocation11 + $0x234] sm:$0xff]
    %v3558 = vld [vmem:[#allocation11 + $0x23c] sm:$0xf]
    %v3559 = vld [vmem:[#allocation12] sm:$0x7]
    %v3561 = vperm.slane %v3559, 0
    %v3562 = vperm.slane %v3559, 1
    %v3563 = vperm.slane %v3559, 2
    %v3663 = vunpack.c.l.b16 %v3463
    %v3664 = vunpack.c.h.b16 %v3463
    %v3665 = vunpack.c.l.b16 %v3464
    %v3666 = vunpack.c.l.b16 %v3465
    %v3667 = vunpack.c.h.b16 %v3465
    %v3668 = vunpack.c.l.b16 %v3466
    %v3669 = vunpack.c.l.b16 %v3467
    %v3670 = vunpack.c.h.b16 %v3467
    %v3671 = vunpack.c.l.b16 %v3468
    %v3672 = vunpack.c.l.b16 %v3469
    %v3673 = vunpack.c.h.b16 %v3469
    %v3674 = vunpack.c.l.b16 %v3470
    %v3675 = vunpack.c.l.b16 %v3471
    %v3676 = vunpack.c.h.b16 %v3471
    %v3677 = vunpack.c.l.b16 %v3472
    %v3678 = vunpack.c.l.b16 %v3473
    %v3679 = vunpack.c.h.b16 %v3473
    %v3680 = vunpack.c.l.b16 %v3474
    %v3681 = vunpack.c.l.b16 %v3475
    %v3682 = vunpack.c.h.b16 %v3475
    %v3683 = vunpack.c.l.b16 %v3476
    %v3684 = vunpack.c.l.b16 %v3477
    %v3685 = vunpack.c.h.b16 %v3477
    %v3686 = vunpack.c.l.b16 %v3478
    %v3687 = vunpack.c.l.b16 %v3479
    %v3688 = vunpack.c.h.b16 %v3479
    %v3689 = vunpack.c.l.b16 %v3480
    %v3690 = vunpack.c.l.b16 %v3481
    %v3691 = vunpack.c.h.b16 %v3481
    %v3692 = vunpack.c.l.b16 %v3482
    %v3693 = vunpack.c.l.b16 %v3483
    %v3694 = vunpack.c.h.b16 %v3483
    %v3695 = vunpack.c.l.b16 %v3484
    %v3696 = vunpack.c.l.b16 %v3485
    %v3697 = vunpack.c.h.b16 %v3485
    %v3698 = vunpack.c.l.b16 %v3486
    %v3699 = vunpack.c.l.b16 %v3487
    %v3700 = vunpack.c.h.b16 %v3487
    %v3701 = vunpack.c.l.b16 %v3488
    %v3702 = vunpack.c.l.b16 %v3489
    %v3703 = vunpack.c.h.b16 %v3489
    %v3704 = vunpack.c.l.b16 %v3490
    %v3705 = vunpack.c.l.b16 %v3491
    %v3706 = vunpack.c.h.b16 %v3491
    %v3707 = vunpack.c.l.b16 %v3492
    %v3708 = vunpack.c.l.b16 %v3493
    %v3709 = vunpack.c.h.b16 %v3493
    %v3710 = vunpack.c.l.b16 %v3494
    %v3711 = vunpack.c.l.b16 %v3495
    %v3712 = vunpack.c.h.b16 %v3495
    %v3713 = vunpack.c.l.b16 %v3496
    %v3714 = vunpack.c.l.b16 %v3497
    %v3715 = vunpack.c.h.b16 %v3497
    %v3716 = vunpack.c.l.b16 %v3498
    %v3717 = vunpack.c.l.b16 %v3499
    %v3718 = vunpack.c.h.b16 %v3499
    %v3719 = vunpack.c.l.b16 %v3500
    %v3720 = vunpack.c.l.b16 %v3501
    %v3721 = vunpack.c.h.b16 %v3501
    %v3722 = vunpack.c.l.b16 %v3502
    %v3723 = vunpack.c.l.b16 %v3503
    %v3724 = vunpack.c.h.b16 %v3503
    %v3725 = vunpack.c.l.b16 %v3504
    %v3726 = vunpack.c.l.b16 %v3505
    %v3727 = vunpack.c.h.b16 %v3505
    %v3728 = vunpack.c.l.b16 %v3506
    %v3729 = vunpack.c.l.b16 %v3507
    %v3730 = vunpack.c.h.b16 %v3507
    %v3731 = vunpack.c.l.b16 %v3508
    %v3732 = vunpack.c.l.b16 %v3509
    %v3733 = vunpack.c.h.b16 %v3509
    %v3734 = vunpack.c.l.b16 %v3510
    %v3735 = vunpack.c.l.b16 %v3511
    %v3736 = vunpack.c.h.b16 %v3511
    %v3737 = vunpack.c.l.b16 %v3512
    %v3738 = vunpack.c.l.b16 %v3513
    %v3739 = vunpack.c.h.b16 %v3513
    %v3740 = vunpack.c.l.b16 %v3514
    %v3741 = vunpack.c.l.b16 %v3515
    %v3742 = vunpack.c.h.b16 %v3515
    %v3743 = vunpack.c.l.b16 %v3516
    %v3744 = vunpack.c.l.b16 %v3517
    %v3745 = vunpack.c.h.b16 %v3517
    %v3746 = vunpack.c.l.b16 %v3518
    %v3747 = vunpack.c.l.b16 %v3519
    %v3748 = vunpack.c.h.b16 %v3519
    %v3749 = vunpack.c.l.b16 %v3520
    %v3750 = vunpack.c.l.b16 %v3521
    %v3751 = vunpack.c.h.b16 %v3521
    %v3752 = vunpack.c.l.b16 %v3522
    %v3753 = vunpack.c.l.b16 %v3523
    %v3754 = vunpack.c.h.b16 %v3523
    %v3755 = vunpack.c.l.b16 %v3524
    %v3756 = vunpack.c.l.b16 %v3525
    %v3757 = vunpack.c.h.b16 %v3525
    %v3758 = vunpack.c.l.b16 %v3526
    %v3759 = vunpack.c.l.b16 %v3527
    %v3760 = vunpack.c.h.b16 %v3527
    %v3761 = vunpack.c.l.b16 %v3528
    %v3762 = vunpack.c.l.b16 %v3529
    %v3763 = vunpack.c.h.b16 %v3529
    %v3764 = vunpack.c.l.b16 %v3530
    %v3765 = vunpack.c.l.b16 %v3531
    %v3766 = vunpack.c.h.b16 %v3531
    %v3767 = vunpack.c.l.b16 %v3532
    %v3768 = vunpack.c.l.b16 %v3533
    %v3769 = vunpack.c.h.b16 %v3533
    %v3770 = vunpack.c.l.b16 %v3534
    %v3771 = vunpack.c.l.b16 %v3535
    %v3772 = vunpack.c.h.b16 %v3535
    %v3773 = vunpack.c.l.b16 %v3536
    %v3774 = vunpack.c.l.b16 %v3537
    %v3775 = vunpack.c.h.b16 %v3537
    %v3776 = vunpack.c.l.b16 %v3538
    %v3777 = vunpack.c.l.b16 %v3539
    %v3778 = vunpack.c.h.b16 %v3539
    %v3779 = vunpack.c.l.b16 %v3540
    %v3780 = vunpack.c.l.b16 %v3541
    %v3781 = vunpack.c.h.b16 %v3541
    %v3782 = vunpack.c.l.b16 %v3542
    %v3783 = vunpack.c.l.b16 %v3543
    %v3784 = vunpack.c.h.b16 %v3543
    %v3785 = vunpack.c.l.b16 %v3544
    %v3786 = vunpack.c.l.b16 %v3545
    %v3787 = vunpack.c.h.b16 %v3545
    %v3788 = vunpack.c.l.b16 %v3546
    %v3789 = vunpack.c.l.b16 %v3547
    %v3790 = vunpack.c.h.b16 %v3547
    %v3791 = vunpack.c.l.b16 %v3548
    %v3792 = vunpack.c.l.b16 %v3549
    %v3793 = vunpack.c.h.b16 %v3549
    %v3794 = vunpack.c.l.b16 %v3550
    %v3795 = vunpack.c.l.b16 %v3551
    %v3796 = vunpack.c.h.b16 %v3551
    %v3797 = vunpack.c.l.b16 %v3552
    %v3798 = vunpack.c.l.b16 %v3553
    %v3799 = vunpack.c.h.b16 %v3553
    %v3800 = vunpack.c.l.b16 %v3554
    %v3801 = vunpack.c.l.b16 %v3555
    %v3802 = vunpack.c.h.b16 %v3555
    %v3803 = vunpack.c.l.b16 %v3556
    %v3804 = vunpack.c.l.b16 %v3557
    %v3805 = vunpack.c.h.b16 %v3557
    %v3806 = vunpack.c.l.b16 %v3558
    %v3807 = vpack.c.b16 %v3666, %v3663
    %v3808 = vpack.c.b16 %v3667, %v3664
    %v3809 = vpack.c.b16 %v3668, %v3665
    %v3810 = vpack.c.b16 %v3672, %v3669
    %v3811 = vpack.c.b16 %v3673, %v3670
    %v3812 = vpack.c.b16 %v3674, %v3671
    %v3813 = vpack.c.b16 %v3678, %v3675
    %v3814 = vpack.c.b16 %v3679, %v3676
    %v3815 = vpack.c.b16 %v3680, %v3677
    %v3816 = vpack.c.b16 %v3684, %v3681
    %v3817 = vpack.c.b16 %v3685, %v3682
    %v3818 = vpack.c.b16 %v3686, %v3683
    %v3819 = vpack.c.b16 %v3690, %v3687
    %v3820 = vpack.c.b16 %v3691, %v3688
    %v3821 = vpack.c.b16 %v3692, %v3689
    %v3822 = vpack.c.b16 %v3696, %v3693
    %v3823 = vpack.c.b16 %v3697, %v3694
    %v3824 = vpack.c.b16 %v3698, %v3695
    %v3825 = vpack.c.b16 %v3702, %v3699
    %v3826 = vpack.c.b16 %v3703, %v3700
    %v3827 = vpack.c.b16 %v3704, %v3701
    %v3828 = vpack.c.b16 %v3708, %v3705
    %v3829 = vpack.c.b16 %v3709, %v3706
    %v3830 = vpack.c.b16 %v3710, %v3707
    %v3831 = vpack.c.b16 %v3714, %v3711
    %v3832 = vpack.c.b16 %v3715, %v3712
    %v3833 = vpack.c.b16 %v3716, %v3713
    %v3834 = vpack.c.b16 %v3720, %v3717
    %v3835 = vpack.c.b16 %v3721, %v3718
    %v3836 = vpack.c.b16 %v3722, %v3719
    %v3837 = vpack.c.b16 %v3726, %v3723
    %v3838 = vpack.c.b16 %v3727, %v3724
    %v3839 = vpack.c.b16 %v3728, %v3725
    %v3840 = vpack.c.b16 %v3732, %v3729
    %v3841 = vpack.c.b16 %v3733, %v3730
    %v3842 = vpack.c.b16 %v3734, %v3731
    %v3843 = vpack.c.b16 %v3738, %v3735
    %v3844 = vpack.c.b16 %v3739, %v3736
    %v3845 = vpack.c.b16 %v3740, %v3737
    %v3846 = vpack.c.b16 %v3744, %v3741
    %v3847 = vpack.c.b16 %v3745, %v3742
    %v3848 = vpack.c.b16 %v3746, %v3743
    %v3849 = vpack.c.b16 %v3750, %v3747
    %v3850 = vpack.c.b16 %v3751, %v3748
    %v3851 = vpack.c.b16 %v3752, %v3749
    %v3852 = vpack.c.b16 %v3756, %v3753
    %v3853 = vpack.c.b16 %v3757, %v3754
    %v3854 = vpack.c.b16 %v3758, %v3755
    %v3855 = vpack.c.b16 %v3762, %v3759
    %v3856 = vpack.c.b16 %v3763, %v3760
    %v3857 = vpack.c.b16 %v3764, %v3761
    %v3858 = vpack.c.b16 %v3768, %v3765
    %v3859 = vpack.c.b16 %v3769, %v3766
    %v3860 = vpack.c.b16 %v3770, %v3767
    %v3861 = vpack.c.b16 %v3774, %v3771
    %v3862 = vpack.c.b16 %v3775, %v3772
    %v3863 = vpack.c.b16 %v3776, %v3773
    %v3864 = vpack.c.b16 %v3780, %v3777
    %v3865 = vpack.c.b16 %v3781, %v3778
    %v3866 = vpack.c.b16 %v3782, %v3779
    %v3867 = vpack.c.b16 %v3786, %v3783
    %v3868 = vpack.c.b16 %v3787, %v3784
    %v3869 = vpack.c.b16 %v3788, %v3785
    %v3870 = vpack.c.b16 %v3792, %v3789
    %v3871 = vpack.c.b16 %v3793, %v3790
    %v3872 = vpack.c.b16 %v3794, %v3791
    %v3873 = vpack.c.b16 %v3798, %v3795
    %v3874 = vpack.c.b16 %v3799, %v3796
    %v3875 = vpack.c.b16 %v3800, %v3797
    %v3876 = vpack.c.b16 %v3804, %v3801
    %v3877 = vpack.c.b16 %v3805, %v3802
    %v3878 = vpack.c.b16 %v3806, %v3803
    %3951 = vmatpush.bf16.msra.mxu0 %v3828
    %3952 = vmatpush.bf16.msra.mxu0 %v3825
    %3953 = vmatpush.bf16.msra.mxu0 %v3822
    %3954 = vmatpush.bf16.msra.mxu0 %v3819
    %3955 = vmatpush.bf16.msra.mxu0 %v3816
    %3956 = vmatpush.bf16.msra.mxu0 %v3813
    %3957 = vmatpush.bf16.msra.mxu0 %v3810
    %3958 = vmatpush.bf16.msra.mxu0 %v3807
    %3959 = vmatmul.bf16.gmra.mxu0 %v3457
    %v3960 = vpop.f32.mrf.mxu0
    %v3961 = vadd.f32 %v3561, %v3960
    %v3962 = vpop.f32.mrf.mxu0
    %v3963 = vadd.f32 %v3561, %v3962
    %3964 = vmatmul.bf16.gmra.mxu0 %v3460
    %v3965 = vpop.f32.mrf.mxu0
    %v3966 = vadd.f32 %v3561, %v3965
    %v3967 = vpop.f32.mrf.mxu0
    %v3968 = vadd.f32 %v3561, %v3967
    %3969 = vdwg.mxu0
    %3970 = vmatpush.bf16.msra.mxu0 %v3852
    %3971 = vmatpush.bf16.msra.mxu0 %v3849
    %3972 = vmatpush.bf16.msra.mxu0 %v3846
    %3973 = vmatpush.bf16.msra.mxu0 %v3843
    %3974 = vmatpush.bf16.msra.mxu0 %v3840
    %3975 = vmatpush.bf16.msra.mxu0 %v3837
    %3976 = vmatpush.bf16.msra.mxu0 %v3834
    %3977 = vmatpush.bf16.msra.mxu0 %v3831
    %3978 = vmatmul.bf16.gmra.mxu0 %v3458
    %v3979 = vpop.f32.mrf.mxu0
    %v3980 = vadd.f32 %v3961, %v3979
    %v3981 = vpop.f32.mrf.mxu0
    %v3982 = vadd.f32 %v3963, %v3981
    %3983 = vmatmul.bf16.gmra.mxu0 %v3461
    %v3984 = vpop.f32.mrf.mxu0
    %v3985 = vadd.f32 %v3966, %v3984
    %v3986 = vpop.f32.mrf.mxu0
    %v3987 = vadd.f32 %v3968, %v3986
    %3988 = vdwg.mxu0
    %3989 = vmatpush.bf16.msra.mxu0 %v3876
    %3990 = vmatpush.bf16.msra.mxu0 %v3873
    %3991 = vmatpush.bf16.msra.mxu0 %v3870
    %3992 = vmatpush.bf16.msra.mxu0 %v3867
    %3993 = vmatpush.bf16.msra.mxu0 %v3864
    %3994 = vmatpush.bf16.msra.mxu0 %v3861
    %3995 = vmatpush.bf16.msra.mxu0 %v3858
    %3996 = vmatpush.bf16.msra.mxu0 %v3855
    %3997 = vmatmul.bf16.gmra.mxu0 %v3459
    %v3998 = vpop.f32.mrf.mxu0
    %v3999 = vadd.f32 %v3980, %v3998
    %v4000 = vpop.f32.mrf.mxu0
    %v4001 = vadd.f32 %v3982, %v4000
    %4002 = vmatmul.bf16.gmra.mxu0 %v3462
    %v4003 = vpop.f32.mrf.mxu0
    %v4004 = vadd.f32 %v3985, %v4003
    %v4005 = vpop.f32.mrf.mxu0
    %v4006 = vadd.f32 %v3987, %v4005
    %4007 = vdwg.mxu0
    %4008 = vmatpush.bf16.msra.mxu0 %v3829
    %4009 = vmatpush.bf16.msra.mxu0 %v3826
    %4010 = vmatpush.bf16.msra.mxu0 %v3823
    %4011 = vmatpush.bf16.msra.mxu0 %v3820
    %4012 = vmatpush.bf16.msra.mxu0 %v3817
    %4013 = vmatpush.bf16.msra.mxu0 %v3814
    %4014 = vmatpush.bf16.msra.mxu0 %v3811
    %4015 = vmatpush.bf16.msra.mxu0 %v3808
    %4016 = vmatmul.bf16.gmra.mxu0 %v3457
    %v4017 = vpop.f32.mrf.mxu0
    %v4018 = vadd.f32 %v3562, %v4017
    %v4019 = vpop.f32.mrf.mxu0
    %v4020 = vadd.f32 %v3562, %v4019
    %4021 = vmatmul.bf16.gmra.mxu0 %v3460
    %v4022 = vpop.f32.mrf.mxu0
    %v4023 = vadd.f32 %v3562, %v4022
    %v4024 = vpop.f32.mrf.mxu0
    %v4025 = vadd.f32 %v3562, %v4024
    %4026 = vdwg.mxu0
    %4027 = vmatpush.bf16.msra.mxu0 %v3853
    %4028 = vmatpush.bf16.msra.mxu0 %v3850
    %4029 = vmatpush.bf16.msra.mxu0 %v3847
    %4030 = vmatpush.bf16.msra.mxu0 %v3844
    %4031 = vmatpush.bf16.msra.mxu0 %v3841
    %4032 = vmatpush.bf16.msra.mxu0 %v3838
    %4033 = vmatpush.bf16.msra.mxu0 %v3835
    %4034 = vmatpush.bf16.msra.mxu0 %v3832
    %4035 = vmatmul.bf16.gmra.mxu0 %v3458
    %v4036 = vpop.f32.mrf.mxu0
    %v4037 = vadd.f32 %v4018, %v4036
    %v4038 = vpop.f32.mrf.mxu0
    %v4039 = vadd.f32 %v4020, %v4038
    %4040 = vmatmul.bf16.gmra.mxu0 %v3461
    %v4041 = vpop.f32.mrf.mxu0
    %v4042 = vadd.f32 %v4023, %v4041
    %v4043 = vpop.f32.mrf.mxu0
    %v4044 = vadd.f32 %v4025, %v4043
    %4045 = vdwg.mxu0
    %4046 = vmatpush.bf16.msra.mxu0 %v3877
    %4047 = vmatpush.bf16.msra.mxu0 %v3874
    %4048 = vmatpush.bf16.msra.mxu0 %v3871
    %4049 = vmatpush.bf16.msra.mxu0 %v3868
    %4050 = vmatpush.bf16.msra.mxu0 %v3865
    %4051 = vmatpush.bf16.msra.mxu0 %v3862
    %4052 = vmatpush.bf16.msra.mxu0 %v3859
    %4053 = vmatpush.bf16.msra.mxu0 %v3856
    %4054 = vmatmul.bf16.gmra.mxu0 %v3459
    %v4055 = vpop.f32.mrf.mxu0
    %v4056 = vadd.f32 %v4037, %v4055
    %v4057 = vpop.f32.mrf.mxu0
    %v4058 = vadd.f32 %v4039, %v4057
    %4059 = vmatmul.bf16.gmra.mxu0 %v3462
    %v4060 = vpop.f32.mrf.mxu0
    %v4061 = vadd.f32 %v4042, %v4060
    %v4062 = vpop.f32.mrf.mxu0
    %v4063 = vadd.f32 %v4044, %v4062
    %4064 = vdwg.mxu0
    %4065 = vmatpush.bf16.msra.mxu0 %v3830
    %4066 = vmatpush.bf16.msra.mxu0 %v3827
    %4067 = vmatpush.bf16.msra.mxu0 %v3824
    %4068 = vmatpush.bf16.msra.mxu0 %v3821
    %4069 = vmatpush.bf16.msra.mxu0 %v3818
    %4070 = vmatpush.bf16.msra.mxu0 %v3815
    %4071 = vmatpush.bf16.msra.mxu0 %v3812
    %4072 = vmatpush.bf16.msra.mxu0 %v3809
    %4073 = vmatmul.bf16.gmra.mxu0 %v3457
    %v4074 = vpop.f32.mrf.mxu0
    %v4075 = vadd.f32 %v3563, %v4074
    %v4076 = vpop.f32.mrf.mxu0
    %v4077 = vadd.f32 %v3563, %v4076
    %4078 = vmatmul.bf16.gmra.mxu0 %v3460
    %v4079 = vpop.f32.mrf.mxu0
    %v4080 = vadd.f32 %v3563, %v4079
    %v4081 = vpop.f32.mrf.mxu0
    %v4082 = vadd.f32 %v3563, %v4081
    %4083 = vdwg.mxu0
    %4084 = vmatpush.bf16.msra.mxu0 %v3854
    %4085 = vmatpush.bf16.msra.mxu0 %v3851
    %4086 = vmatpush.bf16.msra.mxu0 %v3848
    %4087 = vmatpush.bf16.msra.mxu0 %v3845
    %4088 = vmatpush.bf16.msra.mxu0 %v3842
    %4089 = vmatpush.bf16.msra.mxu0 %v3839
    %4090 = vmatpush.bf16.msra.mxu0 %v3836
    %4091 = vmatpush.bf16.msra.mxu0 %v3833
    %4092 = vmatmul.bf16.gmra.mxu0 %v3458
    %v4093 = vpop.f32.mrf.mxu0
    %v4094 = vadd.f32 %v4075, %v4093
    %v4095 = vpop.f32.mrf.mxu0
    %v4096 = vadd.f32 %v4077, %v4095
    %4097 = vmatmul.bf16.gmra.mxu0 %v3461
    %v4098 = vpop.f32.mrf.mxu0
    %v4099 = vadd.f32 %v4080, %v4098
    %v4100 = vpop.f32.mrf.mxu0
    %v4101 = vadd.f32 %v4082, %v4100
    %4102 = vdwg.mxu0
    %4103 = vmatpush.bf16.msra.mxu0 %v3878
    %4104 = vmatpush.bf16.msra.mxu0 %v3875
    %4105 = vmatpush.bf16.msra.mxu0 %v3872
    %4106 = vmatpush.bf16.msra.mxu0 %v3869
    %4107 = vmatpush.bf16.msra.mxu0 %v3866
    %4108 = vmatpush.bf16.msra.mxu0 %v3863
    %4109 = vmatpush.bf16.msra.mxu0 %v3860
    %4110 = vmatpush.bf16.msra.mxu0 %v3857
    %4111 = vmatmul.bf16.gmra.mxu0 %v3459
    %v4112 = vpop.f32.mrf.mxu0
    %v4113 = vadd.f32 %v4094, %v4112
    %v4114 = vpop.f32.mrf.mxu0
    %v4115 = vadd.f32 %v4096, %v4114
    %4116 = vmatmul.bf16.gmra.mxu0 %v3462
    %v4117 = vpop.f32.mrf.mxu0
    %v4118 = vadd.f32 %v4099, %v4117
    %v4119 = vpop.f32.mrf.mxu0
    %v4120 = vadd.f32 %v4101, %v4119
    %4121 = vdwg.mxu0
    %v4122 = vadd.f32 %v215, %v3999
    %v4123 = vadd.f32 %v216, %v4056
    %v4124 = vadd.f32 %v217, %v4113
    %v4125 = vadd.f32 %v218, %v4001
    %v4126 = vadd.f32 %v219, %v4058
    %v4127 = vadd.f32 %v220, %v4115
    %v4128 = vadd.f32 %v221, %v4004
    %v4129 = vadd.f32 %v222, %v4061
    %v4130 = vadd.f32 %v223, %v4118
    %v4131 = vadd.f32 %v224, %v4006
    %v4132 = vadd.f32 %v225, %v4063
    %v4133 = vadd.f32 %v226, %v4120
    %v4134 = vld [vmem:[#allocation14] sm:$0x7]
    %v4135 = vld [vmem:[#allocation15] sm:$0x7]
    %v4136 = vadd.f32 %v4122, %v4123
    %v4137 = vadd.f32 %v4136, %v4124
    %4138 = vadd.xlane.f32.xlu0 %v4137
    %v4139 = vpop.xlane.xlu0 %4138
    %v4140 = vadd.f32 %v4125, %v4126
    %v4141 = vadd.f32 %v4140, %v4127
    %4142 = vadd.xlane.f32.xlu0 %v4141
    %v4143 = vpop.xlane.xlu0 %4142
    %v4144 = vadd.f32 %v4128, %v4129
    %v4145 = vadd.f32 %v4144, %v4130
    %4146 = vadd.xlane.f32.xlu0 %v4145
    %v4147 = vpop.xlane.xlu0 %4146
    %v4148 = vadd.f32 %v4131, %v4132
    %v4149 = vadd.f32 %v4148, %v4133
    %4150 = vadd.xlane.f32.xlu0 %v4149
    %v4151 = vpop.xlane.xlu0 %4150
    %v4152 = vmul.f32 %v4139, %v251
    %v4153 = vmul.f32 %v4143, %v251
    %v4154 = vmul.f32 %v4147, %v251
    %v4155 = vmul.f32 %v4151, %v251
    %v4156 = vsub.f32 %v4122, %v4152
    %v4157 = vsub.f32 %v4123, %v4152
    %v4158 = vsub.f32 %v4124, %v4152
    %v4159 = vsub.f32 %v4125, %v4153
    %v4160 = vsub.f32 %v4126, %v4153
    %v4161 = vsub.f32 %v4127, %v4153
    %v4162 = vsub.f32 %v4128, %v4154
    %v4163 = vsub.f32 %v4129, %v4154
    %v4164 = vsub.f32 %v4130, %v4154
    %v4165 = vsub.f32 %v4131, %v4155
    %v4166 = vsub.f32 %v4132, %v4155
    %v4167 = vsub.f32 %v4133, %v4155
    %v4168 = vmul.f32 %v4156, %v4156
    %v4169 = vmul.f32 %v4157, %v4157
    %v4170 = vmul.f32 %v4158, %v4158
    %v4171 = vmul.f32 %v4159, %v4159
    %v4172 = vmul.f32 %v4160, %v4160
    %v4173 = vmul.f32 %v4161, %v4161
    %v4174 = vmul.f32 %v4162, %v4162
    %v4175 = vmul.f32 %v4163, %v4163
    %v4176 = vmul.f32 %v4164, %v4164
    %v4177 = vmul.f32 %v4165, %v4165
    %v4178 = vmul.f32 %v4166, %v4166
    %v4179 = vmul.f32 %v4167, %v4167
    %v4180 = vadd.f32 %v4168, %v4169
    %v4181 = vadd.f32 %v4180, %v4170
    %4182 = vadd.xlane.f32.xlu0 %v4181
    %v4183 = vpop.xlane.xlu0 %4182
    %v4184 = vadd.f32 %v4171, %v4172
    %v4185 = vadd.f32 %v4184, %v4173
    %4186 = vadd.xlane.f32.xlu0 %v4185
    %v4187 = vpop.xlane.xlu0 %4186
    %v4188 = vadd.f32 %v4174, %v4175
    %v4189 = vadd.f32 %v4188, %v4176
    %4190 = vadd.xlane.f32.xlu0 %v4189
    %v4191 = vpop.xlane.xlu0 %4190
    %v4192 = vadd.f32 %v4177, %v4178
    %v4193 = vadd.f32 %v4192, %v4179
    %4194 = vadd.xlane.f32.xlu0 %v4193
    %v4195 = vpop.xlane.xlu0 %4194
    %v4196 = vmul.f32 %v4183, %v251
    %v4197 = vmul.f32 %v4187, %v251
    %v4198 = vmul.f32 %v4191, %v251
    %v4199 = vmul.f32 %v4195, %v251
    %v4200 = vadd.f32 %v4196, 1e-05
    %v4201 = vadd.f32 %v4197, 1e-05
    %v4202 = vadd.f32 %v4198, 1e-05
    %v4203 = vadd.f32 %v4199, 1e-05
    %v4204 = vrsqrt.pop %v4200
    %v4205 = vmul.f32 %v4204, %v4200
    %v4206 = vmul.f32 %v4205, %v4204
    %v4207 = vmul.f32 0.5, %v4206
    %v4208 = vsub.f32 1.5, %v4207
    %v4209 = vmul.f32 %v4204, %v4208
    %vm4210 = vweird.f32 %v4200
    %vm4211 = vweird.f32 %v4204
    %vm4212 = vmor %vm4210, %vm4211
    %v4213 = vsel %vm4212, %v4204, %v4209
    %v4214 = vrsqrt.pop %v4201
    %v4215 = vmul.f32 %v4214, %v4201
    %v4216 = vmul.f32 %v4215, %v4214
    %v4217 = vmul.f32 0.5, %v4216
    %v4218 = vsub.f32 1.5, %v4217
    %v4219 = vmul.f32 %v4214, %v4218
    %vm4220 = vweird.f32 %v4201
    %vm4221 = vweird.f32 %v4214
    %vm4222 = vmor %vm4220, %vm4221
    %v4223 = vsel %vm4222, %v4214, %v4219
    %v4224 = vrsqrt.pop %v4202
    %v4225 = vmul.f32 %v4224, %v4202
    %v4226 = vmul.f32 %v4225, %v4224
    %v4227 = vmul.f32 0.5, %v4226
    %v4228 = vsub.f32 1.5, %v4227
    %v4229 = vmul.f32 %v4224, %v4228
    %vm4230 = vweird.f32 %v4202
    %vm4231 = vweird.f32 %v4224
    %vm4232 = vmor %vm4230, %vm4231
    %v4233 = vsel %vm4232, %v4224, %v4229
    %v4234 = vrsqrt.pop %v4203
    %v4235 = vmul.f32 %v4234, %v4203
    %v4236 = vmul.f32 %v4235, %v4234
    %v4237 = vmul.f32 0.5, %v4236
    %v4238 = vsub.f32 1.5, %v4237
    %v4239 = vmul.f32 %v4234, %v4238
    %vm4240 = vweird.f32 %v4203
    %vm4241 = vweird.f32 %v4234
    %vm4242 = vmor %vm4240, %vm4241
    %v4243 = vsel %vm4242, %v4234, %v4239
    %v4244 = vmul.f32 %v4156, %v4213
    %v4245 = vmul.f32 %v4157, %v4213
    %v4246 = vmul.f32 %v4158, %v4213
    %v4247 = vmul.f32 %v4159, %v4223
    %v4248 = vmul.f32 %v4160, %v4223
    %v4249 = vmul.f32 %v4161, %v4223
    %v4250 = vmul.f32 %v4162, %v4233
    %v4251 = vmul.f32 %v4163, %v4233
    %v4252 = vmul.f32 %v4164, %v4233
    %v4253 = vmul.f32 %v4165, %v4243
    %v4254 = vmul.f32 %v4166, %v4243
    %v4255 = vmul.f32 %v4167, %v4243
    %v4257 = vperm.slane %v4134, 0
    %v4258 = vperm.slane %v4134, 1
    %v4259 = vperm.slane %v4134, 2
    %v4263 = vmul.f32 %v4244, %v4257
    %v4264 = vmul.f32 %v4245, %v4258
    %v4265 = vmul.f32 %v4246, %v4259
    %v4266 = vmul.f32 %v4247, %v4257
    %v4267 = vmul.f32 %v4248, %v4258
    %v4268 = vmul.f32 %v4249, %v4259
    %v4269 = vmul.f32 %v4250, %v4257
    %v4270 = vmul.f32 %v4251, %v4258
    %v4271 = vmul.f32 %v4252, %v4259
    %v4272 = vmul.f32 %v4253, %v4257
    %v4273 = vmul.f32 %v4254, %v4258
    %v4274 = vmul.f32 %v4255, %v4259
    %v4276 = vperm.slane %v4135, 0
    %v4277 = vperm.slane %v4135, 1
    %v4278 = vperm.slane %v4135, 2
    %v4282 = vadd.f32 %v4263, %v4276
    %v4283 = vadd.f32 %v4264, %v4277
    %v4284 = vadd.f32 %v4265, %v4278
    %v4285 = vadd.f32 %v4266, %v4276
    %v4286 = vadd.f32 %v4267, %v4277
    %v4287 = vadd.f32 %v4268, %v4278
    %v4288 = vadd.f32 %v4269, %v4276
    %v4289 = vadd.f32 %v4270, %v4277
    %v4290 = vadd.f32 %v4271, %v4278
    %v4291 = vadd.f32 %v4272, %v4276
    %v4292 = vadd.f32 %v4273, %v4277
    %v4293 = vadd.f32 %v4274, %v4278
    %v4294 = vpack.c.bf16 %v4285, %v4282
    %v4295 = vpack.c.bf16 %v4286, %v4283
    %v4296 = vpack.c.bf16 %v4287, %v4284
    %v4297 = vpack.c.bf16 %v4291, %v4288
    %v4298 = vpack.c.bf16 %v4292, %v4289
    %v4299 = vpack.c.bf16 %v4293, %v4290
    %v4300 = vld [vmem:[#allocation17] sm:$0xff]
    %v4301 = vld [vmem:[#allocation17 + $0x8] sm:$0xff]
    %v4302 = vld [vmem:[#allocation17 + $0x10] sm:$0xff]
    %v4303 = vld [vmem:[#allocation17 + $0x18] sm:$0xff]
    %v4304 = vld [vmem:[#allocation17 + $0x20] sm:$0xff]
    %v4305 = vld [vmem:[#allocation17 + $0x28] sm:$0xff]
    %v4306 = vld [vmem:[#allocation17 + $0x30] sm:$0xff]
    %v4307 = vld [vmem:[#allocation17 + $0x38] sm:$0xff]
    %v4308 = vld [vmem:[#allocation17 + $0x40] sm:$0xff]
    %v4309 = vld [vmem:[#allocation17 + $0x48] sm:$0xff]
    %v4310 = vld [vmem:[#allocation17 + $0x50] sm:$0xff]
    %v4311 = vld [vmem:[#allocation17 + $0x58] sm:$0xff]
    %v4312 = vld [vmem:[#allocation17 + $0x60] sm:$0xff]
    %v4313 = vld [vmem:[#allocation17 + $0x68] sm:$0xff]
    %v4314 = vld [vmem:[#allocation17 + $0x70] sm:$0xff]
    %v4315 = vld [vmem:[#allocation17 + $0x78] sm:$0xff]
    %v4316 = vld [vmem:[#allocation17 + $0x80] sm:$0xff]
    %v4317 = vld [vmem:[#allocation17 + $0x88] sm:$0xff]
    %v4318 = vld [vmem:[#allocation17 + $0x90] sm:$0xff]
    %v4319 = vld [vmem:[#allocation17 + $0x98] sm:$0xff]
    %v4320 = vld [vmem:[#allocation17 + $0xa0] sm:$0xff]
    %v4321 = vld [vmem:[#allocation17 + $0xa8] sm:$0xff]
    %v4322 = vld [vmem:[#allocation17 + $0xb0] sm:$0xff]
    %v4323 = vld [vmem:[#allocation17 + $0xb8] sm:$0xff]
    %v4324 = vld [vmem:[#allocation17 + $0xc0] sm:$0xff]
    %v4325 = vld [vmem:[#allocation17 + $0xc8] sm:$0xff]
    %v4326 = vld [vmem:[#allocation17 + $0xd0] sm:$0xff]
    %v4327 = vld [vmem:[#allocation17 + $0xd8] sm:$0xff]
    %v4328 = vld [vmem:[#allocation17 + $0xe0] sm:$0xff]
    %v4329 = vld [vmem:[#allocation17 + $0xe8] sm:$0xff]
    %v4330 = vld [vmem:[#allocation17 + $0xf0] sm:$0xff]
    %v4331 = vld [vmem:[#allocation17 + $0xf8] sm:$0xff]
    %v4332 = vld [vmem:[#allocation17 + $0x100] sm:$0xff]
    %v4333 = vld [vmem:[#allocation17 + $0x108] sm:$0xff]
    %v4334 = vld [vmem:[#allocation17 + $0x110] sm:$0xff]
    %v4335 = vld [vmem:[#allocation17 + $0x118] sm:$0xff]
    %v4336 = vld [vmem:[#allocation17 + $0x120] sm:$0xff]
    %v4337 = vld [vmem:[#allocation17 + $0x128] sm:$0xff]
    %v4338 = vld [vmem:[#allocation17 + $0x130] sm:$0xff]
    %v4339 = vld [vmem:[#allocation17 + $0x138] sm:$0xff]
    %v4340 = vld [vmem:[#allocation17 + $0x140] sm:$0xff]
    %v4341 = vld [vmem:[#allocation17 + $0x148] sm:$0xff]
    %v4342 = vld [vmem:[#allocation17 + $0x150] sm:$0xff]
    %v4343 = vld [vmem:[#allocation17 + $0x158] sm:$0xff]
    %v4344 = vld [vmem:[#allocation17 + $0x160] sm:$0xff]
    %v4345 = vld [vmem:[#allocation17 + $0x168] sm:$0xff]
    %v4346 = vld [vmem:[#allocation17 + $0x170] sm:$0xff]
    %v4347 = vld [vmem:[#allocation17 + $0x178] sm:$0xff]
    %v4348 = vld [vmem:[#allocation17 + $0x180] sm:$0xff]
    %v4349 = vld [vmem:[#allocation17 + $0x188] sm:$0xff]
    %v4350 = vld [vmem:[#allocation17 + $0x190] sm:$0xff]
    %v4351 = vld [vmem:[#allocation17 + $0x198] sm:$0xff]
    %v4352 = vld [vmem:[#allocation17 + $0x1a0] sm:$0xff]
    %v4353 = vld [vmem:[#allocation17 + $0x1a8] sm:$0xff]
    %v4354 = vld [vmem:[#allocation17 + $0x1b0] sm:$0xff]
    %v4355 = vld [vmem:[#allocation17 + $0x1b8] sm:$0xff]
    %v4356 = vld [vmem:[#allocation17 + $0x1c0] sm:$0xff]
    %v4357 = vld [vmem:[#allocation17 + $0x1c8] sm:$0xff]
    %v4358 = vld [vmem:[#allocation17 + $0x1d0] sm:$0xff]
    %v4359 = vld [vmem:[#allocation17 + $0x1d8] sm:$0xff]
    %v4360 = vld [vmem:[#allocation17 + $0x1e0] sm:$0xff]
    %v4361 = vld [vmem:[#allocation17 + $0x1e8] sm:$0xff]
    %v4362 = vld [vmem:[#allocation17 + $0x1f0] sm:$0xff]
    %v4363 = vld [vmem:[#allocation17 + $0x1f8] sm:$0xff]
    %v4364 = vld [vmem:[#allocation17 + $0x200] sm:$0xff]
    %v4365 = vld [vmem:[#allocation17 + $0x208] sm:$0xff]
    %v4366 = vld [vmem:[#allocation17 + $0x210] sm:$0xff]
    %v4367 = vld [vmem:[#allocation17 + $0x218] sm:$0xff]
    %v4368 = vld [vmem:[#allocation17 + $0x220] sm:$0xff]
    %v4369 = vld [vmem:[#allocation17 + $0x228] sm:$0xff]
    %v4370 = vld [vmem:[#allocation17 + $0x230] sm:$0xff]
    %v4371 = vld [vmem:[#allocation17 + $0x238] sm:$0xff]
    %v4372 = vld [vmem:[#allocation17 + $0x240] sm:$0xff]
    %v4373 = vld [vmem:[#allocation17 + $0x248] sm:$0xff]
    %v4374 = vld [vmem:[#allocation17 + $0x250] sm:$0xff]
    %v4375 = vld [vmem:[#allocation17 + $0x258] sm:$0xff]
    %v4376 = vld [vmem:[#allocation17 + $0x260] sm:$0xff]
    %v4377 = vld [vmem:[#allocation17 + $0x268] sm:$0xff]
    %v4378 = vld [vmem:[#allocation17 + $0x270] sm:$0xff]
    %v4379 = vld [vmem:[#allocation17 + $0x278] sm:$0xff]
    %v4380 = vld [vmem:[#allocation17 + $0x280] sm:$0xff]
    %v4381 = vld [vmem:[#allocation17 + $0x288] sm:$0xff]
    %v4382 = vld [vmem:[#allocation17 + $0x290] sm:$0xff]
    %v4383 = vld [vmem:[#allocation17 + $0x298] sm:$0xff]
    %v4384 = vld [vmem:[#allocation17 + $0x2a0] sm:$0xff]
    %v4385 = vld [vmem:[#allocation17 + $0x2a8] sm:$0xff]
    %v4386 = vld [vmem:[#allocation17 + $0x2b0] sm:$0xff]
    %v4387 = vld [vmem:[#allocation17 + $0x2b8] sm:$0xff]
    %v4388 = vld [vmem:[#allocation17 + $0x2c0] sm:$0xff]
    %v4389 = vld [vmem:[#allocation17 + $0x2c8] sm:$0xff]
    %v4390 = vld [vmem:[#allocation17 + $0x2d0] sm:$0xff]
    %v4391 = vld [vmem:[#allocation17 + $0x2d8] sm:$0xff]
    %v4392 = vld [vmem:[#allocation17 + $0x2e0] sm:$0xff]
    %v4393 = vld [vmem:[#allocation17 + $0x2e8] sm:$0xff]
    %v4394 = vld [vmem:[#allocation17 + $0x2f0] sm:$0xff]
    %v4395 = vld [vmem:[#allocation17 + $0x2f8] sm:$0xff]
    %v4396 = vld [vmem:[#allocation17 + $0x300] sm:$0xff]
    %v4397 = vld [vmem:[#allocation17 + $0x308] sm:$0xff]
    %v4398 = vld [vmem:[#allocation17 + $0x310] sm:$0xff]
    %v4399 = vld [vmem:[#allocation17 + $0x318] sm:$0xff]
    %v4400 = vld [vmem:[#allocation17 + $0x320] sm:$0xff]
    %v4401 = vld [vmem:[#allocation17 + $0x328] sm:$0xff]
    %v4402 = vld [vmem:[#allocation17 + $0x330] sm:$0xff]
    %v4403 = vld [vmem:[#allocation17 + $0x338] sm:$0xff]
    %v4404 = vld [vmem:[#allocation17 + $0x340] sm:$0xff]
    %v4405 = vld [vmem:[#allocation17 + $0x348] sm:$0xff]
    %v4406 = vld [vmem:[#allocation17 + $0x350] sm:$0xff]
    %v4407 = vld [vmem:[#allocation17 + $0x358] sm:$0xff]
    %v4408 = vld [vmem:[#allocation17 + $0x360] sm:$0xff]
    %v4409 = vld [vmem:[#allocation17 + $0x368] sm:$0xff]
    %v4410 = vld [vmem:[#allocation17 + $0x370] sm:$0xff]
    %v4411 = vld [vmem:[#allocation17 + $0x378] sm:$0xff]
    %v4412 = vld [vmem:[#allocation17 + $0x380] sm:$0xff]
    %v4413 = vld [vmem:[#allocation17 + $0x388] sm:$0xff]
    %v4414 = vld [vmem:[#allocation17 + $0x390] sm:$0xff]
    %v4415 = vld [vmem:[#allocation17 + $0x398] sm:$0xff]
    %v4416 = vld [vmem:[#allocation17 + $0x3a0] sm:$0xff]
    %v4417 = vld [vmem:[#allocation17 + $0x3a8] sm:$0xff]
    %v4418 = vld [vmem:[#allocation17 + $0x3b0] sm:$0xff]
    %v4419 = vld [vmem:[#allocation17 + $0x3b8] sm:$0xff]
    %v4420 = vld [vmem:[#allocation17 + $0x3c0] sm:$0xff]
    %v4421 = vld [vmem:[#allocation17 + $0x3c8] sm:$0xff]
    %v4422 = vld [vmem:[#allocation17 + $0x3d0] sm:$0xff]
    %v4423 = vld [vmem:[#allocation17 + $0x3d8] sm:$0xff]
    %v4424 = vld [vmem:[#allocation17 + $0x3e0] sm:$0xff]
    %v4425 = vld [vmem:[#allocation17 + $0x3e8] sm:$0xff]
    %v4426 = vld [vmem:[#allocation17 + $0x3f0] sm:$0xff]
    %v4427 = vld [vmem:[#allocation17 + $0x3f8] sm:$0xff]
    %v4428 = vld [vmem:[#allocation17 + $0x400] sm:$0xff]
    %v4429 = vld [vmem:[#allocation17 + $0x408] sm:$0xff]
    %v4430 = vld [vmem:[#allocation17 + $0x410] sm:$0xff]
    %v4431 = vld [vmem:[#allocation17 + $0x418] sm:$0xff]
    %v4432 = vld [vmem:[#allocation17 + $0x420] sm:$0xff]
    %v4433 = vld [vmem:[#allocation17 + $0x428] sm:$0xff]
    %v4434 = vld [vmem:[#allocation17 + $0x430] sm:$0xff]
    %v4435 = vld [vmem:[#allocation17 + $0x438] sm:$0xff]
    %v4436 = vld [vmem:[#allocation17 + $0x440] sm:$0xff]
    %v4437 = vld [vmem:[#allocation17 + $0x448] sm:$0xff]
    %v4438 = vld [vmem:[#allocation17 + $0x450] sm:$0xff]
    %v4439 = vld [vmem:[#allocation17 + $0x458] sm:$0xff]
    %v4440 = vld [vmem:[#allocation17 + $0x460] sm:$0xff]
    %v4441 = vld [vmem:[#allocation17 + $0x468] sm:$0xff]
    %v4442 = vld [vmem:[#allocation17 + $0x470] sm:$0xff]
    %v4443 = vld [vmem:[#allocation17 + $0x478] sm:$0xff]
    %v4444 = vld [vmem:[#allocation17 + $0x480] sm:$0xff]
    %v4445 = vld [vmem:[#allocation17 + $0x488] sm:$0xff]
    %v4446 = vld [vmem:[#allocation17 + $0x490] sm:$0xff]
    %v4447 = vld [vmem:[#allocation17 + $0x498] sm:$0xff]
    %v4448 = vld [vmem:[#allocation17 + $0x4a0] sm:$0xff]
    %v4449 = vld [vmem:[#allocation17 + $0x4a8] sm:$0xff]
    %v4450 = vld [vmem:[#allocation17 + $0x4b0] sm:$0xff]
    %v4451 = vld [vmem:[#allocation17 + $0x4b8] sm:$0xff]
    %v4452 = vld [vmem:[#allocation17 + $0x4c0] sm:$0xff]
    %v4453 = vld [vmem:[#allocation17 + $0x4c8] sm:$0xff]
    %v4454 = vld [vmem:[#allocation17 + $0x4d0] sm:$0xff]
    %v4455 = vld [vmem:[#allocation17 + $0x4d8] sm:$0xff]
    %v4456 = vld [vmem:[#allocation17 + $0x4e0] sm:$0xff]
    %v4457 = vld [vmem:[#allocation17 + $0x4e8] sm:$0xff]
    %v4458 = vld [vmem:[#allocation17 + $0x4f0] sm:$0xff]
    %v4459 = vld [vmem:[#allocation17 + $0x4f8] sm:$0xff]
    %v4460 = vld [vmem:[#allocation17 + $0x500] sm:$0xff]
    %v4461 = vld [vmem:[#allocation17 + $0x508] sm:$0xff]
    %v4462 = vld [vmem:[#allocation17 + $0x510] sm:$0xff]
    %v4463 = vld [vmem:[#allocation17 + $0x518] sm:$0xff]
    %v4464 = vld [vmem:[#allocation17 + $0x520] sm:$0xff]
    %v4465 = vld [vmem:[#allocation17 + $0x528] sm:$0xff]
    %v4466 = vld [vmem:[#allocation17 + $0x530] sm:$0xff]
    %v4467 = vld [vmem:[#allocation17 + $0x538] sm:$0xff]
    %v4468 = vld [vmem:[#allocation17 + $0x540] sm:$0xff]
    %v4469 = vld [vmem:[#allocation17 + $0x548] sm:$0xff]
    %v4470 = vld [vmem:[#allocation17 + $0x550] sm:$0xff]
    %v4471 = vld [vmem:[#allocation17 + $0x558] sm:$0xff]
    %v4472 = vld [vmem:[#allocation17 + $0x560] sm:$0xff]
    %v4473 = vld [vmem:[#allocation17 + $0x568] sm:$0xff]
    %v4474 = vld [vmem:[#allocation17 + $0x570] sm:$0xff]
    %v4475 = vld [vmem:[#allocation17 + $0x578] sm:$0xff]
    %v4476 = vld [vmem:[#allocation17 + $0x580] sm:$0xff]
    %v4477 = vld [vmem:[#allocation17 + $0x588] sm:$0xff]
    %v4478 = vld [vmem:[#allocation17 + $0x590] sm:$0xff]
    %v4479 = vld [vmem:[#allocation17 + $0x598] sm:$0xff]
    %v4480 = vld [vmem:[#allocation17 + $0x5a0] sm:$0xff]
    %v4481 = vld [vmem:[#allocation17 + $0x5a8] sm:$0xff]
    %v4482 = vld [vmem:[#allocation17 + $0x5b0] sm:$0xff]
    %v4483 = vld [vmem:[#allocation17 + $0x5b8] sm:$0xff]
    %v4484 = vld [vmem:[#allocation17 + $0x5c0] sm:$0xff]
    %v4485 = vld [vmem:[#allocation17 + $0x5c8] sm:$0xff]
    %v4486 = vld [vmem:[#allocation17 + $0x5d0] sm:$0xff]
    %v4487 = vld [vmem:[#allocation17 + $0x5d8] sm:$0xff]
    %v4488 = vld [vmem:[#allocation17 + $0x5e0] sm:$0xff]
    %v4489 = vld [vmem:[#allocation17 + $0x5e8] sm:$0xff]
    %v4490 = vld [vmem:[#allocation17 + $0x5f0] sm:$0xff]
    %v4491 = vld [vmem:[#allocation17 + $0x5f8] sm:$0xff]
    %v4492 = vld [vmem:[#allocation17 + $0x600] sm:$0xff]
    %v4493 = vld [vmem:[#allocation17 + $0x608] sm:$0xff]
    %v4494 = vld [vmem:[#allocation17 + $0x610] sm:$0xff]
    %v4495 = vld [vmem:[#allocation17 + $0x618] sm:$0xff]
    %v4496 = vld [vmem:[#allocation17 + $0x620] sm:$0xff]
    %v4497 = vld [vmem:[#allocation17 + $0x628] sm:$0xff]
    %v4498 = vld [vmem:[#allocation17 + $0x630] sm:$0xff]
    %v4499 = vld [vmem:[#allocation17 + $0x638] sm:$0xff]
    %v4500 = vld [vmem:[#allocation17 + $0x640] sm:$0xff]
    %v4501 = vld [vmem:[#allocation17 + $0x648] sm:$0xff]
    %v4502 = vld [vmem:[#allocation17 + $0x650] sm:$0xff]
    %v4503 = vld [vmem:[#allocation17 + $0x658] sm:$0xff]
    %v4504 = vld [vmem:[#allocation17 + $0x660] sm:$0xff]
    %v4505 = vld [vmem:[#allocation17 + $0x668] sm:$0xff]
    %v4506 = vld [vmem:[#allocation17 + $0x670] sm:$0xff]
    %v4507 = vld [vmem:[#allocation17 + $0x678] sm:$0xff]
    %v4508 = vld [vmem:[#allocation17 + $0x680] sm:$0xff]
    %v4509 = vld [vmem:[#allocation17 + $0x688] sm:$0xff]
    %v4510 = vld [vmem:[#allocation17 + $0x690] sm:$0xff]
    %v4511 = vld [vmem:[#allocation17 + $0x698] sm:$0xff]
    %v4512 = vld [vmem:[#allocation17 + $0x6a0] sm:$0xff]
    %v4513 = vld [vmem:[#allocation17 + $0x6a8] sm:$0xff]
    %v4514 = vld [vmem:[#allocation17 + $0x6b0] sm:$0xff]
    %v4515 = vld [vmem:[#allocation17 + $0x6b8] sm:$0xff]
    %v4516 = vld [vmem:[#allocation17 + $0x6c0] sm:$0xff]
    %v4517 = vld [vmem:[#allocation17 + $0x6c8] sm:$0xff]
    %v4518 = vld [vmem:[#allocation17 + $0x6d0] sm:$0xff]
    %v4519 = vld [vmem:[#allocation17 + $0x6d8] sm:$0xff]
    %v4520 = vld [vmem:[#allocation17 + $0x6e0] sm:$0xff]
    %v4521 = vld [vmem:[#allocation17 + $0x6e8] sm:$0xff]
    %v4522 = vld [vmem:[#allocation17 + $0x6f0] sm:$0xff]
    %v4523 = vld [vmem:[#allocation17 + $0x6f8] sm:$0xff]
    %v4524 = vld [vmem:[#allocation17 + $0x700] sm:$0xff]
    %v4525 = vld [vmem:[#allocation17 + $0x708] sm:$0xff]
    %v4526 = vld [vmem:[#allocation17 + $0x710] sm:$0xff]
    %v4527 = vld [vmem:[#allocation17 + $0x718] sm:$0xff]
    %v4528 = vld [vmem:[#allocation17 + $0x720] sm:$0xff]
    %v4529 = vld [vmem:[#allocation17 + $0x728] sm:$0xff]
    %v4530 = vld [vmem:[#allocation17 + $0x730] sm:$0xff]
    %v4531 = vld [vmem:[#allocation17 + $0x738] sm:$0xff]
    %v4532 = vld [vmem:[#allocation17 + $0x740] sm:$0xff]
    %v4533 = vld [vmem:[#allocation17 + $0x748] sm:$0xff]
    %v4534 = vld [vmem:[#allocation17 + $0x750] sm:$0xff]
    %v4535 = vld [vmem:[#allocation17 + $0x758] sm:$0xff]
    %v4536 = vld [vmem:[#allocation17 + $0x760] sm:$0xff]
    %v4537 = vld [vmem:[#allocation17 + $0x768] sm:$0xff]
    %v4538 = vld [vmem:[#allocation17 + $0x770] sm:$0xff]
    %v4539 = vld [vmem:[#allocation17 + $0x778] sm:$0xff]
    %v4540 = vld [vmem:[#allocation17 + $0x780] sm:$0xff]
    %v4541 = vld [vmem:[#allocation17 + $0x788] sm:$0xff]
    %v4542 = vld [vmem:[#allocation17 + $0x790] sm:$0xff]
    %v4543 = vld [vmem:[#allocation17 + $0x798] sm:$0xff]
    %v4544 = vld [vmem:[#allocation17 + $0x7a0] sm:$0xff]
    %v4545 = vld [vmem:[#allocation17 + $0x7a8] sm:$0xff]
    %v4546 = vld [vmem:[#allocation17 + $0x7b0] sm:$0xff]
    %v4547 = vld [vmem:[#allocation17 + $0x7b8] sm:$0xff]
    %v4548 = vld [vmem:[#allocation17 + $0x7c0] sm:$0xff]
    %v4549 = vld [vmem:[#allocation17 + $0x7c8] sm:$0xff]
    %v4550 = vld [vmem:[#allocation17 + $0x7d0] sm:$0xff]
    %v4551 = vld [vmem:[#allocation17 + $0x7d8] sm:$0xff]
    %v4552 = vld [vmem:[#allocation17 + $0x7e0] sm:$0xff]
    %v4553 = vld [vmem:[#allocation17 + $0x7e8] sm:$0xff]
    %v4554 = vld [vmem:[#allocation17 + $0x7f0] sm:$0xff]
    %v4555 = vld [vmem:[#allocation17 + $0x7f8] sm:$0xff]
    %v4556 = vld [vmem:[#allocation17 + $0x800] sm:$0xff]
    %v4557 = vld [vmem:[#allocation17 + $0x808] sm:$0xff]
    %v4558 = vld [vmem:[#allocation17 + $0x810] sm:$0xff]
    %v4559 = vld [vmem:[#allocation17 + $0x818] sm:$0xff]
    %v4560 = vld [vmem:[#allocation17 + $0x820] sm:$0xff]
    %v4561 = vld [vmem:[#allocation17 + $0x828] sm:$0xff]
    %v4562 = vld [vmem:[#allocation17 + $0x830] sm:$0xff]
    %v4563 = vld [vmem:[#allocation17 + $0x838] sm:$0xff]
    %v4564 = vld [vmem:[#allocation17 + $0x840] sm:$0xff]
    %v4565 = vld [vmem:[#allocation17 + $0x848] sm:$0xff]
    %v4566 = vld [vmem:[#allocation17 + $0x850] sm:$0xff]
    %v4567 = vld [vmem:[#allocation17 + $0x858] sm:$0xff]
    %v4568 = vld [vmem:[#allocation17 + $0x860] sm:$0xff]
    %v4569 = vld [vmem:[#allocation17 + $0x868] sm:$0xff]
    %v4570 = vld [vmem:[#allocation17 + $0x870] sm:$0xff]
    %v4571 = vld [vmem:[#allocation17 + $0x878] sm:$0xff]
    %v4572 = vld [vmem:[#allocation17 + $0x880] sm:$0xff]
    %v4573 = vld [vmem:[#allocation17 + $0x888] sm:$0xff]
    %v4574 = vld [vmem:[#allocation17 + $0x890] sm:$0xff]
    %v4575 = vld [vmem:[#allocation17 + $0x898] sm:$0xff]
    %v4576 = vld [vmem:[#allocation17 + $0x8a0] sm:$0xff]
    %v4577 = vld [vmem:[#allocation17 + $0x8a8] sm:$0xff]
    %v4578 = vld [vmem:[#allocation17 + $0x8b0] sm:$0xff]
    %v4579 = vld [vmem:[#allocation17 + $0x8b8] sm:$0xff]
    %v4580 = vld [vmem:[#allocation17 + $0x8c0] sm:$0xff]
    %v4581 = vld [vmem:[#allocation17 + $0x8c8] sm:$0xff]
    %v4582 = vld [vmem:[#allocation17 + $0x8d0] sm:$0xff]
    %v4583 = vld [vmem:[#allocation17 + $0x8d8] sm:$0xff]
    %v4584 = vld [vmem:[#allocation17 + $0x8e0] sm:$0xff]
    %v4585 = vld [vmem:[#allocation17 + $0x8e8] sm:$0xff]
    %v4586 = vld [vmem:[#allocation17 + $0x8f0] sm:$0xff]
    %v4587 = vld [vmem:[#allocation17 + $0x8f8] sm:$0xff]
    %v4588 = vld [vmem:[#allocation18] sm:$0xff]
    %v4589 = vld [vmem:[#allocation18 + $0x8] sm:$0xf]
    %v4592 = vperm.slane %v4588, 0
    %v4593 = vperm.slane %v4588, 1
    %v4594 = vperm.slane %v4588, 2
    %v4595 = vperm.slane %v4588, 3
    %v4596 = vperm.slane %v4588, 4
    %v4597 = vperm.slane %v4588, 5
    %v4598 = vperm.slane %v4588, 6
    %v4599 = vperm.slane %v4588, 7
    %v4600 = vperm.slane %v4589, 0
    %v4601 = vperm.slane %v4589, 1
    %v4602 = vperm.slane %v4589, 2
    %v4603 = vperm.slane %v4589, 3
    %v4904 = vunpack.c.l.b16 %v4300
    %v4905 = vunpack.c.h.b16 %v4300
    %v4906 = vunpack.c.l.b16 %v4301
    %v4907 = vunpack.c.h.b16 %v4301
    %v4908 = vunpack.c.l.b16 %v4302
    %v4909 = vunpack.c.h.b16 %v4302
    %v4910 = vunpack.c.l.b16 %v4303
    %v4911 = vunpack.c.h.b16 %v4303
    %v4912 = vunpack.c.l.b16 %v4304
    %v4913 = vunpack.c.h.b16 %v4304
    %v4914 = vunpack.c.l.b16 %v4305
    %v4915 = vunpack.c.h.b16 %v4305
    %v4916 = vunpack.c.l.b16 %v4306
    %v4917 = vunpack.c.h.b16 %v4306
    %v4918 = vunpack.c.l.b16 %v4307
    %v4919 = vunpack.c.h.b16 %v4307
    %v4920 = vunpack.c.l.b16 %v4308
    %v4921 = vunpack.c.h.b16 %v4308
    %v4922 = vunpack.c.l.b16 %v4309
    %v4923 = vunpack.c.h.b16 %v4309
    %v4924 = vunpack.c.l.b16 %v4310
    %v4925 = vunpack.c.h.b16 %v4310
    %v4926 = vunpack.c.l.b16 %v4311
    %v4927 = vunpack.c.h.b16 %v4311
    %v4928 = vunpack.c.l.b16 %v4312
    %v4929 = vunpack.c.h.b16 %v4312
    %v4930 = vunpack.c.l.b16 %v4313
    %v4931 = vunpack.c.h.b16 %v4313
    %v4932 = vunpack.c.l.b16 %v4314
    %v4933 = vunpack.c.h.b16 %v4314
    %v4934 = vunpack.c.l.b16 %v4315
    %v4935 = vunpack.c.h.b16 %v4315
    %v4936 = vunpack.c.l.b16 %v4316
    %v4937 = vunpack.c.h.b16 %v4316
    %v4938 = vunpack.c.l.b16 %v4317
    %v4939 = vunpack.c.h.b16 %v4317
    %v4940 = vunpack.c.l.b16 %v4318
    %v4941 = vunpack.c.h.b16 %v4318
    %v4942 = vunpack.c.l.b16 %v4319
    %v4943 = vunpack.c.h.b16 %v4319
    %v4944 = vunpack.c.l.b16 %v4320
    %v4945 = vunpack.c.h.b16 %v4320
    %v4946 = vunpack.c.l.b16 %v4321
    %v4947 = vunpack.c.h.b16 %v4321
    %v4948 = vunpack.c.l.b16 %v4322
    %v4949 = vunpack.c.h.b16 %v4322
    %v4950 = vunpack.c.l.b16 %v4323
    %v4951 = vunpack.c.h.b16 %v4323
    %v4952 = vunpack.c.l.b16 %v4324
    %v4953 = vunpack.c.h.b16 %v4324
    %v4954 = vunpack.c.l.b16 %v4325
    %v4955 = vunpack.c.h.b16 %v4325
    %v4956 = vunpack.c.l.b16 %v4326
    %v4957 = vunpack.c.h.b16 %v4326
    %v4958 = vunpack.c.l.b16 %v4327
    %v4959 = vunpack.c.h.b16 %v4327
    %v4960 = vunpack.c.l.b16 %v4328
    %v4961 = vunpack.c.h.b16 %v4328
    %v4962 = vunpack.c.l.b16 %v4329
    %v4963 = vunpack.c.h.b16 %v4329
    %v4964 = vunpack.c.l.b16 %v4330
    %v4965 = vunpack.c.h.b16 %v4330
    %v4966 = vunpack.c.l.b16 %v4331
    %v4967 = vunpack.c.h.b16 %v4331
    %v4968 = vunpack.c.l.b16 %v4332
    %v4969 = vunpack.c.h.b16 %v4332
    %v4970 = vunpack.c.l.b16 %v4333
    %v4971 = vunpack.c.h.b16 %v4333
    %v4972 = vunpack.c.l.b16 %v4334
    %v4973 = vunpack.c.h.b16 %v4334
    %v4974 = vunpack.c.l.b16 %v4335
    %v4975 = vunpack.c.h.b16 %v4335
    %v4976 = vunpack.c.l.b16 %v4336
    %v4977 = vunpack.c.h.b16 %v4336
    %v4978 = vunpack.c.l.b16 %v4337
    %v4979 = vunpack.c.h.b16 %v4337
    %v4980 = vunpack.c.l.b16 %v4338
    %v4981 = vunpack.c.h.b16 %v4338
    %v4982 = vunpack.c.l.b16 %v4339
    %v4983 = vunpack.c.h.b16 %v4339
    %v4984 = vunpack.c.l.b16 %v4340
    %v4985 = vunpack.c.h.b16 %v4340
    %v4986 = vunpack.c.l.b16 %v4341
    %v4987 = vunpack.c.h.b16 %v4341
    %v4988 = vunpack.c.l.b16 %v4342
    %v4989 = vunpack.c.h.b16 %v4342
    %v4990 = vunpack.c.l.b16 %v4343
    %v4991 = vunpack.c.h.b16 %v4343
    %v4992 = vunpack.c.l.b16 %v4344
    %v4993 = vunpack.c.h.b16 %v4344
    %v4994 = vunpack.c.l.b16 %v4345
    %v4995 = vunpack.c.h.b16 %v4345
    %v4996 = vunpack.c.l.b16 %v4346
    %v4997 = vunpack.c.h.b16 %v4346
    %v4998 = vunpack.c.l.b16 %v4347
    %v4999 = vunpack.c.h.b16 %v4347
    %v5000 = vunpack.c.l.b16 %v4348
    %v5001 = vunpack.c.h.b16 %v4348
    %v5002 = vunpack.c.l.b16 %v4349
    %v5003 = vunpack.c.h.b16 %v4349
    %v5004 = vunpack.c.l.b16 %v4350
    %v5005 = vunpack.c.h.b16 %v4350
    %v5006 = vunpack.c.l.b16 %v4351
    %v5007 = vunpack.c.h.b16 %v4351
    %v5008 = vunpack.c.l.b16 %v4352
    %v5009 = vunpack.c.h.b16 %v4352
    %v5010 = vunpack.c.l.b16 %v4353
    %v5011 = vunpack.c.h.b16 %v4353
    %v5012 = vunpack.c.l.b16 %v4354
    %v5013 = vunpack.c.h.b16 %v4354
    %v5014 = vunpack.c.l.b16 %v4355
    %v5015 = vunpack.c.h.b16 %v4355
    %v5016 = vunpack.c.l.b16 %v4356
    %v5017 = vunpack.c.h.b16 %v4356
    %v5018 = vunpack.c.l.b16 %v4357
    %v5019 = vunpack.c.h.b16 %v4357
    %v5020 = vunpack.c.l.b16 %v4358
    %v5021 = vunpack.c.h.b16 %v4358
    %v5022 = vunpack.c.l.b16 %v4359
    %v5023 = vunpack.c.h.b16 %v4359
    %v5024 = vunpack.c.l.b16 %v4360
    %v5025 = vunpack.c.h.b16 %v4360
    %v5026 = vunpack.c.l.b16 %v4361
    %v5027 = vunpack.c.h.b16 %v4361
    %v5028 = vunpack.c.l.b16 %v4362
    %v5029 = vunpack.c.h.b16 %v4362
    %v5030 = vunpack.c.l.b16 %v4363
    %v5031 = vunpack.c.h.b16 %v4363
    %v5032 = vunpack.c.l.b16 %v4364
    %v5033 = vunpack.c.h.b16 %v4364
    %v5034 = vunpack.c.l.b16 %v4365
    %v5035 = vunpack.c.h.b16 %v4365
    %v5036 = vunpack.c.l.b16 %v4366
    %v5037 = vunpack.c.h.b16 %v4366
    %v5038 = vunpack.c.l.b16 %v4367
    %v5039 = vunpack.c.h.b16 %v4367
    %v5040 = vunpack.c.l.b16 %v4368
    %v5041 = vunpack.c.h.b16 %v4368
    %v5042 = vunpack.c.l.b16 %v4369
    %v5043 = vunpack.c.h.b16 %v4369
    %v5044 = vunpack.c.l.b16 %v4370
    %v5045 = vunpack.c.h.b16 %v4370
    %v5046 = vunpack.c.l.b16 %v4371
    %v5047 = vunpack.c.h.b16 %v4371
    %v5048 = vunpack.c.l.b16 %v4372
    %v5049 = vunpack.c.h.b16 %v4372
    %v5050 = vunpack.c.l.b16 %v4373
    %v5051 = vunpack.c.h.b16 %v4373
    %v5052 = vunpack.c.l.b16 %v4374
    %v5053 = vunpack.c.h.b16 %v4374
    %v5054 = vunpack.c.l.b16 %v4375
    %v5055 = vunpack.c.h.b16 %v4375
    %v5056 = vunpack.c.l.b16 %v4376
    %v5057 = vunpack.c.h.b16 %v4376
    %v5058 = vunpack.c.l.b16 %v4377
    %v5059 = vunpack.c.h.b16 %v4377
    %v5060 = vunpack.c.l.b16 %v4378
    %v5061 = vunpack.c.h.b16 %v4378
    %v5062 = vunpack.c.l.b16 %v4379
    %v5063 = vunpack.c.h.b16 %v4379
    %v5064 = vunpack.c.l.b16 %v4380
    %v5065 = vunpack.c.h.b16 %v4380
    %v5066 = vunpack.c.l.b16 %v4381
    %v5067 = vunpack.c.h.b16 %v4381
    %v5068 = vunpack.c.l.b16 %v4382
    %v5069 = vunpack.c.h.b16 %v4382
    %v5070 = vunpack.c.l.b16 %v4383
    %v5071 = vunpack.c.h.b16 %v4383
    %v5072 = vunpack.c.l.b16 %v4384
    %v5073 = vunpack.c.h.b16 %v4384
    %v5074 = vunpack.c.l.b16 %v4385
    %v5075 = vunpack.c.h.b16 %v4385
    %v5076 = vunpack.c.l.b16 %v4386
    %v5077 = vunpack.c.h.b16 %v4386
    %v5078 = vunpack.c.l.b16 %v4387
    %v5079 = vunpack.c.h.b16 %v4387
    %v5080 = vunpack.c.l.b16 %v4388
    %v5081 = vunpack.c.h.b16 %v4388
    %v5082 = vunpack.c.l.b16 %v4389
    %v5083 = vunpack.c.h.b16 %v4389
    %v5084 = vunpack.c.l.b16 %v4390
    %v5085 = vunpack.c.h.b16 %v4390
    %v5086 = vunpack.c.l.b16 %v4391
    %v5087 = vunpack.c.h.b16 %v4391
    %v5088 = vunpack.c.l.b16 %v4392
    %v5089 = vunpack.c.h.b16 %v4392
    %v5090 = vunpack.c.l.b16 %v4393
    %v5091 = vunpack.c.h.b16 %v4393
    %v5092 = vunpack.c.l.b16 %v4394
    %v5093 = vunpack.c.h.b16 %v4394
    %v5094 = vunpack.c.l.b16 %v4395
    %v5095 = vunpack.c.h.b16 %v4395
    %v5096 = vunpack.c.l.b16 %v4396
    %v5097 = vunpack.c.h.b16 %v4396
    %v5098 = vunpack.c.l.b16 %v4397
    %v5099 = vunpack.c.h.b16 %v4397
    %v5100 = vunpack.c.l.b16 %v4398
    %v5101 = vunpack.c.h.b16 %v4398
    %v5102 = vunpack.c.l.b16 %v4399
    %v5103 = vunpack.c.h.b16 %v4399
    %v5104 = vunpack.c.l.b16 %v4400
    %v5105 = vunpack.c.h.b16 %v4400
    %v5106 = vunpack.c.l.b16 %v4401
    %v5107 = vunpack.c.h.b16 %v4401
    %v5108 = vunpack.c.l.b16 %v4402
    %v5109 = vunpack.c.h.b16 %v4402
    %v5110 = vunpack.c.l.b16 %v4403
    %v5111 = vunpack.c.h.b16 %v4403
    %v5112 = vunpack.c.l.b16 %v4404
    %v5113 = vunpack.c.h.b16 %v4404
    %v5114 = vunpack.c.l.b16 %v4405
    %v5115 = vunpack.c.h.b16 %v4405
    %v5116 = vunpack.c.l.b16 %v4406
    %v5117 = vunpack.c.h.b16 %v4406
    %v5118 = vunpack.c.l.b16 %v4407
    %v5119 = vunpack.c.h.b16 %v4407
    %v5120 = vunpack.c.l.b16 %v4408
    %v5121 = vunpack.c.h.b16 %v4408
    %v5122 = vunpack.c.l.b16 %v4409
    %v5123 = vunpack.c.h.b16 %v4409
    %v5124 = vunpack.c.l.b16 %v4410
    %v5125 = vunpack.c.h.b16 %v4410
    %v5126 = vunpack.c.l.b16 %v4411
    %v5127 = vunpack.c.h.b16 %v4411
    %v5128 = vunpack.c.l.b16 %v4412
    %v5129 = vunpack.c.h.b16 %v4412
    %v5130 = vunpack.c.l.b16 %v4413
    %v5131 = vunpack.c.h.b16 %v4413
    %v5132 = vunpack.c.l.b16 %v4414
    %v5133 = vunpack.c.h.b16 %v4414
    %v5134 = vunpack.c.l.b16 %v4415
    %v5135 = vunpack.c.h.b16 %v4415
    %v5136 = vunpack.c.l.b16 %v4416
    %v5137 = vunpack.c.h.b16 %v4416
    %v5138 = vunpack.c.l.b16 %v4417
    %v5139 = vunpack.c.h.b16 %v4417
    %v5140 = vunpack.c.l.b16 %v4418
    %v5141 = vunpack.c.h.b16 %v4418
    %v5142 = vunpack.c.l.b16 %v4419
    %v5143 = vunpack.c.h.b16 %v4419
    %v5144 = vunpack.c.l.b16 %v4420
    %v5145 = vunpack.c.h.b16 %v4420
    %v5146 = vunpack.c.l.b16 %v4421
    %v5147 = vunpack.c.h.b16 %v4421
    %v5148 = vunpack.c.l.b16 %v4422
    %v5149 = vunpack.c.h.b16 %v4422
    %v5150 = vunpack.c.l.b16 %v4423
    %v5151 = vunpack.c.h.b16 %v4423
    %v5152 = vunpack.c.l.b16 %v4424
    %v5153 = vunpack.c.h.b16 %v4424
    %v5154 = vunpack.c.l.b16 %v4425
    %v5155 = vunpack.c.h.b16 %v4425
    %v5156 = vunpack.c.l.b16 %v4426
    %v5157 = vunpack.c.h.b16 %v4426
    %v5158 = vunpack.c.l.b16 %v4427
    %v5159 = vunpack.c.h.b16 %v4427
    %v5160 = vunpack.c.l.b16 %v4428
    %v5161 = vunpack.c.h.b16 %v4428
    %v5162 = vunpack.c.l.b16 %v4429
    %v5163 = vunpack.c.h.b16 %v4429
    %v5164 = vunpack.c.l.b16 %v4430
    %v5165 = vunpack.c.h.b16 %v4430
    %v5166 = vunpack.c.l.b16 %v4431
    %v5167 = vunpack.c.h.b16 %v4431
    %v5168 = vunpack.c.l.b16 %v4432
    %v5169 = vunpack.c.h.b16 %v4432
    %v5170 = vunpack.c.l.b16 %v4433
    %v5171 = vunpack.c.h.b16 %v4433
    %v5172 = vunpack.c.l.b16 %v4434
    %v5173 = vunpack.c.h.b16 %v4434
    %v5174 = vunpack.c.l.b16 %v4435
    %v5175 = vunpack.c.h.b16 %v4435
    %v5176 = vunpack.c.l.b16 %v4436
    %v5177 = vunpack.c.h.b16 %v4436
    %v5178 = vunpack.c.l.b16 %v4437
    %v5179 = vunpack.c.h.b16 %v4437
    %v5180 = vunpack.c.l.b16 %v4438
    %v5181 = vunpack.c.h.b16 %v4438
    %v5182 = vunpack.c.l.b16 %v4439
    %v5183 = vunpack.c.h.b16 %v4439
    %v5184 = vunpack.c.l.b16 %v4440
    %v5185 = vunpack.c.h.b16 %v4440
    %v5186 = vunpack.c.l.b16 %v4441
    %v5187 = vunpack.c.h.b16 %v4441
    %v5188 = vunpack.c.l.b16 %v4442
    %v5189 = vunpack.c.h.b16 %v4442
    %v5190 = vunpack.c.l.b16 %v4443
    %v5191 = vunpack.c.h.b16 %v4443
    %v5192 = vunpack.c.l.b16 %v4444
    %v5193 = vunpack.c.h.b16 %v4444
    %v5194 = vunpack.c.l.b16 %v4445
    %v5195 = vunpack.c.h.b16 %v4445
    %v5196 = vunpack.c.l.b16 %v4446
    %v5197 = vunpack.c.h.b16 %v4446
    %v5198 = vunpack.c.l.b16 %v4447
    %v5199 = vunpack.c.h.b16 %v4447
    %v5200 = vunpack.c.l.b16 %v4448
    %v5201 = vunpack.c.h.b16 %v4448
    %v5202 = vunpack.c.l.b16 %v4449
    %v5203 = vunpack.c.h.b16 %v4449
    %v5204 = vunpack.c.l.b16 %v4450
    %v5205 = vunpack.c.h.b16 %v4450
    %v5206 = vunpack.c.l.b16 %v4451
    %v5207 = vunpack.c.h.b16 %v4451
    %v5208 = vunpack.c.l.b16 %v4452
    %v5209 = vunpack.c.h.b16 %v4452
    %v5210 = vunpack.c.l.b16 %v4453
    %v5211 = vunpack.c.h.b16 %v4453
    %v5212 = vunpack.c.l.b16 %v4454
    %v5213 = vunpack.c.h.b16 %v4454
    %v5214 = vunpack.c.l.b16 %v4455
    %v5215 = vunpack.c.h.b16 %v4455
    %v5216 = vunpack.c.l.b16 %v4456
    %v5217 = vunpack.c.h.b16 %v4456
    %v5218 = vunpack.c.l.b16 %v4457
    %v5219 = vunpack.c.h.b16 %v4457
    %v5220 = vunpack.c.l.b16 %v4458
    %v5221 = vunpack.c.h.b16 %v4458
    %v5222 = vunpack.c.l.b16 %v4459
    %v5223 = vunpack.c.h.b16 %v4459
    %v5224 = vunpack.c.l.b16 %v4460
    %v5225 = vunpack.c.h.b16 %v4460
    %v5226 = vunpack.c.l.b16 %v4461
    %v5227 = vunpack.c.h.b16 %v4461
    %v5228 = vunpack.c.l.b16 %v4462
    %v5229 = vunpack.c.h.b16 %v4462
    %v5230 = vunpack.c.l.b16 %v4463
    %v5231 = vunpack.c.h.b16 %v4463
    %v5232 = vunpack.c.l.b16 %v4464
    %v5233 = vunpack.c.h.b16 %v4464
    %v5234 = vunpack.c.l.b16 %v4465
    %v5235 = vunpack.c.h.b16 %v4465
    %v5236 = vunpack.c.l.b16 %v4466
    %v5237 = vunpack.c.h.b16 %v4466
    %v5238 = vunpack.c.l.b16 %v4467
    %v5239 = vunpack.c.h.b16 %v4467
    %v5240 = vunpack.c.l.b16 %v4468
    %v5241 = vunpack.c.h.b16 %v4468
    %v5242 = vunpack.c.l.b16 %v4469
    %v5243 = vunpack.c.h.b16 %v4469
    %v5244 = vunpack.c.l.b16 %v4470
    %v5245 = vunpack.c.h.b16 %v4470
    %v5246 = vunpack.c.l.b16 %v4471
    %v5247 = vunpack.c.h.b16 %v4471
    %v5248 = vunpack.c.l.b16 %v4472
    %v5249 = vunpack.c.h.b16 %v4472
    %v5250 = vunpack.c.l.b16 %v4473
    %v5251 = vunpack.c.h.b16 %v4473
    %v5252 = vunpack.c.l.b16 %v4474
    %v5253 = vunpack.c.h.b16 %v4474
    %v5254 = vunpack.c.l.b16 %v4475
    %v5255 = vunpack.c.h.b16 %v4475
    %v5256 = vunpack.c.l.b16 %v4476
    %v5257 = vunpack.c.h.b16 %v4476
    %v5258 = vunpack.c.l.b16 %v4477
    %v5259 = vunpack.c.h.b16 %v4477
    %v5260 = vunpack.c.l.b16 %v4478
    %v5261 = vunpack.c.h.b16 %v4478
    %v5262 = vunpack.c.l.b16 %v4479
    %v5263 = vunpack.c.h.b16 %v4479
    %v5264 = vunpack.c.l.b16 %v4480
    %v5265 = vunpack.c.h.b16 %v4480
    %v5266 = vunpack.c.l.b16 %v4481
    %v5267 = vunpack.c.h.b16 %v4481
    %v5268 = vunpack.c.l.b16 %v4482
    %v5269 = vunpack.c.h.b16 %v4482
    %v5270 = vunpack.c.l.b16 %v4483
    %v5271 = vunpack.c.h.b16 %v4483
    %v5272 = vunpack.c.l.b16 %v4484
    %v5273 = vunpack.c.h.b16 %v4484
    %v5274 = vunpack.c.l.b16 %v4485
    %v5275 = vunpack.c.h.b16 %v4485
    %v5276 = vunpack.c.l.b16 %v4486
    %v5277 = vunpack.c.h.b16 %v4486
    %v5278 = vunpack.c.l.b16 %v4487
    %v5279 = vunpack.c.h.b16 %v4487
    %v5280 = vunpack.c.l.b16 %v4488
    %v5281 = vunpack.c.h.b16 %v4488
    %v5282 = vunpack.c.l.b16 %v4489
    %v5283 = vunpack.c.h.b16 %v4489
    %v5284 = vunpack.c.l.b16 %v4490
    %v5285 = vunpack.c.h.b16 %v4490
    %v5286 = vunpack.c.l.b16 %v4491
    %v5287 = vunpack.c.h.b16 %v4491
    %v5288 = vunpack.c.l.b16 %v4492
    %v5289 = vunpack.c.h.b16 %v4492
    %v5290 = vunpack.c.l.b16 %v4493
    %v5291 = vunpack.c.h.b16 %v4493
    %v5292 = vunpack.c.l.b16 %v4494
    %v5293 = vunpack.c.h.b16 %v4494
    %v5294 = vunpack.c.l.b16 %v4495
    %v5295 = vunpack.c.h.b16 %v4495
    %v5296 = vunpack.c.l.b16 %v4496
    %v5297 = vunpack.c.h.b16 %v4496
    %v5298 = vunpack.c.l.b16 %v4497
    %v5299 = vunpack.c.h.b16 %v4497
    %v5300 = vunpack.c.l.b16 %v4498
    %v5301 = vunpack.c.h.b16 %v4498
    %v5302 = vunpack.c.l.b16 %v4499
    %v5303 = vunpack.c.h.b16 %v4499
    %v5304 = vunpack.c.l.b16 %v4500
    %v5305 = vunpack.c.h.b16 %v4500
    %v5306 = vunpack.c.l.b16 %v4501
    %v5307 = vunpack.c.h.b16 %v4501
    %v5308 = vunpack.c.l.b16 %v4502
    %v5309 = vunpack.c.h.b16 %v4502
    %v5310 = vunpack.c.l.b16 %v4503
    %v5311 = vunpack.c.h.b16 %v4503
    %v5312 = vunpack.c.l.b16 %v4504
    %v5313 = vunpack.c.h.b16 %v4504
    %v5314 = vunpack.c.l.b16 %v4505
    %v5315 = vunpack.c.h.b16 %v4505
    %v5316 = vunpack.c.l.b16 %v4506
    %v5317 = vunpack.c.h.b16 %v4506
    %v5318 = vunpack.c.l.b16 %v4507
    %v5319 = vunpack.c.h.b16 %v4507
    %v5320 = vunpack.c.l.b16 %v4508
    %v5321 = vunpack.c.h.b16 %v4508
    %v5322 = vunpack.c.l.b16 %v4509
    %v5323 = vunpack.c.h.b16 %v4509
    %v5324 = vunpack.c.l.b16 %v4510
    %v5325 = vunpack.c.h.b16 %v4510
    %v5326 = vunpack.c.l.b16 %v4511
    %v5327 = vunpack.c.h.b16 %v4511
    %v5328 = vunpack.c.l.b16 %v4512
    %v5329 = vunpack.c.h.b16 %v4512
    %v5330 = vunpack.c.l.b16 %v4513
    %v5331 = vunpack.c.h.b16 %v4513
    %v5332 = vunpack.c.l.b16 %v4514
    %v5333 = vunpack.c.h.b16 %v4514
    %v5334 = vunpack.c.l.b16 %v4515
    %v5335 = vunpack.c.h.b16 %v4515
    %v5336 = vunpack.c.l.b16 %v4516
    %v5337 = vunpack.c.h.b16 %v4516
    %v5338 = vunpack.c.l.b16 %v4517
    %v5339 = vunpack.c.h.b16 %v4517
    %v5340 = vunpack.c.l.b16 %v4518
    %v5341 = vunpack.c.h.b16 %v4518
    %v5342 = vunpack.c.l.b16 %v4519
    %v5343 = vunpack.c.h.b16 %v4519
    %v5344 = vunpack.c.l.b16 %v4520
    %v5345 = vunpack.c.h.b16 %v4520
    %v5346 = vunpack.c.l.b16 %v4521
    %v5347 = vunpack.c.h.b16 %v4521
    %v5348 = vunpack.c.l.b16 %v4522
    %v5349 = vunpack.c.h.b16 %v4522
    %v5350 = vunpack.c.l.b16 %v4523
    %v5351 = vunpack.c.h.b16 %v4523
    %v5352 = vunpack.c.l.b16 %v4524
    %v5353 = vunpack.c.h.b16 %v4524
    %v5354 = vunpack.c.l.b16 %v4525
    %v5355 = vunpack.c.h.b16 %v4525
    %v5356 = vunpack.c.l.b16 %v4526
    %v5357 = vunpack.c.h.b16 %v4526
    %v5358 = vunpack.c.l.b16 %v4527
    %v5359 = vunpack.c.h.b16 %v4527
    %v5360 = vunpack.c.l.b16 %v4528
    %v5361 = vunpack.c.h.b16 %v4528
    %v5362 = vunpack.c.l.b16 %v4529
    %v5363 = vunpack.c.h.b16 %v4529
    %v5364 = vunpack.c.l.b16 %v4530
    %v5365 = vunpack.c.h.b16 %v4530
    %v5366 = vunpack.c.l.b16 %v4531
    %v5367 = vunpack.c.h.b16 %v4531
    %v5368 = vunpack.c.l.b16 %v4532
    %v5369 = vunpack.c.h.b16 %v4532
    %v5370 = vunpack.c.l.b16 %v4533
    %v5371 = vunpack.c.h.b16 %v4533
    %v5372 = vunpack.c.l.b16 %v4534
    %v5373 = vunpack.c.h.b16 %v4534
    %v5374 = vunpack.c.l.b16 %v4535
    %v5375 = vunpack.c.h.b16 %v4535
    %v5376 = vunpack.c.l.b16 %v4536
    %v5377 = vunpack.c.h.b16 %v4536
    %v5378 = vunpack.c.l.b16 %v4537
    %v5379 = vunpack.c.h.b16 %v4537
    %v5380 = vunpack.c.l.b16 %v4538
    %v5381 = vunpack.c.h.b16 %v4538
    %v5382 = vunpack.c.l.b16 %v4539
    %v5383 = vunpack.c.h.b16 %v4539
    %v5384 = vunpack.c.l.b16 %v4540
    %v5385 = vunpack.c.h.b16 %v4540
    %v5386 = vunpack.c.l.b16 %v4541
    %v5387 = vunpack.c.h.b16 %v4541
    %v5388 = vunpack.c.l.b16 %v4542
    %v5389 = vunpack.c.h.b16 %v4542
    %v5390 = vunpack.c.l.b16 %v4543
    %v5391 = vunpack.c.h.b16 %v4543
    %v5392 = vunpack.c.l.b16 %v4544
    %v5393 = vunpack.c.h.b16 %v4544
    %v5394 = vunpack.c.l.b16 %v4545
    %v5395 = vunpack.c.h.b16 %v4545
    %v5396 = vunpack.c.l.b16 %v4546
    %v5397 = vunpack.c.h.b16 %v4546
    %v5398 = vunpack.c.l.b16 %v4547
    %v5399 = vunpack.c.h.b16 %v4547
    %v5400 = vunpack.c.l.b16 %v4548
    %v5401 = vunpack.c.h.b16 %v4548
    %v5402 = vunpack.c.l.b16 %v4549
    %v5403 = vunpack.c.h.b16 %v4549
    %v5404 = vunpack.c.l.b16 %v4550
    %v5405 = vunpack.c.h.b16 %v4550
    %v5406 = vunpack.c.l.b16 %v4551
    %v5407 = vunpack.c.h.b16 %v4551
    %v5408 = vunpack.c.l.b16 %v4552
    %v5409 = vunpack.c.h.b16 %v4552
    %v5410 = vunpack.c.l.b16 %v4553
    %v5411 = vunpack.c.h.b16 %v4553
    %v5412 = vunpack.c.l.b16 %v4554
    %v5413 = vunpack.c.h.b16 %v4554
    %v5414 = vunpack.c.l.b16 %v4555
    %v5415 = vunpack.c.h.b16 %v4555
    %v5416 = vunpack.c.l.b16 %v4556
    %v5417 = vunpack.c.h.b16 %v4556
    %v5418 = vunpack.c.l.b16 %v4557
    %v5419 = vunpack.c.h.b16 %v4557
    %v5420 = vunpack.c.l.b16 %v4558
    %v5421 = vunpack.c.h.b16 %v4558
    %v5422 = vunpack.c.l.b16 %v4559
    %v5423 = vunpack.c.h.b16 %v4559
    %v5424 = vunpack.c.l.b16 %v4560
    %v5425 = vunpack.c.h.b16 %v4560
    %v5426 = vunpack.c.l.b16 %v4561
    %v5427 = vunpack.c.h.b16 %v4561
    %v5428 = vunpack.c.l.b16 %v4562
    %v5429 = vunpack.c.h.b16 %v4562
    %v5430 = vunpack.c.l.b16 %v4563
    %v5431 = vunpack.c.h.b16 %v4563
    %v5432 = vunpack.c.l.b16 %v4564
    %v5433 = vunpack.c.h.b16 %v4564
    %v5434 = vunpack.c.l.b16 %v4565
    %v5435 = vunpack.c.h.b16 %v4565
    %v5436 = vunpack.c.l.b16 %v4566
    %v5437 = vunpack.c.h.b16 %v4566
    %v5438 = vunpack.c.l.b16 %v4567
    %v5439 = vunpack.c.h.b16 %v4567
    %v5440 = vunpack.c.l.b16 %v4568
    %v5441 = vunpack.c.h.b16 %v4568
    %v5442 = vunpack.c.l.b16 %v4569
    %v5443 = vunpack.c.h.b16 %v4569
    %v5444 = vunpack.c.l.b16 %v4570
    %v5445 = vunpack.c.h.b16 %v4570
    %v5446 = vunpack.c.l.b16 %v4571
    %v5447 = vunpack.c.h.b16 %v4571
    %v5448 = vunpack.c.l.b16 %v4572
    %v5449 = vunpack.c.h.b16 %v4572
    %v5450 = vunpack.c.l.b16 %v4573
    %v5451 = vunpack.c.h.b16 %v4573
    %v5452 = vunpack.c.l.b16 %v4574
    %v5453 = vunpack.c.h.b16 %v4574
    %v5454 = vunpack.c.l.b16 %v4575
    %v5455 = vunpack.c.h.b16 %v4575
    %v5456 = vunpack.c.l.b16 %v4576
    %v5457 = vunpack.c.h.b16 %v4576
    %v5458 = vunpack.c.l.b16 %v4577
    %v5459 = vunpack.c.h.b16 %v4577
    %v5460 = vunpack.c.l.b16 %v4578
    %v5461 = vunpack.c.h.b16 %v4578
    %v5462 = vunpack.c.l.b16 %v4579
    %v5463 = vunpack.c.h.b16 %v4579
    %v5464 = vunpack.c.l.b16 %v4580
    %v5465 = vunpack.c.h.b16 %v4580
    %v5466 = vunpack.c.l.b16 %v4581
    %v5467 = vunpack.c.h.b16 %v4581
    %v5468 = vunpack.c.l.b16 %v4582
    %v5469 = vunpack.c.h.b16 %v4582
    %v5470 = vunpack.c.l.b16 %v4583
    %v5471 = vunpack.c.h.b16 %v4583
    %v5472 = vunpack.c.l.b16 %v4584
    %v5473 = vunpack.c.h.b16 %v4584
    %v5474 = vunpack.c.l.b16 %v4585
    %v5475 = vunpack.c.h.b16 %v4585
    %v5476 = vunpack.c.l.b16 %v4586
    %v5477 = vunpack.c.h.b16 %v4586
    %v5478 = vunpack.c.l.b16 %v4587
    %v5479 = vunpack.c.h.b16 %v4587
    %v5480 = vpack.c.b16 %v4916, %v4904
    %v5481 = vpack.c.b16 %v4917, %v4905
    %v5482 = vpack.c.b16 %v4918, %v4906
    %v5483 = vpack.c.b16 %v4919, %v4907
    %v5484 = vpack.c.b16 %v4920, %v4908
    %v5485 = vpack.c.b16 %v4921, %v4909
    %v5486 = vpack.c.b16 %v4922, %v4910
    %v5487 = vpack.c.b16 %v4923, %v4911
    %v5488 = vpack.c.b16 %v4924, %v4912
    %v5489 = vpack.c.b16 %v4925, %v4913
    %v5490 = vpack.c.b16 %v4926, %v4914
    %v5491 = vpack.c.b16 %v4927, %v4915
    %v5492 = vpack.c.b16 %v4940, %v4928
    %v5493 = vpack.c.b16 %v4941, %v4929
    %v5494 = vpack.c.b16 %v4942, %v4930
    %v5495 = vpack.c.b16 %v4943, %v4931
    %v5496 = vpack.c.b16 %v4944, %v4932
    %v5497 = vpack.c.b16 %v4945, %v4933
    %v5498 = vpack.c.b16 %v4946, %v4934
    %v5499 = vpack.c.b16 %v4947, %v4935
    %v5500 = vpack.c.b16 %v4948, %v4936
    %v5501 = vpack.c.b16 %v4949, %v4937
    %v5502 = vpack.c.b16 %v4950, %v4938
    %v5503 = vpack.c.b16 %v4951, %v4939
    %v5504 = vpack.c.b16 %v4964, %v4952
    %v5505 = vpack.c.b16 %v4965, %v4953
    %v5506 = vpack.c.b16 %v4966, %v4954
    %v5507 = vpack.c.b16 %v4967, %v4955
    %v5508 = vpack.c.b16 %v4968, %v4956
    %v5509 = vpack.c.b16 %v4969, %v4957
    %v5510 = vpack.c.b16 %v4970, %v4958
    %v5511 = vpack.c.b16 %v4971, %v4959
    %v5512 = vpack.c.b16 %v4972, %v4960
    %v5513 = vpack.c.b16 %v4973, %v4961
    %v5514 = vpack.c.b16 %v4974, %v4962
    %v5515 = vpack.c.b16 %v4975, %v4963
    %v5516 = vpack.c.b16 %v4988, %v4976
    %v5517 = vpack.c.b16 %v4989, %v4977
    %v5518 = vpack.c.b16 %v4990, %v4978
    %v5519 = vpack.c.b16 %v4991, %v4979
    %v5520 = vpack.c.b16 %v4992, %v4980
    %v5521 = vpack.c.b16 %v4993, %v4981
    %v5522 = vpack.c.b16 %v4994, %v4982
    %v5523 = vpack.c.b16 %v4995, %v4983
    %v5524 = vpack.c.b16 %v4996, %v4984
    %v5525 = vpack.c.b16 %v4997, %v4985
    %v5526 = vpack.c.b16 %v4998, %v4986
    %v5527 = vpack.c.b16 %v4999, %v4987
    %v5528 = vpack.c.b16 %v5012, %v5000
    %v5529 = vpack.c.b16 %v5013, %v5001
    %v5530 = vpack.c.b16 %v5014, %v5002
    %v5531 = vpack.c.b16 %v5015, %v5003
    %v5532 = vpack.c.b16 %v5016, %v5004
    %v5533 = vpack.c.b16 %v5017, %v5005
    %v5534 = vpack.c.b16 %v5018, %v5006
    %v5535 = vpack.c.b16 %v5019, %v5007
    %v5536 = vpack.c.b16 %v5020, %v5008
    %v5537 = vpack.c.b16 %v5021, %v5009
    %v5538 = vpack.c.b16 %v5022, %v5010
    %v5539 = vpack.c.b16 %v5023, %v5011
    %v5540 = vpack.c.b16 %v5036, %v5024
    %v5541 = vpack.c.b16 %v5037, %v5025
    %v5542 = vpack.c.b16 %v5038, %v5026
    %v5543 = vpack.c.b16 %v5039, %v5027
    %v5544 = vpack.c.b16 %v5040, %v5028
    %v5545 = vpack.c.b16 %v5041, %v5029
    %v5546 = vpack.c.b16 %v5042, %v5030
    %v5547 = vpack.c.b16 %v5043, %v5031
    %v5548 = vpack.c.b16 %v5044, %v5032
    %v5549 = vpack.c.b16 %v5045, %v5033
    %v5550 = vpack.c.b16 %v5046, %v5034
    %v5551 = vpack.c.b16 %v5047, %v5035
    %v5552 = vpack.c.b16 %v5060, %v5048
    %v5553 = vpack.c.b16 %v5061, %v5049
    %v5554 = vpack.c.b16 %v5062, %v5050
    %v5555 = vpack.c.b16 %v5063, %v5051
    %v5556 = vpack.c.b16 %v5064, %v5052
    %v5557 = vpack.c.b16 %v5065, %v5053
    %v5558 = vpack.c.b16 %v5066, %v5054
    %v5559 = vpack.c.b16 %v5067, %v5055
    %v5560 = vpack.c.b16 %v5068, %v5056
    %v5561 = vpack.c.b16 %v5069, %v5057
    %v5562 = vpack.c.b16 %v5070, %v5058
    %v5563 = vpack.c.b16 %v5071, %v5059
    %v5564 = vpack.c.b16 %v5084, %v5072
    %v5565 = vpack.c.b16 %v5085, %v5073
    %v5566 = vpack.c.b16 %v5086, %v5074
    %v5567 = vpack.c.b16 %v5087, %v5075
    %v5568 = vpack.c.b16 %v5088, %v5076
    %v5569 = vpack.c.b16 %v5089, %v5077
    %v5570 = vpack.c.b16 %v5090, %v5078
    %v5571 = vpack.c.b16 %v5091, %v5079
    %v5572 = vpack.c.b16 %v5092, %v5080
    %v5573 = vpack.c.b16 %v5093, %v5081
    %v5574 = vpack.c.b16 %v5094, %v5082
    %v5575 = vpack.c.b16 %v5095, %v5083
    %v5576 = vpack.c.b16 %v5108, %v5096
    %v5577 = vpack.c.b16 %v5109, %v5097
    %v5578 = vpack.c.b16 %v5110, %v5098
    %v5579 = vpack.c.b16 %v5111, %v5099
    %v5580 = vpack.c.b16 %v5112, %v5100
    %v5581 = vpack.c.b16 %v5113, %v5101
    %v5582 = vpack.c.b16 %v5114, %v5102
    %v5583 = vpack.c.b16 %v5115, %v5103
    %v5584 = vpack.c.b16 %v5116, %v5104
    %v5585 = vpack.c.b16 %v5117, %v5105
    %v5586 = vpack.c.b16 %v5118, %v5106
    %v5587 = vpack.c.b16 %v5119, %v5107
    %v5588 = vpack.c.b16 %v5132, %v5120
    %v5589 = vpack.c.b16 %v5133, %v5121
    %v5590 = vpack.c.b16 %v5134, %v5122
    %v5591 = vpack.c.b16 %v5135, %v5123
    %v5592 = vpack.c.b16 %v5136, %v5124
    %v5593 = vpack.c.b16 %v5137, %v5125
    %v5594 = vpack.c.b16 %v5138, %v5126
    %v5595 = vpack.c.b16 %v5139, %v5127
    %v5596 = vpack.c.b16 %v5140, %v5128
    %v5597 = vpack.c.b16 %v5141, %v5129
    %v5598 = vpack.c.b16 %v5142, %v5130
    %v5599 = vpack.c.b16 %v5143, %v5131
    %v5600 = vpack.c.b16 %v5156, %v5144
    %v5601 = vpack.c.b16 %v5157, %v5145
    %v5602 = vpack.c.b16 %v5158, %v5146
    %v5603 = vpack.c.b16 %v5159, %v5147
    %v5604 = vpack.c.b16 %v5160, %v5148
    %v5605 = vpack.c.b16 %v5161, %v5149
    %v5606 = vpack.c.b16 %v5162, %v5150
    %v5607 = vpack.c.b16 %v5163, %v5151
    %v5608 = vpack.c.b16 %v5164, %v5152
    %v5609 = vpack.c.b16 %v5165, %v5153
    %v5610 = vpack.c.b16 %v5166, %v5154
    %v5611 = vpack.c.b16 %v5167, %v5155
    %v5612 = vpack.c.b16 %v5180, %v5168
    %v5613 = vpack.c.b16 %v5181, %v5169
    %v5614 = vpack.c.b16 %v5182, %v5170
    %v5615 = vpack.c.b16 %v5183, %v5171
    %v5616 = vpack.c.b16 %v5184, %v5172
    %v5617 = vpack.c.b16 %v5185, %v5173
    %v5618 = vpack.c.b16 %v5186, %v5174
    %v5619 = vpack.c.b16 %v5187, %v5175
    %v5620 = vpack.c.b16 %v5188, %v5176
    %v5621 = vpack.c.b16 %v5189, %v5177
    %v5622 = vpack.c.b16 %v5190, %v5178
    %v5623 = vpack.c.b16 %v5191, %v5179
    %v5624 = vpack.c.b16 %v5204, %v5192
    %v5625 = vpack.c.b16 %v5205, %v5193
    %v5626 = vpack.c.b16 %v5206, %v5194
    %v5627 = vpack.c.b16 %v5207, %v5195
    %v5628 = vpack.c.b16 %v5208, %v5196
    %v5629 = vpack.c.b16 %v5209, %v5197
    %v5630 = vpack.c.b16 %v5210, %v5198
    %v5631 = vpack.c.b16 %v5211, %v5199
    %v5632 = vpack.c.b16 %v5212, %v5200
    %v5633 = vpack.c.b16 %v5213, %v5201
    %v5634 = vpack.c.b16 %v5214, %v5202
    %v5635 = vpack.c.b16 %v5215, %v5203
    %v5636 = vpack.c.b16 %v5228, %v5216
    %v5637 = vpack.c.b16 %v5229, %v5217
    %v5638 = vpack.c.b16 %v5230, %v5218
    %v5639 = vpack.c.b16 %v5231, %v5219
    %v5640 = vpack.c.b16 %v5232, %v5220
    %v5641 = vpack.c.b16 %v5233, %v5221
    %v5642 = vpack.c.b16 %v5234, %v5222
    %v5643 = vpack.c.b16 %v5235, %v5223
    %v5644 = vpack.c.b16 %v5236, %v5224
    %v5645 = vpack.c.b16 %v5237, %v5225
    %v5646 = vpack.c.b16 %v5238, %v5226
    %v5647 = vpack.c.b16 %v5239, %v5227
    %v5648 = vpack.c.b16 %v5252, %v5240
    %v5649 = vpack.c.b16 %v5253, %v5241
    %v5650 = vpack.c.b16 %v5254, %v5242
    %v5651 = vpack.c.b16 %v5255, %v5243
    %v5652 = vpack.c.b16 %v5256, %v5244
    %v5653 = vpack.c.b16 %v5257, %v5245
    %v5654 = vpack.c.b16 %v5258, %v5246
    %v5655 = vpack.c.b16 %v5259, %v5247
    %v5656 = vpack.c.b16 %v5260, %v5248
    %v5657 = vpack.c.b16 %v5261, %v5249
    %v5658 = vpack.c.b16 %v5262, %v5250
    %v5659 = vpack.c.b16 %v5263, %v5251
    %v5660 = vpack.c.b16 %v5276, %v5264
    %v5661 = vpack.c.b16 %v5277, %v5265
    %v5662 = vpack.c.b16 %v5278, %v5266
    %v5663 = vpack.c.b16 %v5279, %v5267
    %v5664 = vpack.c.b16 %v5280, %v5268
    %v5665 = vpack.c.b16 %v5281, %v5269
    %v5666 = vpack.c.b16 %v5282, %v5270
    %v5667 = vpack.c.b16 %v5283, %v5271
    %v5668 = vpack.c.b16 %v5284, %v5272
    %v5669 = vpack.c.b16 %v5285, %v5273
    %v5670 = vpack.c.b16 %v5286, %v5274
    %v5671 = vpack.c.b16 %v5287, %v5275
    %v5672 = vpack.c.b16 %v5300, %v5288
    %v5673 = vpack.c.b16 %v5301, %v5289
    %v5674 = vpack.c.b16 %v5302, %v5290
    %v5675 = vpack.c.b16 %v5303, %v5291
    %v5676 = vpack.c.b16 %v5304, %v5292
    %v5677 = vpack.c.b16 %v5305, %v5293
    %v5678 = vpack.c.b16 %v5306, %v5294
    %v5679 = vpack.c.b16 %v5307, %v5295
    %v5680 = vpack.c.b16 %v5308, %v5296
    %v5681 = vpack.c.b16 %v5309, %v5297
    %v5682 = vpack.c.b16 %v5310, %v5298
    %v5683 = vpack.c.b16 %v5311, %v5299
    %v5684 = vpack.c.b16 %v5324, %v5312
    %v5685 = vpack.c.b16 %v5325, %v5313
    %v5686 = vpack.c.b16 %v5326, %v5314
    %v5687 = vpack.c.b16 %v5327, %v5315
    %v5688 = vpack.c.b16 %v5328, %v5316
    %v5689 = vpack.c.b16 %v5329, %v5317
    %v5690 = vpack.c.b16 %v5330, %v5318
    %v5691 = vpack.c.b16 %v5331, %v5319
    %v5692 = vpack.c.b16 %v5332, %v5320
    %v5693 = vpack.c.b16 %v5333, %v5321
    %v5694 = vpack.c.b16 %v5334, %v5322
    %v5695 = vpack.c.b16 %v5335, %v5323
    %v5696 = vpack.c.b16 %v5348, %v5336
    %v5697 = vpack.c.b16 %v5349, %v5337
    %v5698 = vpack.c.b16 %v5350, %v5338
    %v5699 = vpack.c.b16 %v5351, %v5339
    %v5700 = vpack.c.b16 %v5352, %v5340
    %v5701 = vpack.c.b16 %v5353, %v5341
    %v5702 = vpack.c.b16 %v5354, %v5342
    %v5703 = vpack.c.b16 %v5355, %v5343
    %v5704 = vpack.c.b16 %v5356, %v5344
    %v5705 = vpack.c.b16 %v5357, %v5345
    %v5706 = vpack.c.b16 %v5358, %v5346
    %v5707 = vpack.c.b16 %v5359, %v5347
    %v5708 = vpack.c.b16 %v5372, %v5360
    %v5709 = vpack.c.b16 %v5373, %v5361
    %v5710 = vpack.c.b16 %v5374, %v5362
    %v5711 = vpack.c.b16 %v5375, %v5363
    %v5712 = vpack.c.b16 %v5376, %v5364
    %v5713 = vpack.c.b16 %v5377, %v5365
    %v5714 = vpack.c.b16 %v5378, %v5366
    %v5715 = vpack.c.b16 %v5379, %v5367
    %v5716 = vpack.c.b16 %v5380, %v5368
    %v5717 = vpack.c.b16 %v5381, %v5369
    %v5718 = vpack.c.b16 %v5382, %v5370
    %v5719 = vpack.c.b16 %v5383, %v5371
    %v5720 = vpack.c.b16 %v5396, %v5384
    %v5721 = vpack.c.b16 %v5397, %v5385
    %v5722 = vpack.c.b16 %v5398, %v5386
    %v5723 = vpack.c.b16 %v5399, %v5387
    %v5724 = vpack.c.b16 %v5400, %v5388
    %v5725 = vpack.c.b16 %v5401, %v5389
    %v5726 = vpack.c.b16 %v5402, %v5390
    %v5727 = vpack.c.b16 %v5403, %v5391
    %v5728 = vpack.c.b16 %v5404, %v5392
    %v5729 = vpack.c.b16 %v5405, %v5393
    %v5730 = vpack.c.b16 %v5406, %v5394
    %v5731 = vpack.c.b16 %v5407, %v5395
    %v5732 = vpack.c.b16 %v5420, %v5408
    %v5733 = vpack.c.b16 %v5421, %v5409
    %v5734 = vpack.c.b16 %v5422, %v5410
    %v5735 = vpack.c.b16 %v5423, %v5411
    %v5736 = vpack.c.b16 %v5424, %v5412
    %v5737 = vpack.c.b16 %v5425, %v5413
    %v5738 = vpack.c.b16 %v5426, %v5414
    %v5739 = vpack.c.b16 %v5427, %v5415
    %v5740 = vpack.c.b16 %v5428, %v5416
    %v5741 = vpack.c.b16 %v5429, %v5417
    %v5742 = vpack.c.b16 %v5430, %v5418
    %v5743 = vpack.c.b16 %v5431, %v5419
    %v5744 = vpack.c.b16 %v5444, %v5432
    %v5745 = vpack.c.b16 %v5445, %v5433
    %v5746 = vpack.c.b16 %v5446, %v5434
    %v5747 = vpack.c.b16 %v5447, %v5435
    %v5748 = vpack.c.b16 %v5448, %v5436
    %v5749 = vpack.c.b16 %v5449, %v5437
    %v5750 = vpack.c.b16 %v5450, %v5438
    %v5751 = vpack.c.b16 %v5451, %v5439
    %v5752 = vpack.c.b16 %v5452, %v5440
    %v5753 = vpack.c.b16 %v5453, %v5441
    %v5754 = vpack.c.b16 %v5454, %v5442
    %v5755 = vpack.c.b16 %v5455, %v5443
    %v5756 = vpack.c.b16 %v5468, %v5456
    %v5757 = vpack.c.b16 %v5469, %v5457
    %v5758 = vpack.c.b16 %v5470, %v5458
    %v5759 = vpack.c.b16 %v5471, %v5459
    %v5760 = vpack.c.b16 %v5472, %v5460
    %v5761 = vpack.c.b16 %v5473, %v5461
    %v5762 = vpack.c.b16 %v5474, %v5462
    %v5763 = vpack.c.b16 %v5475, %v5463
    %v5764 = vpack.c.b16 %v5476, %v5464
    %v5765 = vpack.c.b16 %v5477, %v5465
    %v5766 = vpack.c.b16 %v5478, %v5466
    %v5767 = vpack.c.b16 %v5479, %v5467
    %6056 = vmatpush.bf16.msra.mxu0 %v5564
    %6057 = vmatpush.bf16.msra.mxu0 %v5552
    %6058 = vmatpush.bf16.msra.mxu0 %v5540
    %6059 = vmatpush.bf16.msra.mxu0 %v5528
    %6060 = vmatpush.bf16.msra.mxu0 %v5516
    %6061 = vmatpush.bf16.msra.mxu0 %v5504
    %6062 = vmatpush.bf16.msra.mxu0 %v5492
    %6063 = vmatpush.bf16.msra.mxu0 %v5480
    %6064 = vmatmul.bf16.gmra.mxu0 %v4294
    %v6065 = vpop.f32.mrf.mxu0
    %v6066 = vadd.f32 %v4592, %v6065
    %v6067 = vpop.f32.mrf.mxu0
    %v6068 = vadd.f32 %v4592, %v6067
    %6069 = vmatmul.bf16.gmra.mxu0 %v4297
    %v6070 = vpop.f32.mrf.mxu0
    %v6071 = vadd.f32 %v4592, %v6070
    %v6072 = vpop.f32.mrf.mxu0
    %v6073 = vadd.f32 %v4592, %v6072
    %6074 = vdwg.mxu0
    %6075 = vmatpush.bf16.msra.mxu0 %v5660
    %6076 = vmatpush.bf16.msra.mxu0 %v5648
    %6077 = vmatpush.bf16.msra.mxu0 %v5636
    %6078 = vmatpush.bf16.msra.mxu0 %v5624
    %6079 = vmatpush.bf16.msra.mxu0 %v5612
    %6080 = vmatpush.bf16.msra.mxu0 %v5600
    %6081 = vmatpush.bf16.msra.mxu0 %v5588
    %6082 = vmatpush.bf16.msra.mxu0 %v5576
    %6083 = vmatmul.bf16.gmra.mxu0 %v4295
    %v6084 = vpop.f32.mrf.mxu0
    %v6085 = vadd.f32 %v6066, %v6084
    %v6086 = vpop.f32.mrf.mxu0
    %v6087 = vadd.f32 %v6068, %v6086
    %6088 = vmatmul.bf16.gmra.mxu0 %v4298
    %v6089 = vpop.f32.mrf.mxu0
    %v6090 = vadd.f32 %v6071, %v6089
    %v6091 = vpop.f32.mrf.mxu0
    %v6092 = vadd.f32 %v6073, %v6091
    %6093 = vdwg.mxu0
    %6094 = vmatpush.bf16.msra.mxu0 %v5756
    %6095 = vmatpush.bf16.msra.mxu0 %v5744
    %6096 = vmatpush.bf16.msra.mxu0 %v5732
    %6097 = vmatpush.bf16.msra.mxu0 %v5720
    %6098 = vmatpush.bf16.msra.mxu0 %v5708
    %6099 = vmatpush.bf16.msra.mxu0 %v5696
    %6100 = vmatpush.bf16.msra.mxu0 %v5684
    %6101 = vmatpush.bf16.msra.mxu0 %v5672
    %6102 = vmatmul.bf16.gmra.mxu0 %v4296
    %v6103 = vpop.f32.mrf.mxu0
    %v6104 = vadd.f32 %v6085, %v6103
    %v6105 = vpop.f32.mrf.mxu0
    %v6106 = vadd.f32 %v6087, %v6105
    %6107 = vmatmul.bf16.gmra.mxu0 %v4299
    %v6108 = vpop.f32.mrf.mxu0
    %v6109 = vadd.f32 %v6090, %v6108
    %v6110 = vpop.f32.mrf.mxu0
    %v6111 = vadd.f32 %v6092, %v6110
    %6112 = vdwg.mxu0
    %6113 = vmatpush.bf16.msra.mxu0 %v5565
    %6114 = vmatpush.bf16.msra.mxu0 %v5553
    %6115 = vmatpush.bf16.msra.mxu0 %v5541
    %6116 = vmatpush.bf16.msra.mxu0 %v5529
    %6117 = vmatpush.bf16.msra.mxu0 %v5517
    %6118 = vmatpush.bf16.msra.mxu0 %v5505
    %6119 = vmatpush.bf16.msra.mxu0 %v5493
    %6120 = vmatpush.bf16.msra.mxu0 %v5481
    %6121 = vmatmul.bf16.gmra.mxu0 %v4294
    %v6122 = vpop.f32.mrf.mxu0
    %v6123 = vadd.f32 %v4593, %v6122
    %v6124 = vpop.f32.mrf.mxu0
    %v6125 = vadd.f32 %v4593, %v6124
    %6126 = vmatmul.bf16.gmra.mxu0 %v4297
    %v6127 = vpop.f32.mrf.mxu0
    %v6128 = vadd.f32 %v4593, %v6127
    %v6129 = vpop.f32.mrf.mxu0
    %v6130 = vadd.f32 %v4593, %v6129
    %6131 = vdwg.mxu0
    %6132 = vmatpush.bf16.msra.mxu0 %v5661
    %6133 = vmatpush.bf16.msra.mxu0 %v5649
    %6134 = vmatpush.bf16.msra.mxu0 %v5637
    %6135 = vmatpush.bf16.msra.mxu0 %v5625
    %6136 = vmatpush.bf16.msra.mxu0 %v5613
    %6137 = vmatpush.bf16.msra.mxu0 %v5601
    %6138 = vmatpush.bf16.msra.mxu0 %v5589
    %6139 = vmatpush.bf16.msra.mxu0 %v5577
    %6140 = vmatmul.bf16.gmra.mxu0 %v4295
    %v6141 = vpop.f32.mrf.mxu0
    %v6142 = vadd.f32 %v6123, %v6141
    %v6143 = vpop.f32.mrf.mxu0
    %v6144 = vadd.f32 %v6125, %v6143
    %6145 = vmatmul.bf16.gmra.mxu0 %v4298
    %v6146 = vpop.f32.mrf.mxu0
    %v6147 = vadd.f32 %v6128, %v6146
    %v6148 = vpop.f32.mrf.mxu0
    %v6149 = vadd.f32 %v6130, %v6148
    %6150 = vdwg.mxu0
    %6151 = vmatpush.bf16.msra.mxu0 %v5757
    %6152 = vmatpush.bf16.msra.mxu0 %v5745
    %6153 = vmatpush.bf16.msra.mxu0 %v5733
    %6154 = vmatpush.bf16.msra.mxu0 %v5721
    %6155 = vmatpush.bf16.msra.mxu0 %v5709
    %6156 = vmatpush.bf16.msra.mxu0 %v5697
    %6157 = vmatpush.bf16.msra.mxu0 %v5685
    %6158 = vmatpush.bf16.msra.mxu0 %v5673
    %6159 = vmatmul.bf16.gmra.mxu0 %v4296
    %v6160 = vpop.f32.mrf.mxu0
    %v6161 = vadd.f32 %v6142, %v6160
    %v6162 = vpop.f32.mrf.mxu0
    %v6163 = vadd.f32 %v6144, %v6162
    %6164 = vmatmul.bf16.gmra.mxu0 %v4299
    %v6165 = vpop.f32.mrf.mxu0
    %v6166 = vadd.f32 %v6147, %v6165
    %v6167 = vpop.f32.mrf.mxu0
    %v6168 = vadd.f32 %v6149, %v6167
    %6169 = vdwg.mxu0
    %6170 = vmatpush.bf16.msra.mxu0 %v5566
    %6171 = vmatpush.bf16.msra.mxu0 %v5554
    %6172 = vmatpush.bf16.msra.mxu0 %v5542
    %6173 = vmatpush.bf16.msra.mxu0 %v5530
    %6174 = vmatpush.bf16.msra.mxu0 %v5518
    %6175 = vmatpush.bf16.msra.mxu0 %v5506
    %6176 = vmatpush.bf16.msra.mxu0 %v5494
    %6177 = vmatpush.bf16.msra.mxu0 %v5482
    %6178 = vmatmul.bf16.gmra.mxu0 %v4294
    %v6179 = vpop.f32.mrf.mxu0
    %v6180 = vadd.f32 %v4594, %v6179
    %v6181 = vpop.f32.mrf.mxu0
    %v6182 = vadd.f32 %v4594, %v6181
    %6183 = vmatmul.bf16.gmra.mxu0 %v4297
    %v6184 = vpop.f32.mrf.mxu0
    %v6185 = vadd.f32 %v4594, %v6184
    %v6186 = vpop.f32.mrf.mxu0
    %v6187 = vadd.f32 %v4594, %v6186
    %6188 = vdwg.mxu0
    %6189 = vmatpush.bf16.msra.mxu0 %v5662
    %6190 = vmatpush.bf16.msra.mxu0 %v5650
    %6191 = vmatpush.bf16.msra.mxu0 %v5638
    %6192 = vmatpush.bf16.msra.mxu0 %v5626
    %6193 = vmatpush.bf16.msra.mxu0 %v5614
    %6194 = vmatpush.bf16.msra.mxu0 %v5602
    %6195 = vmatpush.bf16.msra.mxu0 %v5590
    %6196 = vmatpush.bf16.msra.mxu0 %v5578
    %6197 = vmatmul.bf16.gmra.mxu0 %v4295
    %v6198 = vpop.f32.mrf.mxu0
    %v6199 = vadd.f32 %v6180, %v6198
    %v6200 = vpop.f32.mrf.mxu0
    %v6201 = vadd.f32 %v6182, %v6200
    %6202 = vmatmul.bf16.gmra.mxu0 %v4298
    %v6203 = vpop.f32.mrf.mxu0
    %v6204 = vadd.f32 %v6185, %v6203
    %v6205 = vpop.f32.mrf.mxu0
    %v6206 = vadd.f32 %v6187, %v6205
    %6207 = vdwg.mxu0
    %6208 = vmatpush.bf16.msra.mxu0 %v5758
    %6209 = vmatpush.bf16.msra.mxu0 %v5746
    %6210 = vmatpush.bf16.msra.mxu0 %v5734
    %6211 = vmatpush.bf16.msra.mxu0 %v5722
    %6212 = vmatpush.bf16.msra.mxu0 %v5710
    %6213 = vmatpush.bf16.msra.mxu0 %v5698
    %6214 = vmatpush.bf16.msra.mxu0 %v5686
    %6215 = vmatpush.bf16.msra.mxu0 %v5674
    %6216 = vmatmul.bf16.gmra.mxu0 %v4296
    %v6217 = vpop.f32.mrf.mxu0
    %v6218 = vadd.f32 %v6199, %v6217
    %v6219 = vpop.f32.mrf.mxu0
    %v6220 = vadd.f32 %v6201, %v6219
    %6221 = vmatmul.bf16.gmra.mxu0 %v4299
    %v6222 = vpop.f32.mrf.mxu0
    %v6223 = vadd.f32 %v6204, %v6222
    %v6224 = vpop.f32.mrf.mxu0
    %v6225 = vadd.f32 %v6206, %v6224
    %6226 = vdwg.mxu0
    %6227 = vmatpush.bf16.msra.mxu0 %v5567
    %6228 = vmatpush.bf16.msra.mxu0 %v5555
    %6229 = vmatpush.bf16.msra.mxu0 %v5543
    %6230 = vmatpush.bf16.msra.mxu0 %v5531
    %6231 = vmatpush.bf16.msra.mxu0 %v5519
    %6232 = vmatpush.bf16.msra.mxu0 %v5507
    %6233 = vmatpush.bf16.msra.mxu0 %v5495
    %6234 = vmatpush.bf16.msra.mxu0 %v5483
    %6235 = vmatmul.bf16.gmra.mxu0 %v4294
    %v6236 = vpop.f32.mrf.mxu0
    %v6237 = vadd.f32 %v4595, %v6236
    %v6238 = vpop.f32.mrf.mxu0
    %v6239 = vadd.f32 %v4595, %v6238
    %6240 = vmatmul.bf16.gmra.mxu0 %v4297
    %v6241 = vpop.f32.mrf.mxu0
    %v6242 = vadd.f32 %v4595, %v6241
    %v6243 = vpop.f32.mrf.mxu0
    %v6244 = vadd.f32 %v4595, %v6243
    %6245 = vdwg.mxu0
    %6246 = vmatpush.bf16.msra.mxu0 %v5663
    %6247 = vmatpush.bf16.msra.mxu0 %v5651
    %6248 = vmatpush.bf16.msra.mxu0 %v5639
    %6249 = vmatpush.bf16.msra.mxu0 %v5627
    %6250 = vmatpush.bf16.msra.mxu0 %v5615
    %6251 = vmatpush.bf16.msra.mxu0 %v5603
    %6252 = vmatpush.bf16.msra.mxu0 %v5591
    %6253 = vmatpush.bf16.msra.mxu0 %v5579
    %6254 = vmatmul.bf16.gmra.mxu0 %v4295
    %v6255 = vpop.f32.mrf.mxu0
    %v6256 = vadd.f32 %v6237, %v6255
    %v6257 = vpop.f32.mrf.mxu0
    %v6258 = vadd.f32 %v6239, %v6257
    %6259 = vmatmul.bf16.gmra.mxu0 %v4298
    %v6260 = vpop.f32.mrf.mxu0
    %v6261 = vadd.f32 %v6242, %v6260
    %v6262 = vpop.f32.mrf.mxu0
    %v6263 = vadd.f32 %v6244, %v6262
    %6264 = vdwg.mxu0
    %6265 = vmatpush.bf16.msra.mxu0 %v5759
    %6266 = vmatpush.bf16.msra.mxu0 %v5747
    %6267 = vmatpush.bf16.msra.mxu0 %v5735
    %6268 = vmatpush.bf16.msra.mxu0 %v5723
    %6269 = vmatpush.bf16.msra.mxu0 %v5711
    %6270 = vmatpush.bf16.msra.mxu0 %v5699
    %6271 = vmatpush.bf16.msra.mxu0 %v5687
    %6272 = vmatpush.bf16.msra.mxu0 %v5675
    %6273 = vmatmul.bf16.gmra.mxu0 %v4296
    %v6274 = vpop.f32.mrf.mxu0
    %v6275 = vadd.f32 %v6256, %v6274
    %v6276 = vpop.f32.mrf.mxu0
    %v6277 = vadd.f32 %v6258, %v6276
    %6278 = vmatmul.bf16.gmra.mxu0 %v4299
    %v6279 = vpop.f32.mrf.mxu0
    %v6280 = vadd.f32 %v6261, %v6279
    %v6281 = vpop.f32.mrf.mxu0
    %v6282 = vadd.f32 %v6263, %v6281
    %6283 = vdwg.mxu0
    %6284 = vmatpush.bf16.msra.mxu0 %v5568
    %6285 = vmatpush.bf16.msra.mxu0 %v5556
    %6286 = vmatpush.bf16.msra.mxu0 %v5544
    %6287 = vmatpush.bf16.msra.mxu0 %v5532
    %6288 = vmatpush.bf16.msra.mxu0 %v5520
    %6289 = vmatpush.bf16.msra.mxu0 %v5508
    %6290 = vmatpush.bf16.msra.mxu0 %v5496
    %6291 = vmatpush.bf16.msra.mxu0 %v5484
    %6292 = vmatmul.bf16.gmra.mxu0 %v4294
    %v6293 = vpop.f32.mrf.mxu0
    %v6294 = vadd.f32 %v4596, %v6293
    %v6295 = vpop.f32.mrf.mxu0
    %v6296 = vadd.f32 %v4596, %v6295
    %6297 = vmatmul.bf16.gmra.mxu0 %v4297
    %v6298 = vpop.f32.mrf.mxu0
    %v6299 = vadd.f32 %v4596, %v6298
    %v6300 = vpop.f32.mrf.mxu0
    %v6301 = vadd.f32 %v4596, %v6300
    %6302 = vdwg.mxu0
    %6303 = vmatpush.bf16.msra.mxu0 %v5664
    %6304 = vmatpush.bf16.msra.mxu0 %v5652
    %6305 = vmatpush.bf16.msra.mxu0 %v5640
    %6306 = vmatpush.bf16.msra.mxu0 %v5628
    %6307 = vmatpush.bf16.msra.mxu0 %v5616
    %6308 = vmatpush.bf16.msra.mxu0 %v5604
    %6309 = vmatpush.bf16.msra.mxu0 %v5592
    %6310 = vmatpush.bf16.msra.mxu0 %v5580
    %6311 = vmatmul.bf16.gmra.mxu0 %v4295
    %v6312 = vpop.f32.mrf.mxu0
    %v6313 = vadd.f32 %v6294, %v6312
    %v6314 = vpop.f32.mrf.mxu0
    %v6315 = vadd.f32 %v6296, %v6314
    %6316 = vmatmul.bf16.gmra.mxu0 %v4298
    %v6317 = vpop.f32.mrf.mxu0
    %v6318 = vadd.f32 %v6299, %v6317
    %v6319 = vpop.f32.mrf.mxu0
    %v6320 = vadd.f32 %v6301, %v6319
    %6321 = vdwg.mxu0
    %6322 = vmatpush.bf16.msra.mxu0 %v5760
    %6323 = vmatpush.bf16.msra.mxu0 %v5748
    %6324 = vmatpush.bf16.msra.mxu0 %v5736
    %6325 = vmatpush.bf16.msra.mxu0 %v5724
    %6326 = vmatpush.bf16.msra.mxu0 %v5712
    %6327 = vmatpush.bf16.msra.mxu0 %v5700
    %6328 = vmatpush.bf16.msra.mxu0 %v5688
    %6329 = vmatpush.bf16.msra.mxu0 %v5676
    %6330 = vmatmul.bf16.gmra.mxu0 %v4296
    %v6331 = vpop.f32.mrf.mxu0
    %v6332 = vadd.f32 %v6313, %v6331
    %v6333 = vpop.f32.mrf.mxu0
    %v6334 = vadd.f32 %v6315, %v6333
    %6335 = vmatmul.bf16.gmra.mxu0 %v4299
    %v6336 = vpop.f32.mrf.mxu0
    %v6337 = vadd.f32 %v6318, %v6336
    %v6338 = vpop.f32.mrf.mxu0
    %v6339 = vadd.f32 %v6320, %v6338
    %6340 = vdwg.mxu0
    %6341 = vmatpush.bf16.msra.mxu0 %v5569
    %6342 = vmatpush.bf16.msra.mxu0 %v5557
    %6343 = vmatpush.bf16.msra.mxu0 %v5545
    %6344 = vmatpush.bf16.msra.mxu0 %v5533
    %6345 = vmatpush.bf16.msra.mxu0 %v5521
    %6346 = vmatpush.bf16.msra.mxu0 %v5509
    %6347 = vmatpush.bf16.msra.mxu0 %v5497
    %6348 = vmatpush.bf16.msra.mxu0 %v5485
    %6349 = vmatmul.bf16.gmra.mxu0 %v4294
    %v6350 = vpop.f32.mrf.mxu0
    %v6351 = vadd.f32 %v4597, %v6350
    %v6352 = vpop.f32.mrf.mxu0
    %v6353 = vadd.f32 %v4597, %v6352
    %6354 = vmatmul.bf16.gmra.mxu0 %v4297
    %v6355 = vpop.f32.mrf.mxu0
    %v6356 = vadd.f32 %v4597, %v6355
    %v6357 = vpop.f32.mrf.mxu0
    %v6358 = vadd.f32 %v4597, %v6357
    %6359 = vdwg.mxu0
    %6360 = vmatpush.bf16.msra.mxu0 %v5665
    %6361 = vmatpush.bf16.msra.mxu0 %v5653
    %6362 = vmatpush.bf16.msra.mxu0 %v5641
    %6363 = vmatpush.bf16.msra.mxu0 %v5629
    %6364 = vmatpush.bf16.msra.mxu0 %v5617
    %6365 = vmatpush.bf16.msra.mxu0 %v5605
    %6366 = vmatpush.bf16.msra.mxu0 %v5593
    %6367 = vmatpush.bf16.msra.mxu0 %v5581
    %6368 = vmatmul.bf16.gmra.mxu0 %v4295
    %v6369 = vpop.f32.mrf.mxu0
    %v6370 = vadd.f32 %v6351, %v6369
    %v6371 = vpop.f32.mrf.mxu0
    %v6372 = vadd.f32 %v6353, %v6371
    %6373 = vmatmul.bf16.gmra.mxu0 %v4298
    %v6374 = vpop.f32.mrf.mxu0
    %v6375 = vadd.f32 %v6356, %v6374
    %v6376 = vpop.f32.mrf.mxu0
    %v6377 = vadd.f32 %v6358, %v6376
    %6378 = vdwg.mxu0
    %6379 = vmatpush.bf16.msra.mxu0 %v5761
    %6380 = vmatpush.bf16.msra.mxu0 %v5749
    %6381 = vmatpush.bf16.msra.mxu0 %v5737
    %6382 = vmatpush.bf16.msra.mxu0 %v5725
    %6383 = vmatpush.bf16.msra.mxu0 %v5713
    %6384 = vmatpush.bf16.msra.mxu0 %v5701
    %6385 = vmatpush.bf16.msra.mxu0 %v5689
    %6386 = vmatpush.bf16.msra.mxu0 %v5677
    %6387 = vmatmul.bf16.gmra.mxu0 %v4296
    %v6388 = vpop.f32.mrf.mxu0
    %v6389 = vadd.f32 %v6370, %v6388
    %v6390 = vpop.f32.mrf.mxu0
    %v6391 = vadd.f32 %v6372, %v6390
    %6392 = vmatmul.bf16.gmra.mxu0 %v4299
    %v6393 = vpop.f32.mrf.mxu0
    %v6394 = vadd.f32 %v6375, %v6393
    %v6395 = vpop.f32.mrf.mxu0
    %v6396 = vadd.f32 %v6377, %v6395
    %6397 = vdwg.mxu0
    %6398 = vmatpush.bf16.msra.mxu0 %v5570
    %6399 = vmatpush.bf16.msra.mxu0 %v5558
    %6400 = vmatpush.bf16.msra.mxu0 %v5546
    %6401 = vmatpush.bf16.msra.mxu0 %v5534
    %6402 = vmatpush.bf16.msra.mxu0 %v5522
    %6403 = vmatpush.bf16.msra.mxu0 %v5510
    %6404 = vmatpush.bf16.msra.mxu0 %v5498
    %6405 = vmatpush.bf16.msra.mxu0 %v5486
    %6406 = vmatmul.bf16.gmra.mxu0 %v4294
    %v6407 = vpop.f32.mrf.mxu0
    %v6408 = vadd.f32 %v4598, %v6407
    %v6409 = vpop.f32.mrf.mxu0
    %v6410 = vadd.f32 %v4598, %v6409
    %6411 = vmatmul.bf16.gmra.mxu0 %v4297
    %v6412 = vpop.f32.mrf.mxu0
    %v6413 = vadd.f32 %v4598, %v6412
    %v6414 = vpop.f32.mrf.mxu0
    %v6415 = vadd.f32 %v4598, %v6414
    %6416 = vdwg.mxu0
    %6417 = vmatpush.bf16.msra.mxu0 %v5666
    %6418 = vmatpush.bf16.msra.mxu0 %v5654
    %6419 = vmatpush.bf16.msra.mxu0 %v5642
    %6420 = vmatpush.bf16.msra.mxu0 %v5630
    %6421 = vmatpush.bf16.msra.mxu0 %v5618
    %6422 = vmatpush.bf16.msra.mxu0 %v5606
    %6423 = vmatpush.bf16.msra.mxu0 %v5594
    %6424 = vmatpush.bf16.msra.mxu0 %v5582
    %6425 = vmatmul.bf16.gmra.mxu0 %v4295
    %v6426 = vpop.f32.mrf.mxu0
    %v6427 = vadd.f32 %v6408, %v6426
    %v6428 = vpop.f32.mrf.mxu0
    %v6429 = vadd.f32 %v6410, %v6428
    %6430 = vmatmul.bf16.gmra.mxu0 %v4298
    %v6431 = vpop.f32.mrf.mxu0
    %v6432 = vadd.f32 %v6413, %v6431
    %v6433 = vpop.f32.mrf.mxu0
    %v6434 = vadd.f32 %v6415, %v6433
    %6435 = vdwg.mxu0
    %6436 = vmatpush.bf16.msra.mxu0 %v5762
    %6437 = vmatpush.bf16.msra.mxu0 %v5750
    %6438 = vmatpush.bf16.msra.mxu0 %v5738
    %6439 = vmatpush.bf16.msra.mxu0 %v5726
    %6440 = vmatpush.bf16.msra.mxu0 %v5714
    %6441 = vmatpush.bf16.msra.mxu0 %v5702
    %6442 = vmatpush.bf16.msra.mxu0 %v5690
    %6443 = vmatpush.bf16.msra.mxu0 %v5678
    %6444 = vmatmul.bf16.gmra.mxu0 %v4296
    %v6445 = vpop.f32.mrf.mxu0
    %v6446 = vadd.f32 %v6427, %v6445
    %v6447 = vpop.f32.mrf.mxu0
    %v6448 = vadd.f32 %v6429, %v6447
    %6449 = vmatmul.bf16.gmra.mxu0 %v4299
    %v6450 = vpop.f32.mrf.mxu0
    %v6451 = vadd.f32 %v6432, %v6450
    %v6452 = vpop.f32.mrf.mxu0
    %v6453 = vadd.f32 %v6434, %v6452
    %6454 = vdwg.mxu0
    %6455 = vmatpush.bf16.msra.mxu0 %v5571
    %6456 = vmatpush.bf16.msra.mxu0 %v5559
    %6457 = vmatpush.bf16.msra.mxu0 %v5547
    %6458 = vmatpush.bf16.msra.mxu0 %v5535
    %6459 = vmatpush.bf16.msra.mxu0 %v5523
    %6460 = vmatpush.bf16.msra.mxu0 %v5511
    %6461 = vmatpush.bf16.msra.mxu0 %v5499
    %6462 = vmatpush.bf16.msra.mxu0 %v5487
    %6463 = vmatmul.bf16.gmra.mxu0 %v4294
    %v6464 = vpop.f32.mrf.mxu0
    %v6465 = vadd.f32 %v4599, %v6464
    %v6466 = vpop.f32.mrf.mxu0
    %v6467 = vadd.f32 %v4599, %v6466
    %6468 = vmatmul.bf16.gmra.mxu0 %v4297
    %v6469 = vpop.f32.mrf.mxu0
    %v6470 = vadd.f32 %v4599, %v6469
    %v6471 = vpop.f32.mrf.mxu0
    %v6472 = vadd.f32 %v4599, %v6471
    %6473 = vdwg.mxu0
    %6474 = vmatpush.bf16.msra.mxu0 %v5667
    %6475 = vmatpush.bf16.msra.mxu0 %v5655
    %6476 = vmatpush.bf16.msra.mxu0 %v5643
    %6477 = vmatpush.bf16.msra.mxu0 %v5631
    %6478 = vmatpush.bf16.msra.mxu0 %v5619
    %6479 = vmatpush.bf16.msra.mxu0 %v5607
    %6480 = vmatpush.bf16.msra.mxu0 %v5595
    %6481 = vmatpush.bf16.msra.mxu0 %v5583
    %6482 = vmatmul.bf16.gmra.mxu0 %v4295
    %v6483 = vpop.f32.mrf.mxu0
    %v6484 = vadd.f32 %v6465, %v6483
    %v6485 = vpop.f32.mrf.mxu0
    %v6486 = vadd.f32 %v6467, %v6485
    %6487 = vmatmul.bf16.gmra.mxu0 %v4298
    %v6488 = vpop.f32.mrf.mxu0
    %v6489 = vadd.f32 %v6470, %v6488
    %v6490 = vpop.f32.mrf.mxu0
    %v6491 = vadd.f32 %v6472, %v6490
    %6492 = vdwg.mxu0
    %6493 = vmatpush.bf16.msra.mxu0 %v5763
    %6494 = vmatpush.bf16.msra.mxu0 %v5751
    %6495 = vmatpush.bf16.msra.mxu0 %v5739
    %6496 = vmatpush.bf16.msra.mxu0 %v5727
    %6497 = vmatpush.bf16.msra.mxu0 %v5715
    %6498 = vmatpush.bf16.msra.mxu0 %v5703
    %6499 = vmatpush.bf16.msra.mxu0 %v5691
    %6500 = vmatpush.bf16.msra.mxu0 %v5679
    %6501 = vmatmul.bf16.gmra.mxu0 %v4296
    %v6502 = vpop.f32.mrf.mxu0
    %v6503 = vadd.f32 %v6484, %v6502
    %v6504 = vpop.f32.mrf.mxu0
    %v6505 = vadd.f32 %v6486, %v6504
    %6506 = vmatmul.bf16.gmra.mxu0 %v4299
    %v6507 = vpop.f32.mrf.mxu0
    %v6508 = vadd.f32 %v6489, %v6507
    %v6509 = vpop.f32.mrf.mxu0
    %v6510 = vadd.f32 %v6491, %v6509
    %6511 = vdwg.mxu0
    %6512 = vmatpush.bf16.msra.mxu0 %v5572
    %6513 = vmatpush.bf16.msra.mxu0 %v5560
    %6514 = vmatpush.bf16.msra.mxu0 %v5548
    %6515 = vmatpush.bf16.msra.mxu0 %v5536
    %6516 = vmatpush.bf16.msra.mxu0 %v5524
    %6517 = vmatpush.bf16.msra.mxu0 %v5512
    %6518 = vmatpush.bf16.msra.mxu0 %v5500
    %6519 = vmatpush.bf16.msra.mxu0 %v5488
    %6520 = vmatmul.bf16.gmra.mxu0 %v4294
    %v6521 = vpop.f32.mrf.mxu0
    %v6522 = vadd.f32 %v4600, %v6521
    %v6523 = vpop.f32.mrf.mxu0
    %v6524 = vadd.f32 %v4600, %v6523
    %6525 = vmatmul.bf16.gmra.mxu0 %v4297
    %v6526 = vpop.f32.mrf.mxu0
    %v6527 = vadd.f32 %v4600, %v6526
    %v6528 = vpop.f32.mrf.mxu0
    %v6529 = vadd.f32 %v4600, %v6528
    %6530 = vdwg.mxu0
    %6531 = vmatpush.bf16.msra.mxu0 %v5668
    %6532 = vmatpush.bf16.msra.mxu0 %v5656
    %6533 = vmatpush.bf16.msra.mxu0 %v5644
    %6534 = vmatpush.bf16.msra.mxu0 %v5632
    %6535 = vmatpush.bf16.msra.mxu0 %v5620
    %6536 = vmatpush.bf16.msra.mxu0 %v5608
    %6537 = vmatpush.bf16.msra.mxu0 %v5596
    %6538 = vmatpush.bf16.msra.mxu0 %v5584
    %6539 = vmatmul.bf16.gmra.mxu0 %v4295
    %v6540 = vpop.f32.mrf.mxu0
    %v6541 = vadd.f32 %v6522, %v6540
    %v6542 = vpop.f32.mrf.mxu0
    %v6543 = vadd.f32 %v6524, %v6542
    %6544 = vmatmul.bf16.gmra.mxu0 %v4298
    %v6545 = vpop.f32.mrf.mxu0
    %v6546 = vadd.f32 %v6527, %v6545
    %v6547 = vpop.f32.mrf.mxu0
    %v6548 = vadd.f32 %v6529, %v6547
    %6549 = vdwg.mxu0
    %6550 = vmatpush.bf16.msra.mxu0 %v5764
    %6551 = vmatpush.bf16.msra.mxu0 %v5752
    %6552 = vmatpush.bf16.msra.mxu0 %v5740
    %6553 = vmatpush.bf16.msra.mxu0 %v5728
    %6554 = vmatpush.bf16.msra.mxu0 %v5716
    %6555 = vmatpush.bf16.msra.mxu0 %v5704
    %6556 = vmatpush.bf16.msra.mxu0 %v5692
    %6557 = vmatpush.bf16.msra.mxu0 %v5680
    %6558 = vmatmul.bf16.gmra.mxu0 %v4296
    %v6559 = vpop.f32.mrf.mxu0
    %v6560 = vadd.f32 %v6541, %v6559
    %v6561 = vpop.f32.mrf.mxu0
    %v6562 = vadd.f32 %v6543, %v6561
    %6563 = vmatmul.bf16.gmra.mxu0 %v4299
    %v6564 = vpop.f32.mrf.mxu0
    %v6565 = vadd.f32 %v6546, %v6564
    %v6566 = vpop.f32.mrf.mxu0
    %v6567 = vadd.f32 %v6548, %v6566
    %6568 = vdwg.mxu0
    %6569 = vmatpush.bf16.msra.mxu0 %v5573
    %6570 = vmatpush.bf16.msra.mxu0 %v5561
    %6571 = vmatpush.bf16.msra.mxu0 %v5549
    %6572 = vmatpush.bf16.msra.mxu0 %v5537
    %6573 = vmatpush.bf16.msra.mxu0 %v5525
    %6574 = vmatpush.bf16.msra.mxu0 %v5513
    %6575 = vmatpush.bf16.msra.mxu0 %v5501
    %6576 = vmatpush.bf16.msra.mxu0 %v5489
    %6577 = vmatmul.bf16.gmra.mxu0 %v4294
    %v6578 = vpop.f32.mrf.mxu0
    %v6579 = vadd.f32 %v4601, %v6578
    %v6580 = vpop.f32.mrf.mxu0
    %v6581 = vadd.f32 %v4601, %v6580
    %6582 = vmatmul.bf16.gmra.mxu0 %v4297
    %v6583 = vpop.f32.mrf.mxu0
    %v6584 = vadd.f32 %v4601, %v6583
    %v6585 = vpop.f32.mrf.mxu0
    %v6586 = vadd.f32 %v4601, %v6585
    %6587 = vdwg.mxu0
    %6588 = vmatpush.bf16.msra.mxu0 %v5669
    %6589 = vmatpush.bf16.msra.mxu0 %v5657
    %6590 = vmatpush.bf16.msra.mxu0 %v5645
    %6591 = vmatpush.bf16.msra.mxu0 %v5633
    %6592 = vmatpush.bf16.msra.mxu0 %v5621
    %6593 = vmatpush.bf16.msra.mxu0 %v5609
    %6594 = vmatpush.bf16.msra.mxu0 %v5597
    %6595 = vmatpush.bf16.msra.mxu0 %v5585
    %6596 = vmatmul.bf16.gmra.mxu0 %v4295
    %v6597 = vpop.f32.mrf.mxu0
    %v6598 = vadd.f32 %v6579, %v6597
    %v6599 = vpop.f32.mrf.mxu0
    %v6600 = vadd.f32 %v6581, %v6599
    %6601 = vmatmul.bf16.gmra.mxu0 %v4298
    %v6602 = vpop.f32.mrf.mxu0
    %v6603 = vadd.f32 %v6584, %v6602
    %v6604 = vpop.f32.mrf.mxu0
    %v6605 = vadd.f32 %v6586, %v6604
    %6606 = vdwg.mxu0
    %6607 = vmatpush.bf16.msra.mxu0 %v5765
    %6608 = vmatpush.bf16.msra.mxu0 %v5753
    %6609 = vmatpush.bf16.msra.mxu0 %v5741
    %6610 = vmatpush.bf16.msra.mxu0 %v5729
    %6611 = vmatpush.bf16.msra.mxu0 %v5717
    %6612 = vmatpush.bf16.msra.mxu0 %v5705
    %6613 = vmatpush.bf16.msra.mxu0 %v5693
    %6614 = vmatpush.bf16.msra.mxu0 %v5681
    %6615 = vmatmul.bf16.gmra.mxu0 %v4296
    %v6616 = vpop.f32.mrf.mxu0
    %v6617 = vadd.f32 %v6598, %v6616
    %v6618 = vpop.f32.mrf.mxu0
    %v6619 = vadd.f32 %v6600, %v6618
    %6620 = vmatmul.bf16.gmra.mxu0 %v4299
    %v6621 = vpop.f32.mrf.mxu0
    %v6622 = vadd.f32 %v6603, %v6621
    %v6623 = vpop.f32.mrf.mxu0
    %v6624 = vadd.f32 %v6605, %v6623
    %6625 = vdwg.mxu0
    %6626 = vmatpush.bf16.msra.mxu0 %v5574
    %6627 = vmatpush.bf16.msra.mxu0 %v5562
    %6628 = vmatpush.bf16.msra.mxu0 %v5550
    %6629 = vmatpush.bf16.msra.mxu0 %v5538
    %6630 = vmatpush.bf16.msra.mxu0 %v5526
    %6631 = vmatpush.bf16.msra.mxu0 %v5514
    %6632 = vmatpush.bf16.msra.mxu0 %v5502
    %6633 = vmatpush.bf16.msra.mxu0 %v5490
    %6634 = vmatmul.bf16.gmra.mxu0 %v4294
    %v6635 = vpop.f32.mrf.mxu0
    %v6636 = vadd.f32 %v4602, %v6635
    %v6637 = vpop.f32.mrf.mxu0
    %v6638 = vadd.f32 %v4602, %v6637
    %6639 = vmatmul.bf16.gmra.mxu0 %v4297
    %v6640 = vpop.f32.mrf.mxu0
    %v6641 = vadd.f32 %v4602, %v6640
    %v6642 = vpop.f32.mrf.mxu0
    %v6643 = vadd.f32 %v4602, %v6642
    %6644 = vdwg.mxu0
    %6645 = vmatpush.bf16.msra.mxu0 %v5670
    %6646 = vmatpush.bf16.msra.mxu0 %v5658
    %6647 = vmatpush.bf16.msra.mxu0 %v5646
    %6648 = vmatpush.bf16.msra.mxu0 %v5634
    %6649 = vmatpush.bf16.msra.mxu0 %v5622
    %6650 = vmatpush.bf16.msra.mxu0 %v5610
    %6651 = vmatpush.bf16.msra.mxu0 %v5598
    %6652 = vmatpush.bf16.msra.mxu0 %v5586
    %6653 = vmatmul.bf16.gmra.mxu0 %v4295
    %v6654 = vpop.f32.mrf.mxu0
    %v6655 = vadd.f32 %v6636, %v6654
    %v6656 = vpop.f32.mrf.mxu0
    %v6657 = vadd.f32 %v6638, %v6656
    %6658 = vmatmul.bf16.gmra.mxu0 %v4298
    %v6659 = vpop.f32.mrf.mxu0
    %v6660 = vadd.f32 %v6641, %v6659
    %v6661 = vpop.f32.mrf.mxu0
    %v6662 = vadd.f32 %v6643, %v6661
    %6663 = vdwg.mxu0
    %6664 = vmatpush.bf16.msra.mxu0 %v5766
    %6665 = vmatpush.bf16.msra.mxu0 %v5754
    %6666 = vmatpush.bf16.msra.mxu0 %v5742
    %6667 = vmatpush.bf16.msra.mxu0 %v5730
    %6668 = vmatpush.bf16.msra.mxu0 %v5718
    %6669 = vmatpush.bf16.msra.mxu0 %v5706
    %6670 = vmatpush.bf16.msra.mxu0 %v5694
    %6671 = vmatpush.bf16.msra.mxu0 %v5682
    %6672 = vmatmul.bf16.gmra.mxu0 %v4296
    %v6673 = vpop.f32.mrf.mxu0
    %v6674 = vadd.f32 %v6655, %v6673
    %v6675 = vpop.f32.mrf.mxu0
    %v6676 = vadd.f32 %v6657, %v6675
    %6677 = vmatmul.bf16.gmra.mxu0 %v4299
    %v6678 = vpop.f32.mrf.mxu0
    %v6679 = vadd.f32 %v6660, %v6678
    %v6680 = vpop.f32.mrf.mxu0
    %v6681 = vadd.f32 %v6662, %v6680
    %6682 = vdwg.mxu0
    %6683 = vmatpush.bf16.msra.mxu0 %v5575
    %6684 = vmatpush.bf16.msra.mxu0 %v5563
    %6685 = vmatpush.bf16.msra.mxu0 %v5551
    %6686 = vmatpush.bf16.msra.mxu0 %v5539
    %6687 = vmatpush.bf16.msra.mxu0 %v5527
    %6688 = vmatpush.bf16.msra.mxu0 %v5515
    %6689 = vmatpush.bf16.msra.mxu0 %v5503
    %6690 = vmatpush.bf16.msra.mxu0 %v5491
    %6691 = vmatmul.bf16.gmra.mxu0 %v4294
    %v6692 = vpop.f32.mrf.mxu0
    %v6693 = vadd.f32 %v4603, %v6692
    %v6694 = vpop.f32.mrf.mxu0
    %v6695 = vadd.f32 %v4603, %v6694
    %6696 = vmatmul.bf16.gmra.mxu0 %v4297
    %v6697 = vpop.f32.mrf.mxu0
    %v6698 = vadd.f32 %v4603, %v6697
    %v6699 = vpop.f32.mrf.mxu0
    %v6700 = vadd.f32 %v4603, %v6699
    %6701 = vdwg.mxu0
    %6702 = vmatpush.bf16.msra.mxu0 %v5671
    %6703 = vmatpush.bf16.msra.mxu0 %v5659
    %6704 = vmatpush.bf16.msra.mxu0 %v5647
    %6705 = vmatpush.bf16.msra.mxu0 %v5635
    %6706 = vmatpush.bf16.msra.mxu0 %v5623
    %6707 = vmatpush.bf16.msra.mxu0 %v5611
    %6708 = vmatpush.bf16.msra.mxu0 %v5599
    %6709 = vmatpush.bf16.msra.mxu0 %v5587
    %6710 = vmatmul.bf16.gmra.mxu0 %v4295
    %v6711 = vpop.f32.mrf.mxu0
    %v6712 = vadd.f32 %v6693, %v6711
    %v6713 = vpop.f32.mrf.mxu0
    %v6714 = vadd.f32 %v6695, %v6713
    %6715 = vmatmul.bf16.gmra.mxu0 %v4298
    %v6716 = vpop.f32.mrf.mxu0
    %v6717 = vadd.f32 %v6698, %v6716
    %v6718 = vpop.f32.mrf.mxu0
    %v6719 = vadd.f32 %v6700, %v6718
    %6720 = vdwg.mxu0
    %6721 = vmatpush.bf16.msra.mxu0 %v5767
    %6722 = vmatpush.bf16.msra.mxu0 %v5755
    %6723 = vmatpush.bf16.msra.mxu0 %v5743
    %6724 = vmatpush.bf16.msra.mxu0 %v5731
    %6725 = vmatpush.bf16.msra.mxu0 %v5719
    %6726 = vmatpush.bf16.msra.mxu0 %v5707
    %6727 = vmatpush.bf16.msra.mxu0 %v5695
    %6728 = vmatpush.bf16.msra.mxu0 %v5683
    %6729 = vmatmul.bf16.gmra.mxu0 %v4296
    %v6730 = vpop.f32.mrf.mxu0
    %v6731 = vadd.f32 %v6712, %v6730
    %v6732 = vpop.f32.mrf.mxu0
    %v6733 = vadd.f32 %v6714, %v6732
    %6734 = vmatmul.bf16.gmra.mxu0 %v4299
    %v6735 = vpop.f32.mrf.mxu0
    %v6736 = vadd.f32 %v6717, %v6735
    %v6737 = vpop.f32.mrf.mxu0
    %v6738 = vadd.f32 %v6719, %v6737
    %6739 = vdwg.mxu0
    %v6740 = vmax.f32 %v6104, 0.0
    %v6741 = vmax.f32 %v6161, 0.0
    %v6742 = vmax.f32 %v6218, 0.0
    %v6743 = vmax.f32 %v6275, 0.0
    %v6744 = vmax.f32 %v6332, 0.0
    %v6745 = vmax.f32 %v6389, 0.0
    %v6746 = vmax.f32 %v6446, 0.0
    %v6747 = vmax.f32 %v6503, 0.0
    %v6748 = vmax.f32 %v6560, 0.0
    %v6749 = vmax.f32 %v6617, 0.0
    %v6750 = vmax.f32 %v6674, 0.0
    %v6751 = vmax.f32 %v6731, 0.0
    %v6752 = vmax.f32 %v6106, 0.0
    %v6753 = vmax.f32 %v6163, 0.0
    %v6754 = vmax.f32 %v6220, 0.0
    %v6755 = vmax.f32 %v6277, 0.0
    %v6756 = vmax.f32 %v6334, 0.0
    %v6757 = vmax.f32 %v6391, 0.0
    %v6758 = vmax.f32 %v6448, 0.0
    %v6759 = vmax.f32 %v6505, 0.0
    %v6760 = vmax.f32 %v6562, 0.0
    %v6761 = vmax.f32 %v6619, 0.0
    %v6762 = vmax.f32 %v6676, 0.0
    %v6763 = vmax.f32 %v6733, 0.0
    %v6764 = vmax.f32 %v6109, 0.0
    %v6765 = vmax.f32 %v6166, 0.0
    %v6766 = vmax.f32 %v6223, 0.0
    %v6767 = vmax.f32 %v6280, 0.0
    %v6768 = vmax.f32 %v6337, 0.0
    %v6769 = vmax.f32 %v6394, 0.0
    %v6770 = vmax.f32 %v6451, 0.0
    %v6771 = vmax.f32 %v6508, 0.0
    %v6772 = vmax.f32 %v6565, 0.0
    %v6773 = vmax.f32 %v6622, 0.0
    %v6774 = vmax.f32 %v6679, 0.0
    %v6775 = vmax.f32 %v6736, 0.0
    %v6776 = vmax.f32 %v6111, 0.0
    %v6777 = vmax.f32 %v6168, 0.0
    %v6778 = vmax.f32 %v6225, 0.0
    %v6779 = vmax.f32 %v6282, 0.0
    %v6780 = vmax.f32 %v6339, 0.0
    %v6781 = vmax.f32 %v6396, 0.0
    %v6782 = vmax.f32 %v6453, 0.0
    %v6783 = vmax.f32 %v6510, 0.0
    %v6784 = vmax.f32 %v6567, 0.0
    %v6785 = vmax.f32 %v6624, 0.0
    %v6786 = vmax.f32 %v6681, 0.0
    %v6787 = vmax.f32 %v6738, 0.0
    %v6788 = vpack.c.bf16 %v6752, %v6740
    %v6789 = vpack.c.bf16 %v6753, %v6741
    %v6790 = vpack.c.bf16 %v6754, %v6742
    %v6791 = vpack.c.bf16 %v6755, %v6743
    %v6792 = vpack.c.bf16 %v6756, %v6744
    %v6793 = vpack.c.bf16 %v6757, %v6745
    %v6794 = vpack.c.bf16 %v6758, %v6746
    %v6795 = vpack.c.bf16 %v6759, %v6747
    %v6796 = vpack.c.bf16 %v6760, %v6748
    %v6797 = vpack.c.bf16 %v6761, %v6749
    %v6798 = vpack.c.bf16 %v6762, %v6750
    %v6799 = vpack.c.bf16 %v6763, %v6751
    %v6800 = vpack.c.bf16 %v6776, %v6764
    %v6801 = vpack.c.bf16 %v6777, %v6765
    %v6802 = vpack.c.bf16 %v6778, %v6766
    %v6803 = vpack.c.bf16 %v6779, %v6767
    %v6804 = vpack.c.bf16 %v6780, %v6768
    %v6805 = vpack.c.bf16 %v6781, %v6769
    %v6806 = vpack.c.bf16 %v6782, %v6770
    %v6807 = vpack.c.bf16 %v6783, %v6771
    %v6808 = vpack.c.bf16 %v6784, %v6772
    %v6809 = vpack.c.bf16 %v6785, %v6773
    %v6810 = vpack.c.bf16 %v6786, %v6774
    %v6811 = vpack.c.bf16 %v6787, %v6775
    %v6812 = vld [vmem:[#allocation20] sm:$0xff]
    %v6813 = vld [vmem:[#allocation20 + $0x8] sm:$0xf]
    %v6814 = vld [vmem:[#allocation20 + $0xc] sm:$0xff]
    %v6815 = vld [vmem:[#allocation20 + $0x14] sm:$0xf]
    %v6816 = vld [vmem:[#allocation20 + $0x18] sm:$0xff]
    %v6817 = vld [vmem:[#allocation20 + $0x20] sm:$0xf]
    %v6818 = vld [vmem:[#allocation20 + $0x24] sm:$0xff]
    %v6819 = vld [vmem:[#allocation20 + $0x2c] sm:$0xf]
    %v6820 = vld [vmem:[#allocation20 + $0x30] sm:$0xff]
    %v6821 = vld [vmem:[#allocation20 + $0x38] sm:$0xf]
    %v6822 = vld [vmem:[#allocation20 + $0x3c] sm:$0xff]
    %v6823 = vld [vmem:[#allocation20 + $0x44] sm:$0xf]
    %v6824 = vld [vmem:[#allocation20 + $0x48] sm:$0xff]
    %v6825 = vld [vmem:[#allocation20 + $0x50] sm:$0xf]
    %v6826 = vld [vmem:[#allocation20 + $0x54] sm:$0xff]
    %v6827 = vld [vmem:[#allocation20 + $0x5c] sm:$0xf]
    %v6828 = vld [vmem:[#allocation20 + $0x60] sm:$0xff]
    %v6829 = vld [vmem:[#allocation20 + $0x68] sm:$0xf]
    %v6830 = vld [vmem:[#allocation20 + $0x6c] sm:$0xff]
    %v6831 = vld [vmem:[#allocation20 + $0x74] sm:$0xf]
    %v6832 = vld [vmem:[#allocation20 + $0x78] sm:$0xff]
    %v6833 = vld [vmem:[#allocation20 + $0x80] sm:$0xf]
    %v6834 = vld [vmem:[#allocation20 + $0x84] sm:$0xff]
    %v6835 = vld [vmem:[#allocation20 + $0x8c] sm:$0xf]
    %v6836 = vld [vmem:[#allocation20 + $0x90] sm:$0xff]
    %v6837 = vld [vmem:[#allocation20 + $0x98] sm:$0xf]
    %v6838 = vld [vmem:[#allocation20 + $0x9c] sm:$0xff]
    %v6839 = vld [vmem:[#allocation20 + $0xa4] sm:$0xf]
    %v6840 = vld [vmem:[#allocation20 + $0xa8] sm:$0xff]
    %v6841 = vld [vmem:[#allocation20 + $0xb0] sm:$0xf]
    %v6842 = vld [vmem:[#allocation20 + $0xb4] sm:$0xff]
    %v6843 = vld [vmem:[#allocation20 + $0xbc] sm:$0xf]
    %v6844 = vld [vmem:[#allocation20 + $0xc0] sm:$0xff]
    %v6845 = vld [vmem:[#allocation20 + $0xc8] sm:$0xf]
    %v6846 = vld [vmem:[#allocation20 + $0xcc] sm:$0xff]
    %v6847 = vld [vmem:[#allocation20 + $0xd4] sm:$0xf]
    %v6848 = vld [vmem:[#allocation20 + $0xd8] sm:$0xff]
    %v6849 = vld [vmem:[#allocation20 + $0xe0] sm:$0xf]
    %v6850 = vld [vmem:[#allocation20 + $0xe4] sm:$0xff]
    %v6851 = vld [vmem:[#allocation20 + $0xec] sm:$0xf]
    %v6852 = vld [vmem:[#allocation20 + $0xf0] sm:$0xff]
    %v6853 = vld [vmem:[#allocation20 + $0xf8] sm:$0xf]
    %v6854 = vld [vmem:[#allocation20 + $0xfc] sm:$0xff]
    %v6855 = vld [vmem:[#allocation20 + $0x104] sm:$0xf]
    %v6856 = vld [vmem:[#allocation20 + $0x108] sm:$0xff]
    %v6857 = vld [vmem:[#allocation20 + $0x110] sm:$0xf]
    %v6858 = vld [vmem:[#allocation20 + $0x114] sm:$0xff]
    %v6859 = vld [vmem:[#allocation20 + $0x11c] sm:$0xf]
    %v6860 = vld [vmem:[#allocation20 + $0x120] sm:$0xff]
    %v6861 = vld [vmem:[#allocation20 + $0x128] sm:$0xf]
    %v6862 = vld [vmem:[#allocation20 + $0x12c] sm:$0xff]
    %v6863 = vld [vmem:[#allocation20 + $0x134] sm:$0xf]
    %v6864 = vld [vmem:[#allocation20 + $0x138] sm:$0xff]
    %v6865 = vld [vmem:[#allocation20 + $0x140] sm:$0xf]
    %v6866 = vld [vmem:[#allocation20 + $0x144] sm:$0xff]
    %v6867 = vld [vmem:[#allocation20 + $0x14c] sm:$0xf]
    %v6868 = vld [vmem:[#allocation20 + $0x150] sm:$0xff]
    %v6869 = vld [vmem:[#allocation20 + $0x158] sm:$0xf]
    %v6870 = vld [vmem:[#allocation20 + $0x15c] sm:$0xff]
    %v6871 = vld [vmem:[#allocation20 + $0x164] sm:$0xf]
    %v6872 = vld [vmem:[#allocation20 + $0x168] sm:$0xff]
    %v6873 = vld [vmem:[#allocation20 + $0x170] sm:$0xf]
    %v6874 = vld [vmem:[#allocation20 + $0x174] sm:$0xff]
    %v6875 = vld [vmem:[#allocation20 + $0x17c] sm:$0xf]
    %v6876 = vld [vmem:[#allocation20 + $0x180] sm:$0xff]
    %v6877 = vld [vmem:[#allocation20 + $0x188] sm:$0xf]
    %v6878 = vld [vmem:[#allocation20 + $0x18c] sm:$0xff]
    %v6879 = vld [vmem:[#allocation20 + $0x194] sm:$0xf]
    %v6880 = vld [vmem:[#allocation20 + $0x198] sm:$0xff]
    %v6881 = vld [vmem:[#allocation20 + $0x1a0] sm:$0xf]
    %v6882 = vld [vmem:[#allocation20 + $0x1a4] sm:$0xff]
    %v6883 = vld [vmem:[#allocation20 + $0x1ac] sm:$0xf]
    %v6884 = vld [vmem:[#allocation20 + $0x1b0] sm:$0xff]
    %v6885 = vld [vmem:[#allocation20 + $0x1b8] sm:$0xf]
    %v6886 = vld [vmem:[#allocation20 + $0x1bc] sm:$0xff]
    %v6887 = vld [vmem:[#allocation20 + $0x1c4] sm:$0xf]
    %v6888 = vld [vmem:[#allocation20 + $0x1c8] sm:$0xff]
    %v6889 = vld [vmem:[#allocation20 + $0x1d0] sm:$0xf]
    %v6890 = vld [vmem:[#allocation20 + $0x1d4] sm:$0xff]
    %v6891 = vld [vmem:[#allocation20 + $0x1dc] sm:$0xf]
    %v6892 = vld [vmem:[#allocation20 + $0x1e0] sm:$0xff]
    %v6893 = vld [vmem:[#allocation20 + $0x1e8] sm:$0xf]
    %v6894 = vld [vmem:[#allocation20 + $0x1ec] sm:$0xff]
    %v6895 = vld [vmem:[#allocation20 + $0x1f4] sm:$0xf]
    %v6896 = vld [vmem:[#allocation20 + $0x1f8] sm:$0xff]
    %v6897 = vld [vmem:[#allocation20 + $0x200] sm:$0xf]
    %v6898 = vld [vmem:[#allocation20 + $0x204] sm:$0xff]
    %v6899 = vld [vmem:[#allocation20 + $0x20c] sm:$0xf]
    %v6900 = vld [vmem:[#allocation20 + $0x210] sm:$0xff]
    %v6901 = vld [vmem:[#allocation20 + $0x218] sm:$0xf]
    %v6902 = vld [vmem:[#allocation20 + $0x21c] sm:$0xff]
    %v6903 = vld [vmem:[#allocation20 + $0x224] sm:$0xf]
    %v6904 = vld [vmem:[#allocation20 + $0x228] sm:$0xff]
    %v6905 = vld [vmem:[#allocation20 + $0x230] sm:$0xf]
    %v6906 = vld [vmem:[#allocation20 + $0x234] sm:$0xff]
    %v6907 = vld [vmem:[#allocation20 + $0x23c] sm:$0xf]
    %v6908 = vld [vmem:[#allocation20 + $0x240] sm:$0xff]
    %v6909 = vld [vmem:[#allocation20 + $0x248] sm:$0xf]
    %v6910 = vld [vmem:[#allocation20 + $0x24c] sm:$0xff]
    %v6911 = vld [vmem:[#allocation20 + $0x254] sm:$0xf]
    %v6912 = vld [vmem:[#allocation20 + $0x258] sm:$0xff]
    %v6913 = vld [vmem:[#allocation20 + $0x260] sm:$0xf]
    %v6914 = vld [vmem:[#allocation20 + $0x264] sm:$0xff]
    %v6915 = vld [vmem:[#allocation20 + $0x26c] sm:$0xf]
    %v6916 = vld [vmem:[#allocation20 + $0x270] sm:$0xff]
    %v6917 = vld [vmem:[#allocation20 + $0x278] sm:$0xf]
    %v6918 = vld [vmem:[#allocation20 + $0x27c] sm:$0xff]
    %v6919 = vld [vmem:[#allocation20 + $0x284] sm:$0xf]
    %v6920 = vld [vmem:[#allocation20 + $0x288] sm:$0xff]
    %v6921 = vld [vmem:[#allocation20 + $0x290] sm:$0xf]
    %v6922 = vld [vmem:[#allocation20 + $0x294] sm:$0xff]
    %v6923 = vld [vmem:[#allocation20 + $0x29c] sm:$0xf]
    %v6924 = vld [vmem:[#allocation20 + $0x2a0] sm:$0xff]
    %v6925 = vld [vmem:[#allocation20 + $0x2a8] sm:$0xf]
    %v6926 = vld [vmem:[#allocation20 + $0x2ac] sm:$0xff]
    %v6927 = vld [vmem:[#allocation20 + $0x2b4] sm:$0xf]
    %v6928 = vld [vmem:[#allocation20 + $0x2b8] sm:$0xff]
    %v6929 = vld [vmem:[#allocation20 + $0x2c0] sm:$0xf]
    %v6930 = vld [vmem:[#allocation20 + $0x2c4] sm:$0xff]
    %v6931 = vld [vmem:[#allocation20 + $0x2cc] sm:$0xf]
    %v6932 = vld [vmem:[#allocation20 + $0x2d0] sm:$0xff]
    %v6933 = vld [vmem:[#allocation20 + $0x2d8] sm:$0xf]
    %v6934 = vld [vmem:[#allocation20 + $0x2dc] sm:$0xff]
    %v6935 = vld [vmem:[#allocation20 + $0x2e4] sm:$0xf]
    %v6936 = vld [vmem:[#allocation20 + $0x2e8] sm:$0xff]
    %v6937 = vld [vmem:[#allocation20 + $0x2f0] sm:$0xf]
    %v6938 = vld [vmem:[#allocation20 + $0x2f4] sm:$0xff]
    %v6939 = vld [vmem:[#allocation20 + $0x2fc] sm:$0xf]
    %v6940 = vld [vmem:[#allocation20 + $0x300] sm:$0xff]
    %v6941 = vld [vmem:[#allocation20 + $0x308] sm:$0xf]
    %v6942 = vld [vmem:[#allocation20 + $0x30c] sm:$0xff]
    %v6943 = vld [vmem:[#allocation20 + $0x314] sm:$0xf]
    %v6944 = vld [vmem:[#allocation20 + $0x318] sm:$0xff]
    %v6945 = vld [vmem:[#allocation20 + $0x320] sm:$0xf]
    %v6946 = vld [vmem:[#allocation20 + $0x324] sm:$0xff]
    %v6947 = vld [vmem:[#allocation20 + $0x32c] sm:$0xf]
    %v6948 = vld [vmem:[#allocation20 + $0x330] sm:$0xff]
    %v6949 = vld [vmem:[#allocation20 + $0x338] sm:$0xf]
    %v6950 = vld [vmem:[#allocation20 + $0x33c] sm:$0xff]
    %v6951 = vld [vmem:[#allocation20 + $0x344] sm:$0xf]
    %v6952 = vld [vmem:[#allocation20 + $0x348] sm:$0xff]
    %v6953 = vld [vmem:[#allocation20 + $0x350] sm:$0xf]
    %v6954 = vld [vmem:[#allocation20 + $0x354] sm:$0xff]
    %v6955 = vld [vmem:[#allocation20 + $0x35c] sm:$0xf]
    %v6956 = vld [vmem:[#allocation20 + $0x360] sm:$0xff]
    %v6957 = vld [vmem:[#allocation20 + $0x368] sm:$0xf]
    %v6958 = vld [vmem:[#allocation20 + $0x36c] sm:$0xff]
    %v6959 = vld [vmem:[#allocation20 + $0x374] sm:$0xf]
    %v6960 = vld [vmem:[#allocation20 + $0x378] sm:$0xff]
    %v6961 = vld [vmem:[#allocation20 + $0x380] sm:$0xf]
    %v6962 = vld [vmem:[#allocation20 + $0x384] sm:$0xff]
    %v6963 = vld [vmem:[#allocation20 + $0x38c] sm:$0xf]
    %v6964 = vld [vmem:[#allocation20 + $0x390] sm:$0xff]
    %v6965 = vld [vmem:[#allocation20 + $0x398] sm:$0xf]
    %v6966 = vld [vmem:[#allocation20 + $0x39c] sm:$0xff]
    %v6967 = vld [vmem:[#allocation20 + $0x3a4] sm:$0xf]
    %v6968 = vld [vmem:[#allocation20 + $0x3a8] sm:$0xff]
    %v6969 = vld [vmem:[#allocation20 + $0x3b0] sm:$0xf]
    %v6970 = vld [vmem:[#allocation20 + $0x3b4] sm:$0xff]
    %v6971 = vld [vmem:[#allocation20 + $0x3bc] sm:$0xf]
    %v6972 = vld [vmem:[#allocation20 + $0x3c0] sm:$0xff]
    %v6973 = vld [vmem:[#allocation20 + $0x3c8] sm:$0xf]
    %v6974 = vld [vmem:[#allocation20 + $0x3cc] sm:$0xff]
    %v6975 = vld [vmem:[#allocation20 + $0x3d4] sm:$0xf]
    %v6976 = vld [vmem:[#allocation20 + $0x3d8] sm:$0xff]
    %v6977 = vld [vmem:[#allocation20 + $0x3e0] sm:$0xf]
    %v6978 = vld [vmem:[#allocation20 + $0x3e4] sm:$0xff]
    %v6979 = vld [vmem:[#allocation20 + $0x3ec] sm:$0xf]
    %v6980 = vld [vmem:[#allocation20 + $0x3f0] sm:$0xff]
    %v6981 = vld [vmem:[#allocation20 + $0x3f8] sm:$0xf]
    %v6982 = vld [vmem:[#allocation20 + $0x3fc] sm:$0xff]
    %v6983 = vld [vmem:[#allocation20 + $0x404] sm:$0xf]
    %v6984 = vld [vmem:[#allocation20 + $0x408] sm:$0xff]
    %v6985 = vld [vmem:[#allocation20 + $0x410] sm:$0xf]
    %v6986 = vld [vmem:[#allocation20 + $0x414] sm:$0xff]
    %v6987 = vld [vmem:[#allocation20 + $0x41c] sm:$0xf]
    %v6988 = vld [vmem:[#allocation20 + $0x420] sm:$0xff]
    %v6989 = vld [vmem:[#allocation20 + $0x428] sm:$0xf]
    %v6990 = vld [vmem:[#allocation20 + $0x42c] sm:$0xff]
    %v6991 = vld [vmem:[#allocation20 + $0x434] sm:$0xf]
    %v6992 = vld [vmem:[#allocation20 + $0x438] sm:$0xff]
    %v6993 = vld [vmem:[#allocation20 + $0x440] sm:$0xf]
    %v6994 = vld [vmem:[#allocation20 + $0x444] sm:$0xff]
    %v6995 = vld [vmem:[#allocation20 + $0x44c] sm:$0xf]
    %v6996 = vld [vmem:[#allocation20 + $0x450] sm:$0xff]
    %v6997 = vld [vmem:[#allocation20 + $0x458] sm:$0xf]
    %v6998 = vld [vmem:[#allocation20 + $0x45c] sm:$0xff]
    %v6999 = vld [vmem:[#allocation20 + $0x464] sm:$0xf]
    %v7000 = vld [vmem:[#allocation20 + $0x468] sm:$0xff]
    %v7001 = vld [vmem:[#allocation20 + $0x470] sm:$0xf]
    %v7002 = vld [vmem:[#allocation20 + $0x474] sm:$0xff]
    %v7003 = vld [vmem:[#allocation20 + $0x47c] sm:$0xf]
    %v7004 = vld [vmem:[#allocation20 + $0x480] sm:$0xff]
    %v7005 = vld [vmem:[#allocation20 + $0x488] sm:$0xf]
    %v7006 = vld [vmem:[#allocation20 + $0x48c] sm:$0xff]
    %v7007 = vld [vmem:[#allocation20 + $0x494] sm:$0xf]
    %v7008 = vld [vmem:[#allocation20 + $0x498] sm:$0xff]
    %v7009 = vld [vmem:[#allocation20 + $0x4a0] sm:$0xf]
    %v7010 = vld [vmem:[#allocation20 + $0x4a4] sm:$0xff]
    %v7011 = vld [vmem:[#allocation20 + $0x4ac] sm:$0xf]
    %v7012 = vld [vmem:[#allocation20 + $0x4b0] sm:$0xff]
    %v7013 = vld [vmem:[#allocation20 + $0x4b8] sm:$0xf]
    %v7014 = vld [vmem:[#allocation20 + $0x4bc] sm:$0xff]
    %v7015 = vld [vmem:[#allocation20 + $0x4c4] sm:$0xf]
    %v7016 = vld [vmem:[#allocation20 + $0x4c8] sm:$0xff]
    %v7017 = vld [vmem:[#allocation20 + $0x4d0] sm:$0xf]
    %v7018 = vld [vmem:[#allocation20 + $0x4d4] sm:$0xff]
    %v7019 = vld [vmem:[#allocation20 + $0x4dc] sm:$0xf]
    %v7020 = vld [vmem:[#allocation20 + $0x4e0] sm:$0xff]
    %v7021 = vld [vmem:[#allocation20 + $0x4e8] sm:$0xf]
    %v7022 = vld [vmem:[#allocation20 + $0x4ec] sm:$0xff]
    %v7023 = vld [vmem:[#allocation20 + $0x4f4] sm:$0xf]
    %v7024 = vld [vmem:[#allocation20 + $0x4f8] sm:$0xff]
    %v7025 = vld [vmem:[#allocation20 + $0x500] sm:$0xf]
    %v7026 = vld [vmem:[#allocation20 + $0x504] sm:$0xff]
    %v7027 = vld [vmem:[#allocation20 + $0x50c] sm:$0xf]
    %v7028 = vld [vmem:[#allocation20 + $0x510] sm:$0xff]
    %v7029 = vld [vmem:[#allocation20 + $0x518] sm:$0xf]
    %v7030 = vld [vmem:[#allocation20 + $0x51c] sm:$0xff]
    %v7031 = vld [vmem:[#allocation20 + $0x524] sm:$0xf]
    %v7032 = vld [vmem:[#allocation20 + $0x528] sm:$0xff]
    %v7033 = vld [vmem:[#allocation20 + $0x530] sm:$0xf]
    %v7034 = vld [vmem:[#allocation20 + $0x534] sm:$0xff]
    %v7035 = vld [vmem:[#allocation20 + $0x53c] sm:$0xf]
    %v7036 = vld [vmem:[#allocation20 + $0x540] sm:$0xff]
    %v7037 = vld [vmem:[#allocation20 + $0x548] sm:$0xf]
    %v7038 = vld [vmem:[#allocation20 + $0x54c] sm:$0xff]
    %v7039 = vld [vmem:[#allocation20 + $0x554] sm:$0xf]
    %v7040 = vld [vmem:[#allocation20 + $0x558] sm:$0xff]
    %v7041 = vld [vmem:[#allocation20 + $0x560] sm:$0xf]
    %v7042 = vld [vmem:[#allocation20 + $0x564] sm:$0xff]
    %v7043 = vld [vmem:[#allocation20 + $0x56c] sm:$0xf]
    %v7044 = vld [vmem:[#allocation20 + $0x570] sm:$0xff]
    %v7045 = vld [vmem:[#allocation20 + $0x578] sm:$0xf]
    %v7046 = vld [vmem:[#allocation20 + $0x57c] sm:$0xff]
    %v7047 = vld [vmem:[#allocation20 + $0x584] sm:$0xf]
    %v7048 = vld [vmem:[#allocation20 + $0x588] sm:$0xff]
    %v7049 = vld [vmem:[#allocation20 + $0x590] sm:$0xf]
    %v7050 = vld [vmem:[#allocation20 + $0x594] sm:$0xff]
    %v7051 = vld [vmem:[#allocation20 + $0x59c] sm:$0xf]
    %v7052 = vld [vmem:[#allocation20 + $0x5a0] sm:$0xff]
    %v7053 = vld [vmem:[#allocation20 + $0x5a8] sm:$0xf]
    %v7054 = vld [vmem:[#allocation20 + $0x5ac] sm:$0xff]
    %v7055 = vld [vmem:[#allocation20 + $0x5b4] sm:$0xf]
    %v7056 = vld [vmem:[#allocation20 + $0x5b8] sm:$0xff]
    %v7057 = vld [vmem:[#allocation20 + $0x5c0] sm:$0xf]
    %v7058 = vld [vmem:[#allocation20 + $0x5c4] sm:$0xff]
    %v7059 = vld [vmem:[#allocation20 + $0x5cc] sm:$0xf]
    %v7060 = vld [vmem:[#allocation20 + $0x5d0] sm:$0xff]
    %v7061 = vld [vmem:[#allocation20 + $0x5d8] sm:$0xf]
    %v7062 = vld [vmem:[#allocation20 + $0x5dc] sm:$0xff]
    %v7063 = vld [vmem:[#allocation20 + $0x5e4] sm:$0xf]
    %v7064 = vld [vmem:[#allocation20 + $0x5e8] sm:$0xff]
    %v7065 = vld [vmem:[#allocation20 + $0x5f0] sm:$0xf]
    %v7066 = vld [vmem:[#allocation20 + $0x5f4] sm:$0xff]
    %v7067 = vld [vmem:[#allocation20 + $0x5fc] sm:$0xf]
    %v7068 = vld [vmem:[#allocation20 + $0x600] sm:$0xff]
    %v7069 = vld [vmem:[#allocation20 + $0x608] sm:$0xf]
    %v7070 = vld [vmem:[#allocation20 + $0x60c] sm:$0xff]
    %v7071 = vld [vmem:[#allocation20 + $0x614] sm:$0xf]
    %v7072 = vld [vmem:[#allocation20 + $0x618] sm:$0xff]
    %v7073 = vld [vmem:[#allocation20 + $0x620] sm:$0xf]
    %v7074 = vld [vmem:[#allocation20 + $0x624] sm:$0xff]
    %v7075 = vld [vmem:[#allocation20 + $0x62c] sm:$0xf]
    %v7076 = vld [vmem:[#allocation20 + $0x630] sm:$0xff]
    %v7077 = vld [vmem:[#allocation20 + $0x638] sm:$0xf]
    %v7078 = vld [vmem:[#allocation20 + $0x63c] sm:$0xff]
    %v7079 = vld [vmem:[#allocation20 + $0x644] sm:$0xf]
    %v7080 = vld [vmem:[#allocation20 + $0x648] sm:$0xff]
    %v7081 = vld [vmem:[#allocation20 + $0x650] sm:$0xf]
    %v7082 = vld [vmem:[#allocation20 + $0x654] sm:$0xff]
    %v7083 = vld [vmem:[#allocation20 + $0x65c] sm:$0xf]
    %v7084 = vld [vmem:[#allocation20 + $0x660] sm:$0xff]
    %v7085 = vld [vmem:[#allocation20 + $0x668] sm:$0xf]
    %v7086 = vld [vmem:[#allocation20 + $0x66c] sm:$0xff]
    %v7087 = vld [vmem:[#allocation20 + $0x674] sm:$0xf]
    %v7088 = vld [vmem:[#allocation20 + $0x678] sm:$0xff]
    %v7089 = vld [vmem:[#allocation20 + $0x680] sm:$0xf]
    %v7090 = vld [vmem:[#allocation20 + $0x684] sm:$0xff]
    %v7091 = vld [vmem:[#allocation20 + $0x68c] sm:$0xf]
    %v7092 = vld [vmem:[#allocation20 + $0x690] sm:$0xff]
    %v7093 = vld [vmem:[#allocation20 + $0x698] sm:$0xf]
    %v7094 = vld [vmem:[#allocation20 + $0x69c] sm:$0xff]
    %v7095 = vld [vmem:[#allocation20 + $0x6a4] sm:$0xf]
    %v7096 = vld [vmem:[#allocation20 + $0x6a8] sm:$0xff]
    %v7097 = vld [vmem:[#allocation20 + $0x6b0] sm:$0xf]
    %v7098 = vld [vmem:[#allocation20 + $0x6b4] sm:$0xff]
    %v7099 = vld [vmem:[#allocation20 + $0x6bc] sm:$0xf]
    %v7100 = vld [vmem:[#allocation20 + $0x6c0] sm:$0xff]
    %v7101 = vld [vmem:[#allocation20 + $0x6c8] sm:$0xf]
    %v7102 = vld [vmem:[#allocation20 + $0x6cc] sm:$0xff]
    %v7103 = vld [vmem:[#allocation20 + $0x6d4] sm:$0xf]
    %v7104 = vld [vmem:[#allocation20 + $0x6d8] sm:$0xff]
    %v7105 = vld [vmem:[#allocation20 + $0x6e0] sm:$0xf]
    %v7106 = vld [vmem:[#allocation20 + $0x6e4] sm:$0xff]
    %v7107 = vld [vmem:[#allocation20 + $0x6ec] sm:$0xf]
    %v7108 = vld [vmem:[#allocation20 + $0x6f0] sm:$0xff]
    %v7109 = vld [vmem:[#allocation20 + $0x6f8] sm:$0xf]
    %v7110 = vld [vmem:[#allocation20 + $0x6fc] sm:$0xff]
    %v7111 = vld [vmem:[#allocation20 + $0x704] sm:$0xf]
    %v7112 = vld [vmem:[#allocation20 + $0x708] sm:$0xff]
    %v7113 = vld [vmem:[#allocation20 + $0x710] sm:$0xf]
    %v7114 = vld [vmem:[#allocation20 + $0x714] sm:$0xff]
    %v7115 = vld [vmem:[#allocation20 + $0x71c] sm:$0xf]
    %v7116 = vld [vmem:[#allocation20 + $0x720] sm:$0xff]
    %v7117 = vld [vmem:[#allocation20 + $0x728] sm:$0xf]
    %v7118 = vld [vmem:[#allocation20 + $0x72c] sm:$0xff]
    %v7119 = vld [vmem:[#allocation20 + $0x734] sm:$0xf]
    %v7120 = vld [vmem:[#allocation20 + $0x738] sm:$0xff]
    %v7121 = vld [vmem:[#allocation20 + $0x740] sm:$0xf]
    %v7122 = vld [vmem:[#allocation20 + $0x744] sm:$0xff]
    %v7123 = vld [vmem:[#allocation20 + $0x74c] sm:$0xf]
    %v7124 = vld [vmem:[#allocation20 + $0x750] sm:$0xff]
    %v7125 = vld [vmem:[#allocation20 + $0x758] sm:$0xf]
    %v7126 = vld [vmem:[#allocation20 + $0x75c] sm:$0xff]
    %v7127 = vld [vmem:[#allocation20 + $0x764] sm:$0xf]
    %v7128 = vld [vmem:[#allocation20 + $0x768] sm:$0xff]
    %v7129 = vld [vmem:[#allocation20 + $0x770] sm:$0xf]
    %v7130 = vld [vmem:[#allocation20 + $0x774] sm:$0xff]
    %v7131 = vld [vmem:[#allocation20 + $0x77c] sm:$0xf]
    %v7132 = vld [vmem:[#allocation20 + $0x780] sm:$0xff]
    %v7133 = vld [vmem:[#allocation20 + $0x788] sm:$0xf]
    %v7134 = vld [vmem:[#allocation20 + $0x78c] sm:$0xff]
    %v7135 = vld [vmem:[#allocation20 + $0x794] sm:$0xf]
    %v7136 = vld [vmem:[#allocation20 + $0x798] sm:$0xff]
    %v7137 = vld [vmem:[#allocation20 + $0x7a0] sm:$0xf]
    %v7138 = vld [vmem:[#allocation20 + $0x7a4] sm:$0xff]
    %v7139 = vld [vmem:[#allocation20 + $0x7ac] sm:$0xf]
    %v7140 = vld [vmem:[#allocation20 + $0x7b0] sm:$0xff]
    %v7141 = vld [vmem:[#allocation20 + $0x7b8] sm:$0xf]
    %v7142 = vld [vmem:[#allocation20 + $0x7bc] sm:$0xff]
    %v7143 = vld [vmem:[#allocation20 + $0x7c4] sm:$0xf]
    %v7144 = vld [vmem:[#allocation20 + $0x7c8] sm:$0xff]
    %v7145 = vld [vmem:[#allocation20 + $0x7d0] sm:$0xf]
    %v7146 = vld [vmem:[#allocation20 + $0x7d4] sm:$0xff]
    %v7147 = vld [vmem:[#allocation20 + $0x7dc] sm:$0xf]
    %v7148 = vld [vmem:[#allocation20 + $0x7e0] sm:$0xff]
    %v7149 = vld [vmem:[#allocation20 + $0x7e8] sm:$0xf]
    %v7150 = vld [vmem:[#allocation20 + $0x7ec] sm:$0xff]
    %v7151 = vld [vmem:[#allocation20 + $0x7f4] sm:$0xf]
    %v7152 = vld [vmem:[#allocation20 + $0x7f8] sm:$0xff]
    %v7153 = vld [vmem:[#allocation20 + $0x800] sm:$0xf]
    %v7154 = vld [vmem:[#allocation20 + $0x804] sm:$0xff]
    %v7155 = vld [vmem:[#allocation20 + $0x80c] sm:$0xf]
    %v7156 = vld [vmem:[#allocation20 + $0x810] sm:$0xff]
    %v7157 = vld [vmem:[#allocation20 + $0x818] sm:$0xf]
    %v7158 = vld [vmem:[#allocation20 + $0x81c] sm:$0xff]
    %v7159 = vld [vmem:[#allocation20 + $0x824] sm:$0xf]
    %v7160 = vld [vmem:[#allocation20 + $0x828] sm:$0xff]
    %v7161 = vld [vmem:[#allocation20 + $0x830] sm:$0xf]
    %v7162 = vld [vmem:[#allocation20 + $0x834] sm:$0xff]
    %v7163 = vld [vmem:[#allocation20 + $0x83c] sm:$0xf]
    %v7164 = vld [vmem:[#allocation20 + $0x840] sm:$0xff]
    %v7165 = vld [vmem:[#allocation20 + $0x848] sm:$0xf]
    %v7166 = vld [vmem:[#allocation20 + $0x84c] sm:$0xff]
    %v7167 = vld [vmem:[#allocation20 + $0x854] sm:$0xf]
    %v7168 = vld [vmem:[#allocation20 + $0x858] sm:$0xff]
    %v7169 = vld [vmem:[#allocation20 + $0x860] sm:$0xf]
    %v7170 = vld [vmem:[#allocation20 + $0x864] sm:$0xff]
    %v7171 = vld [vmem:[#allocation20 + $0x86c] sm:$0xf]
    %v7172 = vld [vmem:[#allocation20 + $0x870] sm:$0xff]
    %v7173 = vld [vmem:[#allocation20 + $0x878] sm:$0xf]
    %v7174 = vld [vmem:[#allocation20 + $0x87c] sm:$0xff]
    %v7175 = vld [vmem:[#allocation20 + $0x884] sm:$0xf]
    %v7176 = vld [vmem:[#allocation20 + $0x888] sm:$0xff]
    %v7177 = vld [vmem:[#allocation20 + $0x890] sm:$0xf]
    %v7178 = vld [vmem:[#allocation20 + $0x894] sm:$0xff]
    %v7179 = vld [vmem:[#allocation20 + $0x89c] sm:$0xf]
    %v7180 = vld [vmem:[#allocation20 + $0x8a0] sm:$0xff]
    %v7181 = vld [vmem:[#allocation20 + $0x8a8] sm:$0xf]
    %v7182 = vld [vmem:[#allocation20 + $0x8ac] sm:$0xff]
    %v7183 = vld [vmem:[#allocation20 + $0x8b4] sm:$0xf]
    %v7184 = vld [vmem:[#allocation20 + $0x8b8] sm:$0xff]
    %v7185 = vld [vmem:[#allocation20 + $0x8c0] sm:$0xf]
    %v7186 = vld [vmem:[#allocation20 + $0x8c4] sm:$0xff]
    %v7187 = vld [vmem:[#allocation20 + $0x8cc] sm:$0xf]
    %v7188 = vld [vmem:[#allocation20 + $0x8d0] sm:$0xff]
    %v7189 = vld [vmem:[#allocation20 + $0x8d8] sm:$0xf]
    %v7190 = vld [vmem:[#allocation20 + $0x8dc] sm:$0xff]
    %v7191 = vld [vmem:[#allocation20 + $0x8e4] sm:$0xf]
    %v7192 = vld [vmem:[#allocation20 + $0x8e8] sm:$0xff]
    %v7193 = vld [vmem:[#allocation20 + $0x8f0] sm:$0xf]
    %v7194 = vld [vmem:[#allocation20 + $0x8f4] sm:$0xff]
    %v7195 = vld [vmem:[#allocation20 + $0x8fc] sm:$0xf]
    %v7196 = vld [vmem:[#allocation21] sm:$0x7]
    %v7198 = vperm.slane %v7196, 0
    %v7199 = vperm.slane %v7196, 1
    %v7200 = vperm.slane %v7196, 2
    %v7588 = vunpack.c.l.b16 %v6812
    %v7589 = vunpack.c.h.b16 %v6812
    %v7590 = vunpack.c.l.b16 %v6813
    %v7591 = vunpack.c.l.b16 %v6814
    %v7592 = vunpack.c.h.b16 %v6814
    %v7593 = vunpack.c.l.b16 %v6815
    %v7594 = vunpack.c.l.b16 %v6816
    %v7595 = vunpack.c.h.b16 %v6816
    %v7596 = vunpack.c.l.b16 %v6817
    %v7597 = vunpack.c.l.b16 %v6818
    %v7598 = vunpack.c.h.b16 %v6818
    %v7599 = vunpack.c.l.b16 %v6819
    %v7600 = vunpack.c.l.b16 %v6820
    %v7601 = vunpack.c.h.b16 %v6820
    %v7602 = vunpack.c.l.b16 %v6821
    %v7603 = vunpack.c.l.b16 %v6822
    %v7604 = vunpack.c.h.b16 %v6822
    %v7605 = vunpack.c.l.b16 %v6823
    %v7606 = vunpack.c.l.b16 %v6824
    %v7607 = vunpack.c.h.b16 %v6824
    %v7608 = vunpack.c.l.b16 %v6825
    %v7609 = vunpack.c.l.b16 %v6826
    %v7610 = vunpack.c.h.b16 %v6826
    %v7611 = vunpack.c.l.b16 %v6827
    %v7612 = vunpack.c.l.b16 %v6828
    %v7613 = vunpack.c.h.b16 %v6828
    %v7614 = vunpack.c.l.b16 %v6829
    %v7615 = vunpack.c.l.b16 %v6830
    %v7616 = vunpack.c.h.b16 %v6830
    %v7617 = vunpack.c.l.b16 %v6831
    %v7618 = vunpack.c.l.b16 %v6832
    %v7619 = vunpack.c.h.b16 %v6832
    %v7620 = vunpack.c.l.b16 %v6833
    %v7621 = vunpack.c.l.b16 %v6834
    %v7622 = vunpack.c.h.b16 %v6834
    %v7623 = vunpack.c.l.b16 %v6835
    %v7624 = vunpack.c.l.b16 %v6836
    %v7625 = vunpack.c.h.b16 %v6836
    %v7626 = vunpack.c.l.b16 %v6837
    %v7627 = vunpack.c.l.b16 %v6838
    %v7628 = vunpack.c.h.b16 %v6838
    %v7629 = vunpack.c.l.b16 %v6839
    %v7630 = vunpack.c.l.b16 %v6840
    %v7631 = vunpack.c.h.b16 %v6840
    %v7632 = vunpack.c.l.b16 %v6841
    %v7633 = vunpack.c.l.b16 %v6842
    %v7634 = vunpack.c.h.b16 %v6842
    %v7635 = vunpack.c.l.b16 %v6843
    %v7636 = vunpack.c.l.b16 %v6844
    %v7637 = vunpack.c.h.b16 %v6844
    %v7638 = vunpack.c.l.b16 %v6845
    %v7639 = vunpack.c.l.b16 %v6846
    %v7640 = vunpack.c.h.b16 %v6846
    %v7641 = vunpack.c.l.b16 %v6847
    %v7642 = vunpack.c.l.b16 %v6848
    %v7643 = vunpack.c.h.b16 %v6848
    %v7644 = vunpack.c.l.b16 %v6849
    %v7645 = vunpack.c.l.b16 %v6850
    %v7646 = vunpack.c.h.b16 %v6850
    %v7647 = vunpack.c.l.b16 %v6851
    %v7648 = vunpack.c.l.b16 %v6852
    %v7649 = vunpack.c.h.b16 %v6852
    %v7650 = vunpack.c.l.b16 %v6853
    %v7651 = vunpack.c.l.b16 %v6854
    %v7652 = vunpack.c.h.b16 %v6854
    %v7653 = vunpack.c.l.b16 %v6855
    %v7654 = vunpack.c.l.b16 %v6856
    %v7655 = vunpack.c.h.b16 %v6856
    %v7656 = vunpack.c.l.b16 %v6857
    %v7657 = vunpack.c.l.b16 %v6858
    %v7658 = vunpack.c.h.b16 %v6858
    %v7659 = vunpack.c.l.b16 %v6859
    %v7660 = vunpack.c.l.b16 %v6860
    %v7661 = vunpack.c.h.b16 %v6860
    %v7662 = vunpack.c.l.b16 %v6861
    %v7663 = vunpack.c.l.b16 %v6862
    %v7664 = vunpack.c.h.b16 %v6862
    %v7665 = vunpack.c.l.b16 %v6863
    %v7666 = vunpack.c.l.b16 %v6864
    %v7667 = vunpack.c.h.b16 %v6864
    %v7668 = vunpack.c.l.b16 %v6865
    %v7669 = vunpack.c.l.b16 %v6866
    %v7670 = vunpack.c.h.b16 %v6866
    %v7671 = vunpack.c.l.b16 %v6867
    %v7672 = vunpack.c.l.b16 %v6868
    %v7673 = vunpack.c.h.b16 %v6868
    %v7674 = vunpack.c.l.b16 %v6869
    %v7675 = vunpack.c.l.b16 %v6870
    %v7676 = vunpack.c.h.b16 %v6870
    %v7677 = vunpack.c.l.b16 %v6871
    %v7678 = vunpack.c.l.b16 %v6872
    %v7679 = vunpack.c.h.b16 %v6872
    %v7680 = vunpack.c.l.b16 %v6873
    %v7681 = vunpack.c.l.b16 %v6874
    %v7682 = vunpack.c.h.b16 %v6874
    %v7683 = vunpack.c.l.b16 %v6875
    %v7684 = vunpack.c.l.b16 %v6876
    %v7685 = vunpack.c.h.b16 %v6876
    %v7686 = vunpack.c.l.b16 %v6877
    %v7687 = vunpack.c.l.b16 %v6878
    %v7688 = vunpack.c.h.b16 %v6878
    %v7689 = vunpack.c.l.b16 %v6879
    %v7690 = vunpack.c.l.b16 %v6880
    %v7691 = vunpack.c.h.b16 %v6880
    %v7692 = vunpack.c.l.b16 %v6881
    %v7693 = vunpack.c.l.b16 %v6882
    %v7694 = vunpack.c.h.b16 %v6882
    %v7695 = vunpack.c.l.b16 %v6883
    %v7696 = vunpack.c.l.b16 %v6884
    %v7697 = vunpack.c.h.b16 %v6884
    %v7698 = vunpack.c.l.b16 %v6885
    %v7699 = vunpack.c.l.b16 %v6886
    %v7700 = vunpack.c.h.b16 %v6886
    %v7701 = vunpack.c.l.b16 %v6887
    %v7702 = vunpack.c.l.b16 %v6888
    %v7703 = vunpack.c.h.b16 %v6888
    %v7704 = vunpack.c.l.b16 %v6889
    %v7705 = vunpack.c.l.b16 %v6890
    %v7706 = vunpack.c.h.b16 %v6890
    %v7707 = vunpack.c.l.b16 %v6891
    %v7708 = vunpack.c.l.b16 %v6892
    %v7709 = vunpack.c.h.b16 %v6892
    %v7710 = vunpack.c.l.b16 %v6893
    %v7711 = vunpack.c.l.b16 %v6894
    %v7712 = vunpack.c.h.b16 %v6894
    %v7713 = vunpack.c.l.b16 %v6895
    %v7714 = vunpack.c.l.b16 %v6896
    %v7715 = vunpack.c.h.b16 %v6896
    %v7716 = vunpack.c.l.b16 %v6897
    %v7717 = vunpack.c.l.b16 %v6898
    %v7718 = vunpack.c.h.b16 %v6898
    %v7719 = vunpack.c.l.b16 %v6899
    %v7720 = vunpack.c.l.b16 %v6900
    %v7721 = vunpack.c.h.b16 %v6900
    %v7722 = vunpack.c.l.b16 %v6901
    %v7723 = vunpack.c.l.b16 %v6902
    %v7724 = vunpack.c.h.b16 %v6902
    %v7725 = vunpack.c.l.b16 %v6903
    %v7726 = vunpack.c.l.b16 %v6904
    %v7727 = vunpack.c.h.b16 %v6904
    %v7728 = vunpack.c.l.b16 %v6905
    %v7729 = vunpack.c.l.b16 %v6906
    %v7730 = vunpack.c.h.b16 %v6906
    %v7731 = vunpack.c.l.b16 %v6907
    %v7732 = vunpack.c.l.b16 %v6908
    %v7733 = vunpack.c.h.b16 %v6908
    %v7734 = vunpack.c.l.b16 %v6909
    %v7735 = vunpack.c.l.b16 %v6910
    %v7736 = vunpack.c.h.b16 %v6910
    %v7737 = vunpack.c.l.b16 %v6911
    %v7738 = vunpack.c.l.b16 %v6912
    %v7739 = vunpack.c.h.b16 %v6912
    %v7740 = vunpack.c.l.b16 %v6913
    %v7741 = vunpack.c.l.b16 %v6914
    %v7742 = vunpack.c.h.b16 %v6914
    %v7743 = vunpack.c.l.b16 %v6915
    %v7744 = vunpack.c.l.b16 %v6916
    %v7745 = vunpack.c.h.b16 %v6916
    %v7746 = vunpack.c.l.b16 %v6917
    %v7747 = vunpack.c.l.b16 %v6918
    %v7748 = vunpack.c.h.b16 %v6918
    %v7749 = vunpack.c.l.b16 %v6919
    %v7750 = vunpack.c.l.b16 %v6920
    %v7751 = vunpack.c.h.b16 %v6920
    %v7752 = vunpack.c.l.b16 %v6921
    %v7753 = vunpack.c.l.b16 %v6922
    %v7754 = vunpack.c.h.b16 %v6922
    %v7755 = vunpack.c.l.b16 %v6923
    %v7756 = vunpack.c.l.b16 %v6924
    %v7757 = vunpack.c.h.b16 %v6924
    %v7758 = vunpack.c.l.b16 %v6925
    %v7759 = vunpack.c.l.b16 %v6926
    %v7760 = vunpack.c.h.b16 %v6926
    %v7761 = vunpack.c.l.b16 %v6927
    %v7762 = vunpack.c.l.b16 %v6928
    %v7763 = vunpack.c.h.b16 %v6928
    %v7764 = vunpack.c.l.b16 %v6929
    %v7765 = vunpack.c.l.b16 %v6930
    %v7766 = vunpack.c.h.b16 %v6930
    %v7767 = vunpack.c.l.b16 %v6931
    %v7768 = vunpack.c.l.b16 %v6932
    %v7769 = vunpack.c.h.b16 %v6932
    %v7770 = vunpack.c.l.b16 %v6933
    %v7771 = vunpack.c.l.b16 %v6934
    %v7772 = vunpack.c.h.b16 %v6934
    %v7773 = vunpack.c.l.b16 %v6935
    %v7774 = vunpack.c.l.b16 %v6936
    %v7775 = vunpack.c.h.b16 %v6936
    %v7776 = vunpack.c.l.b16 %v6937
    %v7777 = vunpack.c.l.b16 %v6938
    %v7778 = vunpack.c.h.b16 %v6938
    %v7779 = vunpack.c.l.b16 %v6939
    %v7780 = vunpack.c.l.b16 %v6940
    %v7781 = vunpack.c.h.b16 %v6940
    %v7782 = vunpack.c.l.b16 %v6941
    %v7783 = vunpack.c.l.b16 %v6942
    %v7784 = vunpack.c.h.b16 %v6942
    %v7785 = vunpack.c.l.b16 %v6943
    %v7786 = vunpack.c.l.b16 %v6944
    %v7787 = vunpack.c.h.b16 %v6944
    %v7788 = vunpack.c.l.b16 %v6945
    %v7789 = vunpack.c.l.b16 %v6946
    %v7790 = vunpack.c.h.b16 %v6946
    %v7791 = vunpack.c.l.b16 %v6947
    %v7792 = vunpack.c.l.b16 %v6948
    %v7793 = vunpack.c.h.b16 %v6948
    %v7794 = vunpack.c.l.b16 %v6949
    %v7795 = vunpack.c.l.b16 %v6950
    %v7796 = vunpack.c.h.b16 %v6950
    %v7797 = vunpack.c.l.b16 %v6951
    %v7798 = vunpack.c.l.b16 %v6952
    %v7799 = vunpack.c.h.b16 %v6952
    %v7800 = vunpack.c.l.b16 %v6953
    %v7801 = vunpack.c.l.b16 %v6954
    %v7802 = vunpack.c.h.b16 %v6954
    %v7803 = vunpack.c.l.b16 %v6955
    %v7804 = vunpack.c.l.b16 %v6956
    %v7805 = vunpack.c.h.b16 %v6956
    %v7806 = vunpack.c.l.b16 %v6957
    %v7807 = vunpack.c.l.b16 %v6958
    %v7808 = vunpack.c.h.b16 %v6958
    %v7809 = vunpack.c.l.b16 %v6959
    %v7810 = vunpack.c.l.b16 %v6960
    %v7811 = vunpack.c.h.b16 %v6960
    %v7812 = vunpack.c.l.b16 %v6961
    %v7813 = vunpack.c.l.b16 %v6962
    %v7814 = vunpack.c.h.b16 %v6962
    %v7815 = vunpack.c.l.b16 %v6963
    %v7816 = vunpack.c.l.b16 %v6964
    %v7817 = vunpack.c.h.b16 %v6964
    %v7818 = vunpack.c.l.b16 %v6965
    %v7819 = vunpack.c.l.b16 %v6966
    %v7820 = vunpack.c.h.b16 %v6966
    %v7821 = vunpack.c.l.b16 %v6967
    %v7822 = vunpack.c.l.b16 %v6968
    %v7823 = vunpack.c.h.b16 %v6968
    %v7824 = vunpack.c.l.b16 %v6969
    %v7825 = vunpack.c.l.b16 %v6970
    %v7826 = vunpack.c.h.b16 %v6970
    %v7827 = vunpack.c.l.b16 %v6971
    %v7828 = vunpack.c.l.b16 %v6972
    %v7829 = vunpack.c.h.b16 %v6972
    %v7830 = vunpack.c.l.b16 %v6973
    %v7831 = vunpack.c.l.b16 %v6974
    %v7832 = vunpack.c.h.b16 %v6974
    %v7833 = vunpack.c.l.b16 %v6975
    %v7834 = vunpack.c.l.b16 %v6976
    %v7835 = vunpack.c.h.b16 %v6976
    %v7836 = vunpack.c.l.b16 %v6977
    %v7837 = vunpack.c.l.b16 %v6978
    %v7838 = vunpack.c.h.b16 %v6978
    %v7839 = vunpack.c.l.b16 %v6979
    %v7840 = vunpack.c.l.b16 %v6980
    %v7841 = vunpack.c.h.b16 %v6980
    %v7842 = vunpack.c.l.b16 %v6981
    %v7843 = vunpack.c.l.b16 %v6982
    %v7844 = vunpack.c.h.b16 %v6982
    %v7845 = vunpack.c.l.b16 %v6983
    %v7846 = vunpack.c.l.b16 %v6984
    %v7847 = vunpack.c.h.b16 %v6984
    %v7848 = vunpack.c.l.b16 %v6985
    %v7849 = vunpack.c.l.b16 %v6986
    %v7850 = vunpack.c.h.b16 %v6986
    %v7851 = vunpack.c.l.b16 %v6987
    %v7852 = vunpack.c.l.b16 %v6988
    %v7853 = vunpack.c.h.b16 %v6988
    %v7854 = vunpack.c.l.b16 %v6989
    %v7855 = vunpack.c.l.b16 %v6990
    %v7856 = vunpack.c.h.b16 %v6990
    %v7857 = vunpack.c.l.b16 %v6991
    %v7858 = vunpack.c.l.b16 %v6992
    %v7859 = vunpack.c.h.b16 %v6992
    %v7860 = vunpack.c.l.b16 %v6993
    %v7861 = vunpack.c.l.b16 %v6994
    %v7862 = vunpack.c.h.b16 %v6994
    %v7863 = vunpack.c.l.b16 %v6995
    %v7864 = vunpack.c.l.b16 %v6996
    %v7865 = vunpack.c.h.b16 %v6996
    %v7866 = vunpack.c.l.b16 %v6997
    %v7867 = vunpack.c.l.b16 %v6998
    %v7868 = vunpack.c.h.b16 %v6998
    %v7869 = vunpack.c.l.b16 %v6999
    %v7870 = vunpack.c.l.b16 %v7000
    %v7871 = vunpack.c.h.b16 %v7000
    %v7872 = vunpack.c.l.b16 %v7001
    %v7873 = vunpack.c.l.b16 %v7002
    %v7874 = vunpack.c.h.b16 %v7002
    %v7875 = vunpack.c.l.b16 %v7003
    %v7876 = vunpack.c.l.b16 %v7004
    %v7877 = vunpack.c.h.b16 %v7004
    %v7878 = vunpack.c.l.b16 %v7005
    %v7879 = vunpack.c.l.b16 %v7006
    %v7880 = vunpack.c.h.b16 %v7006
    %v7881 = vunpack.c.l.b16 %v7007
    %v7882 = vunpack.c.l.b16 %v7008
    %v7883 = vunpack.c.h.b16 %v7008
    %v7884 = vunpack.c.l.b16 %v7009
    %v7885 = vunpack.c.l.b16 %v7010
    %v7886 = vunpack.c.h.b16 %v7010
    %v7887 = vunpack.c.l.b16 %v7011
    %v7888 = vunpack.c.l.b16 %v7012
    %v7889 = vunpack.c.h.b16 %v7012
    %v7890 = vunpack.c.l.b16 %v7013
    %v7891 = vunpack.c.l.b16 %v7014
    %v7892 = vunpack.c.h.b16 %v7014
    %v7893 = vunpack.c.l.b16 %v7015
    %v7894 = vunpack.c.l.b16 %v7016
    %v7895 = vunpack.c.h.b16 %v7016
    %v7896 = vunpack.c.l.b16 %v7017
    %v7897 = vunpack.c.l.b16 %v7018
    %v7898 = vunpack.c.h.b16 %v7018
    %v7899 = vunpack.c.l.b16 %v7019
    %v7900 = vunpack.c.l.b16 %v7020
    %v7901 = vunpack.c.h.b16 %v7020
    %v7902 = vunpack.c.l.b16 %v7021
    %v7903 = vunpack.c.l.b16 %v7022
    %v7904 = vunpack.c.h.b16 %v7022
    %v7905 = vunpack.c.l.b16 %v7023
    %v7906 = vunpack.c.l.b16 %v7024
    %v7907 = vunpack.c.h.b16 %v7024
    %v7908 = vunpack.c.l.b16 %v7025
    %v7909 = vunpack.c.l.b16 %v7026
    %v7910 = vunpack.c.h.b16 %v7026
    %v7911 = vunpack.c.l.b16 %v7027
    %v7912 = vunpack.c.l.b16 %v7028
    %v7913 = vunpack.c.h.b16 %v7028
    %v7914 = vunpack.c.l.b16 %v7029
    %v7915 = vunpack.c.l.b16 %v7030
    %v7916 = vunpack.c.h.b16 %v7030
    %v7917 = vunpack.c.l.b16 %v7031
    %v7918 = vunpack.c.l.b16 %v7032
    %v7919 = vunpack.c.h.b16 %v7032
    %v7920 = vunpack.c.l.b16 %v7033
    %v7921 = vunpack.c.l.b16 %v7034
    %v7922 = vunpack.c.h.b16 %v7034
    %v7923 = vunpack.c.l.b16 %v7035
    %v7924 = vunpack.c.l.b16 %v7036
    %v7925 = vunpack.c.h.b16 %v7036
    %v7926 = vunpack.c.l.b16 %v7037
    %v7927 = vunpack.c.l.b16 %v7038
    %v7928 = vunpack.c.h.b16 %v7038
    %v7929 = vunpack.c.l.b16 %v7039
    %v7930 = vunpack.c.l.b16 %v7040
    %v7931 = vunpack.c.h.b16 %v7040
    %v7932 = vunpack.c.l.b16 %v7041
    %v7933 = vunpack.c.l.b16 %v7042
    %v7934 = vunpack.c.h.b16 %v7042
    %v7935 = vunpack.c.l.b16 %v7043
    %v7936 = vunpack.c.l.b16 %v7044
    %v7937 = vunpack.c.h.b16 %v7044
    %v7938 = vunpack.c.l.b16 %v7045
    %v7939 = vunpack.c.l.b16 %v7046
    %v7940 = vunpack.c.h.b16 %v7046
    %v7941 = vunpack.c.l.b16 %v7047
    %v7942 = vunpack.c.l.b16 %v7048
    %v7943 = vunpack.c.h.b16 %v7048
    %v7944 = vunpack.c.l.b16 %v7049
    %v7945 = vunpack.c.l.b16 %v7050
    %v7946 = vunpack.c.h.b16 %v7050
    %v7947 = vunpack.c.l.b16 %v7051
    %v7948 = vunpack.c.l.b16 %v7052
    %v7949 = vunpack.c.h.b16 %v7052
    %v7950 = vunpack.c.l.b16 %v7053
    %v7951 = vunpack.c.l.b16 %v7054
    %v7952 = vunpack.c.h.b16 %v7054
    %v7953 = vunpack.c.l.b16 %v7055
    %v7954 = vunpack.c.l.b16 %v7056
    %v7955 = vunpack.c.h.b16 %v7056
    %v7956 = vunpack.c.l.b16 %v7057
    %v7957 = vunpack.c.l.b16 %v7058
    %v7958 = vunpack.c.h.b16 %v7058
    %v7959 = vunpack.c.l.b16 %v7059
    %v7960 = vunpack.c.l.b16 %v7060
    %v7961 = vunpack.c.h.b16 %v7060
    %v7962 = vunpack.c.l.b16 %v7061
    %v7963 = vunpack.c.l.b16 %v7062
    %v7964 = vunpack.c.h.b16 %v7062
    %v7965 = vunpack.c.l.b16 %v7063
    %v7966 = vunpack.c.l.b16 %v7064
    %v7967 = vunpack.c.h.b16 %v7064
    %v7968 = vunpack.c.l.b16 %v7065
    %v7969 = vunpack.c.l.b16 %v7066
    %v7970 = vunpack.c.h.b16 %v7066
    %v7971 = vunpack.c.l.b16 %v7067
    %v7972 = vunpack.c.l.b16 %v7068
    %v7973 = vunpack.c.h.b16 %v7068
    %v7974 = vunpack.c.l.b16 %v7069
    %v7975 = vunpack.c.l.b16 %v7070
    %v7976 = vunpack.c.h.b16 %v7070
    %v7977 = vunpack.c.l.b16 %v7071
    %v7978 = vunpack.c.l.b16 %v7072
    %v7979 = vunpack.c.h.b16 %v7072
    %v7980 = vunpack.c.l.b16 %v7073
    %v7981 = vunpack.c.l.b16 %v7074
    %v7982 = vunpack.c.h.b16 %v7074
    %v7983 = vunpack.c.l.b16 %v7075
    %v7984 = vunpack.c.l.b16 %v7076
    %v7985 = vunpack.c.h.b16 %v7076
    %v7986 = vunpack.c.l.b16 %v7077
    %v7987 = vunpack.c.l.b16 %v7078
    %v7988 = vunpack.c.h.b16 %v7078
    %v7989 = vunpack.c.l.b16 %v7079
    %v7990 = vunpack.c.l.b16 %v7080
    %v7991 = vunpack.c.h.b16 %v7080
    %v7992 = vunpack.c.l.b16 %v7081
    %v7993 = vunpack.c.l.b16 %v7082
    %v7994 = vunpack.c.h.b16 %v7082
    %v7995 = vunpack.c.l.b16 %v7083
    %v7996 = vunpack.c.l.b16 %v7084
    %v7997 = vunpack.c.h.b16 %v7084
    %v7998 = vunpack.c.l.b16 %v7085
    %v7999 = vunpack.c.l.b16 %v7086
    %v8000 = vunpack.c.h.b16 %v7086
    %v8001 = vunpack.c.l.b16 %v7087
    %v8002 = vunpack.c.l.b16 %v7088
    %v8003 = vunpack.c.h.b16 %v7088
    %v8004 = vunpack.c.l.b16 %v7089
    %v8005 = vunpack.c.l.b16 %v7090
    %v8006 = vunpack.c.h.b16 %v7090
    %v8007 = vunpack.c.l.b16 %v7091
    %v8008 = vunpack.c.l.b16 %v7092
    %v8009 = vunpack.c.h.b16 %v7092
    %v8010 = vunpack.c.l.b16 %v7093
    %v8011 = vunpack.c.l.b16 %v7094
    %v8012 = vunpack.c.h.b16 %v7094
    %v8013 = vunpack.c.l.b16 %v7095
    %v8014 = vunpack.c.l.b16 %v7096
    %v8015 = vunpack.c.h.b16 %v7096
    %v8016 = vunpack.c.l.b16 %v7097
    %v8017 = vunpack.c.l.b16 %v7098
    %v8018 = vunpack.c.h.b16 %v7098
    %v8019 = vunpack.c.l.b16 %v7099
    %v8020 = vunpack.c.l.b16 %v7100
    %v8021 = vunpack.c.h.b16 %v7100
    %v8022 = vunpack.c.l.b16 %v7101
    %v8023 = vunpack.c.l.b16 %v7102
    %v8024 = vunpack.c.h.b16 %v7102
    %v8025 = vunpack.c.l.b16 %v7103
    %v8026 = vunpack.c.l.b16 %v7104
    %v8027 = vunpack.c.h.b16 %v7104
    %v8028 = vunpack.c.l.b16 %v7105
    %v8029 = vunpack.c.l.b16 %v7106
    %v8030 = vunpack.c.h.b16 %v7106
    %v8031 = vunpack.c.l.b16 %v7107
    %v8032 = vunpack.c.l.b16 %v7108
    %v8033 = vunpack.c.h.b16 %v7108
    %v8034 = vunpack.c.l.b16 %v7109
    %v8035 = vunpack.c.l.b16 %v7110
    %v8036 = vunpack.c.h.b16 %v7110
    %v8037 = vunpack.c.l.b16 %v7111
    %v8038 = vunpack.c.l.b16 %v7112
    %v8039 = vunpack.c.h.b16 %v7112
    %v8040 = vunpack.c.l.b16 %v7113
    %v8041 = vunpack.c.l.b16 %v7114
    %v8042 = vunpack.c.h.b16 %v7114
    %v8043 = vunpack.c.l.b16 %v7115
    %v8044 = vunpack.c.l.b16 %v7116
    %v8045 = vunpack.c.h.b16 %v7116
    %v8046 = vunpack.c.l.b16 %v7117
    %v8047 = vunpack.c.l.b16 %v7118
    %v8048 = vunpack.c.h.b16 %v7118
    %v8049 = vunpack.c.l.b16 %v7119
    %v8050 = vunpack.c.l.b16 %v7120
    %v8051 = vunpack.c.h.b16 %v7120
    %v8052 = vunpack.c.l.b16 %v7121
    %v8053 = vunpack.c.l.b16 %v7122
    %v8054 = vunpack.c.h.b16 %v7122
    %v8055 = vunpack.c.l.b16 %v7123
    %v8056 = vunpack.c.l.b16 %v7124
    %v8057 = vunpack.c.h.b16 %v7124
    %v8058 = vunpack.c.l.b16 %v7125
    %v8059 = vunpack.c.l.b16 %v7126
    %v8060 = vunpack.c.h.b16 %v7126
    %v8061 = vunpack.c.l.b16 %v7127
    %v8062 = vunpack.c.l.b16 %v7128
    %v8063 = vunpack.c.h.b16 %v7128
    %v8064 = vunpack.c.l.b16 %v7129
    %v8065 = vunpack.c.l.b16 %v7130
    %v8066 = vunpack.c.h.b16 %v7130
    %v8067 = vunpack.c.l.b16 %v7131
    %v8068 = vunpack.c.l.b16 %v7132
    %v8069 = vunpack.c.h.b16 %v7132
    %v8070 = vunpack.c.l.b16 %v7133
    %v8071 = vunpack.c.l.b16 %v7134
    %v8072 = vunpack.c.h.b16 %v7134
    %v8073 = vunpack.c.l.b16 %v7135
    %v8074 = vunpack.c.l.b16 %v7136
    %v8075 = vunpack.c.h.b16 %v7136
    %v8076 = vunpack.c.l.b16 %v7137
    %v8077 = vunpack.c.l.b16 %v7138
    %v8078 = vunpack.c.h.b16 %v7138
    %v8079 = vunpack.c.l.b16 %v7139
    %v8080 = vunpack.c.l.b16 %v7140
    %v8081 = vunpack.c.h.b16 %v7140
    %v8082 = vunpack.c.l.b16 %v7141
    %v8083 = vunpack.c.l.b16 %v7142
    %v8084 = vunpack.c.h.b16 %v7142
    %v8085 = vunpack.c.l.b16 %v7143
    %v8086 = vunpack.c.l.b16 %v7144
    %v8087 = vunpack.c.h.b16 %v7144
    %v8088 = vunpack.c.l.b16 %v7145
    %v8089 = vunpack.c.l.b16 %v7146
    %v8090 = vunpack.c.h.b16 %v7146
    %v8091 = vunpack.c.l.b16 %v7147
    %v8092 = vunpack.c.l.b16 %v7148
    %v8093 = vunpack.c.h.b16 %v7148
    %v8094 = vunpack.c.l.b16 %v7149
    %v8095 = vunpack.c.l.b16 %v7150
    %v8096 = vunpack.c.h.b16 %v7150
    %v8097 = vunpack.c.l.b16 %v7151
    %v8098 = vunpack.c.l.b16 %v7152
    %v8099 = vunpack.c.h.b16 %v7152
    %v8100 = vunpack.c.l.b16 %v7153
    %v8101 = vunpack.c.l.b16 %v7154
    %v8102 = vunpack.c.h.b16 %v7154
    %v8103 = vunpack.c.l.b16 %v7155
    %v8104 = vunpack.c.l.b16 %v7156
    %v8105 = vunpack.c.h.b16 %v7156
    %v8106 = vunpack.c.l.b16 %v7157
    %v8107 = vunpack.c.l.b16 %v7158
    %v8108 = vunpack.c.h.b16 %v7158
    %v8109 = vunpack.c.l.b16 %v7159
    %v8110 = vunpack.c.l.b16 %v7160
    %v8111 = vunpack.c.h.b16 %v7160
    %v8112 = vunpack.c.l.b16 %v7161
    %v8113 = vunpack.c.l.b16 %v7162
    %v8114 = vunpack.c.h.b16 %v7162
    %v8115 = vunpack.c.l.b16 %v7163
    %v8116 = vunpack.c.l.b16 %v7164
    %v8117 = vunpack.c.h.b16 %v7164
    %v8118 = vunpack.c.l.b16 %v7165
    %v8119 = vunpack.c.l.b16 %v7166
    %v8120 = vunpack.c.h.b16 %v7166
    %v8121 = vunpack.c.l.b16 %v7167
    %v8122 = vunpack.c.l.b16 %v7168
    %v8123 = vunpack.c.h.b16 %v7168
    %v8124 = vunpack.c.l.b16 %v7169
    %v8125 = vunpack.c.l.b16 %v7170
    %v8126 = vunpack.c.h.b16 %v7170
    %v8127 = vunpack.c.l.b16 %v7171
    %v8128 = vunpack.c.l.b16 %v7172
    %v8129 = vunpack.c.h.b16 %v7172
    %v8130 = vunpack.c.l.b16 %v7173
    %v8131 = vunpack.c.l.b16 %v7174
    %v8132 = vunpack.c.h.b16 %v7174
    %v8133 = vunpack.c.l.b16 %v7175
    %v8134 = vunpack.c.l.b16 %v7176
    %v8135 = vunpack.c.h.b16 %v7176
    %v8136 = vunpack.c.l.b16 %v7177
    %v8137 = vunpack.c.l.b16 %v7178
    %v8138 = vunpack.c.h.b16 %v7178
    %v8139 = vunpack.c.l.b16 %v7179
    %v8140 = vunpack.c.l.b16 %v7180
    %v8141 = vunpack.c.h.b16 %v7180
    %v8142 = vunpack.c.l.b16 %v7181
    %v8143 = vunpack.c.l.b16 %v7182
    %v8144 = vunpack.c.h.b16 %v7182
    %v8145 = vunpack.c.l.b16 %v7183
    %v8146 = vunpack.c.l.b16 %v7184
    %v8147 = vunpack.c.h.b16 %v7184
    %v8148 = vunpack.c.l.b16 %v7185
    %v8149 = vunpack.c.l.b16 %v7186
    %v8150 = vunpack.c.h.b16 %v7186
    %v8151 = vunpack.c.l.b16 %v7187
    %v8152 = vunpack.c.l.b16 %v7188
    %v8153 = vunpack.c.h.b16 %v7188
    %v8154 = vunpack.c.l.b16 %v7189
    %v8155 = vunpack.c.l.b16 %v7190
    %v8156 = vunpack.c.h.b16 %v7190
    %v8157 = vunpack.c.l.b16 %v7191
    %v8158 = vunpack.c.l.b16 %v7192
    %v8159 = vunpack.c.h.b16 %v7192
    %v8160 = vunpack.c.l.b16 %v7193
    %v8161 = vunpack.c.l.b16 %v7194
    %v8162 = vunpack.c.h.b16 %v7194
    %v8163 = vunpack.c.l.b16 %v7195
    %v8164 = vpack.c.b16 %v7591, %v7588
    %v8165 = vpack.c.b16 %v7592, %v7589
    %v8166 = vpack.c.b16 %v7593, %v7590
    %v8167 = vpack.c.b16 %v7597, %v7594
    %v8168 = vpack.c.b16 %v7598, %v7595
    %v8169 = vpack.c.b16 %v7599, %v7596
    %v8170 = vpack.c.b16 %v7603, %v7600
    %v8171 = vpack.c.b16 %v7604, %v7601
    %v8172 = vpack.c.b16 %v7605, %v7602
    %v8173 = vpack.c.b16 %v7609, %v7606
    %v8174 = vpack.c.b16 %v7610, %v7607
    %v8175 = vpack.c.b16 %v7611, %v7608
    %v8176 = vpack.c.b16 %v7615, %v7612
    %v8177 = vpack.c.b16 %v7616, %v7613
    %v8178 = vpack.c.b16 %v7617, %v7614
    %v8179 = vpack.c.b16 %v7621, %v7618
    %v8180 = vpack.c.b16 %v7622, %v7619
    %v8181 = vpack.c.b16 %v7623, %v7620
    %v8182 = vpack.c.b16 %v7627, %v7624
    %v8183 = vpack.c.b16 %v7628, %v7625
    %v8184 = vpack.c.b16 %v7629, %v7626
    %v8185 = vpack.c.b16 %v7633, %v7630
    %v8186 = vpack.c.b16 %v7634, %v7631
    %v8187 = vpack.c.b16 %v7635, %v7632
    %v8188 = vpack.c.b16 %v7639, %v7636
    %v8189 = vpack.c.b16 %v7640, %v7637
    %v8190 = vpack.c.b16 %v7641, %v7638
    %v8191 = vpack.c.b16 %v7645, %v7642
    %v8192 = vpack.c.b16 %v7646, %v7643
    %v8193 = vpack.c.b16 %v7647, %v7644
    %v8194 = vpack.c.b16 %v7651, %v7648
    %v8195 = vpack.c.b16 %v7652, %v7649
    %v8196 = vpack.c.b16 %v7653, %v7650
    %v8197 = vpack.c.b16 %v7657, %v7654
    %v8198 = vpack.c.b16 %v7658, %v7655
    %v8199 = vpack.c.b16 %v7659, %v7656
    %v8200 = vpack.c.b16 %v7663, %v7660
    %v8201 = vpack.c.b16 %v7664, %v7661
    %v8202 = vpack.c.b16 %v7665, %v7662
    %v8203 = vpack.c.b16 %v7669, %v7666
    %v8204 = vpack.c.b16 %v7670, %v7667
    %v8205 = vpack.c.b16 %v7671, %v7668
    %v8206 = vpack.c.b16 %v7675, %v7672
    %v8207 = vpack.c.b16 %v7676, %v7673
    %v8208 = vpack.c.b16 %v7677, %v7674
    %v8209 = vpack.c.b16 %v7681, %v7678
    %v8210 = vpack.c.b16 %v7682, %v7679
    %v8211 = vpack.c.b16 %v7683, %v7680
    %v8212 = vpack.c.b16 %v7687, %v7684
    %v8213 = vpack.c.b16 %v7688, %v7685
    %v8214 = vpack.c.b16 %v7689, %v7686
    %v8215 = vpack.c.b16 %v7693, %v7690
    %v8216 = vpack.c.b16 %v7694, %v7691
    %v8217 = vpack.c.b16 %v7695, %v7692
    %v8218 = vpack.c.b16 %v7699, %v7696
    %v8219 = vpack.c.b16 %v7700, %v7697
    %v8220 = vpack.c.b16 %v7701, %v7698
    %v8221 = vpack.c.b16 %v7705, %v7702
    %v8222 = vpack.c.b16 %v7706, %v7703
    %v8223 = vpack.c.b16 %v7707, %v7704
    %v8224 = vpack.c.b16 %v7711, %v7708
    %v8225 = vpack.c.b16 %v7712, %v7709
    %v8226 = vpack.c.b16 %v7713, %v7710
    %v8227 = vpack.c.b16 %v7717, %v7714
    %v8228 = vpack.c.b16 %v7718, %v7715
    %v8229 = vpack.c.b16 %v7719, %v7716
    %v8230 = vpack.c.b16 %v7723, %v7720
    %v8231 = vpack.c.b16 %v7724, %v7721
    %v8232 = vpack.c.b16 %v7725, %v7722
    %v8233 = vpack.c.b16 %v7729, %v7726
    %v8234 = vpack.c.b16 %v7730, %v7727
    %v8235 = vpack.c.b16 %v7731, %v7728
    %v8236 = vpack.c.b16 %v7735, %v7732
    %v8237 = vpack.c.b16 %v7736, %v7733
    %v8238 = vpack.c.b16 %v7737, %v7734
    %v8239 = vpack.c.b16 %v7741, %v7738
    %v8240 = vpack.c.b16 %v7742, %v7739
    %v8241 = vpack.c.b16 %v7743, %v7740
    %v8242 = vpack.c.b16 %v7747, %v7744
    %v8243 = vpack.c.b16 %v7748, %v7745
    %v8244 = vpack.c.b16 %v7749, %v7746
    %v8245 = vpack.c.b16 %v7753, %v7750
    %v8246 = vpack.c.b16 %v7754, %v7751
    %v8247 = vpack.c.b16 %v7755, %v7752
    %v8248 = vpack.c.b16 %v7759, %v7756
    %v8249 = vpack.c.b16 %v7760, %v7757
    %v8250 = vpack.c.b16 %v7761, %v7758
    %v8251 = vpack.c.b16 %v7765, %v7762
    %v8252 = vpack.c.b16 %v7766, %v7763
    %v8253 = vpack.c.b16 %v7767, %v7764
    %v8254 = vpack.c.b16 %v7771, %v7768
    %v8255 = vpack.c.b16 %v7772, %v7769
    %v8256 = vpack.c.b16 %v7773, %v7770
    %v8257 = vpack.c.b16 %v7777, %v7774
    %v8258 = vpack.c.b16 %v7778, %v7775
    %v8259 = vpack.c.b16 %v7779, %v7776
    %v8260 = vpack.c.b16 %v7783, %v7780
    %v8261 = vpack.c.b16 %v7784, %v7781
    %v8262 = vpack.c.b16 %v7785, %v7782
    %v8263 = vpack.c.b16 %v7789, %v7786
    %v8264 = vpack.c.b16 %v7790, %v7787
    %v8265 = vpack.c.b16 %v7791, %v7788
    %v8266 = vpack.c.b16 %v7795, %v7792
    %v8267 = vpack.c.b16 %v7796, %v7793
    %v8268 = vpack.c.b16 %v7797, %v7794
    %v8269 = vpack.c.b16 %v7801, %v7798
    %v8270 = vpack.c.b16 %v7802, %v7799
    %v8271 = vpack.c.b16 %v7803, %v7800
    %v8272 = vpack.c.b16 %v7807, %v7804
    %v8273 = vpack.c.b16 %v7808, %v7805
    %v8274 = vpack.c.b16 %v7809, %v7806
    %v8275 = vpack.c.b16 %v7813, %v7810
    %v8276 = vpack.c.b16 %v7814, %v7811
    %v8277 = vpack.c.b16 %v7815, %v7812
    %v8278 = vpack.c.b16 %v7819, %v7816
    %v8279 = vpack.c.b16 %v7820, %v7817
    %v8280 = vpack.c.b16 %v7821, %v7818
    %v8281 = vpack.c.b16 %v7825, %v7822
    %v8282 = vpack.c.b16 %v7826, %v7823
    %v8283 = vpack.c.b16 %v7827, %v7824
    %v8284 = vpack.c.b16 %v7831, %v7828
    %v8285 = vpack.c.b16 %v7832, %v7829
    %v8286 = vpack.c.b16 %v7833, %v7830
    %v8287 = vpack.c.b16 %v7837, %v7834
    %v8288 = vpack.c.b16 %v7838, %v7835
    %v8289 = vpack.c.b16 %v7839, %v7836
    %v8290 = vpack.c.b16 %v7843, %v7840
    %v8291 = vpack.c.b16 %v7844, %v7841
    %v8292 = vpack.c.b16 %v7845, %v7842
    %v8293 = vpack.c.b16 %v7849, %v7846
    %v8294 = vpack.c.b16 %v7850, %v7847
    %v8295 = vpack.c.b16 %v7851, %v7848
    %v8296 = vpack.c.b16 %v7855, %v7852
    %v8297 = vpack.c.b16 %v7856, %v7853
    %v8298 = vpack.c.b16 %v7857, %v7854
    %v8299 = vpack.c.b16 %v7861, %v7858
    %v8300 = vpack.c.b16 %v7862, %v7859
    %v8301 = vpack.c.b16 %v7863, %v7860
    %v8302 = vpack.c.b16 %v7867, %v7864
    %v8303 = vpack.c.b16 %v7868, %v7865
    %v8304 = vpack.c.b16 %v7869, %v7866
    %v8305 = vpack.c.b16 %v7873, %v7870
    %v8306 = vpack.c.b16 %v7874, %v7871
    %v8307 = vpack.c.b16 %v7875, %v7872
    %v8308 = vpack.c.b16 %v7879, %v7876
    %v8309 = vpack.c.b16 %v7880, %v7877
    %v8310 = vpack.c.b16 %v7881, %v7878
    %v8311 = vpack.c.b16 %v7885, %v7882
    %v8312 = vpack.c.b16 %v7886, %v7883
    %v8313 = vpack.c.b16 %v7887, %v7884
    %v8314 = vpack.c.b16 %v7891, %v7888
    %v8315 = vpack.c.b16 %v7892, %v7889
    %v8316 = vpack.c.b16 %v7893, %v7890
    %v8317 = vpack.c.b16 %v7897, %v7894
    %v8318 = vpack.c.b16 %v7898, %v7895
    %v8319 = vpack.c.b16 %v7899, %v7896
    %v8320 = vpack.c.b16 %v7903, %v7900
    %v8321 = vpack.c.b16 %v7904, %v7901
    %v8322 = vpack.c.b16 %v7905, %v7902
    %v8323 = vpack.c.b16 %v7909, %v7906
    %v8324 = vpack.c.b16 %v7910, %v7907
    %v8325 = vpack.c.b16 %v7911, %v7908
    %v8326 = vpack.c.b16 %v7915, %v7912
    %v8327 = vpack.c.b16 %v7916, %v7913
    %v8328 = vpack.c.b16 %v7917, %v7914
    %v8329 = vpack.c.b16 %v7921, %v7918
    %v8330 = vpack.c.b16 %v7922, %v7919
    %v8331 = vpack.c.b16 %v7923, %v7920
    %v8332 = vpack.c.b16 %v7927, %v7924
    %v8333 = vpack.c.b16 %v7928, %v7925
    %v8334 = vpack.c.b16 %v7929, %v7926
    %v8335 = vpack.c.b16 %v7933, %v7930
    %v8336 = vpack.c.b16 %v7934, %v7931
    %v8337 = vpack.c.b16 %v7935, %v7932
    %v8338 = vpack.c.b16 %v7939, %v7936
    %v8339 = vpack.c.b16 %v7940, %v7937
    %v8340 = vpack.c.b16 %v7941, %v7938
    %v8341 = vpack.c.b16 %v7945, %v7942
    %v8342 = vpack.c.b16 %v7946, %v7943
    %v8343 = vpack.c.b16 %v7947, %v7944
    %v8344 = vpack.c.b16 %v7951, %v7948
    %v8345 = vpack.c.b16 %v7952, %v7949
    %v8346 = vpack.c.b16 %v7953, %v7950
    %v8347 = vpack.c.b16 %v7957, %v7954
    %v8348 = vpack.c.b16 %v7958, %v7955
    %v8349 = vpack.c.b16 %v7959, %v7956
    %v8350 = vpack.c.b16 %v7963, %v7960
    %v8351 = vpack.c.b16 %v7964, %v7961
    %v8352 = vpack.c.b16 %v7965, %v7962
    %v8353 = vpack.c.b16 %v7969, %v7966
    %v8354 = vpack.c.b16 %v7970, %v7967
    %v8355 = vpack.c.b16 %v7971, %v7968
    %v8356 = vpack.c.b16 %v7975, %v7972
    %v8357 = vpack.c.b16 %v7976, %v7973
    %v8358 = vpack.c.b16 %v7977, %v7974
    %v8359 = vpack.c.b16 %v7981, %v7978
    %v8360 = vpack.c.b16 %v7982, %v7979
    %v8361 = vpack.c.b16 %v7983, %v7980
    %v8362 = vpack.c.b16 %v7987, %v7984
    %v8363 = vpack.c.b16 %v7988, %v7985
    %v8364 = vpack.c.b16 %v7989, %v7986
    %v8365 = vpack.c.b16 %v7993, %v7990
    %v8366 = vpack.c.b16 %v7994, %v7991
    %v8367 = vpack.c.b16 %v7995, %v7992
    %v8368 = vpack.c.b16 %v7999, %v7996
    %v8369 = vpack.c.b16 %v8000, %v7997
    %v8370 = vpack.c.b16 %v8001, %v7998
    %v8371 = vpack.c.b16 %v8005, %v8002
    %v8372 = vpack.c.b16 %v8006, %v8003
    %v8373 = vpack.c.b16 %v8007, %v8004
    %v8374 = vpack.c.b16 %v8011, %v8008
    %v8375 = vpack.c.b16 %v8012, %v8009
    %v8376 = vpack.c.b16 %v8013, %v8010
    %v8377 = vpack.c.b16 %v8017, %v8014
    %v8378 = vpack.c.b16 %v8018, %v8015
    %v8379 = vpack.c.b16 %v8019, %v8016
    %v8380 = vpack.c.b16 %v8023, %v8020
    %v8381 = vpack.c.b16 %v8024, %v8021
    %v8382 = vpack.c.b16 %v8025, %v8022
    %v8383 = vpack.c.b16 %v8029, %v8026
    %v8384 = vpack.c.b16 %v8030, %v8027
    %v8385 = vpack.c.b16 %v8031, %v8028
    %v8386 = vpack.c.b16 %v8035, %v8032
    %v8387 = vpack.c.b16 %v8036, %v8033
    %v8388 = vpack.c.b16 %v8037, %v8034
    %v8389 = vpack.c.b16 %v8041, %v8038
    %v8390 = vpack.c.b16 %v8042, %v8039
    %v8391 = vpack.c.b16 %v8043, %v8040
    %v8392 = vpack.c.b16 %v8047, %v8044
    %v8393 = vpack.c.b16 %v8048, %v8045
    %v8394 = vpack.c.b16 %v8049, %v8046
    %v8395 = vpack.c.b16 %v8053, %v8050
    %v8396 = vpack.c.b16 %v8054, %v8051
    %v8397 = vpack.c.b16 %v8055, %v8052
    %v8398 = vpack.c.b16 %v8059, %v8056
    %v8399 = vpack.c.b16 %v8060, %v8057
    %v8400 = vpack.c.b16 %v8061, %v8058
    %v8401 = vpack.c.b16 %v8065, %v8062
    %v8402 = vpack.c.b16 %v8066, %v8063
    %v8403 = vpack.c.b16 %v8067, %v8064
    %v8404 = vpack.c.b16 %v8071, %v8068
    %v8405 = vpack.c.b16 %v8072, %v8069
    %v8406 = vpack.c.b16 %v8073, %v8070
    %v8407 = vpack.c.b16 %v8077, %v8074
    %v8408 = vpack.c.b16 %v8078, %v8075
    %v8409 = vpack.c.b16 %v8079, %v8076
    %v8410 = vpack.c.b16 %v8083, %v8080
    %v8411 = vpack.c.b16 %v8084, %v8081
    %v8412 = vpack.c.b16 %v8085, %v8082
    %v8413 = vpack.c.b16 %v8089, %v8086
    %v8414 = vpack.c.b16 %v8090, %v8087
    %v8415 = vpack.c.b16 %v8091, %v8088
    %v8416 = vpack.c.b16 %v8095, %v8092
    %v8417 = vpack.c.b16 %v8096, %v8093
    %v8418 = vpack.c.b16 %v8097, %v8094
    %v8419 = vpack.c.b16 %v8101, %v8098
    %v8420 = vpack.c.b16 %v8102, %v8099
    %v8421 = vpack.c.b16 %v8103, %v8100
    %v8422 = vpack.c.b16 %v8107, %v8104
    %v8423 = vpack.c.b16 %v8108, %v8105
    %v8424 = vpack.c.b16 %v8109, %v8106
    %v8425 = vpack.c.b16 %v8113, %v8110
    %v8426 = vpack.c.b16 %v8114, %v8111
    %v8427 = vpack.c.b16 %v8115, %v8112
    %v8428 = vpack.c.b16 %v8119, %v8116
    %v8429 = vpack.c.b16 %v8120, %v8117
    %v8430 = vpack.c.b16 %v8121, %v8118
    %v8431 = vpack.c.b16 %v8125, %v8122
    %v8432 = vpack.c.b16 %v8126, %v8123
    %v8433 = vpack.c.b16 %v8127, %v8124
    %v8434 = vpack.c.b16 %v8131, %v8128
    %v8435 = vpack.c.b16 %v8132, %v8129
    %v8436 = vpack.c.b16 %v8133, %v8130
    %v8437 = vpack.c.b16 %v8137, %v8134
    %v8438 = vpack.c.b16 %v8138, %v8135
    %v8439 = vpack.c.b16 %v8139, %v8136
    %v8440 = vpack.c.b16 %v8143, %v8140
    %v8441 = vpack.c.b16 %v8144, %v8141
    %v8442 = vpack.c.b16 %v8145, %v8142
    %v8443 = vpack.c.b16 %v8149, %v8146
    %v8444 = vpack.c.b16 %v8150, %v8147
    %v8445 = vpack.c.b16 %v8151, %v8148
    %v8446 = vpack.c.b16 %v8155, %v8152
    %v8447 = vpack.c.b16 %v8156, %v8153
    %v8448 = vpack.c.b16 %v8157, %v8154
    %v8449 = vpack.c.b16 %v8161, %v8158
    %v8450 = vpack.c.b16 %v8162, %v8159
    %v8451 = vpack.c.b16 %v8163, %v8160
    %8740 = vmatpush.bf16.msra.mxu0 %v8185
    %8741 = vmatpush.bf16.msra.mxu0 %v8182
    %8742 = vmatpush.bf16.msra.mxu0 %v8179
    %8743 = vmatpush.bf16.msra.mxu0 %v8176
    %8744 = vmatpush.bf16.msra.mxu0 %v8173
    %8745 = vmatpush.bf16.msra.mxu0 %v8170
    %8746 = vmatpush.bf16.msra.mxu0 %v8167
    %8747 = vmatpush.bf16.msra.mxu0 %v8164
    %8748 = vmatmul.bf16.gmra.mxu0 %v6788
    %v8749 = vpop.f32.mrf.mxu0
    %v8750 = vadd.f32 %v7198, %v8749
    %v8751 = vpop.f32.mrf.mxu0
    %v8752 = vadd.f32 %v7198, %v8751
    %8753 = vmatmul.bf16.gmra.mxu0 %v6800
    %v8754 = vpop.f32.mrf.mxu0
    %v8755 = vadd.f32 %v7198, %v8754
    %v8756 = vpop.f32.mrf.mxu0
    %v8757 = vadd.f32 %v7198, %v8756
    %8758 = vdwg.mxu0
    %8759 = vmatpush.bf16.msra.mxu0 %v8209
    %8760 = vmatpush.bf16.msra.mxu0 %v8206
    %8761 = vmatpush.bf16.msra.mxu0 %v8203
    %8762 = vmatpush.bf16.msra.mxu0 %v8200
    %8763 = vmatpush.bf16.msra.mxu0 %v8197
    %8764 = vmatpush.bf16.msra.mxu0 %v8194
    %8765 = vmatpush.bf16.msra.mxu0 %v8191
    %8766 = vmatpush.bf16.msra.mxu0 %v8188
    %8767 = vmatmul.bf16.gmra.mxu0 %v6789
    %v8768 = vpop.f32.mrf.mxu0
    %v8769 = vadd.f32 %v8750, %v8768
    %v8770 = vpop.f32.mrf.mxu0
    %v8771 = vadd.f32 %v8752, %v8770
    %8772 = vmatmul.bf16.gmra.mxu0 %v6801
    %v8773 = vpop.f32.mrf.mxu0
    %v8774 = vadd.f32 %v8755, %v8773
    %v8775 = vpop.f32.mrf.mxu0
    %v8776 = vadd.f32 %v8757, %v8775
    %8777 = vdwg.mxu0
    %8778 = vmatpush.bf16.msra.mxu0 %v8233
    %8779 = vmatpush.bf16.msra.mxu0 %v8230
    %8780 = vmatpush.bf16.msra.mxu0 %v8227
    %8781 = vmatpush.bf16.msra.mxu0 %v8224
    %8782 = vmatpush.bf16.msra.mxu0 %v8221
    %8783 = vmatpush.bf16.msra.mxu0 %v8218
    %8784 = vmatpush.bf16.msra.mxu0 %v8215
    %8785 = vmatpush.bf16.msra.mxu0 %v8212
    %8786 = vmatmul.bf16.gmra.mxu0 %v6790
    %v8787 = vpop.f32.mrf.mxu0
    %v8788 = vadd.f32 %v8769, %v8787
    %v8789 = vpop.f32.mrf.mxu0
    %v8790 = vadd.f32 %v8771, %v8789
    %8791 = vmatmul.bf16.gmra.mxu0 %v6802
    %v8792 = vpop.f32.mrf.mxu0
    %v8793 = vadd.f32 %v8774, %v8792
    %v8794 = vpop.f32.mrf.mxu0
    %v8795 = vadd.f32 %v8776, %v8794
    %8796 = vdwg.mxu0
    %8797 = vmatpush.bf16.msra.mxu0 %v8257
    %8798 = vmatpush.bf16.msra.mxu0 %v8254
    %8799 = vmatpush.bf16.msra.mxu0 %v8251
    %8800 = vmatpush.bf16.msra.mxu0 %v8248
    %8801 = vmatpush.bf16.msra.mxu0 %v8245
    %8802 = vmatpush.bf16.msra.mxu0 %v8242
    %8803 = vmatpush.bf16.msra.mxu0 %v8239
    %8804 = vmatpush.bf16.msra.mxu0 %v8236
    %8805 = vmatmul.bf16.gmra.mxu0 %v6791
    %v8806 = vpop.f32.mrf.mxu0
    %v8807 = vadd.f32 %v8788, %v8806
    %v8808 = vpop.f32.mrf.mxu0
    %v8809 = vadd.f32 %v8790, %v8808
    %8810 = vmatmul.bf16.gmra.mxu0 %v6803
    %v8811 = vpop.f32.mrf.mxu0
    %v8812 = vadd.f32 %v8793, %v8811
    %v8813 = vpop.f32.mrf.mxu0
    %v8814 = vadd.f32 %v8795, %v8813
    %8815 = vdwg.mxu0
    %8816 = vmatpush.bf16.msra.mxu0 %v8281
    %8817 = vmatpush.bf16.msra.mxu0 %v8278
    %8818 = vmatpush.bf16.msra.mxu0 %v8275
    %8819 = vmatpush.bf16.msra.mxu0 %v8272
    %8820 = vmatpush.bf16.msra.mxu0 %v8269
    %8821 = vmatpush.bf16.msra.mxu0 %v8266
    %8822 = vmatpush.bf16.msra.mxu0 %v8263
    %8823 = vmatpush.bf16.msra.mxu0 %v8260
    %8824 = vmatmul.bf16.gmra.mxu0 %v6792
    %v8825 = vpop.f32.mrf.mxu0
    %v8826 = vadd.f32 %v8807, %v8825
    %v8827 = vpop.f32.mrf.mxu0
    %v8828 = vadd.f32 %v8809, %v8827
    %8829 = vmatmul.bf16.gmra.mxu0 %v6804
    %v8830 = vpop.f32.mrf.mxu0
    %v8831 = vadd.f32 %v8812, %v8830
    %v8832 = vpop.f32.mrf.mxu0
    %v8833 = vadd.f32 %v8814, %v8832
    %8834 = vdwg.mxu0
    %8835 = vmatpush.bf16.msra.mxu0 %v8305
    %8836 = vmatpush.bf16.msra.mxu0 %v8302
    %8837 = vmatpush.bf16.msra.mxu0 %v8299
    %8838 = vmatpush.bf16.msra.mxu0 %v8296
    %8839 = vmatpush.bf16.msra.mxu0 %v8293
    %8840 = vmatpush.bf16.msra.mxu0 %v8290
    %8841 = vmatpush.bf16.msra.mxu0 %v8287
    %8842 = vmatpush.bf16.msra.mxu0 %v8284
    %8843 = vmatmul.bf16.gmra.mxu0 %v6793
    %v8844 = vpop.f32.mrf.mxu0
    %v8845 = vadd.f32 %v8826, %v8844
    %v8846 = vpop.f32.mrf.mxu0
    %v8847 = vadd.f32 %v8828, %v8846
    %8848 = vmatmul.bf16.gmra.mxu0 %v6805
    %v8849 = vpop.f32.mrf.mxu0
    %v8850 = vadd.f32 %v8831, %v8849
    %v8851 = vpop.f32.mrf.mxu0
    %v8852 = vadd.f32 %v8833, %v8851
    %8853 = vdwg.mxu0
    %8854 = vmatpush.bf16.msra.mxu0 %v8329
    %8855 = vmatpush.bf16.msra.mxu0 %v8326
    %8856 = vmatpush.bf16.msra.mxu0 %v8323
    %8857 = vmatpush.bf16.msra.mxu0 %v8320
    %8858 = vmatpush.bf16.msra.mxu0 %v8317
    %8859 = vmatpush.bf16.msra.mxu0 %v8314
    %8860 = vmatpush.bf16.msra.mxu0 %v8311
    %8861 = vmatpush.bf16.msra.mxu0 %v8308
    %8862 = vmatmul.bf16.gmra.mxu0 %v6794
    %v8863 = vpop.f32.mrf.mxu0
    %v8864 = vadd.f32 %v8845, %v8863
    %v8865 = vpop.f32.mrf.mxu0
    %v8866 = vadd.f32 %v8847, %v8865
    %8867 = vmatmul.bf16.gmra.mxu0 %v6806
    %v8868 = vpop.f32.mrf.mxu0
    %v8869 = vadd.f32 %v8850, %v8868
    %v8870 = vpop.f32.mrf.mxu0
    %v8871 = vadd.f32 %v8852, %v8870
    %8872 = vdwg.mxu0
    %8873 = vmatpush.bf16.msra.mxu0 %v8353
    %8874 = vmatpush.bf16.msra.mxu0 %v8350
    %8875 = vmatpush.bf16.msra.mxu0 %v8347
    %8876 = vmatpush.bf16.msra.mxu0 %v8344
    %8877 = vmatpush.bf16.msra.mxu0 %v8341
    %8878 = vmatpush.bf16.msra.mxu0 %v8338
    %8879 = vmatpush.bf16.msra.mxu0 %v8335
    %8880 = vmatpush.bf16.msra.mxu0 %v8332
    %8881 = vmatmul.bf16.gmra.mxu0 %v6795
    %v8882 = vpop.f32.mrf.mxu0
    %v8883 = vadd.f32 %v8864, %v8882
    %v8884 = vpop.f32.mrf.mxu0
    %v8885 = vadd.f32 %v8866, %v8884
    %8886 = vmatmul.bf16.gmra.mxu0 %v6807
    %v8887 = vpop.f32.mrf.mxu0
    %v8888 = vadd.f32 %v8869, %v8887
    %v8889 = vpop.f32.mrf.mxu0
    %v8890 = vadd.f32 %v8871, %v8889
    %8891 = vdwg.mxu0
    %8892 = vmatpush.bf16.msra.mxu0 %v8377
    %8893 = vmatpush.bf16.msra.mxu0 %v8374
    %8894 = vmatpush.bf16.msra.mxu0 %v8371
    %8895 = vmatpush.bf16.msra.mxu0 %v8368
    %8896 = vmatpush.bf16.msra.mxu0 %v8365
    %8897 = vmatpush.bf16.msra.mxu0 %v8362
    %8898 = vmatpush.bf16.msra.mxu0 %v8359
    %8899 = vmatpush.bf16.msra.mxu0 %v8356
    %8900 = vmatmul.bf16.gmra.mxu0 %v6796
    %v8901 = vpop.f32.mrf.mxu0
    %v8902 = vadd.f32 %v8883, %v8901
    %v8903 = vpop.f32.mrf.mxu0
    %v8904 = vadd.f32 %v8885, %v8903
    %8905 = vmatmul.bf16.gmra.mxu0 %v6808
    %v8906 = vpop.f32.mrf.mxu0
    %v8907 = vadd.f32 %v8888, %v8906
    %v8908 = vpop.f32.mrf.mxu0
    %v8909 = vadd.f32 %v8890, %v8908
    %8910 = vdwg.mxu0
    %8911 = vmatpush.bf16.msra.mxu0 %v8401
    %8912 = vmatpush.bf16.msra.mxu0 %v8398
    %8913 = vmatpush.bf16.msra.mxu0 %v8395
    %8914 = vmatpush.bf16.msra.mxu0 %v8392
    %8915 = vmatpush.bf16.msra.mxu0 %v8389
    %8916 = vmatpush.bf16.msra.mxu0 %v8386
    %8917 = vmatpush.bf16.msra.mxu0 %v8383
    %8918 = vmatpush.bf16.msra.mxu0 %v8380
    %8919 = vmatmul.bf16.gmra.mxu0 %v6797
    %v8920 = vpop.f32.mrf.mxu0
    %v8921 = vadd.f32 %v8902, %v8920
    %v8922 = vpop.f32.mrf.mxu0
    %v8923 = vadd.f32 %v8904, %v8922
    %8924 = vmatmul.bf16.gmra.mxu0 %v6809
    %v8925 = vpop.f32.mrf.mxu0
    %v8926 = vadd.f32 %v8907, %v8925
    %v8927 = vpop.f32.mrf.mxu0
    %v8928 = vadd.f32 %v8909, %v8927
    %8929 = vdwg.mxu0
    %8930 = vmatpush.bf16.msra.mxu0 %v8425
    %8931 = vmatpush.bf16.msra.mxu0 %v8422
    %8932 = vmatpush.bf16.msra.mxu0 %v8419
    %8933 = vmatpush.bf16.msra.mxu0 %v8416
    %8934 = vmatpush.bf16.msra.mxu0 %v8413
    %8935 = vmatpush.bf16.msra.mxu0 %v8410
    %8936 = vmatpush.bf16.msra.mxu0 %v8407
    %8937 = vmatpush.bf16.msra.mxu0 %v8404
    %8938 = vmatmul.bf16.gmra.mxu0 %v6798
    %v8939 = vpop.f32.mrf.mxu0
    %v8940 = vadd.f32 %v8921, %v8939
    %v8941 = vpop.f32.mrf.mxu0
    %v8942 = vadd.f32 %v8923, %v8941
    %8943 = vmatmul.bf16.gmra.mxu0 %v6810
    %v8944 = vpop.f32.mrf.mxu0
    %v8945 = vadd.f32 %v8926, %v8944
    %v8946 = vpop.f32.mrf.mxu0
    %v8947 = vadd.f32 %v8928, %v8946
    %8948 = vdwg.mxu0
    %8949 = vmatpush.bf16.msra.mxu0 %v8449
    %8950 = vmatpush.bf16.msra.mxu0 %v8446
    %8951 = vmatpush.bf16.msra.mxu0 %v8443
    %8952 = vmatpush.bf16.msra.mxu0 %v8440
    %8953 = vmatpush.bf16.msra.mxu0 %v8437
    %8954 = vmatpush.bf16.msra.mxu0 %v8434
    %8955 = vmatpush.bf16.msra.mxu0 %v8431
    %8956 = vmatpush.bf16.msra.mxu0 %v8428
    %8957 = vmatmul.bf16.gmra.mxu0 %v6799
    %v8958 = vpop.f32.mrf.mxu0
    %v8959 = vadd.f32 %v8940, %v8958
    %v8960 = vpop.f32.mrf.mxu0
    %v8961 = vadd.f32 %v8942, %v8960
    %8962 = vmatmul.bf16.gmra.mxu0 %v6811
    %v8963 = vpop.f32.mrf.mxu0
    %v8964 = vadd.f32 %v8945, %v8963
    %v8965 = vpop.f32.mrf.mxu0
    %v8966 = vadd.f32 %v8947, %v8965
    %8967 = vdwg.mxu0
    %8968 = vmatpush.bf16.msra.mxu0 %v8186
    %8969 = vmatpush.bf16.msra.mxu0 %v8183
    %8970 = vmatpush.bf16.msra.mxu0 %v8180
    %8971 = vmatpush.bf16.msra.mxu0 %v8177
    %8972 = vmatpush.bf16.msra.mxu0 %v8174
    %8973 = vmatpush.bf16.msra.mxu0 %v8171
    %8974 = vmatpush.bf16.msra.mxu0 %v8168
    %8975 = vmatpush.bf16.msra.mxu0 %v8165
    %8976 = vmatmul.bf16.gmra.mxu0 %v6788
    %v8977 = vpop.f32.mrf.mxu0
    %v8978 = vadd.f32 %v7199, %v8977
    %v8979 = vpop.f32.mrf.mxu0
    %v8980 = vadd.f32 %v7199, %v8979
    %8981 = vmatmul.bf16.gmra.mxu0 %v6800
    %v8982 = vpop.f32.mrf.mxu0
    %v8983 = vadd.f32 %v7199, %v8982
    %v8984 = vpop.f32.mrf.mxu0
    %v8985 = vadd.f32 %v7199, %v8984
    %8986 = vdwg.mxu0
    %8987 = vmatpush.bf16.msra.mxu0 %v8210
    %8988 = vmatpush.bf16.msra.mxu0 %v8207
    %8989 = vmatpush.bf16.msra.mxu0 %v8204
    %8990 = vmatpush.bf16.msra.mxu0 %v8201
    %8991 = vmatpush.bf16.msra.mxu0 %v8198
    %8992 = vmatpush.bf16.msra.mxu0 %v8195
    %8993 = vmatpush.bf16.msra.mxu0 %v8192
    %8994 = vmatpush.bf16.msra.mxu0 %v8189
    %8995 = vmatmul.bf16.gmra.mxu0 %v6789
    %v8996 = vpop.f32.mrf.mxu0
    %v8997 = vadd.f32 %v8978, %v8996
    %v8998 = vpop.f32.mrf.mxu0
    %v8999 = vadd.f32 %v8980, %v8998
    %9000 = vmatmul.bf16.gmra.mxu0 %v6801
    %v9001 = vpop.f32.mrf.mxu0
    %v9002 = vadd.f32 %v8983, %v9001
    %v9003 = vpop.f32.mrf.mxu0
    %v9004 = vadd.f32 %v8985, %v9003
    %9005 = vdwg.mxu0
    %9006 = vmatpush.bf16.msra.mxu0 %v8234
    %9007 = vmatpush.bf16.msra.mxu0 %v8231
    %9008 = vmatpush.bf16.msra.mxu0 %v8228
    %9009 = vmatpush.bf16.msra.mxu0 %v8225
    %9010 = vmatpush.bf16.msra.mxu0 %v8222
    %9011 = vmatpush.bf16.msra.mxu0 %v8219
    %9012 = vmatpush.bf16.msra.mxu0 %v8216
    %9013 = vmatpush.bf16.msra.mxu0 %v8213
    %9014 = vmatmul.bf16.gmra.mxu0 %v6790
    %v9015 = vpop.f32.mrf.mxu0
    %v9016 = vadd.f32 %v8997, %v9015
    %v9017 = vpop.f32.mrf.mxu0
    %v9018 = vadd.f32 %v8999, %v9017
    %9019 = vmatmul.bf16.gmra.mxu0 %v6802
    %v9020 = vpop.f32.mrf.mxu0
    %v9021 = vadd.f32 %v9002, %v9020
    %v9022 = vpop.f32.mrf.mxu0
    %v9023 = vadd.f32 %v9004, %v9022
    %9024 = vdwg.mxu0
    %9025 = vmatpush.bf16.msra.mxu0 %v8258
    %9026 = vmatpush.bf16.msra.mxu0 %v8255
    %9027 = vmatpush.bf16.msra.mxu0 %v8252
    %9028 = vmatpush.bf16.msra.mxu0 %v8249
    %9029 = vmatpush.bf16.msra.mxu0 %v8246
    %9030 = vmatpush.bf16.msra.mxu0 %v8243
    %9031 = vmatpush.bf16.msra.mxu0 %v8240
    %9032 = vmatpush.bf16.msra.mxu0 %v8237
    %9033 = vmatmul.bf16.gmra.mxu0 %v6791
    %v9034 = vpop.f32.mrf.mxu0
    %v9035 = vadd.f32 %v9016, %v9034
    %v9036 = vpop.f32.mrf.mxu0
    %v9037 = vadd.f32 %v9018, %v9036
    %9038 = vmatmul.bf16.gmra.mxu0 %v6803
    %v9039 = vpop.f32.mrf.mxu0
    %v9040 = vadd.f32 %v9021, %v9039
    %v9041 = vpop.f32.mrf.mxu0
    %v9042 = vadd.f32 %v9023, %v9041
    %9043 = vdwg.mxu0
    %9044 = vmatpush.bf16.msra.mxu0 %v8282
    %9045 = vmatpush.bf16.msra.mxu0 %v8279
    %9046 = vmatpush.bf16.msra.mxu0 %v8276
    %9047 = vmatpush.bf16.msra.mxu0 %v8273
    %9048 = vmatpush.bf16.msra.mxu0 %v8270
    %9049 = vmatpush.bf16.msra.mxu0 %v8267
    %9050 = vmatpush.bf16.msra.mxu0 %v8264
    %9051 = vmatpush.bf16.msra.mxu0 %v8261
    %9052 = vmatmul.bf16.gmra.mxu0 %v6792
    %v9053 = vpop.f32.mrf.mxu0
    %v9054 = vadd.f32 %v9035, %v9053
    %v9055 = vpop.f32.mrf.mxu0
    %v9056 = vadd.f32 %v9037, %v9055
    %9057 = vmatmul.bf16.gmra.mxu0 %v6804
    %v9058 = vpop.f32.mrf.mxu0
    %v9059 = vadd.f32 %v9040, %v9058
    %v9060 = vpop.f32.mrf.mxu0
    %v9061 = vadd.f32 %v9042, %v9060
    %9062 = vdwg.mxu0
    %9063 = vmatpush.bf16.msra.mxu0 %v8306
    %9064 = vmatpush.bf16.msra.mxu0 %v8303
    %9065 = vmatpush.bf16.msra.mxu0 %v8300
    %9066 = vmatpush.bf16.msra.mxu0 %v8297
    %9067 = vmatpush.bf16.msra.mxu0 %v8294
    %9068 = vmatpush.bf16.msra.mxu0 %v8291
    %9069 = vmatpush.bf16.msra.mxu0 %v8288
    %9070 = vmatpush.bf16.msra.mxu0 %v8285
    %9071 = vmatmul.bf16.gmra.mxu0 %v6793
    %v9072 = vpop.f32.mrf.mxu0
    %v9073 = vadd.f32 %v9054, %v9072
    %v9074 = vpop.f32.mrf.mxu0
    %v9075 = vadd.f32 %v9056, %v9074
    %9076 = vmatmul.bf16.gmra.mxu0 %v6805
    %v9077 = vpop.f32.mrf.mxu0
    %v9078 = vadd.f32 %v9059, %v9077
    %v9079 = vpop.f32.mrf.mxu0
    %v9080 = vadd.f32 %v9061, %v9079
    %9081 = vdwg.mxu0
    %9082 = vmatpush.bf16.msra.mxu0 %v8330
    %9083 = vmatpush.bf16.msra.mxu0 %v8327
    %9084 = vmatpush.bf16.msra.mxu0 %v8324
    %9085 = vmatpush.bf16.msra.mxu0 %v8321
    %9086 = vmatpush.bf16.msra.mxu0 %v8318
    %9087 = vmatpush.bf16.msra.mxu0 %v8315
    %9088 = vmatpush.bf16.msra.mxu0 %v8312
    %9089 = vmatpush.bf16.msra.mxu0 %v8309
    %9090 = vmatmul.bf16.gmra.mxu0 %v6794
    %v9091 = vpop.f32.mrf.mxu0
    %v9092 = vadd.f32 %v9073, %v9091
    %v9093 = vpop.f32.mrf.mxu0
    %v9094 = vadd.f32 %v9075, %v9093
    %9095 = vmatmul.bf16.gmra.mxu0 %v6806
    %v9096 = vpop.f32.mrf.mxu0
    %v9097 = vadd.f32 %v9078, %v9096
    %v9098 = vpop.f32.mrf.mxu0
    %v9099 = vadd.f32 %v9080, %v9098
    %9100 = vdwg.mxu0
    %9101 = vmatpush.bf16.msra.mxu0 %v8354
    %9102 = vmatpush.bf16.msra.mxu0 %v8351
    %9103 = vmatpush.bf16.msra.mxu0 %v8348
    %9104 = vmatpush.bf16.msra.mxu0 %v8345
    %9105 = vmatpush.bf16.msra.mxu0 %v8342
    %9106 = vmatpush.bf16.msra.mxu0 %v8339
    %9107 = vmatpush.bf16.msra.mxu0 %v8336
    %9108 = vmatpush.bf16.msra.mxu0 %v8333
    %9109 = vmatmul.bf16.gmra.mxu0 %v6795
    %v9110 = vpop.f32.mrf.mxu0
    %v9111 = vadd.f32 %v9092, %v9110
    %v9112 = vpop.f32.mrf.mxu0
    %v9113 = vadd.f32 %v9094, %v9112
    %9114 = vmatmul.bf16.gmra.mxu0 %v6807
    %v9115 = vpop.f32.mrf.mxu0
    %v9116 = vadd.f32 %v9097, %v9115
    %v9117 = vpop.f32.mrf.mxu0
    %v9118 = vadd.f32 %v9099, %v9117
    %9119 = vdwg.mxu0
    %9120 = vmatpush.bf16.msra.mxu0 %v8378
    %9121 = vmatpush.bf16.msra.mxu0 %v8375
    %9122 = vmatpush.bf16.msra.mxu0 %v8372
    %9123 = vmatpush.bf16.msra.mxu0 %v8369
    %9124 = vmatpush.bf16.msra.mxu0 %v8366
    %9125 = vmatpush.bf16.msra.mxu0 %v8363
    %9126 = vmatpush.bf16.msra.mxu0 %v8360
    %9127 = vmatpush.bf16.msra.mxu0 %v8357
    %9128 = vmatmul.bf16.gmra.mxu0 %v6796
    %v9129 = vpop.f32.mrf.mxu0
    %v9130 = vadd.f32 %v9111, %v9129
    %v9131 = vpop.f32.mrf.mxu0
    %v9132 = vadd.f32 %v9113, %v9131
    %9133 = vmatmul.bf16.gmra.mxu0 %v6808
    %v9134 = vpop.f32.mrf.mxu0
    %v9135 = vadd.f32 %v9116, %v9134
    %v9136 = vpop.f32.mrf.mxu0
    %v9137 = vadd.f32 %v9118, %v9136
    %9138 = vdwg.mxu0
    %9139 = vmatpush.bf16.msra.mxu0 %v8402
    %9140 = vmatpush.bf16.msra.mxu0 %v8399
    %9141 = vmatpush.bf16.msra.mxu0 %v8396
    %9142 = vmatpush.bf16.msra.mxu0 %v8393
    %9143 = vmatpush.bf16.msra.mxu0 %v8390
    %9144 = vmatpush.bf16.msra.mxu0 %v8387
    %9145 = vmatpush.bf16.msra.mxu0 %v8384
    %9146 = vmatpush.bf16.msra.mxu0 %v8381
    %9147 = vmatmul.bf16.gmra.mxu0 %v6797
    %v9148 = vpop.f32.mrf.mxu0
    %v9149 = vadd.f32 %v9130, %v9148
    %v9150 = vpop.f32.mrf.mxu0
    %v9151 = vadd.f32 %v9132, %v9150
    %9152 = vmatmul.bf16.gmra.mxu0 %v6809
    %v9153 = vpop.f32.mrf.mxu0
    %v9154 = vadd.f32 %v9135, %v9153
    %v9155 = vpop.f32.mrf.mxu0
    %v9156 = vadd.f32 %v9137, %v9155
    %9157 = vdwg.mxu0
    %9158 = vmatpush.bf16.msra.mxu0 %v8426
    %9159 = vmatpush.bf16.msra.mxu0 %v8423
    %9160 = vmatpush.bf16.msra.mxu0 %v8420
    %9161 = vmatpush.bf16.msra.mxu0 %v8417
    %9162 = vmatpush.bf16.msra.mxu0 %v8414
    %9163 = vmatpush.bf16.msra.mxu0 %v8411
    %9164 = vmatpush.bf16.msra.mxu0 %v8408
    %9165 = vmatpush.bf16.msra.mxu0 %v8405
    %9166 = vmatmul.bf16.gmra.mxu0 %v6798
    %v9167 = vpop.f32.mrf.mxu0
    %v9168 = vadd.f32 %v9149, %v9167
    %v9169 = vpop.f32.mrf.mxu0
    %v9170 = vadd.f32 %v9151, %v9169
    %9171 = vmatmul.bf16.gmra.mxu0 %v6810
    %v9172 = vpop.f32.mrf.mxu0
    %v9173 = vadd.f32 %v9154, %v9172
    %v9174 = vpop.f32.mrf.mxu0
    %v9175 = vadd.f32 %v9156, %v9174
    %9176 = vdwg.mxu0
    %9177 = vmatpush.bf16.msra.mxu0 %v8450
    %9178 = vmatpush.bf16.msra.mxu0 %v8447
    %9179 = vmatpush.bf16.msra.mxu0 %v8444
    %9180 = vmatpush.bf16.msra.mxu0 %v8441
    %9181 = vmatpush.bf16.msra.mxu0 %v8438
    %9182 = vmatpush.bf16.msra.mxu0 %v8435
    %9183 = vmatpush.bf16.msra.mxu0 %v8432
    %9184 = vmatpush.bf16.msra.mxu0 %v8429
    %9185 = vmatmul.bf16.gmra.mxu0 %v6799
    %v9186 = vpop.f32.mrf.mxu0
    %v9187 = vadd.f32 %v9168, %v9186
    %v9188 = vpop.f32.mrf.mxu0
    %v9189 = vadd.f32 %v9170, %v9188
    %9190 = vmatmul.bf16.gmra.mxu0 %v6811
    %v9191 = vpop.f32.mrf.mxu0
    %v9192 = vadd.f32 %v9173, %v9191
    %v9193 = vpop.f32.mrf.mxu0
    %v9194 = vadd.f32 %v9175, %v9193
    %9195 = vdwg.mxu0
    %9196 = vmatpush.bf16.msra.mxu0 %v8187
    %9197 = vmatpush.bf16.msra.mxu0 %v8184
    %9198 = vmatpush.bf16.msra.mxu0 %v8181
    %9199 = vmatpush.bf16.msra.mxu0 %v8178
    %9200 = vmatpush.bf16.msra.mxu0 %v8175
    %9201 = vmatpush.bf16.msra.mxu0 %v8172
    %9202 = vmatpush.bf16.msra.mxu0 %v8169
    %9203 = vmatpush.bf16.msra.mxu0 %v8166
    %9204 = vmatmul.bf16.gmra.mxu0 %v6788
    %v9205 = vpop.f32.mrf.mxu0
    %v9206 = vadd.f32 %v7200, %v9205
    %v9207 = vpop.f32.mrf.mxu0
    %v9208 = vadd.f32 %v7200, %v9207
    %9209 = vmatmul.bf16.gmra.mxu0 %v6800
    %v9210 = vpop.f32.mrf.mxu0
    %v9211 = vadd.f32 %v7200, %v9210
    %v9212 = vpop.f32.mrf.mxu0
    %v9213 = vadd.f32 %v7200, %v9212
    %9214 = vdwg.mxu0
    %9215 = vmatpush.bf16.msra.mxu0 %v8211
    %9216 = vmatpush.bf16.msra.mxu0 %v8208
    %9217 = vmatpush.bf16.msra.mxu0 %v8205
    %9218 = vmatpush.bf16.msra.mxu0 %v8202
    %9219 = vmatpush.bf16.msra.mxu0 %v8199
    %9220 = vmatpush.bf16.msra.mxu0 %v8196
    %9221 = vmatpush.bf16.msra.mxu0 %v8193
    %9222 = vmatpush.bf16.msra.mxu0 %v8190
    %9223 = vmatmul.bf16.gmra.mxu0 %v6789
    %v9224 = vpop.f32.mrf.mxu0
    %v9225 = vadd.f32 %v9206, %v9224
    %v9226 = vpop.f32.mrf.mxu0
    %v9227 = vadd.f32 %v9208, %v9226
    %9228 = vmatmul.bf16.gmra.mxu0 %v6801
    %v9229 = vpop.f32.mrf.mxu0
    %v9230 = vadd.f32 %v9211, %v9229
    %v9231 = vpop.f32.mrf.mxu0
    %v9232 = vadd.f32 %v9213, %v9231
    %9233 = vdwg.mxu0
    %9234 = vmatpush.bf16.msra.mxu0 %v8235
    %9235 = vmatpush.bf16.msra.mxu0 %v8232
    %9236 = vmatpush.bf16.msra.mxu0 %v8229
    %9237 = vmatpush.bf16.msra.mxu0 %v8226
    %9238 = vmatpush.bf16.msra.mxu0 %v8223
    %9239 = vmatpush.bf16.msra.mxu0 %v8220
    %9240 = vmatpush.bf16.msra.mxu0 %v8217
    %9241 = vmatpush.bf16.msra.mxu0 %v8214
    %9242 = vmatmul.bf16.gmra.mxu0 %v6790
    %v9243 = vpop.f32.mrf.mxu0
    %v9244 = vadd.f32 %v9225, %v9243
    %v9245 = vpop.f32.mrf.mxu0
    %v9246 = vadd.f32 %v9227, %v9245
    %9247 = vmatmul.bf16.gmra.mxu0 %v6802
    %v9248 = vpop.f32.mrf.mxu0
    %v9249 = vadd.f32 %v9230, %v9248
    %v9250 = vpop.f32.mrf.mxu0
    %v9251 = vadd.f32 %v9232, %v9250
    %9252 = vdwg.mxu0
    %9253 = vmatpush.bf16.msra.mxu0 %v8259
    %9254 = vmatpush.bf16.msra.mxu0 %v8256
    %9255 = vmatpush.bf16.msra.mxu0 %v8253
    %9256 = vmatpush.bf16.msra.mxu0 %v8250
    %9257 = vmatpush.bf16.msra.mxu0 %v8247
    %9258 = vmatpush.bf16.msra.mxu0 %v8244
    %9259 = vmatpush.bf16.msra.mxu0 %v8241
    %9260 = vmatpush.bf16.msra.mxu0 %v8238
    %9261 = vmatmul.bf16.gmra.mxu0 %v6791
    %v9262 = vpop.f32.mrf.mxu0
    %v9263 = vadd.f32 %v9244, %v9262
    %v9264 = vpop.f32.mrf.mxu0
    %v9265 = vadd.f32 %v9246, %v9264
    %9266 = vmatmul.bf16.gmra.mxu0 %v6803
    %v9267 = vpop.f32.mrf.mxu0
    %v9268 = vadd.f32 %v9249, %v9267
    %v9269 = vpop.f32.mrf.mxu0
    %v9270 = vadd.f32 %v9251, %v9269
    %9271 = vdwg.mxu0
    %9272 = vmatpush.bf16.msra.mxu0 %v8283
    %9273 = vmatpush.bf16.msra.mxu0 %v8280
    %9274 = vmatpush.bf16.msra.mxu0 %v8277
    %9275 = vmatpush.bf16.msra.mxu0 %v8274
    %9276 = vmatpush.bf16.msra.mxu0 %v8271
    %9277 = vmatpush.bf16.msra.mxu0 %v8268
    %9278 = vmatpush.bf16.msra.mxu0 %v8265
    %9279 = vmatpush.bf16.msra.mxu0 %v8262
    %9280 = vmatmul.bf16.gmra.mxu0 %v6792
    %v9281 = vpop.f32.mrf.mxu0
    %v9282 = vadd.f32 %v9263, %v9281
    %v9283 = vpop.f32.mrf.mxu0
    %v9284 = vadd.f32 %v9265, %v9283
    %9285 = vmatmul.bf16.gmra.mxu0 %v6804
    %v9286 = vpop.f32.mrf.mxu0
    %v9287 = vadd.f32 %v9268, %v9286
    %v9288 = vpop.f32.mrf.mxu0
    %v9289 = vadd.f32 %v9270, %v9288
    %9290 = vdwg.mxu0
    %9291 = vmatpush.bf16.msra.mxu0 %v8307
    %9292 = vmatpush.bf16.msra.mxu0 %v8304
    %9293 = vmatpush.bf16.msra.mxu0 %v8301
    %9294 = vmatpush.bf16.msra.mxu0 %v8298
    %9295 = vmatpush.bf16.msra.mxu0 %v8295
    %9296 = vmatpush.bf16.msra.mxu0 %v8292
    %9297 = vmatpush.bf16.msra.mxu0 %v8289
    %9298 = vmatpush.bf16.msra.mxu0 %v8286
    %9299 = vmatmul.bf16.gmra.mxu0 %v6793
    %v9300 = vpop.f32.mrf.mxu0
    %v9301 = vadd.f32 %v9282, %v9300
    %v9302 = vpop.f32.mrf.mxu0
    %v9303 = vadd.f32 %v9284, %v9302
    %9304 = vmatmul.bf16.gmra.mxu0 %v6805
    %v9305 = vpop.f32.mrf.mxu0
    %v9306 = vadd.f32 %v9287, %v9305
    %v9307 = vpop.f32.mrf.mxu0
    %v9308 = vadd.f32 %v9289, %v9307
    %9309 = vdwg.mxu0
    %9310 = vmatpush.bf16.msra.mxu0 %v8331
    %9311 = vmatpush.bf16.msra.mxu0 %v8328
    %9312 = vmatpush.bf16.msra.mxu0 %v8325
    %9313 = vmatpush.bf16.msra.mxu0 %v8322
    %9314 = vmatpush.bf16.msra.mxu0 %v8319
    %9315 = vmatpush.bf16.msra.mxu0 %v8316
    %9316 = vmatpush.bf16.msra.mxu0 %v8313
    %9317 = vmatpush.bf16.msra.mxu0 %v8310
    %9318 = vmatmul.bf16.gmra.mxu0 %v6794
    %v9319 = vpop.f32.mrf.mxu0
    %v9320 = vadd.f32 %v9301, %v9319
    %v9321 = vpop.f32.mrf.mxu0
    %v9322 = vadd.f32 %v9303, %v9321
    %9323 = vmatmul.bf16.gmra.mxu0 %v6806
    %v9324 = vpop.f32.mrf.mxu0
    %v9325 = vadd.f32 %v9306, %v9324
    %v9326 = vpop.f32.mrf.mxu0
    %v9327 = vadd.f32 %v9308, %v9326
    %9328 = vdwg.mxu0
    %9329 = vmatpush.bf16.msra.mxu0 %v8355
    %9330 = vmatpush.bf16.msra.mxu0 %v8352
    %9331 = vmatpush.bf16.msra.mxu0 %v8349
    %9332 = vmatpush.bf16.msra.mxu0 %v8346
    %9333 = vmatpush.bf16.msra.mxu0 %v8343
    %9334 = vmatpush.bf16.msra.mxu0 %v8340
    %9335 = vmatpush.bf16.msra.mxu0 %v8337
    %9336 = vmatpush.bf16.msra.mxu0 %v8334
    %9337 = vmatmul.bf16.gmra.mxu0 %v6795
    %v9338 = vpop.f32.mrf.mxu0
    %v9339 = vadd.f32 %v9320, %v9338
    %v9340 = vpop.f32.mrf.mxu0
    %v9341 = vadd.f32 %v9322, %v9340
    %9342 = vmatmul.bf16.gmra.mxu0 %v6807
    %v9343 = vpop.f32.mrf.mxu0
    %v9344 = vadd.f32 %v9325, %v9343
    %v9345 = vpop.f32.mrf.mxu0
    %v9346 = vadd.f32 %v9327, %v9345
    %9347 = vdwg.mxu0
    %9348 = vmatpush.bf16.msra.mxu0 %v8379
    %9349 = vmatpush.bf16.msra.mxu0 %v8376
    %9350 = vmatpush.bf16.msra.mxu0 %v8373
    %9351 = vmatpush.bf16.msra.mxu0 %v8370
    %9352 = vmatpush.bf16.msra.mxu0 %v8367
    %9353 = vmatpush.bf16.msra.mxu0 %v8364
    %9354 = vmatpush.bf16.msra.mxu0 %v8361
    %9355 = vmatpush.bf16.msra.mxu0 %v8358
    %9356 = vmatmul.bf16.gmra.mxu0 %v6796
    %v9357 = vpop.f32.mrf.mxu0
    %v9358 = vadd.f32 %v9339, %v9357
    %v9359 = vpop.f32.mrf.mxu0
    %v9360 = vadd.f32 %v9341, %v9359
    %9361 = vmatmul.bf16.gmra.mxu0 %v6808
    %v9362 = vpop.f32.mrf.mxu0
    %v9363 = vadd.f32 %v9344, %v9362
    %v9364 = vpop.f32.mrf.mxu0
    %v9365 = vadd.f32 %v9346, %v9364
    %9366 = vdwg.mxu0
    %9367 = vmatpush.bf16.msra.mxu0 %v8403
    %9368 = vmatpush.bf16.msra.mxu0 %v8400
    %9369 = vmatpush.bf16.msra.mxu0 %v8397
    %9370 = vmatpush.bf16.msra.mxu0 %v8394
    %9371 = vmatpush.bf16.msra.mxu0 %v8391
    %9372 = vmatpush.bf16.msra.mxu0 %v8388
    %9373 = vmatpush.bf16.msra.mxu0 %v8385
    %9374 = vmatpush.bf16.msra.mxu0 %v8382
    %9375 = vmatmul.bf16.gmra.mxu0 %v6797
    %v9376 = vpop.f32.mrf.mxu0
    %v9377 = vadd.f32 %v9358, %v9376
    %v9378 = vpop.f32.mrf.mxu0
    %v9379 = vadd.f32 %v9360, %v9378
    %9380 = vmatmul.bf16.gmra.mxu0 %v6809
    %v9381 = vpop.f32.mrf.mxu0
    %v9382 = vadd.f32 %v9363, %v9381
    %v9383 = vpop.f32.mrf.mxu0
    %v9384 = vadd.f32 %v9365, %v9383
    %9385 = vdwg.mxu0
    %9386 = vmatpush.bf16.msra.mxu0 %v8427
    %9387 = vmatpush.bf16.msra.mxu0 %v8424
    %9388 = vmatpush.bf16.msra.mxu0 %v8421
    %9389 = vmatpush.bf16.msra.mxu0 %v8418
    %9390 = vmatpush.bf16.msra.mxu0 %v8415
    %9391 = vmatpush.bf16.msra.mxu0 %v8412
    %9392 = vmatpush.bf16.msra.mxu0 %v8409
    %9393 = vmatpush.bf16.msra.mxu0 %v8406
    %9394 = vmatmul.bf16.gmra.mxu0 %v6798
    %v9395 = vpop.f32.mrf.mxu0
    %v9396 = vadd.f32 %v9377, %v9395
    %v9397 = vpop.f32.mrf.mxu0
    %v9398 = vadd.f32 %v9379, %v9397
    %9399 = vmatmul.bf16.gmra.mxu0 %v6810
    %v9400 = vpop.f32.mrf.mxu0
    %v9401 = vadd.f32 %v9382, %v9400
    %v9402 = vpop.f32.mrf.mxu0
    %v9403 = vadd.f32 %v9384, %v9402
    %9404 = vdwg.mxu0
    %9405 = vmatpush.bf16.msra.mxu0 %v8451
    %9406 = vmatpush.bf16.msra.mxu0 %v8448
    %9407 = vmatpush.bf16.msra.mxu0 %v8445
    %9408 = vmatpush.bf16.msra.mxu0 %v8442
    %9409 = vmatpush.bf16.msra.mxu0 %v8439
    %9410 = vmatpush.bf16.msra.mxu0 %v8436
    %9411 = vmatpush.bf16.msra.mxu0 %v8433
    %9412 = vmatpush.bf16.msra.mxu0 %v8430
    %9413 = vmatmul.bf16.gmra.mxu0 %v6799
    %v9414 = vpop.f32.mrf.mxu0
    %v9415 = vadd.f32 %v9396, %v9414
    %v9416 = vpop.f32.mrf.mxu0
    %v9417 = vadd.f32 %v9398, %v9416
    %9418 = vmatmul.bf16.gmra.mxu0 %v6811
    %v9419 = vpop.f32.mrf.mxu0
    %v9420 = vadd.f32 %v9401, %v9419
    %v9421 = vpop.f32.mrf.mxu0
    %v9422 = vadd.f32 %v9403, %v9421
    %9423 = vdwg.mxu0
    %v9424 = vadd.f32 %v4122, %v8959
    %v9425 = vadd.f32 %v4123, %v9187
    %v9426 = vadd.f32 %v4124, %v9415
    %v9427 = vadd.f32 %v4125, %v8961
    %v9428 = vadd.f32 %v4126, %v9189
    %v9429 = vadd.f32 %v4127, %v9417
    %v9430 = vadd.f32 %v4128, %v8964
    %v9431 = vadd.f32 %v4129, %v9192
    %v9432 = vadd.f32 %v4130, %v9420
    %v9433 = vadd.f32 %v4131, %v8966
    %v9434 = vadd.f32 %v4132, %v9194
    %v9435 = vadd.f32 %v4133, %v9422
    %9436 = vst [vmem:[#allocation23] sm:$0xff] %v9424
    %9437 = vst [vmem:[#allocation23 + $0x8] sm:$0xff] %v9425
    %9438 = vst [vmem:[#allocation23 + $0x10] sm:$0xff] %v9426
    %9439 = vst [vmem:[#allocation23 + $0x18] sm:$0xff] %v9427
    %9440 = vst [vmem:[#allocation23 + $0x20] sm:$0xff] %v9428
    %9441 = vst [vmem:[#allocation23 + $0x28] sm:$0xff] %v9429
    %9442 = vst [vmem:[#allocation23 + $0x30] sm:$0xff] %v9430
    %9443 = vst [vmem:[#allocation23 + $0x38] sm:$0xff] %v9431
    %9444 = vst [vmem:[#allocation23 + $0x40] sm:$0xff] %v9432
    %9445 = vst [vmem:[#allocation23 + $0x48] sm:$0xff] %v9433
    %9446 = vst [vmem:[#allocation23 + $0x50] sm:$0xff] %v9434
    %9447 = vst [vmem:[#allocation23 + $0x58] sm:$0xff] %v9435
    // Predicated region
    $region98: #{block_forward.1} parent=1 // pred_check
      _
    $region99: #{block_forward.1} parent=1 // pred_check_branch
      %9449 = sbr.rel (0) target = $region101
    $region100: #{block_forward.1} parent=1 // pred_region
      %9451 = vsyncadd [#allocation5], 0
      %s9452 = sshll.u32 [#allocation23], 4
      %s9453 = int_to_ptr.vmem [resolvable:$true] %s9452
      %s9454 = sshll.u32 %s12, 4
      %s9455 = int_to_ptr.hbm [resolvable:$true] %s9454
      %9460 = dma.vmem_to_hbm [thread:$0]  %s9453, 1536, %s9455, [#allocation5], 384, 384, 24
    $region101: #{block_forward.1} parent=1 // pred_fallthru
      _
    // Predicated region
    $region102: #{block_forward.1} parent=1 // pred_check
      _
    $region103: #{block_forward.1} parent=1 // pred_check_branch
      %9462 = sbr.rel (0) target = $region105
    $region104: #{block_forward.1} parent=1 // pred_region
      %9464 = dma.done [#allocation5], 1536
    $region105: #{block_forward.1} parent=1 // pred_fallthru
      _
    %9465 = vsyncpa [#allocation4], 1
    %9466 = vsyncpa [#allocation7], 1
    %9467 = vsyncpa [#allocation10], 1
    %9468 = vsyncpa [#allocation13], 1
    %9469 = vsyncpa [#allocation16], 1
    %9470 = vsyncpa [#allocation19], 1
    %9471 = vsyncpa [#allocation22], 1
    %9472 = vsyncpa [#allocation5], 1

</llo_original>
